<compile_context>
chip_gen: v7x
topology: tpu7x:2x2x1
jax: 0.10.0
libtpu: 0.0.40
codegen_flags: <defaults>
</compile_context>

<pallas_src>
import numpy as np
import jax
import jax.numpy as jnp
from jax import lax
from jax.experimental import pallas as pl
from jax.experimental.pallas import tpu as pltpu

NI = 8  # images per grid step (batch tile)


# =============================================================================
# Fused kernel: one grid step = NI images end-to-end.
# =============================================================================
def _fused_kernel(x_ref, w1_ref, b1_ref, w2_ref, b2_ref,
                  wfc_ref, bfc_ref, wh1_ref, bh1_ref,
                  wh2_ref, bh2_ref, wc_ref, bc_ref,
                  zl_ref, zh_ref, lg_ref):
    f32 = jnp.float32
    x = x_ref[0]                                     # (256, 96) conv1 LHS rows
    w1 = w1_ref[...]                                 # (96, 1024) banded conv1 matrix

    # ---- conv1 (1->32, 3x3, pad=1) + ReLU + MaxPool2d(2), as 2 MXU matmuls ----
    o_e = jnp.dot(x[0:128, :], w1, preferred_element_type=f32)    # even conv1 rows
    o_o = jnp.dot(x[128:256, :], w1, preferred_element_type=f32)  # odd  conv1 rows
    m = jnp.maximum(o_e, o_o)                        # pool over y parity   (128, 1024)
    m = jnp.maximum(m[:, 0:512], m[:, 512:1024])     # pool over x parity   (128, 512)
    rid = lax.broadcasted_iota(jnp.int32, (128, 512), 0)
    valid = (rid >= 8) & (rid < 120)                 # rows j=0 / j=15 = conv2 zero halo
    p = jnp.where(valid, jnp.maximum(m + b1_ref[...], 0.0), 0.0)  # (128, 512)

    # ---- conv2 (32->64, 3x3, pad=1) + ReLU + MaxPool2d(2), as 6 MXU matmuls ----
    # p rows are ordered (t, i) with even pooled rows first (PE) then odd (PO); the
    # "+1 pooled row" operands are just aligned 8-row-shifted slices of the same block.
    pz = jnp.concatenate([p, jnp.zeros((8, 512), f32)], axis=0)   # (136, 512)
    pe, po = pz[0:64, :], pz[64:128, :]
    pes, pos = pz[8:72, :], pz[72:136, :]
    w20, w21, w22 = w2_ref[0], w2_ref[1], w2_ref[2]  # (512, 1024) each (banded)
    out_e = (jnp.dot(pe, w20, preferred_element_type=f32)
             + jnp.dot(po, w21, preferred_element_type=f32)
             + jnp.dot(pes, w22, preferred_element_type=f32))     # even conv2 rows
    out_o = (jnp.dot(po, w20, preferred_element_type=f32)
             + jnp.dot(pes, w21, preferred_element_type=f32)
             + jnp.dot(pos, w22, preferred_element_type=f32))     # odd  conv2 rows
    n = jnp.maximum(out_e, out_o)                    # pool over y parity   (64, 1024)
    n = jnp.maximum(n[:, 0:512], n[:, 512:1024])     # pool over x parity   (64, 512)
    q = jnp.maximum(n + b2_ref[...], 0.0)            # pooled conv2 features

    # ---- Linear(64*7*7, 32): sum over the 7 valid pooled rows (t=7 block is junk) ----
    acc = jnp.zeros((NI, 32), f32)
    for t in range(7):
        acc = acc + jnp.dot(q[8 * t:8 * t + 8, :], wfc_ref[t],
                            preferred_element_type=f32)
    zl = acc + bfc_ref[...]                          # (NI, 32)  == z_L

    # ---- HighLevelEncoder + Classifier ----
    h = jnp.maximum(jnp.dot(zl, wh1_ref[...], preferred_element_type=f32)
                    + bh1_ref[...], 0.0)
    zh = jnp.maximum(jnp.dot(h, wh2_ref[...], preferred_element_type=f32)
                     + bh2_ref[...], 0.0)            # (NI, 128) == z_H
    lg = jnp.dot(zh, wc_ref[...], preferred_element_type=f32) + bc_ref[...]

    zl_ref[...] = zl
    zh_ref[...] = zh
    lg_ref[...] = lg


def _forward_padded(xblk, kp):
    n_steps = xblk.shape[0]
    const2 = lambda s: (0, 0)
    const3 = lambda s: (0, 0, 0)
    out_shape = (jax.ShapeDtypeStruct((n_steps * NI, 32), jnp.float32),
                 jax.ShapeDtypeStruct((n_steps * NI, 128), jnp.float32),
                 jax.ShapeDtypeStruct((n_steps * NI, 10), jnp.float32))
    grid_spec = pltpu.PrefetchScalarGridSpec(
        num_scalar_prefetch=0,
        grid=(n_steps,),
        in_specs=[
            pl.BlockSpec((1, 256, 96), lambda s: (s, 0, 0)),   # conv1 LHS tile
            pl.BlockSpec((96, 1024), const2),                  # w1c   (resident)
            pl.BlockSpec((1, 512), const2),                    # b1
            pl.BlockSpec((3, 512, 1024), const3),              # w2c   (resident)
            pl.BlockSpec((1, 512), const2),                    # b2
            pl.BlockSpec((7, 512, 32), const3),                # wfc   (resident)
            pl.BlockSpec((1, 32), const2),                     # bfc
            pl.BlockSpec((32, 128), const2),                   # wh1
            pl.BlockSpec((1, 128), const2),                    # bh1
            pl.BlockSpec((128, 128), const2),                  # wh2
            pl.BlockSpec((1, 128), const2),                    # bh2
            pl.BlockSpec((128, 10), const2),                   # wc
            pl.BlockSpec((1, 10), const2),                     # bc
        ],
        out_specs=(pl.BlockSpec((NI, 32), lambda s: (s, 0)),
                   pl.BlockSpec((NI, 128), lambda s: (s, 0)),
                   pl.BlockSpec((NI, 10), lambda s: (s, 0))),
    )
    return pl.pallas_call(
        _fused_kernel,
        out_shape=out_shape,
        grid_spec=grid_spec,
        compiler_params=pltpu.CompilerParams(
            dimension_semantics=("parallel",),
            vmem_limit_bytes=40 * 1024 * 1024),   # ~15 MB weights (2x buffered) + values
    )(xblk, kp["w1c"], kp["b1"], kp["w2c"], kp["b2"],
      kp["wfc"], kp["bfc"], kp["wh1"], kp["bh1"],
      kp["wh2"], kp["bh2"], kp["wc"], kp["bc"])


# =============================================================================
# Wrapper-side input construction: per image, 32 rows of 3 vertically adjacent
# zero-padded image rows (96 lanes), ordered so the conv1 matmul output comes out
# already grouped for pooling and for conv2's aligned row shifts.
# HBM cost: 12.3 KB/image (vs ~64 KB/image of intermediates in the old version).
# =============================================================================
def _build_conv1_lhs(img, n_pad):
    B = img.shape[0]
    bp = B + n_pad
    imgp = jnp.zeros((bp, 30, 32), jnp.float32)
    imgp = imgp.at[:B, 1:29, 1:29].set(img.astype(jnp.float32))
    # w3[b, y] = [imgp[y], imgp[y+1], imgp[y+2]]  (the 3 rows conv1 output row y reads)
    w3 = jnp.concatenate([imgp[:, 0:28], imgp[:, 1:29], imgp[:, 2:30]], axis=-1)
    w3 = jnp.pad(w3, ((0, 0), (2, 2), (0, 0)))       # (bp, 32, 96); rows 0,1,30,31 = 0
    # index 4t + 2*jpar + py  <->  conv1 row y = 2*(j-1)+py, padded pooled row j = 2t+jpar
    xf = jnp.transpose(w3.reshape(bp, 8, 2, 2, 96), (0, 3, 2, 1, 4))
    xs = jnp.transpose(xf.reshape(bp // NI, NI, 2, 2, 8, 96), (0, 2, 3, 4, 1, 5))
    return xs.reshape(bp // NI, 256, 96)


@jax.jit
def causal_rep_forward(x, packed):
    """x: (B, 1, 28, 28) or (B, 28, 28).  Returns (z_L, z_H, logits)."""
    if x.ndim == 3:
        x = x[:, None]
    img = x[:, 0].astype(jnp.float32)
    B = img.shape[0]
    n_pad = (-B) % NI
    xblk = _build_conv1_lhs(img, n_pad)
    zl, zh, lg = _forward_padded(xblk, packed)
    return zl[:B], zh[:B], lg[:B]


# =============================================================================
# Parameters: logical PyTorch-layout weights + packing into the kernel layouts.
# =============================================================================
def init_params(key):
    ks = jax.random.split(key, 12)
    s = 0.05

    def w(k, shape):
        return (s * jax.random.normal(k, shape)).astype(jnp.float32)

    return dict(
        w_conv1=w(ks[0], (32, 1, 3, 3)), b_conv1=w(ks[1], (32,)),
        w_conv2=w(ks[2], (64, 32, 3, 3)), b_conv2=w(ks[3], (64,)),
        w_fc=w(ks[4], (32, 3136)), b_fc=w(ks[5], (32,)),
        w_h1=w(ks[6], (128, 32)), b_h1=w(ks[7], (128,)),
        w_h2=w(ks[8], (128, 128)), b_h2=w(ks[9], (128,)),
        w_cls=w(ks[10], (10, 128)), b_cls=w(ks[11], (10,)),
    )


def pack_params(params):
    w1 = np.asarray(params["w_conv1"])
    b1 = np.asarray(params["b_conv1"])
    w2 = np.asarray(params["w_conv2"])
    b2 = np.asarray(params["b_conv2"])
    wfc = np.asarray(params["w_fc"])

    # conv1 banded matrix: row = dy*32 + k (padded image column), col = px*512 + xq*32 + c
    # (px = output-x parity, xq = pooled x in 0..13, columns with xq >= 14 stay zero).
    w1c = np.zeros((96, 2, 16, 32), np.float32)
    for dy in range(3):
        for dx in range(3):
            for px in range(2):
                for xq in range(14):
                    k = 2 * xq + px + dx
                    w1c[dy * 32 + k, px, xq, :] += w1[:, 0, dy, dx]
    w1c = w1c.reshape(96, 1024)

    # conv2 banded matrices (one per dy): row = xs*32 + cin (xs = pooled-conv1 x),
    # col = px*512 + xq*64 + cout (x2 = 2*xq + px).  Rows xs>=14 and cols x2>=14 stay
    # zero -- this is what neutralises the conv1 junk lane groups.
    w2c = np.zeros((3, 16, 32, 2, 8, 64), np.float32)
    for dy in range(3):
        for dx in range(3):
            for px in range(2):
                for xq in range(8):
                    x2 = 2 * xq + px
                    xs = x2 + dx - 1
                    if x2 > 13 or xs < 0 or xs > 13:
                        continue
                    w2c[dy, xs, :, px, xq, :] += w2[:, :, dy, dx].T
    w2c = w2c.reshape(3, 512, 1024)

    # fc: PyTorch nn.Flatten of (64, 7, 7) is (c, y, x)-major; permute to our (y, x, c)
    # layout and zero the junk x2'=7 lane group (and implicitly the junk t=7 row block,
    # which the kernel simply never sums).
    wfc_r = np.transpose(wfc.reshape(32, 64, 7, 7), (2, 3, 1, 0))   # (y, x, c, o)
    wfc_k = np.zeros((7, 8, 64, 32), np.float32)
    wfc_k[:, 0:7] = wfc_r
    wfc_k = wfc_k.reshape(7, 512, 32)

    return dict(
        w1c=jnp.asarray(w1c),
        b1=jnp.asarray(np.tile(b1, 16).reshape(1, 512)),
        w2c=jnp.asarray(w2c),
        b2=jnp.asarray(np.tile(b2, 8).reshape(1, 512)),
        wfc=jnp.asarray(wfc_k),
        bfc=jnp.asarray(np.asarray(params["b_fc"]).reshape(1, 32)),
        wh1=jnp.asarray(np.asarray(params["w_h1"]).T),
        bh1=jnp.asarray(np.asarray(params["b_h1"]).reshape(1, 128)),
        wh2=jnp.asarray(np.asarray(params["w_h2"]).T),
        bh2=jnp.asarray(np.asarray(params["b_h2"]).reshape(1, 128)),
        wc=jnp.asarray(np.asarray(params["w_cls"]).T),
        bc=jnp.asarray(np.asarray(params["b_cls"]).reshape(1, 10)),
    )


# =============================================================================
# Pure-JAX reference (mirrors the PyTorch module) for a correctness check.
# =============================================================================
def reference_forward(x, params):
    if x.ndim == 3:
        x = x[:, None]
    x = x.astype(jnp.float32)
    dn = ("NCHW", "OIHW", "NCHW")
    y = lax.conv_general_dilated(x, params["w_conv1"], (1, 1), ((1, 1), (1, 1)),
                                 dimension_numbers=dn)
    y = jnp.maximum(y + params["b_conv1"].reshape(1, 32, 1, 1), 0.0)
    y = lax.reduce_window(y, -jnp.inf, lax.max, (1, 1, 2, 2), (1, 1, 2, 2), "VALID")
    y = lax.conv_general_dilated(y, params["w_conv2"], (1, 1), ((1, 1), (1, 1)),
                                 dimension_numbers=dn)
    y = jnp.maximum(y + params["b_conv2"].reshape(1, 64, 1, 1), 0.0)
    y = lax.reduce_window(y, -jnp.inf, lax.max, (1, 1, 2, 2), (1, 1, 2, 2), "VALID")
    f = y.reshape(y.shape[0], -1)
    zl = f @ params["w_fc"].T + params["b_fc"]
    h = jnp.maximum(zl @ params["w_h1"].T + params["b_h1"], 0.0)
    zh = jnp.maximum(h @ params["w_h2"].T + params["b_h2"], 0.0)
    lg = zh @ params["w_cls"].T + params["b_cls"]
    return zl, zh, lg


# =============================================================================
if __name__ == "__main__":
    key = jax.random.PRNGKey(0)
    k_x, k_p = jax.random.split(key)

    # 28x28 spatial size is required by the Linear(64*7*7, 32) layer in the module.
    x = jax.random.normal(k_x, (2, 1, 28, 28), dtype=jnp.float32)
    params = init_params(k_p)
    packed = pack_params(params)

    z_L, z_H, logits = causal_rep_forward(x, packed)
    jax.block_until_ready((z_L, z_H, logits))

    assert z_L.shape == (2, 32)
    assert z_H.shape == (2, 128)
    assert logits.shape == (2, 10)

    r_L, r_H, r_lg = reference_forward(x, params)
    np.testing.assert_allclose(np.asarray(z_L), np.asarray(r_L), rtol=2e-2, atol=2e-2)
    np.testing.assert_allclose(np.asarray(z_H), np.asarray(r_H), rtol=2e-2, atol=2e-2)
    np.testing.assert_allclose(np.asarray(logits), np.asarray(r_lg), rtol=2e-2, atol=2e-2)

    print("KERNEL_OK")
</pallas_src>

<mosaic_0001>
module attributes {stable_mosaic.version = 11 : i64} {
  func.func @_fused_kernel(%arg0: i32, %arg1: memref<1x256x96xf32, #tpu.memory_space<vmem>>, %arg2: memref<96x1024xf32, #tpu.memory_space<vmem>>, %arg3: memref<1x512xf32, #tpu.memory_space<vmem>>, %arg4: memref<3x512x1024xf32, #tpu.memory_space<vmem>>, %arg5: memref<1x512xf32, #tpu.memory_space<vmem>>, %arg6: memref<7x512x32xf32, #tpu.memory_space<vmem>>, %arg7: memref<1x32xf32, #tpu.memory_space<vmem>>, %arg8: memref<32x128xf32, #tpu.memory_space<vmem>>, %arg9: memref<1x128xf32, #tpu.memory_space<vmem>>, %arg10: memref<128x128xf32, #tpu.memory_space<vmem>>, %arg11: memref<1x128xf32, #tpu.memory_space<vmem>>, %arg12: memref<128x10xf32, #tpu.memory_space<vmem>>, %arg13: memref<1x10xf32, #tpu.memory_space<vmem>>, %arg14: memref<8x32xf32, #tpu.memory_space<vmem>>, %arg15: memref<8x128xf32, #tpu.memory_space<vmem>>, %arg16: memref<8x10xf32, #tpu.memory_space<vmem>>) attributes {dimension_semantics = [#tpu.dimension_semantics<parallel>], iteration_bounds = array<i64: 1>, scalar_prefetch = 0 : i64, scratch_operands = 0 : i64, tpu.core_type = #tpu.core_type<tc>, window_params = [{transform_indices = @transform_0, window_bounds = array<i64: 1, 256, 96>}, {pipeline_mode = #tpu.pipeline_mode<synchronous>, transform_indices = @transform_1, window_bounds = array<i64: 96, 1024>}, {pipeline_mode = #tpu.pipeline_mode<synchronous>, transform_indices = @transform_2, window_bounds = array<i64: 1, 512>}, {pipeline_mode = #tpu.pipeline_mode<synchronous>, transform_indices = @transform_3, window_bounds = array<i64: 3, 512, 1024>}, {pipeline_mode = #tpu.pipeline_mode<synchronous>, transform_indices = @transform_4, window_bounds = array<i64: 1, 512>}, {pipeline_mode = #tpu.pipeline_mode<synchronous>, transform_indices = @transform_5, window_bounds = array<i64: 7, 512, 32>}, {pipeline_mode = #tpu.pipeline_mode<synchronous>, transform_indices = @transform_6, window_bounds = array<i64: 1, 32>}, {pipeline_mode = #tpu.pipeline_mode<synchronous>, transform_indices = @transform_7, window_bounds = array<i64: 32, 128>}, {pipeline_mode = #tpu.pipeline_mode<synchronous>, transform_indices = @transform_8, window_bounds = array<i64: 1, 128>}, {pipeline_mode = #tpu.pipeline_mode<synchronous>, transform_indices = @transform_9, window_bounds = array<i64: 128, 128>}, {pipeline_mode = #tpu.pipeline_mode<synchronous>, transform_indices = @transform_10, window_bounds = array<i64: 1, 128>}, {pipeline_mode = #tpu.pipeline_mode<synchronous>, transform_indices = @transform_11, window_bounds = array<i64: 128, 10>}, {pipeline_mode = #tpu.pipeline_mode<synchronous>, transform_indices = @transform_12, window_bounds = array<i64: 1, 10>}, {transform_indices = @transform_13, window_bounds = array<i64: 8, 32>}, {transform_indices = @transform_14, window_bounds = array<i64: 8, 128>}, {transform_indices = @transform_15, window_bounds = array<i64: 8, 10>}]} {
    %c0 = arith.constant 0 : index
    %c0_0 = arith.constant 0 : index
    %c0_1 = arith.constant 0 : index
    %0 = vector.load %arg1[%c0, %c0_0, %c0_1] : memref<1x256x96xf32, #tpu.memory_space<vmem>>, vector<1x256x96xf32>
    %1 = vector.shape_cast %0 : vector<1x256x96xf32> to vector<256x96xf32>
    %c0_2 = arith.constant 0 : index
    %c0_3 = arith.constant 0 : index
    %2 = vector.load %arg2[%c0_2, %c0_3] : memref<96x1024xf32, #tpu.memory_space<vmem>>, vector<96x1024xf32>
    %3 = vector.extract_strided_slice %1 {offsets = [0, 0], sizes = [128, 96], strides = [1, 1]} : vector<256x96xf32> to vector<128x96xf32>
    %cst = arith.constant dense<0.000000e+00> : vector<128x1024xf32>
    %4 = tpu.matmul %3, %2, %cst {dimension_numbers = #tpu.dot_dimension_numbers<[1], [0], [0], [1], [0, 0, 1, 1], [], []>} : vector<128x96xf32>, vector<96x1024xf32>, vector<128x1024xf32> -> vector<128x1024xf32>
    %5 = vector.extract_strided_slice %1 {offsets = [128, 0], sizes = [128, 96], strides = [1, 1]} : vector<256x96xf32> to vector<128x96xf32>
    %cst_4 = arith.constant dense<0.000000e+00> : vector<128x1024xf32>
    %6 = tpu.matmul %5, %2, %cst_4 {dimension_numbers = #tpu.dot_dimension_numbers<[1], [0], [0], [1], [0, 0, 1, 1], [], []>} : vector<128x96xf32>, vector<96x1024xf32>, vector<128x1024xf32> -> vector<128x1024xf32>
    %7 = arith.maximumf %4, %6 : vector<128x1024xf32>
    %8 = vector.extract_strided_slice %7 {offsets = [0, 0], sizes = [128, 512], strides = [1, 1]} : vector<128x1024xf32> to vector<128x512xf32>
    %9 = vector.extract_strided_slice %7 {offsets = [0, 512], sizes = [128, 512], strides = [1, 1]} : vector<128x1024xf32> to vector<128x512xf32>
    %10 = arith.maximumf %8, %9 : vector<128x512xf32>
    %11 = tpu.iota {dimensions = array<i32: 0>} : vector<128x512xi32>
    %c8_i32 = arith.constant 8 : i32
    %12 = vector.broadcast %c8_i32 : i32 to vector<128x512xi32>
    %13 = arith.cmpi sge, %11, %12 : vector<128x512xi32>
    %c120_i32 = arith.constant 120 : i32
    %14 = vector.broadcast %c120_i32 : i32 to vector<128x512xi32>
    %15 = arith.cmpi slt, %11, %14 : vector<128x512xi32>
    %16 = arith.andi %13, %15 : vector<128x512xi1>
    %c0_5 = arith.constant 0 : index
    %c0_6 = arith.constant 0 : index
    %17 = vector.load %arg3[%c0_5, %c0_6] : memref<1x512xf32, #tpu.memory_space<vmem>>, vector<1x512xf32>
    %18 = vector.broadcast %17 : vector<1x512xf32> to vector<128x512xf32>
    %19 = arith.addf %10, %18 : vector<128x512xf32>
    %cst_7 = arith.constant 0.000000e+00 : f32
    %20 = vector.broadcast %cst_7 : f32 to vector<128x512xf32>
    %21 = arith.maximumf %19, %20 : vector<128x512xf32>
    %cst_8 = arith.constant 0.000000e+00 : f32
    %22 = vector.broadcast %cst_8 : f32 to vector<128x512xf32>
    %23 = arith.select %16, %21, %22 : vector<128x512xi1>, vector<128x512xf32>
    %cst_9 = arith.constant 0.000000e+00 : f32
    %24 = vector.broadcast %cst_9 : f32 to vector<8x512xf32>
    %25 = tpu.concatenate %23, %24 in 0 : vector<128x512xf32>, vector<8x512xf32> -> vector<136x512xf32>
    %26 = vector.extract_strided_slice %25 {offsets = [0, 0], sizes = [64, 512], strides = [1, 1]} : vector<136x512xf32> to vector<64x512xf32>
    %27 = vector.extract_strided_slice %25 {offsets = [64, 0], sizes = [64, 512], strides = [1, 1]} : vector<136x512xf32> to vector<64x512xf32>
    %28 = vector.extract_strided_slice %25 {offsets = [8, 0], sizes = [64, 512], strides = [1, 1]} : vector<136x512xf32> to vector<64x512xf32>
    %29 = vector.extract_strided_slice %25 {offsets = [72, 0], sizes = [64, 512], strides = [1, 1]} : vector<136x512xf32> to vector<64x512xf32>
    %c0_10 = arith.constant 0 : index
    %c0_11 = arith.constant 0 : index
    %c0_12 = arith.constant 0 : index
    %30 = vector.load %arg4[%c0_10, %c0_11, %c0_12] : memref<3x512x1024xf32, #tpu.memory_space<vmem>>, vector<1x512x1024xf32>
    %31 = vector.shape_cast %30 : vector<1x512x1024xf32> to vector<512x1024xf32>
    %c1 = arith.constant 1 : index
    %c0_13 = arith.constant 0 : index
    %c0_14 = arith.constant 0 : index
    %32 = vector.load %arg4[%c1, %c0_13, %c0_14] : memref<3x512x1024xf32, #tpu.memory_space<vmem>>, vector<1x512x1024xf32>
    %33 = vector.shape_cast %32 : vector<1x512x1024xf32> to vector<512x1024xf32>
    %c2 = arith.constant 2 : index
    %c0_15 = arith.constant 0 : index
    %c0_16 = arith.constant 0 : index
    %34 = vector.load %arg4[%c2, %c0_15, %c0_16] : memref<3x512x1024xf32, #tpu.memory_space<vmem>>, vector<1x512x1024xf32>
    %35 = vector.shape_cast %34 : vector<1x512x1024xf32> to vector<512x1024xf32>
    %cst_17 = arith.constant dense<0.000000e+00> : vector<64x1024xf32>
    %36 = tpu.matmul %26, %31, %cst_17 {dimension_numbers = #tpu.dot_dimension_numbers<[1], [0], [0], [1], [0, 0, 1, 1], [], []>} : vector<64x512xf32>, vector<512x1024xf32>, vector<64x1024xf32> -> vector<64x1024xf32>
    %cst_18 = arith.constant dense<0.000000e+00> : vector<64x1024xf32>
    %37 = tpu.matmul %27, %33, %cst_18 {dimension_numbers = #tpu.dot_dimension_numbers<[1], [0], [0], [1], [0, 0, 1, 1], [], []>} : vector<64x512xf32>, vector<512x1024xf32>, vector<64x1024xf32> -> vector<64x1024xf32>
    %38 = arith.addf %36, %37 : vector<64x1024xf32>
    %cst_19 = arith.constant dense<0.000000e+00> : vector<64x1024xf32>
    %39 = tpu.matmul %28, %35, %cst_19 {dimension_numbers = #tpu.dot_dimension_numbers<[1], [0], [0], [1], [0, 0, 1, 1], [], []>} : vector<64x512xf32>, vector<512x1024xf32>, vector<64x1024xf32> -> vector<64x1024xf32>
    %40 = arith.addf %38, %39 : vector<64x1024xf32>
    %cst_20 = arith.constant dense<0.000000e+00> : vector<64x1024xf32>
    %41 = tpu.matmul %27, %31, %cst_20 {dimension_numbers = #tpu.dot_dimension_numbers<[1], [0], [0], [1], [0, 0, 1, 1], [], []>} : vector<64x512xf32>, vector<512x1024xf32>, vector<64x1024xf32> -> vector<64x1024xf32>
    %cst_21 = arith.constant dense<0.000000e+00> : vector<64x1024xf32>
    %42 = tpu.matmul %28, %33, %cst_21 {dimension_numbers = #tpu.dot_dimension_numbers<[1], [0], [0], [1], [0, 0, 1, 1], [], []>} : vector<64x512xf32>, vector<512x1024xf32>, vector<64x1024xf32> -> vector<64x1024xf32>
    %43 = arith.addf %41, %42 : vector<64x1024xf32>
    %cst_22 = arith.constant dense<0.000000e+00> : vector<64x1024xf32>
    %44 = tpu.matmul %29, %35, %cst_22 {dimension_numbers = #tpu.dot_dimension_numbers<[1], [0], [0], [1], [0, 0, 1, 1], [], []>} : vector<64x512xf32>, vector<512x1024xf32>, vector<64x1024xf32> -> vector<64x1024xf32>
    %45 = arith.addf %43, %44 : vector<64x1024xf32>
    %46 = arith.maximumf %40, %45 : vector<64x1024xf32>
    %47 = vector.extract_strided_slice %46 {offsets = [0, 0], sizes = [64, 512], strides = [1, 1]} : vector<64x1024xf32> to vector<64x512xf32>
    %48 = vector.extract_strided_slice %46 {offsets = [0, 512], sizes = [64, 512], strides = [1, 1]} : vector<64x1024xf32> to vector<64x512xf32>
    %49 = arith.maximumf %47, %48 : vector<64x512xf32>
    %c0_23 = arith.constant 0 : index
    %c0_24 = arith.constant 0 : index
    %50 = vector.load %arg5[%c0_23, %c0_24] : memref<1x512xf32, #tpu.memory_space<vmem>>, vector<1x512xf32>
    %51 = vector.broadcast %50 : vector<1x512xf32> to vector<64x512xf32>
    %52 = arith.addf %49, %51 : vector<64x512xf32>
    %cst_25 = arith.constant 0.000000e+00 : f32
    %53 = vector.broadcast %cst_25 : f32 to vector<64x512xf32>
    %54 = arith.maximumf %52, %53 : vector<64x512xf32>
    %cst_26 = arith.constant 0.000000e+00 : f32
    %55 = vector.broadcast %cst_26 : f32 to vector<8x32xf32>
    %56 = vector.extract_strided_slice %54 {offsets = [0, 0], sizes = [8, 512], strides = [1, 1]} : vector<64x512xf32> to vector<8x512xf32>
    %c0_27 = arith.constant 0 : index
    %c0_28 = arith.constant 0 : index
    %c0_29 = arith.constant 0 : index
    %57 = vector.load %arg6[%c0_27, %c0_28, %c0_29] : memref<7x512x32xf32, #tpu.memory_space<vmem>>, vector<1x512x32xf32>
    %58 = vector.shape_cast %57 : vector<1x512x32xf32> to vector<512x32xf32>
    %cst_30 = arith.constant dense<0.000000e+00> : vector<8x32xf32>
    %59 = tpu.matmul %56, %58, %cst_30 {dimension_numbers = #tpu.dot_dimension_numbers<[1], [0], [0], [1], [0, 0, 1, 1], [], []>} : vector<8x512xf32>, vector<512x32xf32>, vector<8x32xf32> -> vector<8x32xf32>
    %60 = arith.addf %55, %59 : vector<8x32xf32>
    %61 = vector.extract_strided_slice %54 {offsets = [8, 0], sizes = [8, 512], strides = [1, 1]} : vector<64x512xf32> to vector<8x512xf32>
    %c1_31 = arith.constant 1 : index
    %c0_32 = arith.constant 0 : index
    %c0_33 = arith.constant 0 : index
    %62 = vector.load %arg6[%c1_31, %c0_32, %c0_33] : memref<7x512x32xf32, #tpu.memory_space<vmem>>, vector<1x512x32xf32>
    %63 = vector.shape_cast %62 : vector<1x512x32xf32> to vector<512x32xf32>
    %cst_34 = arith.constant dense<0.000000e+00> : vector<8x32xf32>
    %64 = tpu.matmul %61, %63, %cst_34 {dimension_numbers = #tpu.dot_dimension_numbers<[1], [0], [0], [1], [0, 0, 1, 1], [], []>} : vector<8x512xf32>, vector<512x32xf32>, vector<8x32xf32> -> vector<8x32xf32>
    %65 = arith.addf %60, %64 : vector<8x32xf32>
    %66 = vector.extract_strided_slice %54 {offsets = [16, 0], sizes = [8, 512], strides = [1, 1]} : vector<64x512xf32> to vector<8x512xf32>
    %c2_35 = arith.constant 2 : index
    %c0_36 = arith.constant 0 : index
    %c0_37 = arith.constant 0 : index
    %67 = vector.load %arg6[%c2_35, %c0_36, %c0_37] : memref<7x512x32xf32, #tpu.memory_space<vmem>>, vector<1x512x32xf32>
    %68 = vector.shape_cast %67 : vector<1x512x32xf32> to vector<512x32xf32>
    %cst_38 = arith.constant dense<0.000000e+00> : vector<8x32xf32>
    %69 = tpu.matmul %66, %68, %cst_38 {dimension_numbers = #tpu.dot_dimension_numbers<[1], [0], [0], [1], [0, 0, 1, 1], [], []>} : vector<8x512xf32>, vector<512x32xf32>, vector<8x32xf32> -> vector<8x32xf32>
    %70 = arith.addf %65, %69 : vector<8x32xf32>
    %71 = vector.extract_strided_slice %54 {offsets = [24, 0], sizes = [8, 512], strides = [1, 1]} : vector<64x512xf32> to vector<8x512xf32>
    %c3 = arith.constant 3 : index
    %c0_39 = arith.constant 0 : index
    %c0_40 = arith.constant 0 : index
    %72 = vector.load %arg6[%c3, %c0_39, %c0_40] : memref<7x512x32xf32, #tpu.memory_space<vmem>>, vector<1x512x32xf32>
    %73 = vector.shape_cast %72 : vector<1x512x32xf32> to vector<512x32xf32>
    %cst_41 = arith.constant dense<0.000000e+00> : vector<8x32xf32>
    %74 = tpu.matmul %71, %73, %cst_41 {dimension_numbers = #tpu.dot_dimension_numbers<[1], [0], [0], [1], [0, 0, 1, 1], [], []>} : vector<8x512xf32>, vector<512x32xf32>, vector<8x32xf32> -> vector<8x32xf32>
    %75 = arith.addf %70, %74 : vector<8x32xf32>
    %76 = vector.extract_strided_slice %54 {offsets = [32, 0], sizes = [8, 512], strides = [1, 1]} : vector<64x512xf32> to vector<8x512xf32>
    %c4 = arith.constant 4 : index
    %c0_42 = arith.constant 0 : index
    %c0_43 = arith.constant 0 : index
    %77 = vector.load %arg6[%c4, %c0_42, %c0_43] : memref<7x512x32xf32, #tpu.memory_space<vmem>>, vector<1x512x32xf32>
    %78 = vector.shape_cast %77 : vector<1x512x32xf32> to vector<512x32xf32>
    %cst_44 = arith.constant dense<0.000000e+00> : vector<8x32xf32>
    %79 = tpu.matmul %76, %78, %cst_44 {dimension_numbers = #tpu.dot_dimension_numbers<[1], [0], [0], [1], [0, 0, 1, 1], [], []>} : vector<8x512xf32>, vector<512x32xf32>, vector<8x32xf32> -> vector<8x32xf32>
    %80 = arith.addf %75, %79 : vector<8x32xf32>
    %81 = vector.extract_strided_slice %54 {offsets = [40, 0], sizes = [8, 512], strides = [1, 1]} : vector<64x512xf32> to vector<8x512xf32>
    %c5 = arith.constant 5 : index
    %c0_45 = arith.constant 0 : index
    %c0_46 = arith.constant 0 : index
    %82 = vector.load %arg6[%c5, %c0_45, %c0_46] : memref<7x512x32xf32, #tpu.memory_space<vmem>>, vector<1x512x32xf32>
    %83 = vector.shape_cast %82 : vector<1x512x32xf32> to vector<512x32xf32>
    %cst_47 = arith.constant dense<0.000000e+00> : vector<8x32xf32>
    %84 = tpu.matmul %81, %83, %cst_47 {dimension_numbers = #tpu.dot_dimension_numbers<[1], [0], [0], [1], [0, 0, 1, 1], [], []>} : vector<8x512xf32>, vector<512x32xf32>, vector<8x32xf32> -> vector<8x32xf32>
    %85 = arith.addf %80, %84 : vector<8x32xf32>
    %86 = vector.extract_strided_slice %54 {offsets = [48, 0], sizes = [8, 512], strides = [1, 1]} : vector<64x512xf32> to vector<8x512xf32>
    %c6 = arith.constant 6 : index
    %c0_48 = arith.constant 0 : index
    %c0_49 = arith.constant 0 : index
    %87 = vector.load %arg6[%c6, %c0_48, %c0_49] : memref<7x512x32xf32, #tpu.memory_space<vmem>>, vector<1x512x32xf32>
    %88 = vector.shape_cast %87 : vector<1x512x32xf32> to vector<512x32xf32>
    %cst_50 = arith.constant dense<0.000000e+00> : vector<8x32xf32>
    %89 = tpu.matmul %86, %88, %cst_50 {dimension_numbers = #tpu.dot_dimension_numbers<[1], [0], [0], [1], [0, 0, 1, 1], [], []>} : vector<8x512xf32>, vector<512x32xf32>, vector<8x32xf32> -> vector<8x32xf32>
    %90 = arith.addf %85, %89 : vector<8x32xf32>
    %c0_51 = arith.constant 0 : index
    %c0_52 = arith.constant 0 : index
    %91 = vector.load %arg7[%c0_51, %c0_52] : memref<1x32xf32, #tpu.memory_space<vmem>>, vector<1x32xf32>
    %92 = vector.broadcast %91 : vector<1x32xf32> to vector<8x32xf32>
    %93 = arith.addf %90, %92 : vector<8x32xf32>
    %c0_53 = arith.constant 0 : index
    %c0_54 = arith.constant 0 : index
    %94 = vector.load %arg8[%c0_53, %c0_54] : memref<32x128xf32, #tpu.memory_space<vmem>>, vector<32x128xf32>
    %cst_55 = arith.constant dense<0.000000e+00> : vector<8x128xf32>
    %95 = tpu.matmul %93, %94, %cst_55 {dimension_numbers = #tpu.dot_dimension_numbers<[1], [0], [0], [1], [0, 0, 1, 1], [], []>} : vector<8x32xf32>, vector<32x128xf32>, vector<8x128xf32> -> vector<8x128xf32>
    %c0_56 = arith.constant 0 : index
    %c0_57 = arith.constant 0 : index
    %96 = vector.load %arg9[%c0_56, %c0_57] : memref<1x128xf32, #tpu.memory_space<vmem>>, vector<1x128xf32>
    %97 = vector.broadcast %96 : vector<1x128xf32> to vector<8x128xf32>
    %98 = arith.addf %95, %97 : vector<8x128xf32>
    %cst_58 = arith.constant 0.000000e+00 : f32
    %99 = vector.broadcast %cst_58 : f32 to vector<8x128xf32>
    %100 = arith.maximumf %98, %99 : vector<8x128xf32>
    %c0_59 = arith.constant 0 : index
    %c0_60 = arith.constant 0 : index
    %101 = vector.load %arg10[%c0_59, %c0_60] : memref<128x128xf32, #tpu.memory_space<vmem>>, vector<128x128xf32>
    %cst_61 = arith.constant dense<0.000000e+00> : vector<8x128xf32>
    %102 = tpu.matmul %100, %101, %cst_61 {dimension_numbers = #tpu.dot_dimension_numbers<[1], [0], [0], [1], [0, 0, 1, 1], [], []>} : vector<8x128xf32>, vector<128x128xf32>, vector<8x128xf32> -> vector<8x128xf32>
    %c0_62 = arith.constant 0 : index
    %c0_63 = arith.constant 0 : index
    %103 = vector.load %arg11[%c0_62, %c0_63] : memref<1x128xf32, #tpu.memory_space<vmem>>, vector<1x128xf32>
    %104 = vector.broadcast %103 : vector<1x128xf32> to vector<8x128xf32>
    %105 = arith.addf %102, %104 : vector<8x128xf32>
    %cst_64 = arith.constant 0.000000e+00 : f32
    %106 = vector.broadcast %cst_64 : f32 to vector<8x128xf32>
    %107 = arith.maximumf %105, %106 : vector<8x128xf32>
    %c0_65 = arith.constant 0 : index
    %c0_66 = arith.constant 0 : index
    %108 = vector.load %arg12[%c0_65, %c0_66] : memref<128x10xf32, #tpu.memory_space<vmem>>, vector<128x10xf32>
    %cst_67 = arith.constant dense<0.000000e+00> : vector<8x10xf32>
    %109 = tpu.matmul %107, %108, %cst_67 {dimension_numbers = #tpu.dot_dimension_numbers<[1], [0], [0], [1], [0, 0, 1, 1], [], []>} : vector<8x128xf32>, vector<128x10xf32>, vector<8x10xf32> -> vector<8x10xf32>
    %c0_68 = arith.constant 0 : index
    %c0_69 = arith.constant 0 : index
    %110 = vector.load %arg13[%c0_68, %c0_69] : memref<1x10xf32, #tpu.memory_space<vmem>>, vector<1x10xf32>
    %111 = vector.broadcast %110 : vector<1x10xf32> to vector<8x10xf32>
    %112 = arith.addf %109, %111 : vector<8x10xf32>
    %c0_70 = arith.constant 0 : index
    %c0_71 = arith.constant 0 : index
    %113 = vector.load %arg14[%c0_70, %c0_71] : memref<8x32xf32, #tpu.memory_space<vmem>>, vector<8x32xf32>
    tpu.vector_store %arg14[%c0_70, %c0_71], %93 {strides = array<i32>} : memref<8x32xf32, #tpu.memory_space<vmem>>, vector<8x32xf32>,
    %c0_72 = arith.constant 0 : index
    %c0_73 = arith.constant 0 : index
    %114 = vector.load %arg15[%c0_72, %c0_73] : memref<8x128xf32, #tpu.memory_space<vmem>>, vector<8x128xf32>
    tpu.vector_store %arg15[%c0_72, %c0_73], %107 {strides = array<i32>} : memref<8x128xf32, #tpu.memory_space<vmem>>, vector<8x128xf32>,
    %c0_74 = arith.constant 0 : index
    %c0_75 = arith.constant 0 : index
    %115 = vector.load %arg16[%c0_74, %c0_75] : memref<8x10xf32, #tpu.memory_space<vmem>>, vector<8x10xf32>
    tpu.vector_store %arg16[%c0_74, %c0_75], %112 {strides = array<i32>} : memref<8x10xf32, #tpu.memory_space<vmem>>, vector<8x10xf32>,
    return
  }
  func.func @transform_0(%arg0: i32) -> (i32, i32, i32) {
    %c0_i32 = arith.constant 0 : i32
    %c0_i32_0 = arith.constant 0 : i32
    %c0_i32_1 = arith.constant 0 : i32
    return %arg0, %c0_i32, %c0_i32_0 : i32, i32, i32
  }
  func.func @transform_1(%arg0: i32) -> (i32, i32) {
    %c0_i32 = arith.constant 0 : i32
    %c0_i32_0 = arith.constant 0 : i32
    %c0_i32_1 = arith.constant 0 : i32
    return %c0_i32, %c0_i32_0 : i32, i32
  }
  func.func @transform_2(%arg0: i32) -> (i32, i32) {
    %c0_i32 = arith.constant 0 : i32
    %c0_i32_0 = arith.constant 0 : i32
    %c0_i32_1 = arith.constant 0 : i32
    return %c0_i32, %c0_i32_0 : i32, i32
  }
  func.func @transform_3(%arg0: i32) -> (i32, i32, i32) {
    %c0_i32 = arith.constant 0 : i32
    %c0_i32_0 = arith.constant 0 : i32
    %c0_i32_1 = arith.constant 0 : i32
    %c0_i32_2 = arith.constant 0 : i32
    return %c0_i32, %c0_i32_0, %c0_i32_1 : i32, i32, i32
  }
  func.func @transform_4(%arg0: i32) -> (i32, i32) {
    %c0_i32 = arith.constant 0 : i32
    %c0_i32_0 = arith.constant 0 : i32
    %c0_i32_1 = arith.constant 0 : i32
    return %c0_i32, %c0_i32_0 : i32, i32
  }
  func.func @transform_5(%arg0: i32) -> (i32, i32, i32) {
    %c0_i32 = arith.constant 0 : i32
    %c0_i32_0 = arith.constant 0 : i32
    %c0_i32_1 = arith.constant 0 : i32
    %c0_i32_2 = arith.constant 0 : i32
    return %c0_i32, %c0_i32_0, %c0_i32_1 : i32, i32, i32
  }
  func.func @transform_6(%arg0: i32) -> (i32, i32) {
    %c0_i32 = arith.constant 0 : i32
    %c0_i32_0 = arith.constant 0 : i32
    %c0_i32_1 = arith.constant 0 : i32
    return %c0_i32, %c0_i32_0 : i32, i32
  }
  func.func @transform_7(%arg0: i32) -> (i32, i32) {
    %c0_i32 = arith.constant 0 : i32
    %c0_i32_0 = arith.constant 0 : i32
    %c0_i32_1 = arith.constant 0 : i32
    return %c0_i32, %c0_i32_0 : i32, i32
  }
  func.func @transform_8(%arg0: i32) -> (i32, i32) {
    %c0_i32 = arith.constant 0 : i32
    %c0_i32_0 = arith.constant 0 : i32
    %c0_i32_1 = arith.constant 0 : i32
    return %c0_i32, %c0_i32_0 : i32, i32
  }
  func.func @transform_9(%arg0: i32) -> (i32, i32) {
    %c0_i32 = arith.constant 0 : i32
    %c0_i32_0 = arith.constant 0 : i32
    %c0_i32_1 = arith.constant 0 : i32
    return %c0_i32, %c0_i32_0 : i32, i32
  }
  func.func @transform_10(%arg0: i32) -> (i32, i32) {
    %c0_i32 = arith.constant 0 : i32
    %c0_i32_0 = arith.constant 0 : i32
    %c0_i32_1 = arith.constant 0 : i32
    return %c0_i32, %c0_i32_0 : i32, i32
  }
  func.func @transform_11(%arg0: i32) -> (i32, i32) {
    %c0_i32 = arith.constant 0 : i32
    %c0_i32_0 = arith.constant 0 : i32
    %c0_i32_1 = arith.constant 0 : i32
    return %c0_i32, %c0_i32_0 : i32, i32
  }
  func.func @transform_12(%arg0: i32) -> (i32, i32) {
    %c0_i32 = arith.constant 0 : i32
    %c0_i32_0 = arith.constant 0 : i32
    %c0_i32_1 = arith.constant 0 : i32
    return %c0_i32, %c0_i32_0 : i32, i32
  }
  func.func @transform_13(%arg0: i32) -> (i32, i32) {
    %c0_i32 = arith.constant 0 : i32
    %c0_i32_0 = arith.constant 0 : i32
    return %arg0, %c0_i32 : i32, i32
  }
  func.func @transform_14(%arg0: i32) -> (i32, i32) {
    %c0_i32 = arith.constant 0 : i32
    %c0_i32_0 = arith.constant 0 : i32
    return %arg0, %c0_i32 : i32, i32
  }
  func.func @transform_15(%arg0: i32) -> (i32, i32) {
    %c0_i32 = arith.constant 0 : i32
    %c0_i32_0 = arith.constant 0 : i32
    return %arg0, %c0_i32 : i32, i32
  }
}

</mosaic_0001>

<llo_original>
// kernel: causal_rep_forward.1
$region0: #{causal_rep_forward.1}
  #allocation0 [shape = 'u32[]', space=smem, size = 0x4, offset = 0x4, fixed_abs, tag = 'smem constant byte address 0x4 - core index']
  #allocation1 [shape = 'u32[144,128]{1,0:T(1,128)}', space=vmem, size = 0x12000, scoped, tag = 'internal scratch']
  %s0 = inlined_call_operand.vmem [shape: f32[1,256,96], index: 0, kind: input, shape index: {}]
  %s1 = inlined_call_operand.hbm [shape: f32[96,1024], index: 1, kind: input, shape index: {}]
  %s2 = inlined_call_operand.hbm [shape: f32[1,512], index: 2, kind: input, shape index: {}]
  %s3 = inlined_call_operand.hbm [shape: f32[3,512,1024], index: 3, kind: input, shape index: {}]
  %s4 = inlined_call_operand.hbm [shape: f32[1,512], index: 4, kind: input, shape index: {}]
  %s5 = inlined_call_operand.vmem [shape: f32[7,512,32], index: 5, kind: input, shape index: {}]
  %s6 = inlined_call_operand.hbm [shape: f32[1,32], index: 6, kind: input, shape index: {}]
  %s7 = inlined_call_operand.hbm [shape: f32[32,128], index: 7, kind: input, shape index: {}]
  %s8 = inlined_call_operand.hbm [shape: f32[1,128], index: 8, kind: input, shape index: {}]
  %s9 = inlined_call_operand.hbm [shape: f32[128,128], index: 9, kind: input, shape index: {}]
  %s10 = inlined_call_operand.hbm [shape: f32[1,128], index: 10, kind: input, shape index: {}]
  %s11 = inlined_call_operand.vmem [shape: f32[128,10], index: 11, kind: input, shape index: {}]
  %s12 = inlined_call_operand.hbm [shape: f32[1,10], index: 12, kind: input, shape index: {}]
  %s13 = inlined_call_operand.vmem [shape: f32[8,32], index: 13, kind: output, shape index: {0}]
  %s14 = inlined_call_operand.vmem [shape: f32[8,128], index: 14, kind: output, shape index: {1}]
  %s15 = inlined_call_operand.vmem [shape: f32[8,10], index: 15, kind: output, shape index: {2}]
  %16 = xla_tuple %s13, %s14, %s15
  %s17 = sld [smem:[#allocation0]]
  $region118: #{causal_rep_forward.1} parent=0
    _
  %s19 = ssub.s32 1, %s17
  %s20 = scalar_select 0, %s19, %s17
  $region1: #{causal_rep_forward.1} parent=0
    #allocation2 [shape = 'u8[393216]{0}', space=vmem, size = 0x60000, scoped, tag = 'input window, operand 1, single buffered']
    #allocation3 [shape = 's32[1]{0}', space=sflag, size = 0x4, scoped, tag = 'scoped memory for causal_rep_forward.1']
    #allocation4 [shape = 'u8[2048]{0}', space=vmem, size = 0x800, scoped, tag = 'input window, operand 2, single buffered']
    #allocation5 [shape = 's32[1]{0}', space=sflag, size = 0x4, scoped, tag = 'scoped memory for causal_rep_forward.1']
    #allocation6 [shape = 'u8[6291456]{0}', space=vmem, size = 0x600000, scoped, tag = 'input window, operand 3, single buffered']
    #allocation7 [shape = 'u8[2048]{0}', space=vmem, size = 0x800, scoped, tag = 'input window, operand 4, single buffered']
    #allocation8 [shape = 's32[1]{0}', space=sflag, size = 0x4, scoped, tag = 'scoped memory for causal_rep_forward.1']
    #allocation9 [shape = 'u8[512]{0}', space=vmem, size = 0x400, scoped, tag = 'input window, operand 6, single buffered']
    #allocation10 [shape = 'u8[16384]{0}', space=vmem, size = 0x4000, scoped, tag = 'input window, operand 7, single buffered']
    #allocation11 [shape = 's32[1]{0}', space=sflag, size = 0x4, scoped, tag = 'scoped memory for causal_rep_forward.1']
    #allocation12 [shape = 'u8[512]{0}', space=vmem, size = 0x400, scoped, tag = 'input window, operand 8, single buffered']
    #allocation13 [shape = 'u8[65536]{0}', space=vmem, size = 0x10000, scoped, tag = 'input window, operand 9, single buffered']
    #allocation14 [shape = 's32[1]{0}', space=sflag, size = 0x4, scoped, tag = 'scoped memory for causal_rep_forward.1']
    #allocation15 [shape = 'u8[512]{0}', space=vmem, size = 0x400, scoped, tag = 'input window, operand 10, single buffered']
    #allocation16 [shape = 'u8[512]{0}', space=vmem, size = 0x400, scoped, tag = 'input window, operand 12, single buffered']
    #allocation17 [shape = 's32[1]{0}', space=sflag, size = 0x4, scoped, tag = 'scoped memory for causal_rep_forward.1']
    %21 = vsyncpa [#allocation3], 0
    %22 = vsyncpa [#allocation5], 0
    %23 = vsyncpa [#allocation8], 0
    %24 = vsyncpa [#allocation11], 0
    %25 = vsyncpa [#allocation14], 0
    %26 = vsyncpa [#allocation17], 0
    // Predicated region
    $region2: #{causal_rep_forward.1} parent=1 // pred_check
      _
    $region3: #{causal_rep_forward.1} parent=1 // pred_check_branch
      %28 = sbr.rel (0) target = $region5
    $region4: #{causal_rep_forward.1} parent=1 // pred_region
      _
    $region5: #{causal_rep_forward.1} parent=1 // pred_fallthru
      _
    // Predicated region
    $region6: #{causal_rep_forward.1} parent=1 // pred_check
      _
    $region7: #{causal_rep_forward.1} parent=1 // pred_check_branch
      %30 = sbr.rel (0) target = $region9
    $region8: #{causal_rep_forward.1} parent=1 // pred_region
      %s32 = ssub.s32 12288, 12288
      %33 = vsyncadd [#allocation3], %s32
      %s34 = sshll.u32 [#allocation2], 4
      %s35 = int_to_ptr.vmem [resolvable:$true] %s34
      %40 = dma.hbm_to_vmem [thread:$0]  %s1, 12288, %s35, [#allocation3], 1024, 1024, 64
    $region9: #{causal_rep_forward.1} parent=1 // pred_fallthru
      _
    // Predicated region
    $region10: #{causal_rep_forward.1} parent=1 // pred_check
      _
    $region11: #{causal_rep_forward.1} parent=1 // pred_check_branch
      %42 = sbr.rel (0) target = $region13
    $region12: #{causal_rep_forward.1} parent=1 // pred_region
      %s44 = ssub.s32 64, 64
      %45 = vsyncadd [#allocation5], %s44
      %s47 = sshll.u32 [#allocation4], 4
      %s48 = int_to_ptr.vmem [resolvable:$true] %s47
      %50 = dma.hbm_to_vmem [thread:$0]  %s2, 64, %s48, [#allocation5]
    $region13: #{causal_rep_forward.1} parent=1 // pred_fallthru
      _
    // Predicated region
    $region14: #{causal_rep_forward.1} parent=1 // pred_check
      _
    $region15: #{causal_rep_forward.1} parent=1 // pred_check_branch
      %52 = sbr.rel (0) target = $region17
    $region16: #{causal_rep_forward.1} parent=1 // pred_region
      %s54 = ssub.s32 196608, 196608
      %55 = vsyncadd [#allocation5], %s54
      %s56 = sshll.u32 [#allocation6], 4
      %s57 = int_to_ptr.vmem [resolvable:$true] %s56
      %62 = dma.hbm_to_vmem [thread:$0]  %s3, 196608, %s57, [#allocation5], 1024, 1024, 64
    $region17: #{causal_rep_forward.1} parent=1 // pred_fallthru
      _
    // Predicated region
    $region18: #{causal_rep_forward.1} parent=1 // pred_check
      _
    $region19: #{causal_rep_forward.1} parent=1 // pred_check_branch
      %64 = sbr.rel (0) target = $region21
    $region20: #{causal_rep_forward.1} parent=1 // pred_region
      %s66 = ssub.s32 64, 64
      %67 = vsyncadd [#allocation8], %s66
      %s69 = sshll.u32 [#allocation7], 4
      %s70 = int_to_ptr.vmem [resolvable:$true] %s69
      %72 = dma.hbm_to_vmem [thread:$0]  %s4, 64, %s70, [#allocation8]
    $region21: #{causal_rep_forward.1} parent=1 // pred_fallthru
      _
    // Predicated region
    $region22: #{causal_rep_forward.1} parent=1 // pred_check
      _
    $region23: #{causal_rep_forward.1} parent=1 // pred_check_branch
      %74 = sbr.rel (0) target = $region25
    $region24: #{causal_rep_forward.1} parent=1 // pred_region
      _
    $region25: #{causal_rep_forward.1} parent=1 // pred_fallthru
      _
    // Predicated region
    $region26: #{causal_rep_forward.1} parent=1 // pred_check
      _
    $region27: #{causal_rep_forward.1} parent=1 // pred_check_branch
      %76 = sbr.rel (0) target = $region29
    $region28: #{causal_rep_forward.1} parent=1 // pred_region
      %s78 = ssub.s32 16, 16
      %79 = vsyncadd [#allocation8], %s78
      %s81 = sshll.u32 [#allocation9], 4
      %s82 = int_to_ptr.vmem [resolvable:$true] %s81
      %84 = dma.hbm_to_vmem [thread:$0]  %s6, 16, %s82, [#allocation8]
    $region29: #{causal_rep_forward.1} parent=1 // pred_fallthru
      _
    // Predicated region
    $region30: #{causal_rep_forward.1} parent=1 // pred_check
      _
    $region31: #{causal_rep_forward.1} parent=1 // pred_check_branch
      %86 = sbr.rel (0) target = $region33
    $region32: #{causal_rep_forward.1} parent=1 // pred_region
      %s88 = ssub.s32 512, 512
      %89 = vsyncadd [#allocation11], %s88
      %s90 = sshll.u32 [#allocation10], 4
      %s91 = int_to_ptr.vmem [resolvable:$true] %s90
      %96 = dma.hbm_to_vmem [thread:$0]  %s7, 512, %s91, [#allocation11], 128, 128, 8
    $region33: #{causal_rep_forward.1} parent=1 // pred_fallthru
      _
    // Predicated region
    $region34: #{causal_rep_forward.1} parent=1 // pred_check
      _
    $region35: #{causal_rep_forward.1} parent=1 // pred_check_branch
      %98 = sbr.rel (0) target = $region37
    $region36: #{causal_rep_forward.1} parent=1 // pred_region
      %s100 = ssub.s32 16, 16
      %101 = vsyncadd [#allocation11], %s100
      %s103 = sshll.u32 [#allocation12], 4
      %s104 = int_to_ptr.vmem [resolvable:$true] %s103
      %106 = dma.hbm_to_vmem [thread:$0]  %s8, 16, %s104, [#allocation11]
    $region37: #{causal_rep_forward.1} parent=1 // pred_fallthru
      _
    // Predicated region
    $region38: #{causal_rep_forward.1} parent=1 // pred_check
      _
    $region39: #{causal_rep_forward.1} parent=1 // pred_check_branch
      %108 = sbr.rel (0) target = $region41
    $region40: #{causal_rep_forward.1} parent=1 // pred_region
      %s110 = ssub.s32 2048, 2048
      %111 = vsyncadd [#allocation14], %s110
      %s112 = sshll.u32 [#allocation13], 4
      %s113 = int_to_ptr.vmem [resolvable:$true] %s112
      %118 = dma.hbm_to_vmem [thread:$0]  %s9, 2048, %s113, [#allocation14], 128, 128, 8
    $region41: #{causal_rep_forward.1} parent=1 // pred_fallthru
      _
    // Predicated region
    $region42: #{causal_rep_forward.1} parent=1 // pred_check
      _
    $region43: #{causal_rep_forward.1} parent=1 // pred_check_branch
      %120 = sbr.rel (0) target = $region45
    $region44: #{causal_rep_forward.1} parent=1 // pred_region
      %s122 = ssub.s32 16, 16
      %123 = vsyncadd [#allocation14], %s122
      %s125 = sshll.u32 [#allocation15], 4
      %s126 = int_to_ptr.vmem [resolvable:$true] %s125
      %128 = dma.hbm_to_vmem [thread:$0]  %s10, 16, %s126, [#allocation14]
    $region45: #{causal_rep_forward.1} parent=1 // pred_fallthru
      _
    // Predicated region
    $region46: #{causal_rep_forward.1} parent=1 // pred_check
      _
    $region47: #{causal_rep_forward.1} parent=1 // pred_check_branch
      %130 = sbr.rel (0) target = $region49
    $region48: #{causal_rep_forward.1} parent=1 // pred_region
      _
    $region49: #{causal_rep_forward.1} parent=1 // pred_fallthru
      _
    // Predicated region
    $region50: #{causal_rep_forward.1} parent=1 // pred_check
      _
    $region51: #{causal_rep_forward.1} parent=1 // pred_check_branch
      %132 = sbr.rel (0) target = $region53
    $region52: #{causal_rep_forward.1} parent=1 // pred_region
      %s134 = ssub.s32 16, 16
      %135 = vsyncadd [#allocation17], %s134
      %s137 = sshll.u32 [#allocation16], 4
      %s138 = int_to_ptr.vmem [resolvable:$true] %s137
      %140 = dma.hbm_to_vmem [thread:$0]  %s12, 16, %s138, [#allocation17]
    $region53: #{causal_rep_forward.1} parent=1 // pred_fallthru
      _
    // Predicated region
    $region54: #{causal_rep_forward.1} parent=1 // pred_check
      _
    $region55: #{causal_rep_forward.1} parent=1 // pred_check_branch
      %142 = sbr.rel (0) target = $region57
    $region56: #{causal_rep_forward.1} parent=1 // pred_region
      %143 = dma.done [#allocation3], 12288
    $region57: #{causal_rep_forward.1} parent=1 // pred_fallthru
      _
    // Predicated region
    $region58: #{causal_rep_forward.1} parent=1 // pred_check
      _
    $region59: #{causal_rep_forward.1} parent=1 // pred_check_branch
      %145 = sbr.rel (0) target = $region61
    $region60: #{causal_rep_forward.1} parent=1 // pred_region
      %146 = dma.done [#allocation5], 64
    $region61: #{causal_rep_forward.1} parent=1 // pred_fallthru
      _
    // Predicated region
    $region62: #{causal_rep_forward.1} parent=1 // pred_check
      _
    $region63: #{causal_rep_forward.1} parent=1 // pred_check_branch
      %148 = sbr.rel (0) target = $region65
    $region64: #{causal_rep_forward.1} parent=1 // pred_region
      %149 = dma.done [#allocation5], 196608
    $region65: #{causal_rep_forward.1} parent=1 // pred_fallthru
      _
    // Predicated region
    $region66: #{causal_rep_forward.1} parent=1 // pred_check
      _
    $region67: #{causal_rep_forward.1} parent=1 // pred_check_branch
      %151 = sbr.rel (0) target = $region69
    $region68: #{causal_rep_forward.1} parent=1 // pred_region
      %152 = dma.done [#allocation8], 64
    $region69: #{causal_rep_forward.1} parent=1 // pred_fallthru
      _
    // Predicated region
    $region70: #{causal_rep_forward.1} parent=1 // pred_check
      _
    $region71: #{causal_rep_forward.1} parent=1 // pred_check_branch
      %154 = sbr.rel (0) target = $region73
    $region72: #{causal_rep_forward.1} parent=1 // pred_region
      %155 = dma.done [#allocation8], 16
    $region73: #{causal_rep_forward.1} parent=1 // pred_fallthru
      _
    // Predicated region
    $region74: #{causal_rep_forward.1} parent=1 // pred_check
      _
    $region75: #{causal_rep_forward.1} parent=1 // pred_check_branch
      %157 = sbr.rel (0) target = $region77
    $region76: #{causal_rep_forward.1} parent=1 // pred_region
      %158 = dma.done [#allocation11], 512
    $region77: #{causal_rep_forward.1} parent=1 // pred_fallthru
      _
    // Predicated region
    $region78: #{causal_rep_forward.1} parent=1 // pred_check
      _
    $region79: #{causal_rep_forward.1} parent=1 // pred_check_branch
      %160 = sbr.rel (0) target = $region81
    $region80: #{causal_rep_forward.1} parent=1 // pred_region
      %161 = dma.done [#allocation11], 16
    $region81: #{causal_rep_forward.1} parent=1 // pred_fallthru
      _
    // Predicated region
    $region82: #{causal_rep_forward.1} parent=1 // pred_check
      _
    $region83: #{causal_rep_forward.1} parent=1 // pred_check_branch
      %163 = sbr.rel (0) target = $region85
    $region84: #{causal_rep_forward.1} parent=1 // pred_region
      %164 = dma.done [#allocation14], 2048
    $region85: #{causal_rep_forward.1} parent=1 // pred_fallthru
      _
    // Predicated region
    $region86: #{causal_rep_forward.1} parent=1 // pred_check
      _
    $region87: #{causal_rep_forward.1} parent=1 // pred_check_branch
      %166 = sbr.rel (0) target = $region89
    $region88: #{causal_rep_forward.1} parent=1 // pred_region
      %167 = dma.done [#allocation14], 16
    $region89: #{causal_rep_forward.1} parent=1 // pred_fallthru
      _
    // Predicated region
    $region90: #{causal_rep_forward.1} parent=1 // pred_check
      _
    $region91: #{causal_rep_forward.1} parent=1 // pred_check_branch
      %169 = sbr.rel (0) target = $region93
    $region92: #{causal_rep_forward.1} parent=1 // pred_region
      %170 = dma.done [#allocation17], 16
    $region93: #{causal_rep_forward.1} parent=1 // pred_fallthru
      _
    %v171 = vld [vmem:[%s0] sm:$0xff]
    %v172 = vld [vmem:[%s0 + $0x8] sm:$0xff]
    %v173 = vld [vmem:[%s0 + $0x10] sm:$0xff]
    %v174 = vld [vmem:[%s0 + $0x18] sm:$0xff]
    %v175 = vld [vmem:[%s0 + $0x20] sm:$0xff]
    %v176 = vld [vmem:[%s0 + $0x28] sm:$0xff]
    %v177 = vld [vmem:[%s0 + $0x30] sm:$0xff]
    %v178 = vld [vmem:[%s0 + $0x38] sm:$0xff]
    %v179 = vld [vmem:[%s0 + $0x40] sm:$0xff]
    %v180 = vld [vmem:[%s0 + $0x48] sm:$0xff]
    %v181 = vld [vmem:[%s0 + $0x50] sm:$0xff]
    %v182 = vld [vmem:[%s0 + $0x58] sm:$0xff]
    %v183 = vld [vmem:[%s0 + $0x60] sm:$0xff]
    %v184 = vld [vmem:[%s0 + $0x68] sm:$0xff]
    %v185 = vld [vmem:[%s0 + $0x70] sm:$0xff]
    %v186 = vld [vmem:[%s0 + $0x78] sm:$0xff]
    %v187 = vld [vmem:[%s0 + $0x80] sm:$0xff]
    %v188 = vld [vmem:[%s0 + $0x88] sm:$0xff]
    %v189 = vld [vmem:[%s0 + $0x90] sm:$0xff]
    %v190 = vld [vmem:[%s0 + $0x98] sm:$0xff]
    %v191 = vld [vmem:[%s0 + $0xa0] sm:$0xff]
    %v192 = vld [vmem:[%s0 + $0xa8] sm:$0xff]
    %v193 = vld [vmem:[%s0 + $0xb0] sm:$0xff]
    %v194 = vld [vmem:[%s0 + $0xb8] sm:$0xff]
    %v195 = vld [vmem:[%s0 + $0xc0] sm:$0xff]
    %v196 = vld [vmem:[%s0 + $0xc8] sm:$0xff]
    %v197 = vld [vmem:[%s0 + $0xd0] sm:$0xff]
    %v198 = vld [vmem:[%s0 + $0xd8] sm:$0xff]
    %v199 = vld [vmem:[%s0 + $0xe0] sm:$0xff]
    %v200 = vld [vmem:[%s0 + $0xe8] sm:$0xff]
    %v201 = vld [vmem:[%s0 + $0xf0] sm:$0xff]
    %v202 = vld [vmem:[%s0 + $0xf8] sm:$0xff]
    %v203 = vld [vmem:[#allocation2] sm:$0xff]
    %v204 = vld [vmem:[#allocation2 + $0x8] sm:$0xff]
    %v205 = vld [vmem:[#allocation2 + $0x10] sm:$0xff]
    %v206 = vld [vmem:[#allocation2 + $0x18] sm:$0xff]
    %v207 = vld [vmem:[#allocation2 + $0x20] sm:$0xff]
    %v208 = vld [vmem:[#allocation2 + $0x28] sm:$0xff]
    %v209 = vld [vmem:[#allocation2 + $0x30] sm:$0xff]
    %v210 = vld [vmem:[#allocation2 + $0x38] sm:$0xff]
    %v211 = vld [vmem:[#allocation2 + $0x40] sm:$0xff]
    %v212 = vld [vmem:[#allocation2 + $0x48] sm:$0xff]
    %v213 = vld [vmem:[#allocation2 + $0x50] sm:$0xff]
    %v214 = vld [vmem:[#allocation2 + $0x58] sm:$0xff]
    %v215 = vld [vmem:[#allocation2 + $0x60] sm:$0xff]
    %v216 = vld [vmem:[#allocation2 + $0x68] sm:$0xff]
    %v217 = vld [vmem:[#allocation2 + $0x70] sm:$0xff]
    %v218 = vld [vmem:[#allocation2 + $0x78] sm:$0xff]
    %v219 = vld [vmem:[#allocation2 + $0x80] sm:$0xff]
    %v220 = vld [vmem:[#allocation2 + $0x88] sm:$0xff]
    %v221 = vld [vmem:[#allocation2 + $0x90] sm:$0xff]
    %v222 = vld [vmem:[#allocation2 + $0x98] sm:$0xff]
    %v223 = vld [vmem:[#allocation2 + $0xa0] sm:$0xff]
    %v224 = vld [vmem:[#allocation2 + $0xa8] sm:$0xff]
    %v225 = vld [vmem:[#allocation2 + $0xb0] sm:$0xff]
    %v226 = vld [vmem:[#allocation2 + $0xb8] sm:$0xff]
    %v227 = vld [vmem:[#allocation2 + $0xc0] sm:$0xff]
    %v228 = vld [vmem:[#allocation2 + $0xc8] sm:$0xff]
    %v229 = vld [vmem:[#allocation2 + $0xd0] sm:$0xff]
    %v230 = vld [vmem:[#allocation2 + $0xd8] sm:$0xff]
    %v231 = vld [vmem:[#allocation2 + $0xe0] sm:$0xff]
    %v232 = vld [vmem:[#allocation2 + $0xe8] sm:$0xff]
    %v233 = vld [vmem:[#allocation2 + $0xf0] sm:$0xff]
    %v234 = vld [vmem:[#allocation2 + $0xf8] sm:$0xff]
    %v235 = vld [vmem:[#allocation2 + $0x100] sm:$0xff]
    %v236 = vld [vmem:[#allocation2 + $0x108] sm:$0xff]
    %v237 = vld [vmem:[#allocation2 + $0x110] sm:$0xff]
    %v238 = vld [vmem:[#allocation2 + $0x118] sm:$0xff]
    %v239 = vld [vmem:[#allocation2 + $0x120] sm:$0xff]
    %v240 = vld [vmem:[#allocation2 + $0x128] sm:$0xff]
    %v241 = vld [vmem:[#allocation2 + $0x130] sm:$0xff]
    %v242 = vld [vmem:[#allocation2 + $0x138] sm:$0xff]
    %v243 = vld [vmem:[#allocation2 + $0x140] sm:$0xff]
    %v244 = vld [vmem:[#allocation2 + $0x148] sm:$0xff]
    %v245 = vld [vmem:[#allocation2 + $0x150] sm:$0xff]
    %v246 = vld [vmem:[#allocation2 + $0x158] sm:$0xff]
    %v247 = vld [vmem:[#allocation2 + $0x160] sm:$0xff]
    %v248 = vld [vmem:[#allocation2 + $0x168] sm:$0xff]
    %v249 = vld [vmem:[#allocation2 + $0x170] sm:$0xff]
    %v250 = vld [vmem:[#allocation2 + $0x178] sm:$0xff]
    %v251 = vld [vmem:[#allocation2 + $0x180] sm:$0xff]
    %v252 = vld [vmem:[#allocation2 + $0x188] sm:$0xff]
    %v253 = vld [vmem:[#allocation2 + $0x190] sm:$0xff]
    %v254 = vld [vmem:[#allocation2 + $0x198] sm:$0xff]
    %v255 = vld [vmem:[#allocation2 + $0x1a0] sm:$0xff]
    %v256 = vld [vmem:[#allocation2 + $0x1a8] sm:$0xff]
    %v257 = vld [vmem:[#allocation2 + $0x1b0] sm:$0xff]
    %v258 = vld [vmem:[#allocation2 + $0x1b8] sm:$0xff]
    %v259 = vld [vmem:[#allocation2 + $0x1c0] sm:$0xff]
    %v260 = vld [vmem:[#allocation2 + $0x1c8] sm:$0xff]
    %v261 = vld [vmem:[#allocation2 + $0x1d0] sm:$0xff]
    %v262 = vld [vmem:[#allocation2 + $0x1d8] sm:$0xff]
    %v263 = vld [vmem:[#allocation2 + $0x1e0] sm:$0xff]
    %v264 = vld [vmem:[#allocation2 + $0x1e8] sm:$0xff]
    %v265 = vld [vmem:[#allocation2 + $0x1f0] sm:$0xff]
    %v266 = vld [vmem:[#allocation2 + $0x1f8] sm:$0xff]
    %v267 = vld [vmem:[#allocation2 + $0x200] sm:$0xff]
    %v268 = vld [vmem:[#allocation2 + $0x208] sm:$0xff]
    %v269 = vld [vmem:[#allocation2 + $0x210] sm:$0xff]
    %v270 = vld [vmem:[#allocation2 + $0x218] sm:$0xff]
    %v271 = vld [vmem:[#allocation2 + $0x220] sm:$0xff]
    %v272 = vld [vmem:[#allocation2 + $0x228] sm:$0xff]
    %v273 = vld [vmem:[#allocation2 + $0x230] sm:$0xff]
    %v274 = vld [vmem:[#allocation2 + $0x238] sm:$0xff]
    %v275 = vld [vmem:[#allocation2 + $0x240] sm:$0xff]
    %v276 = vld [vmem:[#allocation2 + $0x248] sm:$0xff]
    %v277 = vld [vmem:[#allocation2 + $0x250] sm:$0xff]
    %v278 = vld [vmem:[#allocation2 + $0x258] sm:$0xff]
    %v279 = vld [vmem:[#allocation2 + $0x260] sm:$0xff]
    %v280 = vld [vmem:[#allocation2 + $0x268] sm:$0xff]
    %v281 = vld [vmem:[#allocation2 + $0x270] sm:$0xff]
    %v282 = vld [vmem:[#allocation2 + $0x278] sm:$0xff]
    %v283 = vld [vmem:[#allocation2 + $0x280] sm:$0xff]
    %v284 = vld [vmem:[#allocation2 + $0x288] sm:$0xff]
    %v285 = vld [vmem:[#allocation2 + $0x290] sm:$0xff]
    %v286 = vld [vmem:[#allocation2 + $0x298] sm:$0xff]
    %v287 = vld [vmem:[#allocation2 + $0x2a0] sm:$0xff]
    %v288 = vld [vmem:[#allocation2 + $0x2a8] sm:$0xff]
    %v289 = vld [vmem:[#allocation2 + $0x2b0] sm:$0xff]
    %v290 = vld [vmem:[#allocation2 + $0x2b8] sm:$0xff]
    %v291 = vld [vmem:[#allocation2 + $0x2c0] sm:$0xff]
    %v292 = vld [vmem:[#allocation2 + $0x2c8] sm:$0xff]
    %v293 = vld [vmem:[#allocation2 + $0x2d0] sm:$0xff]
    %v294 = vld [vmem:[#allocation2 + $0x2d8] sm:$0xff]
    %v295 = vld [vmem:[#allocation2 + $0x2e0] sm:$0xff]
    %v296 = vld [vmem:[#allocation2 + $0x2e8] sm:$0xff]
    %v297 = vld [vmem:[#allocation2 + $0x2f0] sm:$0xff]
    %v298 = vld [vmem:[#allocation2 + $0x2f8] sm:$0xff]
    %vm299 = vcmask 785408
    %v301 = vsel %vm299, %v171, 0
    %v304 = vsel %vm299, %v172, 0
    %v307 = vsel %vm299, %v173, 0
    %v310 = vsel %vm299, %v174, 0
    %v313 = vsel %vm299, %v175, 0
    %v316 = vsel %vm299, %v176, 0
    %v319 = vsel %vm299, %v177, 0
    %v322 = vsel %vm299, %v178, 0
    %v325 = vsel %vm299, %v179, 0
    %v328 = vsel %vm299, %v180, 0
    %v331 = vsel %vm299, %v181, 0
    %v334 = vsel %vm299, %v182, 0
    %v337 = vsel %vm299, %v183, 0
    %v340 = vsel %vm299, %v184, 0
    %v343 = vsel %vm299, %v185, 0
    %v346 = vsel %vm299, %v186, 0
    %348 = vmatprep.subr.mxu0 %v204
    %349 = vmatpush1.msra.mxu0 %v203
    %350 = vmatprep.subr.mxu0 %v212
    %351 = vmatpush1.msra.mxu0 %v211
    %352 = vmatprep.subr.mxu0 %v220
    %353 = vmatpush1.msra.mxu0 %v219
    %354 = vmatprep.subr.mxu0 %v228
    %355 = vmatpush1.msra.mxu0 %v227
    %356 = vmatprep.subr.mxu0 %v236
    %357 = vmatpush1.msra.mxu0 %v235
    %358 = vmatprep.subr.mxu0 %v244
    %359 = vmatpush1.msra.mxu0 %v243
    %360 = vmatprep.subr.mxu0 %v252
    %361 = vmatpush1.msra.mxu0 %v251
    %362 = vmatprep.subr.mxu0 %v260
    %363 = vmatpush1.msra.mxu0 %v259
    %364 = vmatprep.subr.mxu0 %v268
    %365 = vmatpush1.msra.mxu0 %v267
    %366 = vmatprep.subr.mxu0 %v276
    %367 = vmatpush1.msra.mxu0 %v275
    %368 = vmatprep.subr.mxu0 %v284
    %369 = vmatpush1.msra.mxu0 %v283
    %370 = vmatprep.subr.mxu0 %v292
    %371 = vmatpush1.msra.mxu0 %v291
    %372 = vmatprep.subr.mxu0 0.0
    %373 = vmatpush1.msra.mxu0 0.0
    %374 = vmatprep.subr.mxu0 0.0
    %375 = vmatpush1.msra.mxu0 0.0
    %376 = vmatprep.subr.mxu0 0.0
    %377 = vmatpush1.msra.mxu0 0.0
    %378 = vmatprep.subr.mxu0 0.0
    %379 = vmatpush1.msra.mxu0 0.0
    %380 = vmatprep.subr.mxu0 0.0
    %381 = vmatpush1.msra.mxu0 0.0
    %382 = vmatprep.subr.mxu0 0.0
    %383 = vmatpush1.msra.mxu0 0.0
    %384 = vmatprep.subr.mxu0 0.0
    %385 = vmatpush1.msra.mxu0 0.0
    %386 = vmatprep.subr.mxu0 0.0
    %387 = vmatpush1.msra.mxu0 0.0
    %388 = vmatprep.subr.mxu0 0.0
    %389 = vmatpush1.msra.mxu0 0.0
    %390 = vmatprep.subr.mxu0 0.0
    %391 = vmatpush1.msra.mxu0 0.0
    %392 = vmatprep.subr.mxu0 0.0
    %393 = vmatpush1.msra.mxu0 0.0
    %394 = vmatprep.subr.mxu0 0.0
    %395 = vmatpush1.msra.mxu0 0.0
    %396 = vmatprep.subr.mxu0 0.0
    %397 = vmatpush1.msra.mxu0 0.0
    %398 = vmatprep.subr.mxu0 0.0
    %399 = vmatpush1.msra.mxu0 0.0
    %400 = vmatprep.subr.mxu0 0.0
    %401 = vmatpush1.msra.mxu0 0.0
    %402 = vmatprep.subr.mxu0 0.0
    %403 = vmatpush1.msra.mxu0 0.0
    %404 = vmatprep.subr.mxu0 0.0
    %405 = vmatpush1.msra.mxu0 0.0
    %406 = vmatprep.subr.mxu0 0.0
    %407 = vmatpush1.msra.mxu0 0.0
    %408 = vmatprep.subr.mxu0 0.0
    %409 = vmatpush1.msra.mxu0 0.0
    %410 = vmatprep.subr.mxu0 0.0
    %411 = vmatpush1.msra.mxu0 0.0
    %412 = vmatprep.mubr.f32.mxu0 0.0
    %413 = vmatmul.mubr.f32.gmra.mrb[0].mxu0 %v301
    %v414 = vpop.f32.mrb[0].mxu0
    %v415 = vadd.f32 0.0, %v414
    %v416 = vpop.f32.mrb[0].mxu0
    %v417 = vadd.f32 0.0, %v416
    %418 = vmatprep.mubr.f32.mxu0 0.0
    %419 = vmatmul.mubr.f32.gmra.mrb[0].mxu0 %v304
    %v420 = vpop.f32.mrb[0].mxu0
    %v421 = vadd.f32 0.0, %v420
    %v422 = vpop.f32.mrb[0].mxu0
    %v423 = vadd.f32 0.0, %v422
    %424 = vmatprep.mubr.f32.mxu0 0.0
    %425 = vmatmul.mubr.f32.gmra.mrb[0].mxu0 %v307
    %v426 = vpop.f32.mrb[0].mxu0
    %v427 = vadd.f32 0.0, %v426
    %v428 = vpop.f32.mrb[0].mxu0
    %v429 = vadd.f32 0.0, %v428
    %430 = vmatprep.mubr.f32.mxu0 0.0
    %431 = vmatmul.mubr.f32.gmra.mrb[0].mxu0 %v310
    %v432 = vpop.f32.mrb[0].mxu0
    %v433 = vadd.f32 0.0, %v432
    %v434 = vpop.f32.mrb[0].mxu0
    %v435 = vadd.f32 0.0, %v434
    %436 = vmatprep.mubr.f32.mxu0 0.0
    %437 = vmatmul.mubr.f32.gmra.mrb[0].mxu0 %v313
    %v438 = vpop.f32.mrb[0].mxu0
    %v439 = vadd.f32 0.0, %v438
    %v440 = vpop.f32.mrb[0].mxu0
    %v441 = vadd.f32 0.0, %v440
    %442 = vmatprep.mubr.f32.mxu0 0.0
    %443 = vmatmul.mubr.f32.gmra.mrb[0].mxu0 %v316
    %v444 = vpop.f32.mrb[0].mxu0
    %v445 = vadd.f32 0.0, %v444
    %v446 = vpop.f32.mrb[0].mxu0
    %v447 = vadd.f32 0.0, %v446
    %448 = vmatprep.mubr.f32.mxu0 0.0
    %449 = vmatmul.mubr.f32.gmra.mrb[0].mxu0 %v319
    %v450 = vpop.f32.mrb[0].mxu0
    %v451 = vadd.f32 0.0, %v450
    %v452 = vpop.f32.mrb[0].mxu0
    %v453 = vadd.f32 0.0, %v452
    %454 = vmatprep.mubr.f32.mxu0 0.0
    %455 = vmatmul.mubr.f32.gmra.mrb[0].mxu0 %v322
    %v456 = vpop.f32.mrb[0].mxu0
    %v457 = vadd.f32 0.0, %v456
    %v458 = vpop.f32.mrb[0].mxu0
    %v459 = vadd.f32 0.0, %v458
    %460 = vmatprep.mubr.f32.mxu0 0.0
    %461 = vmatmul.mubr.f32.gmra.mrb[0].mxu0 %v325
    %v462 = vpop.f32.mrb[0].mxu0
    %v463 = vadd.f32 0.0, %v462
    %v464 = vpop.f32.mrb[0].mxu0
    %v465 = vadd.f32 0.0, %v464
    %466 = vmatprep.mubr.f32.mxu0 0.0
    %467 = vmatmul.mubr.f32.gmra.mrb[0].mxu0 %v328
    %v468 = vpop.f32.mrb[0].mxu0
    %v469 = vadd.f32 0.0, %v468
    %v470 = vpop.f32.mrb[0].mxu0
    %v471 = vadd.f32 0.0, %v470
    %472 = vmatprep.mubr.f32.mxu0 0.0
    %473 = vmatmul.mubr.f32.gmra.mrb[0].mxu0 %v331
    %v474 = vpop.f32.mrb[0].mxu0
    %v475 = vadd.f32 0.0, %v474
    %v476 = vpop.f32.mrb[0].mxu0
    %v477 = vadd.f32 0.0, %v476
    %478 = vmatprep.mubr.f32.mxu0 0.0
    %479 = vmatmul.mubr.f32.gmra.mrb[0].mxu0 %v334
    %v480 = vpop.f32.mrb[0].mxu0
    %v481 = vadd.f32 0.0, %v480
    %v482 = vpop.f32.mrb[0].mxu0
    %v483 = vadd.f32 0.0, %v482
    %484 = vmatprep.mubr.f32.mxu0 0.0
    %485 = vmatmul.mubr.f32.gmra.mrb[0].mxu0 %v337
    %v486 = vpop.f32.mrb[0].mxu0
    %v487 = vadd.f32 0.0, %v486
    %v488 = vpop.f32.mrb[0].mxu0
    %v489 = vadd.f32 0.0, %v488
    %490 = vmatprep.mubr.f32.mxu0 0.0
    %491 = vmatmul.mubr.f32.gmra.mrb[0].mxu0 %v340
    %v492 = vpop.f32.mrb[0].mxu0
    %v493 = vadd.f32 0.0, %v492
    %v494 = vpop.f32.mrb[0].mxu0
    %v495 = vadd.f32 0.0, %v494
    %496 = vmatprep.mubr.f32.mxu0 0.0
    %497 = vmatmul.mubr.f32.gmra.mrb[0].mxu0 %v343
    %v498 = vpop.f32.mrb[0].mxu0
    %v499 = vadd.f32 0.0, %v498
    %v500 = vpop.f32.mrb[0].mxu0
    %v501 = vadd.f32 0.0, %v500
    %502 = vmatprep.mubr.f32.mxu0 0.0
    %503 = vmatmul.mubr.f32.gmra.mrb[0].mxu0 %v346
    %v504 = vpop.f32.mrb[0].mxu0
    %v505 = vadd.f32 0.0, %v504
    %v506 = vpop.f32.mrb[0].mxu0
    %v507 = vadd.f32 0.0, %v506
    %508 = vdwg.mxu0
    %509 = vmatprep.subr.mxu0 %v206
    %510 = vmatpush1.msra.mxu0 %v205
    %511 = vmatprep.subr.mxu0 %v214
    %512 = vmatpush1.msra.mxu0 %v213
    %513 = vmatprep.subr.mxu0 %v222
    %514 = vmatpush1.msra.mxu0 %v221
    %515 = vmatprep.subr.mxu0 %v230
    %516 = vmatpush1.msra.mxu0 %v229
    %517 = vmatprep.subr.mxu0 %v238
    %518 = vmatpush1.msra.mxu0 %v237
    %519 = vmatprep.subr.mxu0 %v246
    %520 = vmatpush1.msra.mxu0 %v245
    %521 = vmatprep.subr.mxu0 %v254
    %522 = vmatpush1.msra.mxu0 %v253
    %523 = vmatprep.subr.mxu0 %v262
    %524 = vmatpush1.msra.mxu0 %v261
    %525 = vmatprep.subr.mxu0 %v270
    %526 = vmatpush1.msra.mxu0 %v269
    %527 = vmatprep.subr.mxu0 %v278
    %528 = vmatpush1.msra.mxu0 %v277
    %529 = vmatprep.subr.mxu0 %v286
    %530 = vmatpush1.msra.mxu0 %v285
    %531 = vmatprep.subr.mxu0 %v294
    %532 = vmatpush1.msra.mxu0 %v293
    %533 = vmatprep.subr.mxu0 0.0
    %534 = vmatpush1.msra.mxu0 0.0
    %535 = vmatprep.subr.mxu0 0.0
    %536 = vmatpush1.msra.mxu0 0.0
    %537 = vmatprep.subr.mxu0 0.0
    %538 = vmatpush1.msra.mxu0 0.0
    %539 = vmatprep.subr.mxu0 0.0
    %540 = vmatpush1.msra.mxu0 0.0
    %541 = vmatprep.subr.mxu0 0.0
    %542 = vmatpush1.msra.mxu0 0.0
    %543 = vmatprep.subr.mxu0 0.0
    %544 = vmatpush1.msra.mxu0 0.0
    %545 = vmatprep.subr.mxu0 0.0
    %546 = vmatpush1.msra.mxu0 0.0
    %547 = vmatprep.subr.mxu0 0.0
    %548 = vmatpush1.msra.mxu0 0.0
    %549 = vmatprep.subr.mxu0 0.0
    %550 = vmatpush1.msra.mxu0 0.0
    %551 = vmatprep.subr.mxu0 0.0
    %552 = vmatpush1.msra.mxu0 0.0
    %553 = vmatprep.subr.mxu0 0.0
    %554 = vmatpush1.msra.mxu0 0.0
    %555 = vmatprep.subr.mxu0 0.0
    %556 = vmatpush1.msra.mxu0 0.0
    %557 = vmatprep.subr.mxu0 0.0
    %558 = vmatpush1.msra.mxu0 0.0
    %559 = vmatprep.subr.mxu0 0.0
    %560 = vmatpush1.msra.mxu0 0.0
    %561 = vmatprep.subr.mxu0 0.0
    %562 = vmatpush1.msra.mxu0 0.0
    %563 = vmatprep.subr.mxu0 0.0
    %564 = vmatpush1.msra.mxu0 0.0
    %565 = vmatprep.subr.mxu0 0.0
    %566 = vmatpush1.msra.mxu0 0.0
    %567 = vmatprep.subr.mxu0 0.0
    %568 = vmatpush1.msra.mxu0 0.0
    %569 = vmatprep.subr.mxu0 0.0
    %570 = vmatpush1.msra.mxu0 0.0
    %571 = vmatprep.subr.mxu0 0.0
    %572 = vmatpush1.msra.mxu0 0.0
    %573 = vmatprep.mubr.f32.mxu0 0.0
    %574 = vmatmul.mubr.f32.gmra.mrb[0].mxu0 %v301
    %v575 = vpop.f32.mrb[0].mxu0
    %v576 = vadd.f32 0.0, %v575
    %v577 = vpop.f32.mrb[0].mxu0
    %v578 = vadd.f32 0.0, %v577
    %579 = vmatprep.mubr.f32.mxu0 0.0
    %580 = vmatmul.mubr.f32.gmra.mrb[0].mxu0 %v304
    %v581 = vpop.f32.mrb[0].mxu0
    %v582 = vadd.f32 0.0, %v581
    %v583 = vpop.f32.mrb[0].mxu0
    %v584 = vadd.f32 0.0, %v583
    %585 = vmatprep.mubr.f32.mxu0 0.0
    %586 = vmatmul.mubr.f32.gmra.mrb[0].mxu0 %v307
    %v587 = vpop.f32.mrb[0].mxu0
    %v588 = vadd.f32 0.0, %v587
    %v589 = vpop.f32.mrb[0].mxu0
    %v590 = vadd.f32 0.0, %v589
    %591 = vmatprep.mubr.f32.mxu0 0.0
    %592 = vmatmul.mubr.f32.gmra.mrb[0].mxu0 %v310
    %v593 = vpop.f32.mrb[0].mxu0
    %v594 = vadd.f32 0.0, %v593
    %v595 = vpop.f32.mrb[0].mxu0
    %v596 = vadd.f32 0.0, %v595
    %597 = vmatprep.mubr.f32.mxu0 0.0
    %598 = vmatmul.mubr.f32.gmra.mrb[0].mxu0 %v313
    %v599 = vpop.f32.mrb[0].mxu0
    %v600 = vadd.f32 0.0, %v599
    %v601 = vpop.f32.mrb[0].mxu0
    %v602 = vadd.f32 0.0, %v601
    %603 = vmatprep.mubr.f32.mxu0 0.0
    %604 = vmatmul.mubr.f32.gmra.mrb[0].mxu0 %v316
    %v605 = vpop.f32.mrb[0].mxu0
    %v606 = vadd.f32 0.0, %v605
    %v607 = vpop.f32.mrb[0].mxu0
    %v608 = vadd.f32 0.0, %v607
    %609 = vmatprep.mubr.f32.mxu0 0.0
    %610 = vmatmul.mubr.f32.gmra.mrb[0].mxu0 %v319
    %v611 = vpop.f32.mrb[0].mxu0
    %v612 = vadd.f32 0.0, %v611
    %v613 = vpop.f32.mrb[0].mxu0
    %v614 = vadd.f32 0.0, %v613
    %615 = vmatprep.mubr.f32.mxu0 0.0
    %616 = vmatmul.mubr.f32.gmra.mrb[0].mxu0 %v322
    %v617 = vpop.f32.mrb[0].mxu0
    %v618 = vadd.f32 0.0, %v617
    %v619 = vpop.f32.mrb[0].mxu0
    %v620 = vadd.f32 0.0, %v619
    %621 = vmatprep.mubr.f32.mxu0 0.0
    %622 = vmatmul.mubr.f32.gmra.mrb[0].mxu0 %v325
    %v623 = vpop.f32.mrb[0].mxu0
    %v624 = vadd.f32 0.0, %v623
    %v625 = vpop.f32.mrb[0].mxu0
    %v626 = vadd.f32 0.0, %v625
    %627 = vmatprep.mubr.f32.mxu0 0.0
    %628 = vmatmul.mubr.f32.gmra.mrb[0].mxu0 %v328
    %v629 = vpop.f32.mrb[0].mxu0
    %v630 = vadd.f32 0.0, %v629
    %v631 = vpop.f32.mrb[0].mxu0
    %v632 = vadd.f32 0.0, %v631
    %633 = vmatprep.mubr.f32.mxu0 0.0
    %634 = vmatmul.mubr.f32.gmra.mrb[0].mxu0 %v331
    %v635 = vpop.f32.mrb[0].mxu0
    %v636 = vadd.f32 0.0, %v635
    %v637 = vpop.f32.mrb[0].mxu0
    %v638 = vadd.f32 0.0, %v637
    %639 = vmatprep.mubr.f32.mxu0 0.0
    %640 = vmatmul.mubr.f32.gmra.mrb[0].mxu0 %v334
    %v641 = vpop.f32.mrb[0].mxu0
    %v642 = vadd.f32 0.0, %v641
    %v643 = vpop.f32.mrb[0].mxu0
    %v644 = vadd.f32 0.0, %v643
    %645 = vmatprep.mubr.f32.mxu0 0.0
    %646 = vmatmul.mubr.f32.gmra.mrb[0].mxu0 %v337
    %v647 = vpop.f32.mrb[0].mxu0
    %v648 = vadd.f32 0.0, %v647
    %v649 = vpop.f32.mrb[0].mxu0
    %v650 = vadd.f32 0.0, %v649
    %651 = vmatprep.mubr.f32.mxu0 0.0
    %652 = vmatmul.mubr.f32.gmra.mrb[0].mxu0 %v340
    %v653 = vpop.f32.mrb[0].mxu0
    %v654 = vadd.f32 0.0, %v653
    %v655 = vpop.f32.mrb[0].mxu0
    %v656 = vadd.f32 0.0, %v655
    %657 = vmatprep.mubr.f32.mxu0 0.0
    %658 = vmatmul.mubr.f32.gmra.mrb[0].mxu0 %v343
    %v659 = vpop.f32.mrb[0].mxu0
    %v660 = vadd.f32 0.0, %v659
    %v661 = vpop.f32.mrb[0].mxu0
    %v662 = vadd.f32 0.0, %v661
    %663 = vmatprep.mubr.f32.mxu0 0.0
    %664 = vmatmul.mubr.f32.gmra.mrb[0].mxu0 %v346
    %v665 = vpop.f32.mrb[0].mxu0
    %v666 = vadd.f32 0.0, %v665
    %v667 = vpop.f32.mrb[0].mxu0
    %v668 = vadd.f32 0.0, %v667
    %669 = vdwg.mxu0
    %670 = vmatprep.subr.mxu0 %v208
    %671 = vmatpush1.msra.mxu0 %v207
    %672 = vmatprep.subr.mxu0 %v216
    %673 = vmatpush1.msra.mxu0 %v215
    %674 = vmatprep.subr.mxu0 %v224
    %675 = vmatpush1.msra.mxu0 %v223
    %676 = vmatprep.subr.mxu0 %v232
    %677 = vmatpush1.msra.mxu0 %v231
    %678 = vmatprep.subr.mxu0 %v240
    %679 = vmatpush1.msra.mxu0 %v239
    %680 = vmatprep.subr.mxu0 %v248
    %681 = vmatpush1.msra.mxu0 %v247
    %682 = vmatprep.subr.mxu0 %v256
    %683 = vmatpush1.msra.mxu0 %v255
    %684 = vmatprep.subr.mxu0 %v264
    %685 = vmatpush1.msra.mxu0 %v263
    %686 = vmatprep.subr.mxu0 %v272
    %687 = vmatpush1.msra.mxu0 %v271
    %688 = vmatprep.subr.mxu0 %v280
    %689 = vmatpush1.msra.mxu0 %v279
    %690 = vmatprep.subr.mxu0 %v288
    %691 = vmatpush1.msra.mxu0 %v287
    %692 = vmatprep.subr.mxu0 %v296
    %693 = vmatpush1.msra.mxu0 %v295
    %694 = vmatprep.subr.mxu0 0.0
    %695 = vmatpush1.msra.mxu0 0.0
    %696 = vmatprep.subr.mxu0 0.0
    %697 = vmatpush1.msra.mxu0 0.0
    %698 = vmatprep.subr.mxu0 0.0
    %699 = vmatpush1.msra.mxu0 0.0
    %700 = vmatprep.subr.mxu0 0.0
    %701 = vmatpush1.msra.mxu0 0.0
    %702 = vmatprep.subr.mxu0 0.0
    %703 = vmatpush1.msra.mxu0 0.0
    %704 = vmatprep.subr.mxu0 0.0
    %705 = vmatpush1.msra.mxu0 0.0
    %706 = vmatprep.subr.mxu0 0.0
    %707 = vmatpush1.msra.mxu0 0.0
    %708 = vmatprep.subr.mxu0 0.0
    %709 = vmatpush1.msra.mxu0 0.0
    %710 = vmatprep.subr.mxu0 0.0
    %711 = vmatpush1.msra.mxu0 0.0
    %712 = vmatprep.subr.mxu0 0.0
    %713 = vmatpush1.msra.mxu0 0.0
    %714 = vmatprep.subr.mxu0 0.0
    %715 = vmatpush1.msra.mxu0 0.0
    %716 = vmatprep.subr.mxu0 0.0
    %717 = vmatpush1.msra.mxu0 0.0
    %718 = vmatprep.subr.mxu0 0.0
    %719 = vmatpush1.msra.mxu0 0.0
    %720 = vmatprep.subr.mxu0 0.0
    %721 = vmatpush1.msra.mxu0 0.0
    %722 = vmatprep.subr.mxu0 0.0
    %723 = vmatpush1.msra.mxu0 0.0
    %724 = vmatprep.subr.mxu0 0.0
    %725 = vmatpush1.msra.mxu0 0.0
    %726 = vmatprep.subr.mxu0 0.0
    %727 = vmatpush1.msra.mxu0 0.0
    %728 = vmatprep.subr.mxu0 0.0
    %729 = vmatpush1.msra.mxu0 0.0
    %730 = vmatprep.subr.mxu0 0.0
    %731 = vmatpush1.msra.mxu0 0.0
    %732 = vmatprep.subr.mxu0 0.0
    %733 = vmatpush1.msra.mxu0 0.0
    %734 = vmatprep.mubr.f32.mxu0 0.0
    %735 = vmatmul.mubr.f32.gmra.mrb[0].mxu0 %v301
    %v736 = vpop.f32.mrb[0].mxu0
    %v737 = vadd.f32 0.0, %v736
    %v738 = vpop.f32.mrb[0].mxu0
    %v739 = vadd.f32 0.0, %v738
    %740 = vmatprep.mubr.f32.mxu0 0.0
    %741 = vmatmul.mubr.f32.gmra.mrb[0].mxu0 %v304
    %v742 = vpop.f32.mrb[0].mxu0
    %v743 = vadd.f32 0.0, %v742
    %v744 = vpop.f32.mrb[0].mxu0
    %v745 = vadd.f32 0.0, %v744
    %746 = vmatprep.mubr.f32.mxu0 0.0
    %747 = vmatmul.mubr.f32.gmra.mrb[0].mxu0 %v307
    %v748 = vpop.f32.mrb[0].mxu0
    %v749 = vadd.f32 0.0, %v748
    %v750 = vpop.f32.mrb[0].mxu0
    %v751 = vadd.f32 0.0, %v750
    %752 = vmatprep.mubr.f32.mxu0 0.0
    %753 = vmatmul.mubr.f32.gmra.mrb[0].mxu0 %v310
    %v754 = vpop.f32.mrb[0].mxu0
    %v755 = vadd.f32 0.0, %v754
    %v756 = vpop.f32.mrb[0].mxu0
    %v757 = vadd.f32 0.0, %v756
    %758 = vmatprep.mubr.f32.mxu0 0.0
    %759 = vmatmul.mubr.f32.gmra.mrb[0].mxu0 %v313
    %v760 = vpop.f32.mrb[0].mxu0
    %v761 = vadd.f32 0.0, %v760
    %v762 = vpop.f32.mrb[0].mxu0
    %v763 = vadd.f32 0.0, %v762
    %764 = vmatprep.mubr.f32.mxu0 0.0
    %765 = vmatmul.mubr.f32.gmra.mrb[0].mxu0 %v316
    %v766 = vpop.f32.mrb[0].mxu0
    %v767 = vadd.f32 0.0, %v766
    %v768 = vpop.f32.mrb[0].mxu0
    %v769 = vadd.f32 0.0, %v768
    %770 = vmatprep.mubr.f32.mxu0 0.0
    %771 = vmatmul.mubr.f32.gmra.mrb[0].mxu0 %v319
    %v772 = vpop.f32.mrb[0].mxu0
    %v773 = vadd.f32 0.0, %v772
    %v774 = vpop.f32.mrb[0].mxu0
    %v775 = vadd.f32 0.0, %v774
    %776 = vmatprep.mubr.f32.mxu0 0.0
    %777 = vmatmul.mubr.f32.gmra.mrb[0].mxu0 %v322
    %v778 = vpop.f32.mrb[0].mxu0
    %v779 = vadd.f32 0.0, %v778
    %v780 = vpop.f32.mrb[0].mxu0
    %v781 = vadd.f32 0.0, %v780
    %782 = vmatprep.mubr.f32.mxu0 0.0
    %783 = vmatmul.mubr.f32.gmra.mrb[0].mxu0 %v325
    %v784 = vpop.f32.mrb[0].mxu0
    %v785 = vadd.f32 0.0, %v784
    %v786 = vpop.f32.mrb[0].mxu0
    %v787 = vadd.f32 0.0, %v786
    %788 = vmatprep.mubr.f32.mxu0 0.0
    %789 = vmatmul.mubr.f32.gmra.mrb[0].mxu0 %v328
    %v790 = vpop.f32.mrb[0].mxu0
    %v791 = vadd.f32 0.0, %v790
    %v792 = vpop.f32.mrb[0].mxu0
    %v793 = vadd.f32 0.0, %v792
    %794 = vmatprep.mubr.f32.mxu0 0.0
    %795 = vmatmul.mubr.f32.gmra.mrb[0].mxu0 %v331
    %v796 = vpop.f32.mrb[0].mxu0
    %v797 = vadd.f32 0.0, %v796
    %v798 = vpop.f32.mrb[0].mxu0
    %v799 = vadd.f32 0.0, %v798
    %800 = vmatprep.mubr.f32.mxu0 0.0
    %801 = vmatmul.mubr.f32.gmra.mrb[0].mxu0 %v334
    %v802 = vpop.f32.mrb[0].mxu0
    %v803 = vadd.f32 0.0, %v802
    %v804 = vpop.f32.mrb[0].mxu0
    %v805 = vadd.f32 0.0, %v804
    %806 = vmatprep.mubr.f32.mxu0 0.0
    %807 = vmatmul.mubr.f32.gmra.mrb[0].mxu0 %v337
    %v808 = vpop.f32.mrb[0].mxu0
    %v809 = vadd.f32 0.0, %v808
    %v810 = vpop.f32.mrb[0].mxu0
    %v811 = vadd.f32 0.0, %v810
    %812 = vmatprep.mubr.f32.mxu0 0.0
    %813 = vmatmul.mubr.f32.gmra.mrb[0].mxu0 %v340
    %v814 = vpop.f32.mrb[0].mxu0
    %v815 = vadd.f32 0.0, %v814
    %v816 = vpop.f32.mrb[0].mxu0
    %v817 = vadd.f32 0.0, %v816
    %818 = vmatprep.mubr.f32.mxu0 0.0
    %819 = vmatmul.mubr.f32.gmra.mrb[0].mxu0 %v343
    %v820 = vpop.f32.mrb[0].mxu0
    %v821 = vadd.f32 0.0, %v820
    %v822 = vpop.f32.mrb[0].mxu0
    %v823 = vadd.f32 0.0, %v822
    %824 = vmatprep.mubr.f32.mxu0 0.0
    %825 = vmatmul.mubr.f32.gmra.mrb[0].mxu0 %v346
    %v826 = vpop.f32.mrb[0].mxu0
    %v827 = vadd.f32 0.0, %v826
    %v828 = vpop.f32.mrb[0].mxu0
    %v829 = vadd.f32 0.0, %v828
    %830 = vdwg.mxu0
    %831 = vmatprep.subr.mxu0 %v210
    %832 = vmatpush1.msra.mxu0 %v209
    %833 = vmatprep.subr.mxu0 %v218
    %834 = vmatpush1.msra.mxu0 %v217
    %835 = vmatprep.subr.mxu0 %v226
    %836 = vmatpush1.msra.mxu0 %v225
    %837 = vmatprep.subr.mxu0 %v234
    %838 = vmatpush1.msra.mxu0 %v233
    %839 = vmatprep.subr.mxu0 %v242
    %840 = vmatpush1.msra.mxu0 %v241
    %841 = vmatprep.subr.mxu0 %v250
    %842 = vmatpush1.msra.mxu0 %v249
    %843 = vmatprep.subr.mxu0 %v258
    %844 = vmatpush1.msra.mxu0 %v257
    %845 = vmatprep.subr.mxu0 %v266
    %846 = vmatpush1.msra.mxu0 %v265
    %847 = vmatprep.subr.mxu0 %v274
    %848 = vmatpush1.msra.mxu0 %v273
    %849 = vmatprep.subr.mxu0 %v282
    %850 = vmatpush1.msra.mxu0 %v281
    %851 = vmatprep.subr.mxu0 %v290
    %852 = vmatpush1.msra.mxu0 %v289
    %853 = vmatprep.subr.mxu0 %v298
    %854 = vmatpush1.msra.mxu0 %v297
    %855 = vmatprep.subr.mxu0 0.0
    %856 = vmatpush1.msra.mxu0 0.0
    %857 = vmatprep.subr.mxu0 0.0
    %858 = vmatpush1.msra.mxu0 0.0
    %859 = vmatprep.subr.mxu0 0.0
    %860 = vmatpush1.msra.mxu0 0.0
    %861 = vmatprep.subr.mxu0 0.0
    %862 = vmatpush1.msra.mxu0 0.0
    %863 = vmatprep.subr.mxu0 0.0
    %864 = vmatpush1.msra.mxu0 0.0
    %865 = vmatprep.subr.mxu0 0.0
    %866 = vmatpush1.msra.mxu0 0.0
    %867 = vmatprep.subr.mxu0 0.0
    %868 = vmatpush1.msra.mxu0 0.0
    %869 = vmatprep.subr.mxu0 0.0
    %870 = vmatpush1.msra.mxu0 0.0
    %871 = vmatprep.subr.mxu0 0.0
    %872 = vmatpush1.msra.mxu0 0.0
    %873 = vmatprep.subr.mxu0 0.0
    %874 = vmatpush1.msra.mxu0 0.0
    %875 = vmatprep.subr.mxu0 0.0
    %876 = vmatpush1.msra.mxu0 0.0
    %877 = vmatprep.subr.mxu0 0.0
    %878 = vmatpush1.msra.mxu0 0.0
    %879 = vmatprep.subr.mxu0 0.0
    %880 = vmatpush1.msra.mxu0 0.0
    %881 = vmatprep.subr.mxu0 0.0
    %882 = vmatpush1.msra.mxu0 0.0
    %883 = vmatprep.subr.mxu0 0.0
    %884 = vmatpush1.msra.mxu0 0.0
    %885 = vmatprep.subr.mxu0 0.0
    %886 = vmatpush1.msra.mxu0 0.0
    %887 = vmatprep.subr.mxu0 0.0
    %888 = vmatpush1.msra.mxu0 0.0
    %889 = vmatprep.subr.mxu0 0.0
    %890 = vmatpush1.msra.mxu0 0.0
    %891 = vmatprep.subr.mxu0 0.0
    %892 = vmatpush1.msra.mxu0 0.0
    %893 = vmatprep.subr.mxu0 0.0
    %894 = vmatpush1.msra.mxu0 0.0
    %895 = vmatprep.mubr.f32.mxu0 0.0
    %896 = vmatmul.mubr.f32.gmra.mrb[0].mxu0 %v301
    %v897 = vpop.f32.mrb[0].mxu0
    %v898 = vadd.f32 0.0, %v897
    %v899 = vpop.f32.mrb[0].mxu0
    %v900 = vadd.f32 0.0, %v899
    %901 = vmatprep.mubr.f32.mxu0 0.0
    %902 = vmatmul.mubr.f32.gmra.mrb[0].mxu0 %v304
    %v903 = vpop.f32.mrb[0].mxu0
    %v904 = vadd.f32 0.0, %v903
    %v905 = vpop.f32.mrb[0].mxu0
    %v906 = vadd.f32 0.0, %v905
    %907 = vmatprep.mubr.f32.mxu0 0.0
    %908 = vmatmul.mubr.f32.gmra.mrb[0].mxu0 %v307
    %v909 = vpop.f32.mrb[0].mxu0
    %v910 = vadd.f32 0.0, %v909
    %v911 = vpop.f32.mrb[0].mxu0
    %v912 = vadd.f32 0.0, %v911
    %913 = vmatprep.mubr.f32.mxu0 0.0
    %914 = vmatmul.mubr.f32.gmra.mrb[0].mxu0 %v310
    %v915 = vpop.f32.mrb[0].mxu0
    %v916 = vadd.f32 0.0, %v915
    %v917 = vpop.f32.mrb[0].mxu0
    %v918 = vadd.f32 0.0, %v917
    %919 = vmatprep.mubr.f32.mxu0 0.0
    %920 = vmatmul.mubr.f32.gmra.mrb[0].mxu0 %v313
    %v921 = vpop.f32.mrb[0].mxu0
    %v922 = vadd.f32 0.0, %v921
    %v923 = vpop.f32.mrb[0].mxu0
    %v924 = vadd.f32 0.0, %v923
    %925 = vmatprep.mubr.f32.mxu0 0.0
    %926 = vmatmul.mubr.f32.gmra.mrb[0].mxu0 %v316
    %v927 = vpop.f32.mrb[0].mxu0
    %v928 = vadd.f32 0.0, %v927
    %v929 = vpop.f32.mrb[0].mxu0
    %v930 = vadd.f32 0.0, %v929
    %931 = vmatprep.mubr.f32.mxu0 0.0
    %932 = vmatmul.mubr.f32.gmra.mrb[0].mxu0 %v319
    %v933 = vpop.f32.mrb[0].mxu0
    %v934 = vadd.f32 0.0, %v933
    %v935 = vpop.f32.mrb[0].mxu0
    %v936 = vadd.f32 0.0, %v935
    %937 = vmatprep.mubr.f32.mxu0 0.0
    %938 = vmatmul.mubr.f32.gmra.mrb[0].mxu0 %v322
    %v939 = vpop.f32.mrb[0].mxu0
    %v940 = vadd.f32 0.0, %v939
    %v941 = vpop.f32.mrb[0].mxu0
    %v942 = vadd.f32 0.0, %v941
    %943 = vmatprep.mubr.f32.mxu0 0.0
    %944 = vmatmul.mubr.f32.gmra.mrb[0].mxu0 %v325
    %v945 = vpop.f32.mrb[0].mxu0
    %v946 = vadd.f32 0.0, %v945
    %v947 = vpop.f32.mrb[0].mxu0
    %v948 = vadd.f32 0.0, %v947
    %949 = vmatprep.mubr.f32.mxu0 0.0
    %950 = vmatmul.mubr.f32.gmra.mrb[0].mxu0 %v328
    %v951 = vpop.f32.mrb[0].mxu0
    %v952 = vadd.f32 0.0, %v951
    %v953 = vpop.f32.mrb[0].mxu0
    %v954 = vadd.f32 0.0, %v953
    %955 = vmatprep.mubr.f32.mxu0 0.0
    %956 = vmatmul.mubr.f32.gmra.mrb[0].mxu0 %v331
    %v957 = vpop.f32.mrb[0].mxu0
    %v958 = vadd.f32 0.0, %v957
    %v959 = vpop.f32.mrb[0].mxu0
    %v960 = vadd.f32 0.0, %v959
    %961 = vmatprep.mubr.f32.mxu0 0.0
    %962 = vmatmul.mubr.f32.gmra.mrb[0].mxu0 %v334
    %v963 = vpop.f32.mrb[0].mxu0
    %v964 = vadd.f32 0.0, %v963
    %v965 = vpop.f32.mrb[0].mxu0
    %v966 = vadd.f32 0.0, %v965
    %967 = vmatprep.mubr.f32.mxu0 0.0
    %968 = vmatmul.mubr.f32.gmra.mrb[0].mxu0 %v337
    %v969 = vpop.f32.mrb[0].mxu0
    %v970 = vadd.f32 0.0, %v969
    %v971 = vpop.f32.mrb[0].mxu0
    %v972 = vadd.f32 0.0, %v971
    %973 = vmatprep.mubr.f32.mxu0 0.0
    %974 = vmatmul.mubr.f32.gmra.mrb[0].mxu0 %v340
    %v975 = vpop.f32.mrb[0].mxu0
    %v976 = vadd.f32 0.0, %v975
    %v977 = vpop.f32.mrb[0].mxu0
    %v978 = vadd.f32 0.0, %v977
    %979 = vmatprep.mubr.f32.mxu0 0.0
    %980 = vmatmul.mubr.f32.gmra.mrb[0].mxu0 %v343
    %v981 = vpop.f32.mrb[0].mxu0
    %v982 = vadd.f32 0.0, %v981
    %v983 = vpop.f32.mrb[0].mxu0
    %v984 = vadd.f32 0.0, %v983
    %985 = vmatprep.mubr.f32.mxu0 0.0
    %986 = vmatmul.mubr.f32.gmra.mrb[0].mxu0 %v346
    %v987 = vpop.f32.mrb[0].mxu0
    %v988 = vadd.f32 0.0, %v987
    %v989 = vpop.f32.mrb[0].mxu0
    %v990 = vadd.f32 0.0, %v989
    %991 = vdwg.mxu0
    %v993 = vsel %vm299, %v187, 0
    %v996 = vsel %vm299, %v188, 0
    %v999 = vsel %vm299, %v189, 0
    %v1002 = vsel %vm299, %v190, 0
    %v1005 = vsel %vm299, %v191, 0
    %v1008 = vsel %vm299, %v192, 0
    %v1011 = vsel %vm299, %v193, 0
    %v1014 = vsel %vm299, %v194, 0
    %v1017 = vsel %vm299, %v195, 0
    %v1020 = vsel %vm299, %v196, 0
    %v1023 = vsel %vm299, %v197, 0
    %v1026 = vsel %vm299, %v198, 0
    %v1029 = vsel %vm299, %v199, 0
    %v1032 = vsel %vm299, %v200, 0
    %v1035 = vsel %vm299, %v201, 0
    %v1038 = vsel %vm299, %v202, 0
    %1040 = vmatprep.subr.mxu0 %v204
    %1041 = vmatpush1.msra.mxu0 %v203
    %1042 = vmatprep.subr.mxu0 %v212
    %1043 = vmatpush1.msra.mxu0 %v211
    %1044 = vmatprep.subr.mxu0 %v220
    %1045 = vmatpush1.msra.mxu0 %v219
    %1046 = vmatprep.subr.mxu0 %v228
    %1047 = vmatpush1.msra.mxu0 %v227
    %1048 = vmatprep.subr.mxu0 %v236
    %1049 = vmatpush1.msra.mxu0 %v235
    %1050 = vmatprep.subr.mxu0 %v244
    %1051 = vmatpush1.msra.mxu0 %v243
    %1052 = vmatprep.subr.mxu0 %v252
    %1053 = vmatpush1.msra.mxu0 %v251
    %1054 = vmatprep.subr.mxu0 %v260
    %1055 = vmatpush1.msra.mxu0 %v259
    %1056 = vmatprep.subr.mxu0 %v268
    %1057 = vmatpush1.msra.mxu0 %v267
    %1058 = vmatprep.subr.mxu0 %v276
    %1059 = vmatpush1.msra.mxu0 %v275
    %1060 = vmatprep.subr.mxu0 %v284
    %1061 = vmatpush1.msra.mxu0 %v283
    %1062 = vmatprep.subr.mxu0 %v292
    %1063 = vmatpush1.msra.mxu0 %v291
    %1064 = vmatprep.subr.mxu0 0.0
    %1065 = vmatpush1.msra.mxu0 0.0
    %1066 = vmatprep.subr.mxu0 0.0
    %1067 = vmatpush1.msra.mxu0 0.0
    %1068 = vmatprep.subr.mxu0 0.0
    %1069 = vmatpush1.msra.mxu0 0.0
    %1070 = vmatprep.subr.mxu0 0.0
    %1071 = vmatpush1.msra.mxu0 0.0
    %1072 = vmatprep.subr.mxu0 0.0
    %1073 = vmatpush1.msra.mxu0 0.0
    %1074 = vmatprep.subr.mxu0 0.0
    %1075 = vmatpush1.msra.mxu0 0.0
    %1076 = vmatprep.subr.mxu0 0.0
    %1077 = vmatpush1.msra.mxu0 0.0
    %1078 = vmatprep.subr.mxu0 0.0
    %1079 = vmatpush1.msra.mxu0 0.0
    %1080 = vmatprep.subr.mxu0 0.0
    %1081 = vmatpush1.msra.mxu0 0.0
    %1082 = vmatprep.subr.mxu0 0.0
    %1083 = vmatpush1.msra.mxu0 0.0
    %1084 = vmatprep.subr.mxu0 0.0
    %1085 = vmatpush1.msra.mxu0 0.0
    %1086 = vmatprep.subr.mxu0 0.0
    %1087 = vmatpush1.msra.mxu0 0.0
    %1088 = vmatprep.subr.mxu0 0.0
    %1089 = vmatpush1.msra.mxu0 0.0
    %1090 = vmatprep.subr.mxu0 0.0
    %1091 = vmatpush1.msra.mxu0 0.0
    %1092 = vmatprep.subr.mxu0 0.0
    %1093 = vmatpush1.msra.mxu0 0.0
    %1094 = vmatprep.subr.mxu0 0.0
    %1095 = vmatpush1.msra.mxu0 0.0
    %1096 = vmatprep.subr.mxu0 0.0
    %1097 = vmatpush1.msra.mxu0 0.0
    %1098 = vmatprep.subr.mxu0 0.0
    %1099 = vmatpush1.msra.mxu0 0.0
    %1100 = vmatprep.subr.mxu0 0.0
    %1101 = vmatpush1.msra.mxu0 0.0
    %1102 = vmatprep.subr.mxu0 0.0
    %1103 = vmatpush1.msra.mxu0 0.0
    %1104 = vmatprep.mubr.f32.mxu0 0.0
    %1105 = vmatmul.mubr.f32.gmra.mrb[0].mxu0 %v993
    %v1106 = vpop.f32.mrb[0].mxu0
    %v1107 = vadd.f32 0.0, %v1106
    %v1108 = vpop.f32.mrb[0].mxu0
    %v1109 = vadd.f32 0.0, %v1108
    %1110 = vmatprep.mubr.f32.mxu0 0.0
    %1111 = vmatmul.mubr.f32.gmra.mrb[0].mxu0 %v996
    %v1112 = vpop.f32.mrb[0].mxu0
    %v1113 = vadd.f32 0.0, %v1112
    %v1114 = vpop.f32.mrb[0].mxu0
    %v1115 = vadd.f32 0.0, %v1114
    %1116 = vmatprep.mubr.f32.mxu0 0.0
    %1117 = vmatmul.mubr.f32.gmra.mrb[0].mxu0 %v999
    %v1118 = vpop.f32.mrb[0].mxu0
    %v1119 = vadd.f32 0.0, %v1118
    %v1120 = vpop.f32.mrb[0].mxu0
    %v1121 = vadd.f32 0.0, %v1120
    %1122 = vmatprep.mubr.f32.mxu0 0.0
    %1123 = vmatmul.mubr.f32.gmra.mrb[0].mxu0 %v1002
    %v1124 = vpop.f32.mrb[0].mxu0
    %v1125 = vadd.f32 0.0, %v1124
    %v1126 = vpop.f32.mrb[0].mxu0
    %v1127 = vadd.f32 0.0, %v1126
    %1128 = vmatprep.mubr.f32.mxu0 0.0
    %1129 = vmatmul.mubr.f32.gmra.mrb[0].mxu0 %v1005
    %v1130 = vpop.f32.mrb[0].mxu0
    %v1131 = vadd.f32 0.0, %v1130
    %v1132 = vpop.f32.mrb[0].mxu0
    %v1133 = vadd.f32 0.0, %v1132
    %1134 = vmatprep.mubr.f32.mxu0 0.0
    %1135 = vmatmul.mubr.f32.gmra.mrb[0].mxu0 %v1008
    %v1136 = vpop.f32.mrb[0].mxu0
    %v1137 = vadd.f32 0.0, %v1136
    %v1138 = vpop.f32.mrb[0].mxu0
    %v1139 = vadd.f32 0.0, %v1138
    %1140 = vmatprep.mubr.f32.mxu0 0.0
    %1141 = vmatmul.mubr.f32.gmra.mrb[0].mxu0 %v1011
    %v1142 = vpop.f32.mrb[0].mxu0
    %v1143 = vadd.f32 0.0, %v1142
    %v1144 = vpop.f32.mrb[0].mxu0
    %v1145 = vadd.f32 0.0, %v1144
    %1146 = vmatprep.mubr.f32.mxu0 0.0
    %1147 = vmatmul.mubr.f32.gmra.mrb[0].mxu0 %v1014
    %v1148 = vpop.f32.mrb[0].mxu0
    %v1149 = vadd.f32 0.0, %v1148
    %v1150 = vpop.f32.mrb[0].mxu0
    %v1151 = vadd.f32 0.0, %v1150
    %1152 = vmatprep.mubr.f32.mxu0 0.0
    %1153 = vmatmul.mubr.f32.gmra.mrb[0].mxu0 %v1017
    %v1154 = vpop.f32.mrb[0].mxu0
    %v1155 = vadd.f32 0.0, %v1154
    %v1156 = vpop.f32.mrb[0].mxu0
    %v1157 = vadd.f32 0.0, %v1156
    %1158 = vmatprep.mubr.f32.mxu0 0.0
    %1159 = vmatmul.mubr.f32.gmra.mrb[0].mxu0 %v1020
    %v1160 = vpop.f32.mrb[0].mxu0
    %v1161 = vadd.f32 0.0, %v1160
    %v1162 = vpop.f32.mrb[0].mxu0
    %v1163 = vadd.f32 0.0, %v1162
    %1164 = vmatprep.mubr.f32.mxu0 0.0
    %1165 = vmatmul.mubr.f32.gmra.mrb[0].mxu0 %v1023
    %v1166 = vpop.f32.mrb[0].mxu0
    %v1167 = vadd.f32 0.0, %v1166
    %v1168 = vpop.f32.mrb[0].mxu0
    %v1169 = vadd.f32 0.0, %v1168
    %1170 = vmatprep.mubr.f32.mxu0 0.0
    %1171 = vmatmul.mubr.f32.gmra.mrb[0].mxu0 %v1026
    %v1172 = vpop.f32.mrb[0].mxu0
    %v1173 = vadd.f32 0.0, %v1172
    %v1174 = vpop.f32.mrb[0].mxu0
    %v1175 = vadd.f32 0.0, %v1174
    %1176 = vmatprep.mubr.f32.mxu0 0.0
    %1177 = vmatmul.mubr.f32.gmra.mrb[0].mxu0 %v1029
    %v1178 = vpop.f32.mrb[0].mxu0
    %v1179 = vadd.f32 0.0, %v1178
    %v1180 = vpop.f32.mrb[0].mxu0
    %v1181 = vadd.f32 0.0, %v1180
    %1182 = vmatprep.mubr.f32.mxu0 0.0
    %1183 = vmatmul.mubr.f32.gmra.mrb[0].mxu0 %v1032
    %v1184 = vpop.f32.mrb[0].mxu0
    %v1185 = vadd.f32 0.0, %v1184
    %v1186 = vpop.f32.mrb[0].mxu0
    %v1187 = vadd.f32 0.0, %v1186
    %1188 = vmatprep.mubr.f32.mxu0 0.0
    %1189 = vmatmul.mubr.f32.gmra.mrb[0].mxu0 %v1035
    %v1190 = vpop.f32.mrb[0].mxu0
    %v1191 = vadd.f32 0.0, %v1190
    %v1192 = vpop.f32.mrb[0].mxu0
    %v1193 = vadd.f32 0.0, %v1192
    %1194 = vmatprep.mubr.f32.mxu0 0.0
    %1195 = vmatmul.mubr.f32.gmra.mrb[0].mxu0 %v1038
    %v1196 = vpop.f32.mrb[0].mxu0
    %v1197 = vadd.f32 0.0, %v1196
    %v1198 = vpop.f32.mrb[0].mxu0
    %v1199 = vadd.f32 0.0, %v1198
    %1200 = vdwg.mxu0
    %1201 = vmatprep.subr.mxu0 %v206
    %1202 = vmatpush1.msra.mxu0 %v205
    %1203 = vmatprep.subr.mxu0 %v214
    %1204 = vmatpush1.msra.mxu0 %v213
    %1205 = vmatprep.subr.mxu0 %v222
    %1206 = vmatpush1.msra.mxu0 %v221
    %1207 = vmatprep.subr.mxu0 %v230
    %1208 = vmatpush1.msra.mxu0 %v229
    %1209 = vmatprep.subr.mxu0 %v238
    %1210 = vmatpush1.msra.mxu0 %v237
    %1211 = vmatprep.subr.mxu0 %v246
    %1212 = vmatpush1.msra.mxu0 %v245
    %1213 = vmatprep.subr.mxu0 %v254
    %1214 = vmatpush1.msra.mxu0 %v253
    %1215 = vmatprep.subr.mxu0 %v262
    %1216 = vmatpush1.msra.mxu0 %v261
    %1217 = vmatprep.subr.mxu0 %v270
    %1218 = vmatpush1.msra.mxu0 %v269
    %1219 = vmatprep.subr.mxu0 %v278
    %1220 = vmatpush1.msra.mxu0 %v277
    %1221 = vmatprep.subr.mxu0 %v286
    %1222 = vmatpush1.msra.mxu0 %v285
    %1223 = vmatprep.subr.mxu0 %v294
    %1224 = vmatpush1.msra.mxu0 %v293
    %1225 = vmatprep.subr.mxu0 0.0
    %1226 = vmatpush1.msra.mxu0 0.0
    %1227 = vmatprep.subr.mxu0 0.0
    %1228 = vmatpush1.msra.mxu0 0.0
    %1229 = vmatprep.subr.mxu0 0.0
    %1230 = vmatpush1.msra.mxu0 0.0
    %1231 = vmatprep.subr.mxu0 0.0
    %1232 = vmatpush1.msra.mxu0 0.0
    %1233 = vmatprep.subr.mxu0 0.0
    %1234 = vmatpush1.msra.mxu0 0.0
    %1235 = vmatprep.subr.mxu0 0.0
    %1236 = vmatpush1.msra.mxu0 0.0
    %1237 = vmatprep.subr.mxu0 0.0
    %1238 = vmatpush1.msra.mxu0 0.0
    %1239 = vmatprep.subr.mxu0 0.0
    %1240 = vmatpush1.msra.mxu0 0.0
    %1241 = vmatprep.subr.mxu0 0.0
    %1242 = vmatpush1.msra.mxu0 0.0
    %1243 = vmatprep.subr.mxu0 0.0
    %1244 = vmatpush1.msra.mxu0 0.0
    %1245 = vmatprep.subr.mxu0 0.0
    %1246 = vmatpush1.msra.mxu0 0.0
    %1247 = vmatprep.subr.mxu0 0.0
    %1248 = vmatpush1.msra.mxu0 0.0
    %1249 = vmatprep.subr.mxu0 0.0
    %1250 = vmatpush1.msra.mxu0 0.0
    %1251 = vmatprep.subr.mxu0 0.0
    %1252 = vmatpush1.msra.mxu0 0.0
    %1253 = vmatprep.subr.mxu0 0.0
    %1254 = vmatpush1.msra.mxu0 0.0
    %1255 = vmatprep.subr.mxu0 0.0
    %1256 = vmatpush1.msra.mxu0 0.0
    %1257 = vmatprep.subr.mxu0 0.0
    %1258 = vmatpush1.msra.mxu0 0.0
    %1259 = vmatprep.subr.mxu0 0.0
    %1260 = vmatpush1.msra.mxu0 0.0
    %1261 = vmatprep.subr.mxu0 0.0
    %1262 = vmatpush1.msra.mxu0 0.0
    %1263 = vmatprep.subr.mxu0 0.0
    %1264 = vmatpush1.msra.mxu0 0.0
    %1265 = vmatprep.mubr.f32.mxu0 0.0
    %1266 = vmatmul.mubr.f32.gmra.mrb[0].mxu0 %v993
    %v1267 = vpop.f32.mrb[0].mxu0
    %v1268 = vadd.f32 0.0, %v1267
    %v1269 = vpop.f32.mrb[0].mxu0
    %v1270 = vadd.f32 0.0, %v1269
    %1271 = vmatprep.mubr.f32.mxu0 0.0
    %1272 = vmatmul.mubr.f32.gmra.mrb[0].mxu0 %v996
    %v1273 = vpop.f32.mrb[0].mxu0
    %v1274 = vadd.f32 0.0, %v1273
    %v1275 = vpop.f32.mrb[0].mxu0
    %v1276 = vadd.f32 0.0, %v1275
    %1277 = vmatprep.mubr.f32.mxu0 0.0
    %1278 = vmatmul.mubr.f32.gmra.mrb[0].mxu0 %v999
    %v1279 = vpop.f32.mrb[0].mxu0
    %v1280 = vadd.f32 0.0, %v1279
    %v1281 = vpop.f32.mrb[0].mxu0
    %v1282 = vadd.f32 0.0, %v1281
    %1283 = vmatprep.mubr.f32.mxu0 0.0
    %1284 = vmatmul.mubr.f32.gmra.mrb[0].mxu0 %v1002
    %v1285 = vpop.f32.mrb[0].mxu0
    %v1286 = vadd.f32 0.0, %v1285
    %v1287 = vpop.f32.mrb[0].mxu0
    %v1288 = vadd.f32 0.0, %v1287
    %1289 = vmatprep.mubr.f32.mxu0 0.0
    %1290 = vmatmul.mubr.f32.gmra.mrb[0].mxu0 %v1005
    %v1291 = vpop.f32.mrb[0].mxu0
    %v1292 = vadd.f32 0.0, %v1291
    %v1293 = vpop.f32.mrb[0].mxu0
    %v1294 = vadd.f32 0.0, %v1293
    %1295 = vmatprep.mubr.f32.mxu0 0.0
    %1296 = vmatmul.mubr.f32.gmra.mrb[0].mxu0 %v1008
    %v1297 = vpop.f32.mrb[0].mxu0
    %v1298 = vadd.f32 0.0, %v1297
    %v1299 = vpop.f32.mrb[0].mxu0
    %v1300 = vadd.f32 0.0, %v1299
    %1301 = vmatprep.mubr.f32.mxu0 0.0
    %1302 = vmatmul.mubr.f32.gmra.mrb[0].mxu0 %v1011
    %v1303 = vpop.f32.mrb[0].mxu0
    %v1304 = vadd.f32 0.0, %v1303
    %v1305 = vpop.f32.mrb[0].mxu0
    %v1306 = vadd.f32 0.0, %v1305
    %1307 = vmatprep.mubr.f32.mxu0 0.0
    %1308 = vmatmul.mubr.f32.gmra.mrb[0].mxu0 %v1014
    %v1309 = vpop.f32.mrb[0].mxu0
    %v1310 = vadd.f32 0.0, %v1309
    %v1311 = vpop.f32.mrb[0].mxu0
    %v1312 = vadd.f32 0.0, %v1311
    %1313 = vmatprep.mubr.f32.mxu0 0.0
    %1314 = vmatmul.mubr.f32.gmra.mrb[0].mxu0 %v1017
    %v1315 = vpop.f32.mrb[0].mxu0
    %v1316 = vadd.f32 0.0, %v1315
    %v1317 = vpop.f32.mrb[0].mxu0
    %v1318 = vadd.f32 0.0, %v1317
    %1319 = vmatprep.mubr.f32.mxu0 0.0
    %1320 = vmatmul.mubr.f32.gmra.mrb[0].mxu0 %v1020
    %v1321 = vpop.f32.mrb[0].mxu0
    %v1322 = vadd.f32 0.0, %v1321
    %v1323 = vpop.f32.mrb[0].mxu0
    %v1324 = vadd.f32 0.0, %v1323
    %1325 = vmatprep.mubr.f32.mxu0 0.0
    %1326 = vmatmul.mubr.f32.gmra.mrb[0].mxu0 %v1023
    %v1327 = vpop.f32.mrb[0].mxu0
    %v1328 = vadd.f32 0.0, %v1327
    %v1329 = vpop.f32.mrb[0].mxu0
    %v1330 = vadd.f32 0.0, %v1329
    %1331 = vmatprep.mubr.f32.mxu0 0.0
    %1332 = vmatmul.mubr.f32.gmra.mrb[0].mxu0 %v1026
    %v1333 = vpop.f32.mrb[0].mxu0
    %v1334 = vadd.f32 0.0, %v1333
    %v1335 = vpop.f32.mrb[0].mxu0
    %v1336 = vadd.f32 0.0, %v1335
    %1337 = vmatprep.mubr.f32.mxu0 0.0
    %1338 = vmatmul.mubr.f32.gmra.mrb[0].mxu0 %v1029
    %v1339 = vpop.f32.mrb[0].mxu0
    %v1340 = vadd.f32 0.0, %v1339
    %v1341 = vpop.f32.mrb[0].mxu0
    %v1342 = vadd.f32 0.0, %v1341
    %1343 = vmatprep.mubr.f32.mxu0 0.0
    %1344 = vmatmul.mubr.f32.gmra.mrb[0].mxu0 %v1032
    %v1345 = vpop.f32.mrb[0].mxu0
    %v1346 = vadd.f32 0.0, %v1345
    %v1347 = vpop.f32.mrb[0].mxu0
    %v1348 = vadd.f32 0.0, %v1347
    %1349 = vmatprep.mubr.f32.mxu0 0.0
    %1350 = vmatmul.mubr.f32.gmra.mrb[0].mxu0 %v1035
    %v1351 = vpop.f32.mrb[0].mxu0
    %v1352 = vadd.f32 0.0, %v1351
    %v1353 = vpop.f32.mrb[0].mxu0
    %v1354 = vadd.f32 0.0, %v1353
    %1355 = vmatprep.mubr.f32.mxu0 0.0
    %1356 = vmatmul.mubr.f32.gmra.mrb[0].mxu0 %v1038
    %v1357 = vpop.f32.mrb[0].mxu0
    %v1358 = vadd.f32 0.0, %v1357
    %v1359 = vpop.f32.mrb[0].mxu0
    %v1360 = vadd.f32 0.0, %v1359
    %1361 = vdwg.mxu0
    %1362 = vmatprep.subr.mxu0 %v208
    %1363 = vmatpush1.msra.mxu0 %v207
    %1364 = vmatprep.subr.mxu0 %v216
    %1365 = vmatpush1.msra.mxu0 %v215
    %1366 = vmatprep.subr.mxu0 %v224
    %1367 = vmatpush1.msra.mxu0 %v223
    %1368 = vmatprep.subr.mxu0 %v232
    %1369 = vmatpush1.msra.mxu0 %v231
    %1370 = vmatprep.subr.mxu0 %v240
    %1371 = vmatpush1.msra.mxu0 %v239
    %1372 = vmatprep.subr.mxu0 %v248
    %1373 = vmatpush1.msra.mxu0 %v247
    %1374 = vmatprep.subr.mxu0 %v256
    %1375 = vmatpush1.msra.mxu0 %v255
    %1376 = vmatprep.subr.mxu0 %v264
    %1377 = vmatpush1.msra.mxu0 %v263
    %1378 = vmatprep.subr.mxu0 %v272
    %1379 = vmatpush1.msra.mxu0 %v271
    %1380 = vmatprep.subr.mxu0 %v280
    %1381 = vmatpush1.msra.mxu0 %v279
    %1382 = vmatprep.subr.mxu0 %v288
    %1383 = vmatpush1.msra.mxu0 %v287
    %1384 = vmatprep.subr.mxu0 %v296
    %1385 = vmatpush1.msra.mxu0 %v295
    %1386 = vmatprep.subr.mxu0 0.0
    %1387 = vmatpush1.msra.mxu0 0.0
    %1388 = vmatprep.subr.mxu0 0.0
    %1389 = vmatpush1.msra.mxu0 0.0
    %1390 = vmatprep.subr.mxu0 0.0
    %1391 = vmatpush1.msra.mxu0 0.0
    %1392 = vmatprep.subr.mxu0 0.0
    %1393 = vmatpush1.msra.mxu0 0.0
    %1394 = vmatprep.subr.mxu0 0.0
    %1395 = vmatpush1.msra.mxu0 0.0
    %1396 = vmatprep.subr.mxu0 0.0
    %1397 = vmatpush1.msra.mxu0 0.0
    %1398 = vmatprep.subr.mxu0 0.0
    %1399 = vmatpush1.msra.mxu0 0.0
    %1400 = vmatprep.subr.mxu0 0.0
    %1401 = vmatpush1.msra.mxu0 0.0
    %1402 = vmatprep.subr.mxu0 0.0
    %1403 = vmatpush1.msra.mxu0 0.0
    %1404 = vmatprep.subr.mxu0 0.0
    %1405 = vmatpush1.msra.mxu0 0.0
    %1406 = vmatprep.subr.mxu0 0.0
    %1407 = vmatpush1.msra.mxu0 0.0
    %1408 = vmatprep.subr.mxu0 0.0
    %1409 = vmatpush1.msra.mxu0 0.0
    %1410 = vmatprep.subr.mxu0 0.0
    %1411 = vmatpush1.msra.mxu0 0.0
    %1412 = vmatprep.subr.mxu0 0.0
    %1413 = vmatpush1.msra.mxu0 0.0
    %1414 = vmatprep.subr.mxu0 0.0
    %1415 = vmatpush1.msra.mxu0 0.0
    %1416 = vmatprep.subr.mxu0 0.0
    %1417 = vmatpush1.msra.mxu0 0.0
    %1418 = vmatprep.subr.mxu0 0.0
    %1419 = vmatpush1.msra.mxu0 0.0
    %1420 = vmatprep.subr.mxu0 0.0
    %1421 = vmatpush1.msra.mxu0 0.0
    %1422 = vmatprep.subr.mxu0 0.0
    %1423 = vmatpush1.msra.mxu0 0.0
    %1424 = vmatprep.subr.mxu0 0.0
    %1425 = vmatpush1.msra.mxu0 0.0
    %1426 = vmatprep.mubr.f32.mxu0 0.0
    %1427 = vmatmul.mubr.f32.gmra.mrb[0].mxu0 %v993
    %v1428 = vpop.f32.mrb[0].mxu0
    %v1429 = vadd.f32 0.0, %v1428
    %v1430 = vpop.f32.mrb[0].mxu0
    %v1431 = vadd.f32 0.0, %v1430
    %1432 = vmatprep.mubr.f32.mxu0 0.0
    %1433 = vmatmul.mubr.f32.gmra.mrb[0].mxu0 %v996
    %v1434 = vpop.f32.mrb[0].mxu0
    %v1435 = vadd.f32 0.0, %v1434
    %v1436 = vpop.f32.mrb[0].mxu0
    %v1437 = vadd.f32 0.0, %v1436
    %1438 = vmatprep.mubr.f32.mxu0 0.0
    %1439 = vmatmul.mubr.f32.gmra.mrb[0].mxu0 %v999
    %v1440 = vpop.f32.mrb[0].mxu0
    %v1441 = vadd.f32 0.0, %v1440
    %v1442 = vpop.f32.mrb[0].mxu0
    %v1443 = vadd.f32 0.0, %v1442
    %1444 = vmatprep.mubr.f32.mxu0 0.0
    %1445 = vmatmul.mubr.f32.gmra.mrb[0].mxu0 %v1002
    %v1446 = vpop.f32.mrb[0].mxu0
    %v1447 = vadd.f32 0.0, %v1446
    %v1448 = vpop.f32.mrb[0].mxu0
    %v1449 = vadd.f32 0.0, %v1448
    %1450 = vmatprep.mubr.f32.mxu0 0.0
    %1451 = vmatmul.mubr.f32.gmra.mrb[0].mxu0 %v1005
    %v1452 = vpop.f32.mrb[0].mxu0
    %v1453 = vadd.f32 0.0, %v1452
    %v1454 = vpop.f32.mrb[0].mxu0
    %v1455 = vadd.f32 0.0, %v1454
    %1456 = vmatprep.mubr.f32.mxu0 0.0
    %1457 = vmatmul.mubr.f32.gmra.mrb[0].mxu0 %v1008
    %v1458 = vpop.f32.mrb[0].mxu0
    %v1459 = vadd.f32 0.0, %v1458
    %v1460 = vpop.f32.mrb[0].mxu0
    %v1461 = vadd.f32 0.0, %v1460
    %1462 = vmatprep.mubr.f32.mxu0 0.0
    %1463 = vmatmul.mubr.f32.gmra.mrb[0].mxu0 %v1011
    %v1464 = vpop.f32.mrb[0].mxu0
    %v1465 = vadd.f32 0.0, %v1464
    %v1466 = vpop.f32.mrb[0].mxu0
    %v1467 = vadd.f32 0.0, %v1466
    %1468 = vmatprep.mubr.f32.mxu0 0.0
    %1469 = vmatmul.mubr.f32.gmra.mrb[0].mxu0 %v1014
    %v1470 = vpop.f32.mrb[0].mxu0
    %v1471 = vadd.f32 0.0, %v1470
    %v1472 = vpop.f32.mrb[0].mxu0
    %v1473 = vadd.f32 0.0, %v1472
    %1474 = vmatprep.mubr.f32.mxu0 0.0
    %1475 = vmatmul.mubr.f32.gmra.mrb[0].mxu0 %v1017
    %v1476 = vpop.f32.mrb[0].mxu0
    %v1477 = vadd.f32 0.0, %v1476
    %v1478 = vpop.f32.mrb[0].mxu0
    %v1479 = vadd.f32 0.0, %v1478
    %1480 = vmatprep.mubr.f32.mxu0 0.0
    %1481 = vmatmul.mubr.f32.gmra.mrb[0].mxu0 %v1020
    %v1482 = vpop.f32.mrb[0].mxu0
    %v1483 = vadd.f32 0.0, %v1482
    %v1484 = vpop.f32.mrb[0].mxu0
    %v1485 = vadd.f32 0.0, %v1484
    %1486 = vmatprep.mubr.f32.mxu0 0.0
    %1487 = vmatmul.mubr.f32.gmra.mrb[0].mxu0 %v1023
    %v1488 = vpop.f32.mrb[0].mxu0
    %v1489 = vadd.f32 0.0, %v1488
    %v1490 = vpop.f32.mrb[0].mxu0
    %v1491 = vadd.f32 0.0, %v1490
    %1492 = vmatprep.mubr.f32.mxu0 0.0
    %1493 = vmatmul.mubr.f32.gmra.mrb[0].mxu0 %v1026
    %v1494 = vpop.f32.mrb[0].mxu0
    %v1495 = vadd.f32 0.0, %v1494
    %v1496 = vpop.f32.mrb[0].mxu0
    %v1497 = vadd.f32 0.0, %v1496
    %1498 = vmatprep.mubr.f32.mxu0 0.0
    %1499 = vmatmul.mubr.f32.gmra.mrb[0].mxu0 %v1029
    %v1500 = vpop.f32.mrb[0].mxu0
    %v1501 = vadd.f32 0.0, %v1500
    %v1502 = vpop.f32.mrb[0].mxu0
    %v1503 = vadd.f32 0.0, %v1502
    %1504 = vmatprep.mubr.f32.mxu0 0.0
    %1505 = vmatmul.mubr.f32.gmra.mrb[0].mxu0 %v1032
    %v1506 = vpop.f32.mrb[0].mxu0
    %v1507 = vadd.f32 0.0, %v1506
    %v1508 = vpop.f32.mrb[0].mxu0
    %v1509 = vadd.f32 0.0, %v1508
    %1510 = vmatprep.mubr.f32.mxu0 0.0
    %1511 = vmatmul.mubr.f32.gmra.mrb[0].mxu0 %v1035
    %v1512 = vpop.f32.mrb[0].mxu0
    %v1513 = vadd.f32 0.0, %v1512
    %v1514 = vpop.f32.mrb[0].mxu0
    %v1515 = vadd.f32 0.0, %v1514
    %1516 = vmatprep.mubr.f32.mxu0 0.0
    %1517 = vmatmul.mubr.f32.gmra.mrb[0].mxu0 %v1038
    %v1518 = vpop.f32.mrb[0].mxu0
    %v1519 = vadd.f32 0.0, %v1518
    %v1520 = vpop.f32.mrb[0].mxu0
    %v1521 = vadd.f32 0.0, %v1520
    %1522 = vdwg.mxu0
    %1523 = vmatprep.subr.mxu0 %v210
    %1524 = vmatpush1.msra.mxu0 %v209
    %1525 = vmatprep.subr.mxu0 %v218
    %1526 = vmatpush1.msra.mxu0 %v217
    %1527 = vmatprep.subr.mxu0 %v226
    %1528 = vmatpush1.msra.mxu0 %v225
    %1529 = vmatprep.subr.mxu0 %v234
    %1530 = vmatpush1.msra.mxu0 %v233
    %1531 = vmatprep.subr.mxu0 %v242
    %1532 = vmatpush1.msra.mxu0 %v241
    %1533 = vmatprep.subr.mxu0 %v250
    %1534 = vmatpush1.msra.mxu0 %v249
    %1535 = vmatprep.subr.mxu0 %v258
    %1536 = vmatpush1.msra.mxu0 %v257
    %1537 = vmatprep.subr.mxu0 %v266
    %1538 = vmatpush1.msra.mxu0 %v265
    %1539 = vmatprep.subr.mxu0 %v274
    %1540 = vmatpush1.msra.mxu0 %v273
    %1541 = vmatprep.subr.mxu0 %v282
    %1542 = vmatpush1.msra.mxu0 %v281
    %1543 = vmatprep.subr.mxu0 %v290
    %1544 = vmatpush1.msra.mxu0 %v289
    %1545 = vmatprep.subr.mxu0 %v298
    %1546 = vmatpush1.msra.mxu0 %v297
    %1547 = vmatprep.subr.mxu0 0.0
    %1548 = vmatpush1.msra.mxu0 0.0
    %1549 = vmatprep.subr.mxu0 0.0
    %1550 = vmatpush1.msra.mxu0 0.0
    %1551 = vmatprep.subr.mxu0 0.0
    %1552 = vmatpush1.msra.mxu0 0.0
    %1553 = vmatprep.subr.mxu0 0.0
    %1554 = vmatpush1.msra.mxu0 0.0
    %1555 = vmatprep.subr.mxu0 0.0
    %1556 = vmatpush1.msra.mxu0 0.0
    %1557 = vmatprep.subr.mxu0 0.0
    %1558 = vmatpush1.msra.mxu0 0.0
    %1559 = vmatprep.subr.mxu0 0.0
    %1560 = vmatpush1.msra.mxu0 0.0
    %1561 = vmatprep.subr.mxu0 0.0
    %1562 = vmatpush1.msra.mxu0 0.0
    %1563 = vmatprep.subr.mxu0 0.0
    %1564 = vmatpush1.msra.mxu0 0.0
    %1565 = vmatprep.subr.mxu0 0.0
    %1566 = vmatpush1.msra.mxu0 0.0
    %1567 = vmatprep.subr.mxu0 0.0
    %1568 = vmatpush1.msra.mxu0 0.0
    %1569 = vmatprep.subr.mxu0 0.0
    %1570 = vmatpush1.msra.mxu0 0.0
    %1571 = vmatprep.subr.mxu0 0.0
    %1572 = vmatpush1.msra.mxu0 0.0
    %1573 = vmatprep.subr.mxu0 0.0
    %1574 = vmatpush1.msra.mxu0 0.0
    %1575 = vmatprep.subr.mxu0 0.0
    %1576 = vmatpush1.msra.mxu0 0.0
    %1577 = vmatprep.subr.mxu0 0.0
    %1578 = vmatpush1.msra.mxu0 0.0
    %1579 = vmatprep.subr.mxu0 0.0
    %1580 = vmatpush1.msra.mxu0 0.0
    %1581 = vmatprep.subr.mxu0 0.0
    %1582 = vmatpush1.msra.mxu0 0.0
    %1583 = vmatprep.subr.mxu0 0.0
    %1584 = vmatpush1.msra.mxu0 0.0
    %1585 = vmatprep.subr.mxu0 0.0
    %1586 = vmatpush1.msra.mxu0 0.0
    %1587 = vmatprep.mubr.f32.mxu0 0.0
    %1588 = vmatmul.mubr.f32.gmra.mrb[0].mxu0 %v993
    %v1589 = vpop.f32.mrb[0].mxu0
    %v1590 = vadd.f32 0.0, %v1589
    %v1591 = vpop.f32.mrb[0].mxu0
    %v1592 = vadd.f32 0.0, %v1591
    %1593 = vmatprep.mubr.f32.mxu0 0.0
    %1594 = vmatmul.mubr.f32.gmra.mrb[0].mxu0 %v996
    %v1595 = vpop.f32.mrb[0].mxu0
    %v1596 = vadd.f32 0.0, %v1595
    %v1597 = vpop.f32.mrb[0].mxu0
    %v1598 = vadd.f32 0.0, %v1597
    %1599 = vmatprep.mubr.f32.mxu0 0.0
    %1600 = vmatmul.mubr.f32.gmra.mrb[0].mxu0 %v999
    %v1601 = vpop.f32.mrb[0].mxu0
    %v1602 = vadd.f32 0.0, %v1601
    %v1603 = vpop.f32.mrb[0].mxu0
    %v1604 = vadd.f32 0.0, %v1603
    %1605 = vmatprep.mubr.f32.mxu0 0.0
    %1606 = vmatmul.mubr.f32.gmra.mrb[0].mxu0 %v1002
    %v1607 = vpop.f32.mrb[0].mxu0
    %v1608 = vadd.f32 0.0, %v1607
    %v1609 = vpop.f32.mrb[0].mxu0
    %v1610 = vadd.f32 0.0, %v1609
    %1611 = vmatprep.mubr.f32.mxu0 0.0
    %1612 = vmatmul.mubr.f32.gmra.mrb[0].mxu0 %v1005
    %v1613 = vpop.f32.mrb[0].mxu0
    %v1614 = vadd.f32 0.0, %v1613
    %v1615 = vpop.f32.mrb[0].mxu0
    %v1616 = vadd.f32 0.0, %v1615
    %1617 = vmatprep.mubr.f32.mxu0 0.0
    %1618 = vmatmul.mubr.f32.gmra.mrb[0].mxu0 %v1008
    %v1619 = vpop.f32.mrb[0].mxu0
    %v1620 = vadd.f32 0.0, %v1619
    %v1621 = vpop.f32.mrb[0].mxu0
    %v1622 = vadd.f32 0.0, %v1621
    %1623 = vmatprep.mubr.f32.mxu0 0.0
    %1624 = vmatmul.mubr.f32.gmra.mrb[0].mxu0 %v1011
    %v1625 = vpop.f32.mrb[0].mxu0
    %v1626 = vadd.f32 0.0, %v1625
    %v1627 = vpop.f32.mrb[0].mxu0
    %v1628 = vadd.f32 0.0, %v1627
    %1629 = vmatprep.mubr.f32.mxu0 0.0
    %1630 = vmatmul.mubr.f32.gmra.mrb[0].mxu0 %v1014
    %v1631 = vpop.f32.mrb[0].mxu0
    %v1632 = vadd.f32 0.0, %v1631
    %v1633 = vpop.f32.mrb[0].mxu0
    %v1634 = vadd.f32 0.0, %v1633
    %1635 = vmatprep.mubr.f32.mxu0 0.0
    %1636 = vmatmul.mubr.f32.gmra.mrb[0].mxu0 %v1017
    %v1637 = vpop.f32.mrb[0].mxu0
    %v1638 = vadd.f32 0.0, %v1637
    %v1639 = vpop.f32.mrb[0].mxu0
    %v1640 = vadd.f32 0.0, %v1639
    %1641 = vmatprep.mubr.f32.mxu0 0.0
    %1642 = vmatmul.mubr.f32.gmra.mrb[0].mxu0 %v1020
    %v1643 = vpop.f32.mrb[0].mxu0
    %v1644 = vadd.f32 0.0, %v1643
    %v1645 = vpop.f32.mrb[0].mxu0
    %v1646 = vadd.f32 0.0, %v1645
    %1647 = vmatprep.mubr.f32.mxu0 0.0
    %1648 = vmatmul.mubr.f32.gmra.mrb[0].mxu0 %v1023
    %v1649 = vpop.f32.mrb[0].mxu0
    %v1650 = vadd.f32 0.0, %v1649
    %v1651 = vpop.f32.mrb[0].mxu0
    %v1652 = vadd.f32 0.0, %v1651
    %1653 = vmatprep.mubr.f32.mxu0 0.0
    %1654 = vmatmul.mubr.f32.gmra.mrb[0].mxu0 %v1026
    %v1655 = vpop.f32.mrb[0].mxu0
    %v1656 = vadd.f32 0.0, %v1655
    %v1657 = vpop.f32.mrb[0].mxu0
    %v1658 = vadd.f32 0.0, %v1657
    %1659 = vmatprep.mubr.f32.mxu0 0.0
    %1660 = vmatmul.mubr.f32.gmra.mrb[0].mxu0 %v1029
    %v1661 = vpop.f32.mrb[0].mxu0
    %v1662 = vadd.f32 0.0, %v1661
    %v1663 = vpop.f32.mrb[0].mxu0
    %v1664 = vadd.f32 0.0, %v1663
    %1665 = vmatprep.mubr.f32.mxu0 0.0
    %1666 = vmatmul.mubr.f32.gmra.mrb[0].mxu0 %v1032
    %v1667 = vpop.f32.mrb[0].mxu0
    %v1668 = vadd.f32 0.0, %v1667
    %v1669 = vpop.f32.mrb[0].mxu0
    %v1670 = vadd.f32 0.0, %v1669
    %1671 = vmatprep.mubr.f32.mxu0 0.0
    %1672 = vmatmul.mubr.f32.gmra.mrb[0].mxu0 %v1035
    %v1673 = vpop.f32.mrb[0].mxu0
    %v1674 = vadd.f32 0.0, %v1673
    %v1675 = vpop.f32.mrb[0].mxu0
    %v1676 = vadd.f32 0.0, %v1675
    %1677 = vmatprep.mubr.f32.mxu0 0.0
    %1678 = vmatmul.mubr.f32.gmra.mrb[0].mxu0 %v1038
    %v1679 = vpop.f32.mrb[0].mxu0
    %v1680 = vadd.f32 0.0, %v1679
    %v1681 = vpop.f32.mrb[0].mxu0
    %v1682 = vadd.f32 0.0, %v1681
    %1683 = vdwg.mxu0
    %v1684 = vmax.f32 %v415, %v1107
    %v1685 = vmax.f32 %v417, %v1109
    %v1686 = vmax.f32 %v576, %v1268
    %v1687 = vmax.f32 %v578, %v1270
    %v1688 = vmax.f32 %v737, %v1429
    %v1689 = vmax.f32 %v739, %v1431
    %v1690 = vmax.f32 %v898, %v1590
    %v1691 = vmax.f32 %v900, %v1592
    %v1692 = vmax.f32 %v421, %v1113
    %v1693 = vmax.f32 %v423, %v1115
    %v1694 = vmax.f32 %v582, %v1274
    %v1695 = vmax.f32 %v584, %v1276
    %v1696 = vmax.f32 %v743, %v1435
    %v1697 = vmax.f32 %v745, %v1437
    %v1698 = vmax.f32 %v904, %v1596
    %v1699 = vmax.f32 %v906, %v1598
    %v1700 = vmax.f32 %v427, %v1119
    %v1701 = vmax.f32 %v429, %v1121
    %v1702 = vmax.f32 %v588, %v1280
    %v1703 = vmax.f32 %v590, %v1282
    %v1704 = vmax.f32 %v749, %v1441
    %v1705 = vmax.f32 %v751, %v1443
    %v1706 = vmax.f32 %v910, %v1602
    %v1707 = vmax.f32 %v912, %v1604
    %v1708 = vmax.f32 %v433, %v1125
    %v1709 = vmax.f32 %v435, %v1127
    %v1710 = vmax.f32 %v594, %v1286
    %v1711 = vmax.f32 %v596, %v1288
    %v1712 = vmax.f32 %v755, %v1447
    %v1713 = vmax.f32 %v757, %v1449
    %v1714 = vmax.f32 %v916, %v1608
    %v1715 = vmax.f32 %v918, %v1610
    %v1716 = vmax.f32 %v439, %v1131
    %v1717 = vmax.f32 %v441, %v1133
    %v1718 = vmax.f32 %v600, %v1292
    %v1719 = vmax.f32 %v602, %v1294
    %v1720 = vmax.f32 %v761, %v1453
    %v1721 = vmax.f32 %v763, %v1455
    %v1722 = vmax.f32 %v922, %v1614
    %v1723 = vmax.f32 %v924, %v1616
    %v1724 = vmax.f32 %v445, %v1137
    %v1725 = vmax.f32 %v447, %v1139
    %v1726 = vmax.f32 %v606, %v1298
    %v1727 = vmax.f32 %v608, %v1300
    %v1728 = vmax.f32 %v767, %v1459
    %v1729 = vmax.f32 %v769, %v1461
    %v1730 = vmax.f32 %v928, %v1620
    %v1731 = vmax.f32 %v930, %v1622
    %v1732 = vmax.f32 %v451, %v1143
    %v1733 = vmax.f32 %v453, %v1145
    %v1734 = vmax.f32 %v612, %v1304
    %v1735 = vmax.f32 %v614, %v1306
    %v1736 = vmax.f32 %v773, %v1465
    %v1737 = vmax.f32 %v775, %v1467
    %v1738 = vmax.f32 %v934, %v1626
    %v1739 = vmax.f32 %v936, %v1628
    %v1740 = vmax.f32 %v457, %v1149
    %v1741 = vmax.f32 %v459, %v1151
    %v1742 = vmax.f32 %v618, %v1310
    %v1743 = vmax.f32 %v620, %v1312
    %v1744 = vmax.f32 %v779, %v1471
    %v1745 = vmax.f32 %v781, %v1473
    %v1746 = vmax.f32 %v940, %v1632
    %v1747 = vmax.f32 %v942, %v1634
    %v1748 = vmax.f32 %v463, %v1155
    %v1749 = vmax.f32 %v465, %v1157
    %v1750 = vmax.f32 %v624, %v1316
    %v1751 = vmax.f32 %v626, %v1318
    %v1752 = vmax.f32 %v785, %v1477
    %v1753 = vmax.f32 %v787, %v1479
    %v1754 = vmax.f32 %v946, %v1638
    %v1755 = vmax.f32 %v948, %v1640
    %v1756 = vmax.f32 %v469, %v1161
    %v1757 = vmax.f32 %v471, %v1163
    %v1758 = vmax.f32 %v630, %v1322
    %v1759 = vmax.f32 %v632, %v1324
    %v1760 = vmax.f32 %v791, %v1483
    %v1761 = vmax.f32 %v793, %v1485
    %v1762 = vmax.f32 %v952, %v1644
    %v1763 = vmax.f32 %v954, %v1646
    %v1764 = vmax.f32 %v475, %v1167
    %v1765 = vmax.f32 %v477, %v1169
    %v1766 = vmax.f32 %v636, %v1328
    %v1767 = vmax.f32 %v638, %v1330
    %v1768 = vmax.f32 %v797, %v1489
    %v1769 = vmax.f32 %v799, %v1491
    %v1770 = vmax.f32 %v958, %v1650
    %v1771 = vmax.f32 %v960, %v1652
    %v1772 = vmax.f32 %v481, %v1173
    %v1773 = vmax.f32 %v483, %v1175
    %v1774 = vmax.f32 %v642, %v1334
    %v1775 = vmax.f32 %v644, %v1336
    %v1776 = vmax.f32 %v803, %v1495
    %v1777 = vmax.f32 %v805, %v1497
    %v1778 = vmax.f32 %v964, %v1656
    %v1779 = vmax.f32 %v966, %v1658
    %v1780 = vmax.f32 %v487, %v1179
    %v1781 = vmax.f32 %v489, %v1181
    %v1782 = vmax.f32 %v648, %v1340
    %v1783 = vmax.f32 %v650, %v1342
    %v1784 = vmax.f32 %v809, %v1501
    %v1785 = vmax.f32 %v811, %v1503
    %v1786 = vmax.f32 %v970, %v1662
    %v1787 = vmax.f32 %v972, %v1664
    %v1788 = vmax.f32 %v493, %v1185
    %v1789 = vmax.f32 %v495, %v1187
    %v1790 = vmax.f32 %v654, %v1346
    %v1791 = vmax.f32 %v656, %v1348
    %v1792 = vmax.f32 %v815, %v1507
    %v1793 = vmax.f32 %v817, %v1509
    %v1794 = vmax.f32 %v976, %v1668
    %v1795 = vmax.f32 %v978, %v1670
    %v1796 = vmax.f32 %v499, %v1191
    %v1797 = vmax.f32 %v501, %v1193
    %v1798 = vmax.f32 %v660, %v1352
    %v1799 = vmax.f32 %v662, %v1354
    %v1800 = vmax.f32 %v821, %v1513
    %v1801 = vmax.f32 %v823, %v1515
    %v1802 = vmax.f32 %v982, %v1674
    %v1803 = vmax.f32 %v984, %v1676
    %v1804 = vmax.f32 %v505, %v1197
    %v1805 = vmax.f32 %v507, %v1199
    %v1806 = vmax.f32 %v666, %v1358
    %v1807 = vmax.f32 %v668, %v1360
    %v1808 = vmax.f32 %v827, %v1519
    %v1809 = vmax.f32 %v829, %v1521
    %v1810 = vmax.f32 %v988, %v1680
    %v1811 = vmax.f32 %v990, %v1682
    %v1812 = vmax.f32 %v1684, %v1688
    %v1813 = vmax.f32 %v1685, %v1689
    %v1814 = vmax.f32 %v1686, %v1690
    %v1815 = vmax.f32 %v1687, %v1691
    %v1816 = vmax.f32 %v1692, %v1696
    %v1817 = vmax.f32 %v1693, %v1697
    %v1818 = vmax.f32 %v1694, %v1698
    %v1819 = vmax.f32 %v1695, %v1699
    %v1820 = vmax.f32 %v1700, %v1704
    %v1821 = vmax.f32 %v1701, %v1705
    %v1822 = vmax.f32 %v1702, %v1706
    %v1823 = vmax.f32 %v1703, %v1707
    %v1824 = vmax.f32 %v1708, %v1712
    %v1825 = vmax.f32 %v1709, %v1713
    %v1826 = vmax.f32 %v1710, %v1714
    %v1827 = vmax.f32 %v1711, %v1715
    %v1828 = vmax.f32 %v1716, %v1720
    %v1829 = vmax.f32 %v1717, %v1721
    %v1830 = vmax.f32 %v1718, %v1722
    %v1831 = vmax.f32 %v1719, %v1723
    %v1832 = vmax.f32 %v1724, %v1728
    %v1833 = vmax.f32 %v1725, %v1729
    %v1834 = vmax.f32 %v1726, %v1730
    %v1835 = vmax.f32 %v1727, %v1731
    %v1836 = vmax.f32 %v1732, %v1736
    %v1837 = vmax.f32 %v1733, %v1737
    %v1838 = vmax.f32 %v1734, %v1738
    %v1839 = vmax.f32 %v1735, %v1739
    %v1840 = vmax.f32 %v1740, %v1744
    %v1841 = vmax.f32 %v1741, %v1745
    %v1842 = vmax.f32 %v1742, %v1746
    %v1843 = vmax.f32 %v1743, %v1747
    %v1844 = vmax.f32 %v1748, %v1752
    %v1845 = vmax.f32 %v1749, %v1753
    %v1846 = vmax.f32 %v1750, %v1754
    %v1847 = vmax.f32 %v1751, %v1755
    %v1848 = vmax.f32 %v1756, %v1760
    %v1849 = vmax.f32 %v1757, %v1761
    %v1850 = vmax.f32 %v1758, %v1762
    %v1851 = vmax.f32 %v1759, %v1763
    %v1852 = vmax.f32 %v1764, %v1768
    %v1853 = vmax.f32 %v1765, %v1769
    %v1854 = vmax.f32 %v1766, %v1770
    %v1855 = vmax.f32 %v1767, %v1771
    %v1856 = vmax.f32 %v1772, %v1776
    %v1857 = vmax.f32 %v1773, %v1777
    %v1858 = vmax.f32 %v1774, %v1778
    %v1859 = vmax.f32 %v1775, %v1779
    %v1860 = vmax.f32 %v1780, %v1784
    %v1861 = vmax.f32 %v1781, %v1785
    %v1862 = vmax.f32 %v1782, %v1786
    %v1863 = vmax.f32 %v1783, %v1787
    %v1864 = vmax.f32 %v1788, %v1792
    %v1865 = vmax.f32 %v1789, %v1793
    %v1866 = vmax.f32 %v1790, %v1794
    %v1867 = vmax.f32 %v1791, %v1795
    %v1868 = vmax.f32 %v1796, %v1800
    %v1869 = vmax.f32 %v1797, %v1801
    %v1870 = vmax.f32 %v1798, %v1802
    %v1871 = vmax.f32 %v1799, %v1803
    %v1872 = vmax.f32 %v1804, %v1808
    %v1873 = vmax.f32 %v1805, %v1809
    %v1874 = vmax.f32 %v1806, %v1810
    %v1875 = vmax.f32 %v1807, %v1811
    %v1876 = vlaneseq
    %v1877 = vshrl.u32 %v1876, 7
    %v1878 = vadd.s32 %v1877, 8
    %v1879 = vadd.s32 %v1877, 16
    %v1880 = vadd.s32 %v1877, 24
    %v1881 = vadd.s32 %v1877, 32
    %v1882 = vadd.s32 %v1877, 40
    %v1883 = vadd.s32 %v1877, 48
    %v1884 = vadd.s32 %v1877, 56
    %v1885 = vadd.s32 %v1877, 64
    %v1886 = vadd.s32 %v1877, 72
    %v1887 = vadd.s32 %v1877, 80
    %v1888 = vadd.s32 %v1877, 88
    %v1889 = vadd.s32 %v1877, 96
    %v1890 = vadd.s32 %v1877, 104
    %v1891 = vadd.s32 %v1877, 112
    %v1892 = vadd.s32 %v1877, 120
    %vm1893 = vcmp.ge.s32.totalorder %v1877, 8
    %vm1894 = vcmp.ge.s32.totalorder %v1878, 8
    %vm1895 = vcmp.ge.s32.totalorder %v1879, 8
    %vm1896 = vcmp.ge.s32.totalorder %v1880, 8
    %vm1897 = vcmp.ge.s32.totalorder %v1881, 8
    %vm1898 = vcmp.ge.s32.totalorder %v1882, 8
    %vm1899 = vcmp.ge.s32.totalorder %v1883, 8
    %vm1900 = vcmp.ge.s32.totalorder %v1884, 8
    %vm1901 = vcmp.ge.s32.totalorder %v1885, 8
    %vm1902 = vcmp.ge.s32.totalorder %v1886, 8
    %vm1903 = vcmp.ge.s32.totalorder %v1887, 8
    %vm1904 = vcmp.ge.s32.totalorder %v1888, 8
    %vm1905 = vcmp.ge.s32.totalorder %v1889, 8
    %vm1906 = vcmp.ge.s32.totalorder %v1890, 8
    %vm1907 = vcmp.ge.s32.totalorder %v1891, 8
    %vm1908 = vcmp.ge.s32.totalorder %v1892, 8
    %vm1909 = vcmp.lt.s32.totalorder %v1877, 120
    %vm1910 = vcmp.lt.s32.totalorder %v1878, 120
    %vm1911 = vcmp.lt.s32.totalorder %v1879, 120
    %vm1912 = vcmp.lt.s32.totalorder %v1880, 120
    %vm1913 = vcmp.lt.s32.totalorder %v1881, 120
    %vm1914 = vcmp.lt.s32.totalorder %v1882, 120
    %vm1915 = vcmp.lt.s32.totalorder %v1883, 120
    %vm1916 = vcmp.lt.s32.totalorder %v1884, 120
    %vm1917 = vcmp.lt.s32.totalorder %v1885, 120
    %vm1918 = vcmp.lt.s32.totalorder %v1886, 120
    %vm1919 = vcmp.lt.s32.totalorder %v1887, 120
    %vm1920 = vcmp.lt.s32.totalorder %v1888, 120
    %vm1921 = vcmp.lt.s32.totalorder %v1889, 120
    %vm1922 = vcmp.lt.s32.totalorder %v1890, 120
    %vm1923 = vcmp.lt.s32.totalorder %v1891, 120
    %vm1924 = vcmp.lt.s32.totalorder %v1892, 120
    %vm1925 = vmand %vm1893, %vm1909
    %vm1926 = vmand %vm1894, %vm1910
    %vm1927 = vmand %vm1895, %vm1911
    %vm1928 = vmand %vm1896, %vm1912
    %vm1929 = vmand %vm1897, %vm1913
    %vm1930 = vmand %vm1898, %vm1914
    %vm1931 = vmand %vm1899, %vm1915
    %vm1932 = vmand %vm1900, %vm1916
    %vm1933 = vmand %vm1901, %vm1917
    %vm1934 = vmand %vm1902, %vm1918
    %vm1935 = vmand %vm1903, %vm1919
    %vm1936 = vmand %vm1904, %vm1920
    %vm1937 = vmand %vm1905, %vm1921
    %vm1938 = vmand %vm1906, %vm1922
    %vm1939 = vmand %vm1907, %vm1923
    %vm1940 = vmand %vm1908, %vm1924
    %v1941 = vld [vmem:[#allocation4] sm:$0xf]
    %v1943 = vlaneseq
    %v1944 = vshrl.u32 %v1943, 7
    %v1945 = vsub.s32 0, %v1944
    %v1946 = vrot.slane %v1941, %v1945
    %v1947 = vlaneseq
    %v1948 = vshrl.u32 %v1947, 7
    %v1949 = vsub.s32 1, %v1948
    %v1950 = vrot.slane %v1941, %v1949
    %v1951 = vlaneseq
    %v1952 = vshrl.u32 %v1951, 7
    %v1953 = vsub.s32 2, %v1952
    %v1954 = vrot.slane %v1941, %v1953
    %v1955 = vlaneseq
    %v1956 = vshrl.u32 %v1955, 7
    %v1957 = vsub.s32 3, %v1956
    %v1958 = vrot.slane %v1941, %v1957
    %v1963 = vadd.f32 %v1812, %v1946
    %v1964 = vadd.f32 %v1813, %v1950
    %v1965 = vadd.f32 %v1814, %v1954
    %v1966 = vadd.f32 %v1815, %v1958
    %v1967 = vadd.f32 %v1816, %v1946
    %v1968 = vadd.f32 %v1817, %v1950
    %v1969 = vadd.f32 %v1818, %v1954
    %v1970 = vadd.f32 %v1819, %v1958
    %v1971 = vadd.f32 %v1820, %v1946
    %v1972 = vadd.f32 %v1821, %v1950
    %v1973 = vadd.f32 %v1822, %v1954
    %v1974 = vadd.f32 %v1823, %v1958
    %v1975 = vadd.f32 %v1824, %v1946
    %v1976 = vadd.f32 %v1825, %v1950
    %v1977 = vadd.f32 %v1826, %v1954
    %v1978 = vadd.f32 %v1827, %v1958
    %v1979 = vadd.f32 %v1828, %v1946
    %v1980 = vadd.f32 %v1829, %v1950
    %v1981 = vadd.f32 %v1830, %v1954
    %v1982 = vadd.f32 %v1831, %v1958
    %v1983 = vadd.f32 %v1832, %v1946
    %v1984 = vadd.f32 %v1833, %v1950
    %v1985 = vadd.f32 %v1834, %v1954
    %v1986 = vadd.f32 %v1835, %v1958
    %v1987 = vadd.f32 %v1836, %v1946
    %v1988 = vadd.f32 %v1837, %v1950
    %v1989 = vadd.f32 %v1838, %v1954
    %v1990 = vadd.f32 %v1839, %v1958
    %v1991 = vadd.f32 %v1840, %v1946
    %v1992 = vadd.f32 %v1841, %v1950
    %v1993 = vadd.f32 %v1842, %v1954
    %v1994 = vadd.f32 %v1843, %v1958
    %v1995 = vadd.f32 %v1844, %v1946
    %v1996 = vadd.f32 %v1845, %v1950
    %v1997 = vadd.f32 %v1846, %v1954
    %v1998 = vadd.f32 %v1847, %v1958
    %v1999 = vadd.f32 %v1848, %v1946
    %v2000 = vadd.f32 %v1849, %v1950
    %v2001 = vadd.f32 %v1850, %v1954
    %v2002 = vadd.f32 %v1851, %v1958
    %v2003 = vadd.f32 %v1852, %v1946
    %v2004 = vadd.f32 %v1853, %v1950
    %v2005 = vadd.f32 %v1854, %v1954
    %v2006 = vadd.f32 %v1855, %v1958
    %v2007 = vadd.f32 %v1856, %v1946
    %v2008 = vadd.f32 %v1857, %v1950
    %v2009 = vadd.f32 %v1858, %v1954
    %v2010 = vadd.f32 %v1859, %v1958
    %v2011 = vadd.f32 %v1860, %v1946
    %v2012 = vadd.f32 %v1861, %v1950
    %v2013 = vadd.f32 %v1862, %v1954
    %v2014 = vadd.f32 %v1863, %v1958
    %v2015 = vadd.f32 %v1864, %v1946
    %v2016 = vadd.f32 %v1865, %v1950
    %v2017 = vadd.f32 %v1866, %v1954
    %v2018 = vadd.f32 %v1867, %v1958
    %v2019 = vadd.f32 %v1868, %v1946
    %v2020 = vadd.f32 %v1869, %v1950
    %v2021 = vadd.f32 %v1870, %v1954
    %v2022 = vadd.f32 %v1871, %v1958
    %v2023 = vadd.f32 %v1872, %v1946
    %v2024 = vadd.f32 %v1873, %v1950
    %v2025 = vadd.f32 %v1874, %v1954
    %v2026 = vadd.f32 %v1875, %v1958
    %v2027 = vmax.f32 %v1963, 0.0
    %v2028 = vmax.f32 %v1964, 0.0
    %v2029 = vmax.f32 %v1965, 0.0
    %v2030 = vmax.f32 %v1966, 0.0
    %v2031 = vmax.f32 %v1967, 0.0
    %v2032 = vmax.f32 %v1968, 0.0
    %v2033 = vmax.f32 %v1969, 0.0
    %v2034 = vmax.f32 %v1970, 0.0
    %v2035 = vmax.f32 %v1971, 0.0
    %v2036 = vmax.f32 %v1972, 0.0
    %v2037 = vmax.f32 %v1973, 0.0
    %v2038 = vmax.f32 %v1974, 0.0
    %v2039 = vmax.f32 %v1975, 0.0
    %v2040 = vmax.f32 %v1976, 0.0
    %v2041 = vmax.f32 %v1977, 0.0
    %v2042 = vmax.f32 %v1978, 0.0
    %v2043 = vmax.f32 %v1979, 0.0
    %v2044 = vmax.f32 %v1980, 0.0
    %v2045 = vmax.f32 %v1981, 0.0
    %v2046 = vmax.f32 %v1982, 0.0
    %v2047 = vmax.f32 %v1983, 0.0
    %v2048 = vmax.f32 %v1984, 0.0
    %v2049 = vmax.f32 %v1985, 0.0
    %v2050 = vmax.f32 %v1986, 0.0
    %v2051 = vmax.f32 %v1987, 0.0
    %v2052 = vmax.f32 %v1988, 0.0
    %v2053 = vmax.f32 %v1989, 0.0
    %v2054 = vmax.f32 %v1990, 0.0
    %v2055 = vmax.f32 %v1991, 0.0
    %v2056 = vmax.f32 %v1992, 0.0
    %v2057 = vmax.f32 %v1993, 0.0
    %v2058 = vmax.f32 %v1994, 0.0
    %v2059 = vmax.f32 %v1995, 0.0
    %v2060 = vmax.f32 %v1996, 0.0
    %v2061 = vmax.f32 %v1997, 0.0
    %v2062 = vmax.f32 %v1998, 0.0
    %v2063 = vmax.f32 %v1999, 0.0
    %v2064 = vmax.f32 %v2000, 0.0
    %v2065 = vmax.f32 %v2001, 0.0
    %v2066 = vmax.f32 %v2002, 0.0
    %v2067 = vmax.f32 %v2003, 0.0
    %v2068 = vmax.f32 %v2004, 0.0
    %v2069 = vmax.f32 %v2005, 0.0
    %v2070 = vmax.f32 %v2006, 0.0
    %v2071 = vmax.f32 %v2007, 0.0
    %v2072 = vmax.f32 %v2008, 0.0
    %v2073 = vmax.f32 %v2009, 0.0
    %v2074 = vmax.f32 %v2010, 0.0
    %v2075 = vmax.f32 %v2011, 0.0
    %v2076 = vmax.f32 %v2012, 0.0
    %v2077 = vmax.f32 %v2013, 0.0
    %v2078 = vmax.f32 %v2014, 0.0
    %v2079 = vmax.f32 %v2015, 0.0
    %v2080 = vmax.f32 %v2016, 0.0
    %v2081 = vmax.f32 %v2017, 0.0
    %v2082 = vmax.f32 %v2018, 0.0
    %v2083 = vmax.f32 %v2019, 0.0
    %v2084 = vmax.f32 %v2020, 0.0
    %v2085 = vmax.f32 %v2021, 0.0
    %v2086 = vmax.f32 %v2022, 0.0
    %v2087 = vmax.f32 %v2023, 0.0
    %v2088 = vmax.f32 %v2024, 0.0
    %v2089 = vmax.f32 %v2025, 0.0
    %v2090 = vmax.f32 %v2026, 0.0
    %v2091 = vsel %vm1925, %v2027, 0.0
    %v2092 = vsel %vm1925, %v2028, 0.0
    %v2093 = vsel %vm1925, %v2029, 0.0
    %v2094 = vsel %vm1925, %v2030, 0.0
    %v2095 = vsel %vm1926, %v2031, 0.0
    %v2096 = vsel %vm1926, %v2032, 0.0
    %v2097 = vsel %vm1926, %v2033, 0.0
    %v2098 = vsel %vm1926, %v2034, 0.0
    %v2099 = vsel %vm1927, %v2035, 0.0
    %v2100 = vsel %vm1927, %v2036, 0.0
    %v2101 = vsel %vm1927, %v2037, 0.0
    %v2102 = vsel %vm1927, %v2038, 0.0
    %v2103 = vsel %vm1928, %v2039, 0.0
    %v2104 = vsel %vm1928, %v2040, 0.0
    %v2105 = vsel %vm1928, %v2041, 0.0
    %v2106 = vsel %vm1928, %v2042, 0.0
    %v2107 = vsel %vm1929, %v2043, 0.0
    %v2108 = vsel %vm1929, %v2044, 0.0
    %v2109 = vsel %vm1929, %v2045, 0.0
    %v2110 = vsel %vm1929, %v2046, 0.0
    %v2111 = vsel %vm1930, %v2047, 0.0
    %v2112 = vsel %vm1930, %v2048, 0.0
    %v2113 = vsel %vm1930, %v2049, 0.0
    %v2114 = vsel %vm1930, %v2050, 0.0
    %v2115 = vsel %vm1931, %v2051, 0.0
    %v2116 = vsel %vm1931, %v2052, 0.0
    %v2117 = vsel %vm1931, %v2053, 0.0
    %v2118 = vsel %vm1931, %v2054, 0.0
    %v2119 = vsel %vm1932, %v2055, 0.0
    %v2120 = vsel %vm1932, %v2056, 0.0
    %v2121 = vsel %vm1932, %v2057, 0.0
    %v2122 = vsel %vm1932, %v2058, 0.0
    %v2123 = vsel %vm1933, %v2059, 0.0
    %v2124 = vsel %vm1933, %v2060, 0.0
    %v2125 = vsel %vm1933, %v2061, 0.0
    %v2126 = vsel %vm1933, %v2062, 0.0
    %v2127 = vsel %vm1934, %v2063, 0.0
    %v2128 = vsel %vm1934, %v2064, 0.0
    %v2129 = vsel %vm1934, %v2065, 0.0
    %v2130 = vsel %vm1934, %v2066, 0.0
    %v2131 = vsel %vm1935, %v2067, 0.0
    %v2132 = vsel %vm1935, %v2068, 0.0
    %v2133 = vsel %vm1935, %v2069, 0.0
    %v2134 = vsel %vm1935, %v2070, 0.0
    %v2135 = vsel %vm1936, %v2071, 0.0
    %v2136 = vsel %vm1936, %v2072, 0.0
    %v2137 = vsel %vm1936, %v2073, 0.0
    %v2138 = vsel %vm1936, %v2074, 0.0
    %v2139 = vsel %vm1937, %v2075, 0.0
    %v2140 = vsel %vm1937, %v2076, 0.0
    %v2141 = vsel %vm1937, %v2077, 0.0
    %v2142 = vsel %vm1937, %v2078, 0.0
    %v2143 = vsel %vm1938, %v2079, 0.0
    %v2144 = vsel %vm1938, %v2080, 0.0
    %v2145 = vsel %vm1938, %v2081, 0.0
    %v2146 = vsel %vm1938, %v2082, 0.0
    %v2147 = vsel %vm1939, %v2083, 0.0
    %v2148 = vsel %vm1939, %v2084, 0.0
    %v2149 = vsel %vm1939, %v2085, 0.0
    %v2150 = vsel %vm1939, %v2086, 0.0
    %v2151 = vsel %vm1940, %v2087, 0.0
    %v2152 = vsel %vm1940, %v2088, 0.0
    %v2153 = vsel %vm1940, %v2089, 0.0
    %v2154 = vsel %vm1940, %v2090, 0.0
    %v2155 = vld [vmem:[#allocation6] sm:$0xff]
    %v2156 = vld [vmem:[#allocation6 + $0x8] sm:$0xff]
    %v2157 = vld [vmem:[#allocation6 + $0x10] sm:$0xff]
    %v2158 = vld [vmem:[#allocation6 + $0x18] sm:$0xff]
    %v2159 = vld [vmem:[#allocation6 + $0x20] sm:$0xff]
    %v2160 = vld [vmem:[#allocation6 + $0x28] sm:$0xff]
    %v2161 = vld [vmem:[#allocation6 + $0x30] sm:$0xff]
    %v2162 = vld [vmem:[#allocation6 + $0x38] sm:$0xff]
    %v2163 = vld [vmem:[#allocation6 + $0x40] sm:$0xff]
    %v2164 = vld [vmem:[#allocation6 + $0x48] sm:$0xff]
    %v2165 = vld [vmem:[#allocation6 + $0x50] sm:$0xff]
    %v2166 = vld [vmem:[#allocation6 + $0x58] sm:$0xff]
    %v2167 = vld [vmem:[#allocation6 + $0x60] sm:$0xff]
    %v2168 = vld [vmem:[#allocation6 + $0x68] sm:$0xff]
    %v2169 = vld [vmem:[#allocation6 + $0x70] sm:$0xff]
    %v2170 = vld [vmem:[#allocation6 + $0x78] sm:$0xff]
    %v2171 = vld [vmem:[#allocation6 + $0x80] sm:$0xff]
    %v2172 = vld [vmem:[#allocation6 + $0x88] sm:$0xff]
    %v2173 = vld [vmem:[#allocation6 + $0x90] sm:$0xff]
    %v2174 = vld [vmem:[#allocation6 + $0x98] sm:$0xff]
    %v2175 = vld [vmem:[#allocation6 + $0xa0] sm:$0xff]
    %v2176 = vld [vmem:[#allocation6 + $0xa8] sm:$0xff]
    %v2177 = vld [vmem:[#allocation6 + $0xb0] sm:$0xff]
    %v2178 = vld [vmem:[#allocation6 + $0xb8] sm:$0xff]
    %v2179 = vld [vmem:[#allocation6 + $0xc0] sm:$0xff]
    %v2180 = vld [vmem:[#allocation6 + $0xc8] sm:$0xff]
    %v2181 = vld [vmem:[#allocation6 + $0xd0] sm:$0xff]
    %v2182 = vld [vmem:[#allocation6 + $0xd8] sm:$0xff]
    %v2183 = vld [vmem:[#allocation6 + $0xe0] sm:$0xff]
    %v2184 = vld [vmem:[#allocation6 + $0xe8] sm:$0xff]
    %v2185 = vld [vmem:[#allocation6 + $0xf0] sm:$0xff]
    %v2186 = vld [vmem:[#allocation6 + $0xf8] sm:$0xff]
    %v2187 = vld [vmem:[#allocation6 + $0x100] sm:$0xff]
    %v2188 = vld [vmem:[#allocation6 + $0x108] sm:$0xff]
    %v2189 = vld [vmem:[#allocation6 + $0x110] sm:$0xff]
    %v2190 = vld [vmem:[#allocation6 + $0x118] sm:$0xff]
    %v2191 = vld [vmem:[#allocation6 + $0x120] sm:$0xff]
    %v2192 = vld [vmem:[#allocation6 + $0x128] sm:$0xff]
    %v2193 = vld [vmem:[#allocation6 + $0x130] sm:$0xff]
    %v2194 = vld [vmem:[#allocation6 + $0x138] sm:$0xff]
    %v2195 = vld [vmem:[#allocation6 + $0x140] sm:$0xff]
    %v2196 = vld [vmem:[#allocation6 + $0x148] sm:$0xff]
    %v2197 = vld [vmem:[#allocation6 + $0x150] sm:$0xff]
    %v2198 = vld [vmem:[#allocation6 + $0x158] sm:$0xff]
    %v2199 = vld [vmem:[#allocation6 + $0x160] sm:$0xff]
    %v2200 = vld [vmem:[#allocation6 + $0x168] sm:$0xff]
    %v2201 = vld [vmem:[#allocation6 + $0x170] sm:$0xff]
    %v2202 = vld [vmem:[#allocation6 + $0x178] sm:$0xff]
    %v2203 = vld [vmem:[#allocation6 + $0x180] sm:$0xff]
    %v2204 = vld [vmem:[#allocation6 + $0x188] sm:$0xff]
    %v2205 = vld [vmem:[#allocation6 + $0x190] sm:$0xff]
    %v2206 = vld [vmem:[#allocation6 + $0x198] sm:$0xff]
    %v2207 = vld [vmem:[#allocation6 + $0x1a0] sm:$0xff]
    %v2208 = vld [vmem:[#allocation6 + $0x1a8] sm:$0xff]
    %v2209 = vld [vmem:[#allocation6 + $0x1b0] sm:$0xff]
    %v2210 = vld [vmem:[#allocation6 + $0x1b8] sm:$0xff]
    %v2211 = vld [vmem:[#allocation6 + $0x1c0] sm:$0xff]
    %v2212 = vld [vmem:[#allocation6 + $0x1c8] sm:$0xff]
    %v2213 = vld [vmem:[#allocation6 + $0x1d0] sm:$0xff]
    %v2214 = vld [vmem:[#allocation6 + $0x1d8] sm:$0xff]
    %v2215 = vld [vmem:[#allocation6 + $0x1e0] sm:$0xff]
    %v2216 = vld [vmem:[#allocation6 + $0x1e8] sm:$0xff]
    %v2217 = vld [vmem:[#allocation6 + $0x1f0] sm:$0xff]
    %v2218 = vld [vmem:[#allocation6 + $0x1f8] sm:$0xff]
    %v2219 = vld [vmem:[#allocation6 + $0x200] sm:$0xff]
    %v2220 = vld [vmem:[#allocation6 + $0x208] sm:$0xff]
    %v2221 = vld [vmem:[#allocation6 + $0x210] sm:$0xff]
    %v2222 = vld [vmem:[#allocation6 + $0x218] sm:$0xff]
    %v2223 = vld [vmem:[#allocation6 + $0x220] sm:$0xff]
    %v2224 = vld [vmem:[#allocation6 + $0x228] sm:$0xff]
    %v2225 = vld [vmem:[#allocation6 + $0x230] sm:$0xff]
    %v2226 = vld [vmem:[#allocation6 + $0x238] sm:$0xff]
    %v2227 = vld [vmem:[#allocation6 + $0x240] sm:$0xff]
    %v2228 = vld [vmem:[#allocation6 + $0x248] sm:$0xff]
    %v2229 = vld [vmem:[#allocation6 + $0x250] sm:$0xff]
    %v2230 = vld [vmem:[#allocation6 + $0x258] sm:$0xff]
    %v2231 = vld [vmem:[#allocation6 + $0x260] sm:$0xff]
    %v2232 = vld [vmem:[#allocation6 + $0x268] sm:$0xff]
    %v2233 = vld [vmem:[#allocation6 + $0x270] sm:$0xff]
    %v2234 = vld [vmem:[#allocation6 + $0x278] sm:$0xff]
    %v2235 = vld [vmem:[#allocation6 + $0x280] sm:$0xff]
    %v2236 = vld [vmem:[#allocation6 + $0x288] sm:$0xff]
    %v2237 = vld [vmem:[#allocation6 + $0x290] sm:$0xff]
    %v2238 = vld [vmem:[#allocation6 + $0x298] sm:$0xff]
    %v2239 = vld [vmem:[#allocation6 + $0x2a0] sm:$0xff]
    %v2240 = vld [vmem:[#allocation6 + $0x2a8] sm:$0xff]
    %v2241 = vld [vmem:[#allocation6 + $0x2b0] sm:$0xff]
    %v2242 = vld [vmem:[#allocation6 + $0x2b8] sm:$0xff]
    %v2243 = vld [vmem:[#allocation6 + $0x2c0] sm:$0xff]
    %v2244 = vld [vmem:[#allocation6 + $0x2c8] sm:$0xff]
    %v2245 = vld [vmem:[#allocation6 + $0x2d0] sm:$0xff]
    %v2246 = vld [vmem:[#allocation6 + $0x2d8] sm:$0xff]
    %v2247 = vld [vmem:[#allocation6 + $0x2e0] sm:$0xff]
    %v2248 = vld [vmem:[#allocation6 + $0x2e8] sm:$0xff]
    %v2249 = vld [vmem:[#allocation6 + $0x2f0] sm:$0xff]
    %v2250 = vld [vmem:[#allocation6 + $0x2f8] sm:$0xff]
    %v2251 = vld [vmem:[#allocation6 + $0x300] sm:$0xff]
    %v2252 = vld [vmem:[#allocation6 + $0x308] sm:$0xff]
    %v2253 = vld [vmem:[#allocation6 + $0x310] sm:$0xff]
    %v2254 = vld [vmem:[#allocation6 + $0x318] sm:$0xff]
    %v2255 = vld [vmem:[#allocation6 + $0x320] sm:$0xff]
    %v2256 = vld [vmem:[#allocation6 + $0x328] sm:$0xff]
    %v2257 = vld [vmem:[#allocation6 + $0x330] sm:$0xff]
    %v2258 = vld [vmem:[#allocation6 + $0x338] sm:$0xff]
    %v2259 = vld [vmem:[#allocation6 + $0x340] sm:$0xff]
    %v2260 = vld [vmem:[#allocation6 + $0x348] sm:$0xff]
    %v2261 = vld [vmem:[#allocation6 + $0x350] sm:$0xff]
    %v2262 = vld [vmem:[#allocation6 + $0x358] sm:$0xff]
    %v2263 = vld [vmem:[#allocation6 + $0x360] sm:$0xff]
    %v2264 = vld [vmem:[#allocation6 + $0x368] sm:$0xff]
    %v2265 = vld [vmem:[#allocation6 + $0x370] sm:$0xff]
    %v2266 = vld [vmem:[#allocation6 + $0x378] sm:$0xff]
    %v2267 = vld [vmem:[#allocation6 + $0x380] sm:$0xff]
    %v2268 = vld [vmem:[#allocation6 + $0x388] sm:$0xff]
    %v2269 = vld [vmem:[#allocation6 + $0x390] sm:$0xff]
    %v2270 = vld [vmem:[#allocation6 + $0x398] sm:$0xff]
    %v2271 = vld [vmem:[#allocation6 + $0x3a0] sm:$0xff]
    %v2272 = vld [vmem:[#allocation6 + $0x3a8] sm:$0xff]
    %v2273 = vld [vmem:[#allocation6 + $0x3b0] sm:$0xff]
    %v2274 = vld [vmem:[#allocation6 + $0x3b8] sm:$0xff]
    %v2275 = vld [vmem:[#allocation6 + $0x3c0] sm:$0xff]
    %v2276 = vld [vmem:[#allocation6 + $0x3c8] sm:$0xff]
    %v2277 = vld [vmem:[#allocation6 + $0x3d0] sm:$0xff]
    %v2278 = vld [vmem:[#allocation6 + $0x3d8] sm:$0xff]
    %v2279 = vld [vmem:[#allocation6 + $0x3e0] sm:$0xff]
    %v2280 = vld [vmem:[#allocation6 + $0x3e8] sm:$0xff]
    %v2281 = vld [vmem:[#allocation6 + $0x3f0] sm:$0xff]
    %v2282 = vld [vmem:[#allocation6 + $0x3f8] sm:$0xff]
    %v2283 = vld [vmem:[#allocation6 + $0x400] sm:$0xff]
    %v2284 = vld [vmem:[#allocation6 + $0x408] sm:$0xff]
    %v2285 = vld [vmem:[#allocation6 + $0x410] sm:$0xff]
    %v2286 = vld [vmem:[#allocation6 + $0x418] sm:$0xff]
    %v2287 = vld [vmem:[#allocation6 + $0x420] sm:$0xff]
    %v2288 = vld [vmem:[#allocation6 + $0x428] sm:$0xff]
    %v2289 = vld [vmem:[#allocation6 + $0x430] sm:$0xff]
    %v2290 = vld [vmem:[#allocation6 + $0x438] sm:$0xff]
    %v2291 = vld [vmem:[#allocation6 + $0x440] sm:$0xff]
    %v2292 = vld [vmem:[#allocation6 + $0x448] sm:$0xff]
    %v2293 = vld [vmem:[#allocation6 + $0x450] sm:$0xff]
    %v2294 = vld [vmem:[#allocation6 + $0x458] sm:$0xff]
    %v2295 = vld [vmem:[#allocation6 + $0x460] sm:$0xff]
    %v2296 = vld [vmem:[#allocation6 + $0x468] sm:$0xff]
    %v2297 = vld [vmem:[#allocation6 + $0x470] sm:$0xff]
    %v2298 = vld [vmem:[#allocation6 + $0x478] sm:$0xff]
    %v2299 = vld [vmem:[#allocation6 + $0x480] sm:$0xff]
    %v2300 = vld [vmem:[#allocation6 + $0x488] sm:$0xff]
    %v2301 = vld [vmem:[#allocation6 + $0x490] sm:$0xff]
    %v2302 = vld [vmem:[#allocation6 + $0x498] sm:$0xff]
    %v2303 = vld [vmem:[#allocation6 + $0x4a0] sm:$0xff]
    %v2304 = vld [vmem:[#allocation6 + $0x4a8] sm:$0xff]
    %v2305 = vld [vmem:[#allocation6 + $0x4b0] sm:$0xff]
    %v2306 = vld [vmem:[#allocation6 + $0x4b8] sm:$0xff]
    %v2307 = vld [vmem:[#allocation6 + $0x4c0] sm:$0xff]
    %v2308 = vld [vmem:[#allocation6 + $0x4c8] sm:$0xff]
    %v2309 = vld [vmem:[#allocation6 + $0x4d0] sm:$0xff]
    %v2310 = vld [vmem:[#allocation6 + $0x4d8] sm:$0xff]
    %v2311 = vld [vmem:[#allocation6 + $0x4e0] sm:$0xff]
    %v2312 = vld [vmem:[#allocation6 + $0x4e8] sm:$0xff]
    %v2313 = vld [vmem:[#allocation6 + $0x4f0] sm:$0xff]
    %v2314 = vld [vmem:[#allocation6 + $0x4f8] sm:$0xff]
    %v2315 = vld [vmem:[#allocation6 + $0x500] sm:$0xff]
    %v2316 = vld [vmem:[#allocation6 + $0x508] sm:$0xff]
    %v2317 = vld [vmem:[#allocation6 + $0x510] sm:$0xff]
    %v2318 = vld [vmem:[#allocation6 + $0x518] sm:$0xff]
    %v2319 = vld [vmem:[#allocation6 + $0x520] sm:$0xff]
    %v2320 = vld [vmem:[#allocation6 + $0x528] sm:$0xff]
    %v2321 = vld [vmem:[#allocation6 + $0x530] sm:$0xff]
    %v2322 = vld [vmem:[#allocation6 + $0x538] sm:$0xff]
    %v2323 = vld [vmem:[#allocation6 + $0x540] sm:$0xff]
    %v2324 = vld [vmem:[#allocation6 + $0x548] sm:$0xff]
    %v2325 = vld [vmem:[#allocation6 + $0x550] sm:$0xff]
    %v2326 = vld [vmem:[#allocation6 + $0x558] sm:$0xff]
    %v2327 = vld [vmem:[#allocation6 + $0x560] sm:$0xff]
    %v2328 = vld [vmem:[#allocation6 + $0x568] sm:$0xff]
    %v2329 = vld [vmem:[#allocation6 + $0x570] sm:$0xff]
    %v2330 = vld [vmem:[#allocation6 + $0x578] sm:$0xff]
    %v2331 = vld [vmem:[#allocation6 + $0x580] sm:$0xff]
    %v2332 = vld [vmem:[#allocation6 + $0x588] sm:$0xff]
    %v2333 = vld [vmem:[#allocation6 + $0x590] sm:$0xff]
    %v2334 = vld [vmem:[#allocation6 + $0x598] sm:$0xff]
    %v2335 = vld [vmem:[#allocation6 + $0x5a0] sm:$0xff]
    %v2336 = vld [vmem:[#allocation6 + $0x5a8] sm:$0xff]
    %v2337 = vld [vmem:[#allocation6 + $0x5b0] sm:$0xff]
    %v2338 = vld [vmem:[#allocation6 + $0x5b8] sm:$0xff]
    %v2339 = vld [vmem:[#allocation6 + $0x5c0] sm:$0xff]
    %v2340 = vld [vmem:[#allocation6 + $0x5c8] sm:$0xff]
    %v2341 = vld [vmem:[#allocation6 + $0x5d0] sm:$0xff]
    %v2342 = vld [vmem:[#allocation6 + $0x5d8] sm:$0xff]
    %v2343 = vld [vmem:[#allocation6 + $0x5e0] sm:$0xff]
    %v2344 = vld [vmem:[#allocation6 + $0x5e8] sm:$0xff]
    %v2345 = vld [vmem:[#allocation6 + $0x5f0] sm:$0xff]
    %v2346 = vld [vmem:[#allocation6 + $0x5f8] sm:$0xff]
    %v2347 = vld [vmem:[#allocation6 + $0x600] sm:$0xff]
    %v2348 = vld [vmem:[#allocation6 + $0x608] sm:$0xff]
    %v2349 = vld [vmem:[#allocation6 + $0x610] sm:$0xff]
    %v2350 = vld [vmem:[#allocation6 + $0x618] sm:$0xff]
    %v2351 = vld [vmem:[#allocation6 + $0x620] sm:$0xff]
    %v2352 = vld [vmem:[#allocation6 + $0x628] sm:$0xff]
    %v2353 = vld [vmem:[#allocation6 + $0x630] sm:$0xff]
    %v2354 = vld [vmem:[#allocation6 + $0x638] sm:$0xff]
    %v2355 = vld [vmem:[#allocation6 + $0x640] sm:$0xff]
    %v2356 = vld [vmem:[#allocation6 + $0x648] sm:$0xff]
    %v2357 = vld [vmem:[#allocation6 + $0x650] sm:$0xff]
    %v2358 = vld [vmem:[#allocation6 + $0x658] sm:$0xff]
    %v2359 = vld [vmem:[#allocation6 + $0x660] sm:$0xff]
    %v2360 = vld [vmem:[#allocation6 + $0x668] sm:$0xff]
    %v2361 = vld [vmem:[#allocation6 + $0x670] sm:$0xff]
    %v2362 = vld [vmem:[#allocation6 + $0x678] sm:$0xff]
    %v2363 = vld [vmem:[#allocation6 + $0x680] sm:$0xff]
    %v2364 = vld [vmem:[#allocation6 + $0x688] sm:$0xff]
    %v2365 = vld [vmem:[#allocation6 + $0x690] sm:$0xff]
    %v2366 = vld [vmem:[#allocation6 + $0x698] sm:$0xff]
    %v2367 = vld [vmem:[#allocation6 + $0x6a0] sm:$0xff]
    %v2368 = vld [vmem:[#allocation6 + $0x6a8] sm:$0xff]
    %v2369 = vld [vmem:[#allocation6 + $0x6b0] sm:$0xff]
    %v2370 = vld [vmem:[#allocation6 + $0x6b8] sm:$0xff]
    %v2371 = vld [vmem:[#allocation6 + $0x6c0] sm:$0xff]
    %v2372 = vld [vmem:[#allocation6 + $0x6c8] sm:$0xff]
    %v2373 = vld [vmem:[#allocation6 + $0x6d0] sm:$0xff]
    %v2374 = vld [vmem:[#allocation6 + $0x6d8] sm:$0xff]
    %v2375 = vld [vmem:[#allocation6 + $0x6e0] sm:$0xff]
    %v2376 = vld [vmem:[#allocation6 + $0x6e8] sm:$0xff]
    %v2377 = vld [vmem:[#allocation6 + $0x6f0] sm:$0xff]
    %v2378 = vld [vmem:[#allocation6 + $0x6f8] sm:$0xff]
    %v2379 = vld [vmem:[#allocation6 + $0x700] sm:$0xff]
    %v2380 = vld [vmem:[#allocation6 + $0x708] sm:$0xff]
    %v2381 = vld [vmem:[#allocation6 + $0x710] sm:$0xff]
    %v2382 = vld [vmem:[#allocation6 + $0x718] sm:$0xff]
    %v2383 = vld [vmem:[#allocation6 + $0x720] sm:$0xff]
    %v2384 = vld [vmem:[#allocation6 + $0x728] sm:$0xff]
    %v2385 = vld [vmem:[#allocation6 + $0x730] sm:$0xff]
    %v2386 = vld [vmem:[#allocation6 + $0x738] sm:$0xff]
    %v2387 = vld [vmem:[#allocation6 + $0x740] sm:$0xff]
    %v2388 = vld [vmem:[#allocation6 + $0x748] sm:$0xff]
    %v2389 = vld [vmem:[#allocation6 + $0x750] sm:$0xff]
    %v2390 = vld [vmem:[#allocation6 + $0x758] sm:$0xff]
    %v2391 = vld [vmem:[#allocation6 + $0x760] sm:$0xff]
    %v2392 = vld [vmem:[#allocation6 + $0x768] sm:$0xff]
    %v2393 = vld [vmem:[#allocation6 + $0x770] sm:$0xff]
    %v2394 = vld [vmem:[#allocation6 + $0x778] sm:$0xff]
    %v2395 = vld [vmem:[#allocation6 + $0x780] sm:$0xff]
    %v2396 = vld [vmem:[#allocation6 + $0x788] sm:$0xff]
    %v2397 = vld [vmem:[#allocation6 + $0x790] sm:$0xff]
    %v2398 = vld [vmem:[#allocation6 + $0x798] sm:$0xff]
    %v2399 = vld [vmem:[#allocation6 + $0x7a0] sm:$0xff]
    %v2400 = vld [vmem:[#allocation6 + $0x7a8] sm:$0xff]
    %v2401 = vld [vmem:[#allocation6 + $0x7b0] sm:$0xff]
    %v2402 = vld [vmem:[#allocation6 + $0x7b8] sm:$0xff]
    %v2403 = vld [vmem:[#allocation6 + $0x7c0] sm:$0xff]
    %v2404 = vld [vmem:[#allocation6 + $0x7c8] sm:$0xff]
    %v2405 = vld [vmem:[#allocation6 + $0x7d0] sm:$0xff]
    %v2406 = vld [vmem:[#allocation6 + $0x7d8] sm:$0xff]
    %v2407 = vld [vmem:[#allocation6 + $0x7e0] sm:$0xff]
    %v2408 = vld [vmem:[#allocation6 + $0x7e8] sm:$0xff]
    %v2409 = vld [vmem:[#allocation6 + $0x7f0] sm:$0xff]
    %v2410 = vld [vmem:[#allocation6 + $0x7f8] sm:$0xff]
    %v2411 = vld [vmem:[#allocation6 + $0x800] sm:$0xff]
    %v2412 = vld [vmem:[#allocation6 + $0x808] sm:$0xff]
    %v2413 = vld [vmem:[#allocation6 + $0x810] sm:$0xff]
    %v2414 = vld [vmem:[#allocation6 + $0x818] sm:$0xff]
    %v2415 = vld [vmem:[#allocation6 + $0x820] sm:$0xff]
    %v2416 = vld [vmem:[#allocation6 + $0x828] sm:$0xff]
    %v2417 = vld [vmem:[#allocation6 + $0x830] sm:$0xff]
    %v2418 = vld [vmem:[#allocation6 + $0x838] sm:$0xff]
    %v2419 = vld [vmem:[#allocation6 + $0x840] sm:$0xff]
    %v2420 = vld [vmem:[#allocation6 + $0x848] sm:$0xff]
    %v2421 = vld [vmem:[#allocation6 + $0x850] sm:$0xff]
    %v2422 = vld [vmem:[#allocation6 + $0x858] sm:$0xff]
    %v2423 = vld [vmem:[#allocation6 + $0x860] sm:$0xff]
    %v2424 = vld [vmem:[#allocation6 + $0x868] sm:$0xff]
    %v2425 = vld [vmem:[#allocation6 + $0x870] sm:$0xff]
    %v2426 = vld [vmem:[#allocation6 + $0x878] sm:$0xff]
    %v2427 = vld [vmem:[#allocation6 + $0x880] sm:$0xff]
    %v2428 = vld [vmem:[#allocation6 + $0x888] sm:$0xff]
    %v2429 = vld [vmem:[#allocation6 + $0x890] sm:$0xff]
    %v2430 = vld [vmem:[#allocation6 + $0x898] sm:$0xff]
    %v2431 = vld [vmem:[#allocation6 + $0x8a0] sm:$0xff]
    %v2432 = vld [vmem:[#allocation6 + $0x8a8] sm:$0xff]
    %v2433 = vld [vmem:[#allocation6 + $0x8b0] sm:$0xff]
    %v2434 = vld [vmem:[#allocation6 + $0x8b8] sm:$0xff]
    %v2435 = vld [vmem:[#allocation6 + $0x8c0] sm:$0xff]
    %v2436 = vld [vmem:[#allocation6 + $0x8c8] sm:$0xff]
    %v2437 = vld [vmem:[#allocation6 + $0x8d0] sm:$0xff]
    %v2438 = vld [vmem:[#allocation6 + $0x8d8] sm:$0xff]
    %v2439 = vld [vmem:[#allocation6 + $0x8e0] sm:$0xff]
    %v2440 = vld [vmem:[#allocation6 + $0x8e8] sm:$0xff]
    %v2441 = vld [vmem:[#allocation6 + $0x8f0] sm:$0xff]
    %v2442 = vld [vmem:[#allocation6 + $0x8f8] sm:$0xff]
    %v2443 = vld [vmem:[#allocation6 + $0x900] sm:$0xff]
    %v2444 = vld [vmem:[#allocation6 + $0x908] sm:$0xff]
    %v2445 = vld [vmem:[#allocation6 + $0x910] sm:$0xff]
    %v2446 = vld [vmem:[#allocation6 + $0x918] sm:$0xff]
    %v2447 = vld [vmem:[#allocation6 + $0x920] sm:$0xff]
    %v2448 = vld [vmem:[#allocation6 + $0x928] sm:$0xff]
    %v2449 = vld [vmem:[#allocation6 + $0x930] sm:$0xff]
    %v2450 = vld [vmem:[#allocation6 + $0x938] sm:$0xff]
    %v2451 = vld [vmem:[#allocation6 + $0x940] sm:$0xff]
    %v2452 = vld [vmem:[#allocation6 + $0x948] sm:$0xff]
    %v2453 = vld [vmem:[#allocation6 + $0x950] sm:$0xff]
    %v2454 = vld [vmem:[#allocation6 + $0x958] sm:$0xff]
    %v2455 = vld [vmem:[#allocation6 + $0x960] sm:$0xff]
    %v2456 = vld [vmem:[#allocation6 + $0x968] sm:$0xff]
    %v2457 = vld [vmem:[#allocation6 + $0x970] sm:$0xff]
    %v2458 = vld [vmem:[#allocation6 + $0x978] sm:$0xff]
    %v2459 = vld [vmem:[#allocation6 + $0x980] sm:$0xff]
    %v2460 = vld [vmem:[#allocation6 + $0x988] sm:$0xff]
    %v2461 = vld [vmem:[#allocation6 + $0x990] sm:$0xff]
    %v2462 = vld [vmem:[#allocation6 + $0x998] sm:$0xff]
    %v2463 = vld [vmem:[#allocation6 + $0x9a0] sm:$0xff]
    %v2464 = vld [vmem:[#allocation6 + $0x9a8] sm:$0xff]
    %v2465 = vld [vmem:[#allocation6 + $0x9b0] sm:$0xff]
    %v2466 = vld [vmem:[#allocation6 + $0x9b8] sm:$0xff]
    %v2467 = vld [vmem:[#allocation6 + $0x9c0] sm:$0xff]
    %v2468 = vld [vmem:[#allocation6 + $0x9c8] sm:$0xff]
    %v2469 = vld [vmem:[#allocation6 + $0x9d0] sm:$0xff]
    %v2470 = vld [vmem:[#allocation6 + $0x9d8] sm:$0xff]
    %v2471 = vld [vmem:[#allocation6 + $0x9e0] sm:$0xff]
    %v2472 = vld [vmem:[#allocation6 + $0x9e8] sm:$0xff]
    %v2473 = vld [vmem:[#allocation6 + $0x9f0] sm:$0xff]
    %v2474 = vld [vmem:[#allocation6 + $0x9f8] sm:$0xff]
    %v2475 = vld [vmem:[#allocation6 + $0xa00] sm:$0xff]
    %v2476 = vld [vmem:[#allocation6 + $0xa08] sm:$0xff]
    %v2477 = vld [vmem:[#allocation6 + $0xa10] sm:$0xff]
    %v2478 = vld [vmem:[#allocation6 + $0xa18] sm:$0xff]
    %v2479 = vld [vmem:[#allocation6 + $0xa20] sm:$0xff]
    %v2480 = vld [vmem:[#allocation6 + $0xa28] sm:$0xff]
    %v2481 = vld [vmem:[#allocation6 + $0xa30] sm:$0xff]
    %v2482 = vld [vmem:[#allocation6 + $0xa38] sm:$0xff]
    %v2483 = vld [vmem:[#allocation6 + $0xa40] sm:$0xff]
    %v2484 = vld [vmem:[#allocation6 + $0xa48] sm:$0xff]
    %v2485 = vld [vmem:[#allocation6 + $0xa50] sm:$0xff]
    %v2486 = vld [vmem:[#allocation6 + $0xa58] sm:$0xff]
    %v2487 = vld [vmem:[#allocation6 + $0xa60] sm:$0xff]
    %v2488 = vld [vmem:[#allocation6 + $0xa68] sm:$0xff]
    %v2489 = vld [vmem:[#allocation6 + $0xa70] sm:$0xff]
    %v2490 = vld [vmem:[#allocation6 + $0xa78] sm:$0xff]
    %v2491 = vld [vmem:[#allocation6 + $0xa80] sm:$0xff]
    %v2492 = vld [vmem:[#allocation6 + $0xa88] sm:$0xff]
    %v2493 = vld [vmem:[#allocation6 + $0xa90] sm:$0xff]
    %v2494 = vld [vmem:[#allocation6 + $0xa98] sm:$0xff]
    %v2495 = vld [vmem:[#allocation6 + $0xaa0] sm:$0xff]
    %v2496 = vld [vmem:[#allocation6 + $0xaa8] sm:$0xff]
    %v2497 = vld [vmem:[#allocation6 + $0xab0] sm:$0xff]
    %v2498 = vld [vmem:[#allocation6 + $0xab8] sm:$0xff]
    %v2499 = vld [vmem:[#allocation6 + $0xac0] sm:$0xff]
    %v2500 = vld [vmem:[#allocation6 + $0xac8] sm:$0xff]
    %v2501 = vld [vmem:[#allocation6 + $0xad0] sm:$0xff]
    %v2502 = vld [vmem:[#allocation6 + $0xad8] sm:$0xff]
    %v2503 = vld [vmem:[#allocation6 + $0xae0] sm:$0xff]
    %v2504 = vld [vmem:[#allocation6 + $0xae8] sm:$0xff]
    %v2505 = vld [vmem:[#allocation6 + $0xaf0] sm:$0xff]
    %v2506 = vld [vmem:[#allocation6 + $0xaf8] sm:$0xff]
    %v2507 = vld [vmem:[#allocation6 + $0xb00] sm:$0xff]
    %v2508 = vld [vmem:[#allocation6 + $0xb08] sm:$0xff]
    %v2509 = vld [vmem:[#allocation6 + $0xb10] sm:$0xff]
    %v2510 = vld [vmem:[#allocation6 + $0xb18] sm:$0xff]
    %v2511 = vld [vmem:[#allocation6 + $0xb20] sm:$0xff]
    %v2512 = vld [vmem:[#allocation6 + $0xb28] sm:$0xff]
    %v2513 = vld [vmem:[#allocation6 + $0xb30] sm:$0xff]
    %v2514 = vld [vmem:[#allocation6 + $0xb38] sm:$0xff]
    %v2515 = vld [vmem:[#allocation6 + $0xb40] sm:$0xff]
    %v2516 = vld [vmem:[#allocation6 + $0xb48] sm:$0xff]
    %v2517 = vld [vmem:[#allocation6 + $0xb50] sm:$0xff]
    %v2518 = vld [vmem:[#allocation6 + $0xb58] sm:$0xff]
    %v2519 = vld [vmem:[#allocation6 + $0xb60] sm:$0xff]
    %v2520 = vld [vmem:[#allocation6 + $0xb68] sm:$0xff]
    %v2521 = vld [vmem:[#allocation6 + $0xb70] sm:$0xff]
    %v2522 = vld [vmem:[#allocation6 + $0xb78] sm:$0xff]
    %v2523 = vld [vmem:[#allocation6 + $0xb80] sm:$0xff]
    %v2524 = vld [vmem:[#allocation6 + $0xb88] sm:$0xff]
    %v2525 = vld [vmem:[#allocation6 + $0xb90] sm:$0xff]
    %v2526 = vld [vmem:[#allocation6 + $0xb98] sm:$0xff]
    %v2527 = vld [vmem:[#allocation6 + $0xba0] sm:$0xff]
    %v2528 = vld [vmem:[#allocation6 + $0xba8] sm:$0xff]
    %v2529 = vld [vmem:[#allocation6 + $0xbb0] sm:$0xff]
    %v2530 = vld [vmem:[#allocation6 + $0xbb8] sm:$0xff]
    %v2531 = vld [vmem:[#allocation6 + $0xbc0] sm:$0xff]
    %v2532 = vld [vmem:[#allocation6 + $0xbc8] sm:$0xff]
    %v2533 = vld [vmem:[#allocation6 + $0xbd0] sm:$0xff]
    %v2534 = vld [vmem:[#allocation6 + $0xbd8] sm:$0xff]
    %v2535 = vld [vmem:[#allocation6 + $0xbe0] sm:$0xff]
    %v2536 = vld [vmem:[#allocation6 + $0xbe8] sm:$0xff]
    %v2537 = vld [vmem:[#allocation6 + $0xbf0] sm:$0xff]
    %v2538 = vld [vmem:[#allocation6 + $0xbf8] sm:$0xff]
    %v2539 = vld [vmem:[#allocation6 + $0xc00] sm:$0xff]
    %v2540 = vld [vmem:[#allocation6 + $0xc08] sm:$0xff]
    %v2541 = vld [vmem:[#allocation6 + $0xc10] sm:$0xff]
    %v2542 = vld [vmem:[#allocation6 + $0xc18] sm:$0xff]
    %v2543 = vld [vmem:[#allocation6 + $0xc20] sm:$0xff]
    %v2544 = vld [vmem:[#allocation6 + $0xc28] sm:$0xff]
    %v2545 = vld [vmem:[#allocation6 + $0xc30] sm:$0xff]
    %v2546 = vld [vmem:[#allocation6 + $0xc38] sm:$0xff]
    %v2547 = vld [vmem:[#allocation6 + $0xc40] sm:$0xff]
    %v2548 = vld [vmem:[#allocation6 + $0xc48] sm:$0xff]
    %v2549 = vld [vmem:[#allocation6 + $0xc50] sm:$0xff]
    %v2550 = vld [vmem:[#allocation6 + $0xc58] sm:$0xff]
    %v2551 = vld [vmem:[#allocation6 + $0xc60] sm:$0xff]
    %v2552 = vld [vmem:[#allocation6 + $0xc68] sm:$0xff]
    %v2553 = vld [vmem:[#allocation6 + $0xc70] sm:$0xff]
    %v2554 = vld [vmem:[#allocation6 + $0xc78] sm:$0xff]
    %v2555 = vld [vmem:[#allocation6 + $0xc80] sm:$0xff]
    %v2556 = vld [vmem:[#allocation6 + $0xc88] sm:$0xff]
    %v2557 = vld [vmem:[#allocation6 + $0xc90] sm:$0xff]
    %v2558 = vld [vmem:[#allocation6 + $0xc98] sm:$0xff]
    %v2559 = vld [vmem:[#allocation6 + $0xca0] sm:$0xff]
    %v2560 = vld [vmem:[#allocation6 + $0xca8] sm:$0xff]
    %v2561 = vld [vmem:[#allocation6 + $0xcb0] sm:$0xff]
    %v2562 = vld [vmem:[#allocation6 + $0xcb8] sm:$0xff]
    %v2563 = vld [vmem:[#allocation6 + $0xcc0] sm:$0xff]
    %v2564 = vld [vmem:[#allocation6 + $0xcc8] sm:$0xff]
    %v2565 = vld [vmem:[#allocation6 + $0xcd0] sm:$0xff]
    %v2566 = vld [vmem:[#allocation6 + $0xcd8] sm:$0xff]
    %v2567 = vld [vmem:[#allocation6 + $0xce0] sm:$0xff]
    %v2568 = vld [vmem:[#allocation6 + $0xce8] sm:$0xff]
    %v2569 = vld [vmem:[#allocation6 + $0xcf0] sm:$0xff]
    %v2570 = vld [vmem:[#allocation6 + $0xcf8] sm:$0xff]
    %v2571 = vld [vmem:[#allocation6 + $0xd00] sm:$0xff]
    %v2572 = vld [vmem:[#allocation6 + $0xd08] sm:$0xff]
    %v2573 = vld [vmem:[#allocation6 + $0xd10] sm:$0xff]
    %v2574 = vld [vmem:[#allocation6 + $0xd18] sm:$0xff]
    %v2575 = vld [vmem:[#allocation6 + $0xd20] sm:$0xff]
    %v2576 = vld [vmem:[#allocation6 + $0xd28] sm:$0xff]
    %v2577 = vld [vmem:[#allocation6 + $0xd30] sm:$0xff]
    %v2578 = vld [vmem:[#allocation6 + $0xd38] sm:$0xff]
    %v2579 = vld [vmem:[#allocation6 + $0xd40] sm:$0xff]
    %v2580 = vld [vmem:[#allocation6 + $0xd48] sm:$0xff]
    %v2581 = vld [vmem:[#allocation6 + $0xd50] sm:$0xff]
    %v2582 = vld [vmem:[#allocation6 + $0xd58] sm:$0xff]
    %v2583 = vld [vmem:[#allocation6 + $0xd60] sm:$0xff]
    %v2584 = vld [vmem:[#allocation6 + $0xd68] sm:$0xff]
    %v2585 = vld [vmem:[#allocation6 + $0xd70] sm:$0xff]
    %v2586 = vld [vmem:[#allocation6 + $0xd78] sm:$0xff]
    %v2587 = vld [vmem:[#allocation6 + $0xd80] sm:$0xff]
    %v2588 = vld [vmem:[#allocation6 + $0xd88] sm:$0xff]
    %v2589 = vld [vmem:[#allocation6 + $0xd90] sm:$0xff]
    %v2590 = vld [vmem:[#allocation6 + $0xd98] sm:$0xff]
    %v2591 = vld [vmem:[#allocation6 + $0xda0] sm:$0xff]
    %v2592 = vld [vmem:[#allocation6 + $0xda8] sm:$0xff]
    %v2593 = vld [vmem:[#allocation6 + $0xdb0] sm:$0xff]
    %v2594 = vld [vmem:[#allocation6 + $0xdb8] sm:$0xff]
    %v2595 = vld [vmem:[#allocation6 + $0xdc0] sm:$0xff]
    %v2596 = vld [vmem:[#allocation6 + $0xdc8] sm:$0xff]
    %v2597 = vld [vmem:[#allocation6 + $0xdd0] sm:$0xff]
    %v2598 = vld [vmem:[#allocation6 + $0xdd8] sm:$0xff]
    %v2599 = vld [vmem:[#allocation6 + $0xde0] sm:$0xff]
    %v2600 = vld [vmem:[#allocation6 + $0xde8] sm:$0xff]
    %v2601 = vld [vmem:[#allocation6 + $0xdf0] sm:$0xff]
    %v2602 = vld [vmem:[#allocation6 + $0xdf8] sm:$0xff]
    %v2603 = vld [vmem:[#allocation6 + $0xe00] sm:$0xff]
    %v2604 = vld [vmem:[#allocation6 + $0xe08] sm:$0xff]
    %v2605 = vld [vmem:[#allocation6 + $0xe10] sm:$0xff]
    %v2606 = vld [vmem:[#allocation6 + $0xe18] sm:$0xff]
    %v2607 = vld [vmem:[#allocation6 + $0xe20] sm:$0xff]
    %v2608 = vld [vmem:[#allocation6 + $0xe28] sm:$0xff]
    %v2609 = vld [vmem:[#allocation6 + $0xe30] sm:$0xff]
    %v2610 = vld [vmem:[#allocation6 + $0xe38] sm:$0xff]
    %v2611 = vld [vmem:[#allocation6 + $0xe40] sm:$0xff]
    %v2612 = vld [vmem:[#allocation6 + $0xe48] sm:$0xff]
    %v2613 = vld [vmem:[#allocation6 + $0xe50] sm:$0xff]
    %v2614 = vld [vmem:[#allocation6 + $0xe58] sm:$0xff]
    %v2615 = vld [vmem:[#allocation6 + $0xe60] sm:$0xff]
    %v2616 = vld [vmem:[#allocation6 + $0xe68] sm:$0xff]
    %v2617 = vld [vmem:[#allocation6 + $0xe70] sm:$0xff]
    %v2618 = vld [vmem:[#allocation6 + $0xe78] sm:$0xff]
    %v2619 = vld [vmem:[#allocation6 + $0xe80] sm:$0xff]
    %v2620 = vld [vmem:[#allocation6 + $0xe88] sm:$0xff]
    %v2621 = vld [vmem:[#allocation6 + $0xe90] sm:$0xff]
    %v2622 = vld [vmem:[#allocation6 + $0xe98] sm:$0xff]
    %v2623 = vld [vmem:[#allocation6 + $0xea0] sm:$0xff]
    %v2624 = vld [vmem:[#allocation6 + $0xea8] sm:$0xff]
    %v2625 = vld [vmem:[#allocation6 + $0xeb0] sm:$0xff]
    %v2626 = vld [vmem:[#allocation6 + $0xeb8] sm:$0xff]
    %v2627 = vld [vmem:[#allocation6 + $0xec0] sm:$0xff]
    %v2628 = vld [vmem:[#allocation6 + $0xec8] sm:$0xff]
    %v2629 = vld [vmem:[#allocation6 + $0xed0] sm:$0xff]
    %v2630 = vld [vmem:[#allocation6 + $0xed8] sm:$0xff]
    %v2631 = vld [vmem:[#allocation6 + $0xee0] sm:$0xff]
    %v2632 = vld [vmem:[#allocation6 + $0xee8] sm:$0xff]
    %v2633 = vld [vmem:[#allocation6 + $0xef0] sm:$0xff]
    %v2634 = vld [vmem:[#allocation6 + $0xef8] sm:$0xff]
    %v2635 = vld [vmem:[#allocation6 + $0xf00] sm:$0xff]
    %v2636 = vld [vmem:[#allocation6 + $0xf08] sm:$0xff]
    %v2637 = vld [vmem:[#allocation6 + $0xf10] sm:$0xff]
    %v2638 = vld [vmem:[#allocation6 + $0xf18] sm:$0xff]
    %v2639 = vld [vmem:[#allocation6 + $0xf20] sm:$0xff]
    %v2640 = vld [vmem:[#allocation6 + $0xf28] sm:$0xff]
    %v2641 = vld [vmem:[#allocation6 + $0xf30] sm:$0xff]
    %v2642 = vld [vmem:[#allocation6 + $0xf38] sm:$0xff]
    %v2643 = vld [vmem:[#allocation6 + $0xf40] sm:$0xff]
    %v2644 = vld [vmem:[#allocation6 + $0xf48] sm:$0xff]
    %v2645 = vld [vmem:[#allocation6 + $0xf50] sm:$0xff]
    %v2646 = vld [vmem:[#allocation6 + $0xf58] sm:$0xff]
    %v2647 = vld [vmem:[#allocation6 + $0xf60] sm:$0xff]
    %v2648 = vld [vmem:[#allocation6 + $0xf68] sm:$0xff]
    %v2649 = vld [vmem:[#allocation6 + $0xf70] sm:$0xff]
    %v2650 = vld [vmem:[#allocation6 + $0xf78] sm:$0xff]
    %v2651 = vld [vmem:[#allocation6 + $0xf80] sm:$0xff]
    %v2652 = vld [vmem:[#allocation6 + $0xf88] sm:$0xff]
    %v2653 = vld [vmem:[#allocation6 + $0xf90] sm:$0xff]
    %v2654 = vld [vmem:[#allocation6 + $0xf98] sm:$0xff]
    %v2655 = vld [vmem:[#allocation6 + $0xfa0] sm:$0xff]
    %v2656 = vld [vmem:[#allocation6 + $0xfa8] sm:$0xff]
    %v2657 = vld [vmem:[#allocation6 + $0xfb0] sm:$0xff]
    %v2658 = vld [vmem:[#allocation6 + $0xfb8] sm:$0xff]
    %v2659 = vld [vmem:[#allocation6 + $0xfc0] sm:$0xff]
    %v2660 = vld [vmem:[#allocation6 + $0xfc8] sm:$0xff]
    %v2661 = vld [vmem:[#allocation6 + $0xfd0] sm:$0xff]
    %v2662 = vld [vmem:[#allocation6 + $0xfd8] sm:$0xff]
    %v2663 = vld [vmem:[#allocation6 + $0xfe0] sm:$0xff]
    %v2664 = vld [vmem:[#allocation6 + $0xfe8] sm:$0xff]
    %v2665 = vld [vmem:[#allocation6 + $0xff0] sm:$0xff]
    %v2666 = vld [vmem:[#allocation6 + $0xff8] sm:$0xff]
    %s2667 = scalar_lea.vmem [#allocation6], 4096
    %v2668 = vld [vmem:[%s2667] sm:$0xff]
    %v2669 = vld [vmem:[%s2667 + $0x8] sm:$0xff]
    %v2670 = vld [vmem:[%s2667 + $0x10] sm:$0xff]
    %v2671 = vld [vmem:[%s2667 + $0x18] sm:$0xff]
    %v2672 = vld [vmem:[%s2667 + $0x20] sm:$0xff]
    %v2673 = vld [vmem:[%s2667 + $0x28] sm:$0xff]
    %v2674 = vld [vmem:[%s2667 + $0x30] sm:$0xff]
    %v2675 = vld [vmem:[%s2667 + $0x38] sm:$0xff]
    %v2676 = vld [vmem:[%s2667 + $0x40] sm:$0xff]
    %v2677 = vld [vmem:[%s2667 + $0x48] sm:$0xff]
    %v2678 = vld [vmem:[%s2667 + $0x50] sm:$0xff]
    %v2679 = vld [vmem:[%s2667 + $0x58] sm:$0xff]
    %v2680 = vld [vmem:[%s2667 + $0x60] sm:$0xff]
    %v2681 = vld [vmem:[%s2667 + $0x68] sm:$0xff]
    %v2682 = vld [vmem:[%s2667 + $0x70] sm:$0xff]
    %v2683 = vld [vmem:[%s2667 + $0x78] sm:$0xff]
    %v2684 = vld [vmem:[%s2667 + $0x80] sm:$0xff]
    %v2685 = vld [vmem:[%s2667 + $0x88] sm:$0xff]
    %v2686 = vld [vmem:[%s2667 + $0x90] sm:$0xff]
    %v2687 = vld [vmem:[%s2667 + $0x98] sm:$0xff]
    %v2688 = vld [vmem:[%s2667 + $0xa0] sm:$0xff]
    %v2689 = vld [vmem:[%s2667 + $0xa8] sm:$0xff]
    %v2690 = vld [vmem:[%s2667 + $0xb0] sm:$0xff]
    %v2691 = vld [vmem:[%s2667 + $0xb8] sm:$0xff]
    %v2692 = vld [vmem:[%s2667 + $0xc0] sm:$0xff]
    %v2693 = vld [vmem:[%s2667 + $0xc8] sm:$0xff]
    %v2694 = vld [vmem:[%s2667 + $0xd0] sm:$0xff]
    %v2695 = vld [vmem:[%s2667 + $0xd8] sm:$0xff]
    %v2696 = vld [vmem:[%s2667 + $0xe0] sm:$0xff]
    %v2697 = vld [vmem:[%s2667 + $0xe8] sm:$0xff]
    %v2698 = vld [vmem:[%s2667 + $0xf0] sm:$0xff]
    %v2699 = vld [vmem:[%s2667 + $0xf8] sm:$0xff]
    %v2700 = vld [vmem:[%s2667 + $0x100] sm:$0xff]
    %v2701 = vld [vmem:[%s2667 + $0x108] sm:$0xff]
    %v2702 = vld [vmem:[%s2667 + $0x110] sm:$0xff]
    %v2703 = vld [vmem:[%s2667 + $0x118] sm:$0xff]
    %v2704 = vld [vmem:[%s2667 + $0x120] sm:$0xff]
    %v2705 = vld [vmem:[%s2667 + $0x128] sm:$0xff]
    %v2706 = vld [vmem:[%s2667 + $0x130] sm:$0xff]
    %v2707 = vld [vmem:[%s2667 + $0x138] sm:$0xff]
    %v2708 = vld [vmem:[%s2667 + $0x140] sm:$0xff]
    %v2709 = vld [vmem:[%s2667 + $0x148] sm:$0xff]
    %v2710 = vld [vmem:[%s2667 + $0x150] sm:$0xff]
    %v2711 = vld [vmem:[%s2667 + $0x158] sm:$0xff]
    %v2712 = vld [vmem:[%s2667 + $0x160] sm:$0xff]
    %v2713 = vld [vmem:[%s2667 + $0x168] sm:$0xff]
    %v2714 = vld [vmem:[%s2667 + $0x170] sm:$0xff]
    %v2715 = vld [vmem:[%s2667 + $0x178] sm:$0xff]
    %v2716 = vld [vmem:[%s2667 + $0x180] sm:$0xff]
    %v2717 = vld [vmem:[%s2667 + $0x188] sm:$0xff]
    %v2718 = vld [vmem:[%s2667 + $0x190] sm:$0xff]
    %v2719 = vld [vmem:[%s2667 + $0x198] sm:$0xff]
    %v2720 = vld [vmem:[%s2667 + $0x1a0] sm:$0xff]
    %v2721 = vld [vmem:[%s2667 + $0x1a8] sm:$0xff]
    %v2722 = vld [vmem:[%s2667 + $0x1b0] sm:$0xff]
    %v2723 = vld [vmem:[%s2667 + $0x1b8] sm:$0xff]
    %v2724 = vld [vmem:[%s2667 + $0x1c0] sm:$0xff]
    %v2725 = vld [vmem:[%s2667 + $0x1c8] sm:$0xff]
    %v2726 = vld [vmem:[%s2667 + $0x1d0] sm:$0xff]
    %v2727 = vld [vmem:[%s2667 + $0x1d8] sm:$0xff]
    %v2728 = vld [vmem:[%s2667 + $0x1e0] sm:$0xff]
    %v2729 = vld [vmem:[%s2667 + $0x1e8] sm:$0xff]
    %v2730 = vld [vmem:[%s2667 + $0x1f0] sm:$0xff]
    %v2731 = vld [vmem:[%s2667 + $0x1f8] sm:$0xff]
    %v2732 = vld [vmem:[%s2667 + $0x200] sm:$0xff]
    %v2733 = vld [vmem:[%s2667 + $0x208] sm:$0xff]
    %v2734 = vld [vmem:[%s2667 + $0x210] sm:$0xff]
    %v2735 = vld [vmem:[%s2667 + $0x218] sm:$0xff]
    %v2736 = vld [vmem:[%s2667 + $0x220] sm:$0xff]
    %v2737 = vld [vmem:[%s2667 + $0x228] sm:$0xff]
    %v2738 = vld [vmem:[%s2667 + $0x230] sm:$0xff]
    %v2739 = vld [vmem:[%s2667 + $0x238] sm:$0xff]
    %v2740 = vld [vmem:[%s2667 + $0x240] sm:$0xff]
    %v2741 = vld [vmem:[%s2667 + $0x248] sm:$0xff]
    %v2742 = vld [vmem:[%s2667 + $0x250] sm:$0xff]
    %v2743 = vld [vmem:[%s2667 + $0x258] sm:$0xff]
    %v2744 = vld [vmem:[%s2667 + $0x260] sm:$0xff]
    %v2745 = vld [vmem:[%s2667 + $0x268] sm:$0xff]
    %v2746 = vld [vmem:[%s2667 + $0x270] sm:$0xff]
    %v2747 = vld [vmem:[%s2667 + $0x278] sm:$0xff]
    %v2748 = vld [vmem:[%s2667 + $0x280] sm:$0xff]
    %v2749 = vld [vmem:[%s2667 + $0x288] sm:$0xff]
    %v2750 = vld [vmem:[%s2667 + $0x290] sm:$0xff]
    %v2751 = vld [vmem:[%s2667 + $0x298] sm:$0xff]
    %v2752 = vld [vmem:[%s2667 + $0x2a0] sm:$0xff]
    %v2753 = vld [vmem:[%s2667 + $0x2a8] sm:$0xff]
    %v2754 = vld [vmem:[%s2667 + $0x2b0] sm:$0xff]
    %v2755 = vld [vmem:[%s2667 + $0x2b8] sm:$0xff]
    %v2756 = vld [vmem:[%s2667 + $0x2c0] sm:$0xff]
    %v2757 = vld [vmem:[%s2667 + $0x2c8] sm:$0xff]
    %v2758 = vld [vmem:[%s2667 + $0x2d0] sm:$0xff]
    %v2759 = vld [vmem:[%s2667 + $0x2d8] sm:$0xff]
    %v2760 = vld [vmem:[%s2667 + $0x2e0] sm:$0xff]
    %v2761 = vld [vmem:[%s2667 + $0x2e8] sm:$0xff]
    %v2762 = vld [vmem:[%s2667 + $0x2f0] sm:$0xff]
    %v2763 = vld [vmem:[%s2667 + $0x2f8] sm:$0xff]
    %v2764 = vld [vmem:[%s2667 + $0x300] sm:$0xff]
    %v2765 = vld [vmem:[%s2667 + $0x308] sm:$0xff]
    %v2766 = vld [vmem:[%s2667 + $0x310] sm:$0xff]
    %v2767 = vld [vmem:[%s2667 + $0x318] sm:$0xff]
    %v2768 = vld [vmem:[%s2667 + $0x320] sm:$0xff]
    %v2769 = vld [vmem:[%s2667 + $0x328] sm:$0xff]
    %v2770 = vld [vmem:[%s2667 + $0x330] sm:$0xff]
    %v2771 = vld [vmem:[%s2667 + $0x338] sm:$0xff]
    %v2772 = vld [vmem:[%s2667 + $0x340] sm:$0xff]
    %v2773 = vld [vmem:[%s2667 + $0x348] sm:$0xff]
    %v2774 = vld [vmem:[%s2667 + $0x350] sm:$0xff]
    %v2775 = vld [vmem:[%s2667 + $0x358] sm:$0xff]
    %v2776 = vld [vmem:[%s2667 + $0x360] sm:$0xff]
    %v2777 = vld [vmem:[%s2667 + $0x368] sm:$0xff]
    %v2778 = vld [vmem:[%s2667 + $0x370] sm:$0xff]
    %v2779 = vld [vmem:[%s2667 + $0x378] sm:$0xff]
    %v2780 = vld [vmem:[%s2667 + $0x380] sm:$0xff]
    %v2781 = vld [vmem:[%s2667 + $0x388] sm:$0xff]
    %v2782 = vld [vmem:[%s2667 + $0x390] sm:$0xff]
    %v2783 = vld [vmem:[%s2667 + $0x398] sm:$0xff]
    %v2784 = vld [vmem:[%s2667 + $0x3a0] sm:$0xff]
    %v2785 = vld [vmem:[%s2667 + $0x3a8] sm:$0xff]
    %v2786 = vld [vmem:[%s2667 + $0x3b0] sm:$0xff]
    %v2787 = vld [vmem:[%s2667 + $0x3b8] sm:$0xff]
    %v2788 = vld [vmem:[%s2667 + $0x3c0] sm:$0xff]
    %v2789 = vld [vmem:[%s2667 + $0x3c8] sm:$0xff]
    %v2790 = vld [vmem:[%s2667 + $0x3d0] sm:$0xff]
    %v2791 = vld [vmem:[%s2667 + $0x3d8] sm:$0xff]
    %v2792 = vld [vmem:[%s2667 + $0x3e0] sm:$0xff]
    %v2793 = vld [vmem:[%s2667 + $0x3e8] sm:$0xff]
    %v2794 = vld [vmem:[%s2667 + $0x3f0] sm:$0xff]
    %v2795 = vld [vmem:[%s2667 + $0x3f8] sm:$0xff]
    %v2796 = vld [vmem:[%s2667 + $0x400] sm:$0xff]
    %v2797 = vld [vmem:[%s2667 + $0x408] sm:$0xff]
    %v2798 = vld [vmem:[%s2667 + $0x410] sm:$0xff]
    %v2799 = vld [vmem:[%s2667 + $0x418] sm:$0xff]
    %v2800 = vld [vmem:[%s2667 + $0x420] sm:$0xff]
    %v2801 = vld [vmem:[%s2667 + $0x428] sm:$0xff]
    %v2802 = vld [vmem:[%s2667 + $0x430] sm:$0xff]
    %v2803 = vld [vmem:[%s2667 + $0x438] sm:$0xff]
    %v2804 = vld [vmem:[%s2667 + $0x440] sm:$0xff]
    %v2805 = vld [vmem:[%s2667 + $0x448] sm:$0xff]
    %v2806 = vld [vmem:[%s2667 + $0x450] sm:$0xff]
    %v2807 = vld [vmem:[%s2667 + $0x458] sm:$0xff]
    %v2808 = vld [vmem:[%s2667 + $0x460] sm:$0xff]
    %v2809 = vld [vmem:[%s2667 + $0x468] sm:$0xff]
    %v2810 = vld [vmem:[%s2667 + $0x470] sm:$0xff]
    %v2811 = vld [vmem:[%s2667 + $0x478] sm:$0xff]
    %v2812 = vld [vmem:[%s2667 + $0x480] sm:$0xff]
    %v2813 = vld [vmem:[%s2667 + $0x488] sm:$0xff]
    %v2814 = vld [vmem:[%s2667 + $0x490] sm:$0xff]
    %v2815 = vld [vmem:[%s2667 + $0x498] sm:$0xff]
    %v2816 = vld [vmem:[%s2667 + $0x4a0] sm:$0xff]
    %v2817 = vld [vmem:[%s2667 + $0x4a8] sm:$0xff]
    %v2818 = vld [vmem:[%s2667 + $0x4b0] sm:$0xff]
    %v2819 = vld [vmem:[%s2667 + $0x4b8] sm:$0xff]
    %v2820 = vld [vmem:[%s2667 + $0x4c0] sm:$0xff]
    %v2821 = vld [vmem:[%s2667 + $0x4c8] sm:$0xff]
    %v2822 = vld [vmem:[%s2667 + $0x4d0] sm:$0xff]
    %v2823 = vld [vmem:[%s2667 + $0x4d8] sm:$0xff]
    %v2824 = vld [vmem:[%s2667 + $0x4e0] sm:$0xff]
    %v2825 = vld [vmem:[%s2667 + $0x4e8] sm:$0xff]
    %v2826 = vld [vmem:[%s2667 + $0x4f0] sm:$0xff]
    %v2827 = vld [vmem:[%s2667 + $0x4f8] sm:$0xff]
    %v2828 = vld [vmem:[%s2667 + $0x500] sm:$0xff]
    %v2829 = vld [vmem:[%s2667 + $0x508] sm:$0xff]
    %v2830 = vld [vmem:[%s2667 + $0x510] sm:$0xff]
    %v2831 = vld [vmem:[%s2667 + $0x518] sm:$0xff]
    %v2832 = vld [vmem:[%s2667 + $0x520] sm:$0xff]
    %v2833 = vld [vmem:[%s2667 + $0x528] sm:$0xff]
    %v2834 = vld [vmem:[%s2667 + $0x530] sm:$0xff]
    %v2835 = vld [vmem:[%s2667 + $0x538] sm:$0xff]
    %v2836 = vld [vmem:[%s2667 + $0x540] sm:$0xff]
    %v2837 = vld [vmem:[%s2667 + $0x548] sm:$0xff]
    %v2838 = vld [vmem:[%s2667 + $0x550] sm:$0xff]
    %v2839 = vld [vmem:[%s2667 + $0x558] sm:$0xff]
    %v2840 = vld [vmem:[%s2667 + $0x560] sm:$0xff]
    %v2841 = vld [vmem:[%s2667 + $0x568] sm:$0xff]
    %v2842 = vld [vmem:[%s2667 + $0x570] sm:$0xff]
    %v2843 = vld [vmem:[%s2667 + $0x578] sm:$0xff]
    %v2844 = vld [vmem:[%s2667 + $0x580] sm:$0xff]
    %v2845 = vld [vmem:[%s2667 + $0x588] sm:$0xff]
    %v2846 = vld [vmem:[%s2667 + $0x590] sm:$0xff]
    %v2847 = vld [vmem:[%s2667 + $0x598] sm:$0xff]
    %v2848 = vld [vmem:[%s2667 + $0x5a0] sm:$0xff]
    %v2849 = vld [vmem:[%s2667 + $0x5a8] sm:$0xff]
    %v2850 = vld [vmem:[%s2667 + $0x5b0] sm:$0xff]
    %v2851 = vld [vmem:[%s2667 + $0x5b8] sm:$0xff]
    %v2852 = vld [vmem:[%s2667 + $0x5c0] sm:$0xff]
    %v2853 = vld [vmem:[%s2667 + $0x5c8] sm:$0xff]
    %v2854 = vld [vmem:[%s2667 + $0x5d0] sm:$0xff]
    %v2855 = vld [vmem:[%s2667 + $0x5d8] sm:$0xff]
    %v2856 = vld [vmem:[%s2667 + $0x5e0] sm:$0xff]
    %v2857 = vld [vmem:[%s2667 + $0x5e8] sm:$0xff]
    %v2858 = vld [vmem:[%s2667 + $0x5f0] sm:$0xff]
    %v2859 = vld [vmem:[%s2667 + $0x5f8] sm:$0xff]
    %v2860 = vld [vmem:[%s2667 + $0x600] sm:$0xff]
    %v2861 = vld [vmem:[%s2667 + $0x608] sm:$0xff]
    %v2862 = vld [vmem:[%s2667 + $0x610] sm:$0xff]
    %v2863 = vld [vmem:[%s2667 + $0x618] sm:$0xff]
    %v2864 = vld [vmem:[%s2667 + $0x620] sm:$0xff]
    %v2865 = vld [vmem:[%s2667 + $0x628] sm:$0xff]
    %v2866 = vld [vmem:[%s2667 + $0x630] sm:$0xff]
    %v2867 = vld [vmem:[%s2667 + $0x638] sm:$0xff]
    %v2868 = vld [vmem:[%s2667 + $0x640] sm:$0xff]
    %v2869 = vld [vmem:[%s2667 + $0x648] sm:$0xff]
    %v2870 = vld [vmem:[%s2667 + $0x650] sm:$0xff]
    %v2871 = vld [vmem:[%s2667 + $0x658] sm:$0xff]
    %v2872 = vld [vmem:[%s2667 + $0x660] sm:$0xff]
    %v2873 = vld [vmem:[%s2667 + $0x668] sm:$0xff]
    %v2874 = vld [vmem:[%s2667 + $0x670] sm:$0xff]
    %v2875 = vld [vmem:[%s2667 + $0x678] sm:$0xff]
    %v2876 = vld [vmem:[%s2667 + $0x680] sm:$0xff]
    %v2877 = vld [vmem:[%s2667 + $0x688] sm:$0xff]
    %v2878 = vld [vmem:[%s2667 + $0x690] sm:$0xff]
    %v2879 = vld [vmem:[%s2667 + $0x698] sm:$0xff]
    %v2880 = vld [vmem:[%s2667 + $0x6a0] sm:$0xff]
    %v2881 = vld [vmem:[%s2667 + $0x6a8] sm:$0xff]
    %v2882 = vld [vmem:[%s2667 + $0x6b0] sm:$0xff]
    %v2883 = vld [vmem:[%s2667 + $0x6b8] sm:$0xff]
    %v2884 = vld [vmem:[%s2667 + $0x6c0] sm:$0xff]
    %v2885 = vld [vmem:[%s2667 + $0x6c8] sm:$0xff]
    %v2886 = vld [vmem:[%s2667 + $0x6d0] sm:$0xff]
    %v2887 = vld [vmem:[%s2667 + $0x6d8] sm:$0xff]
    %v2888 = vld [vmem:[%s2667 + $0x6e0] sm:$0xff]
    %v2889 = vld [vmem:[%s2667 + $0x6e8] sm:$0xff]
    %v2890 = vld [vmem:[%s2667 + $0x6f0] sm:$0xff]
    %v2891 = vld [vmem:[%s2667 + $0x6f8] sm:$0xff]
    %v2892 = vld [vmem:[%s2667 + $0x700] sm:$0xff]
    %v2893 = vld [vmem:[%s2667 + $0x708] sm:$0xff]
    %v2894 = vld [vmem:[%s2667 + $0x710] sm:$0xff]
    %v2895 = vld [vmem:[%s2667 + $0x718] sm:$0xff]
    %v2896 = vld [vmem:[%s2667 + $0x720] sm:$0xff]
    %v2897 = vld [vmem:[%s2667 + $0x728] sm:$0xff]
    %v2898 = vld [vmem:[%s2667 + $0x730] sm:$0xff]
    %v2899 = vld [vmem:[%s2667 + $0x738] sm:$0xff]
    %v2900 = vld [vmem:[%s2667 + $0x740] sm:$0xff]
    %v2901 = vld [vmem:[%s2667 + $0x748] sm:$0xff]
    %v2902 = vld [vmem:[%s2667 + $0x750] sm:$0xff]
    %v2903 = vld [vmem:[%s2667 + $0x758] sm:$0xff]
    %v2904 = vld [vmem:[%s2667 + $0x760] sm:$0xff]
    %v2905 = vld [vmem:[%s2667 + $0x768] sm:$0xff]
    %v2906 = vld [vmem:[%s2667 + $0x770] sm:$0xff]
    %v2907 = vld [vmem:[%s2667 + $0x778] sm:$0xff]
    %v2908 = vld [vmem:[%s2667 + $0x780] sm:$0xff]
    %v2909 = vld [vmem:[%s2667 + $0x788] sm:$0xff]
    %v2910 = vld [vmem:[%s2667 + $0x790] sm:$0xff]
    %v2911 = vld [vmem:[%s2667 + $0x798] sm:$0xff]
    %v2912 = vld [vmem:[%s2667 + $0x7a0] sm:$0xff]
    %v2913 = vld [vmem:[%s2667 + $0x7a8] sm:$0xff]
    %v2914 = vld [vmem:[%s2667 + $0x7b0] sm:$0xff]
    %v2915 = vld [vmem:[%s2667 + $0x7b8] sm:$0xff]
    %v2916 = vld [vmem:[%s2667 + $0x7c0] sm:$0xff]
    %v2917 = vld [vmem:[%s2667 + $0x7c8] sm:$0xff]
    %v2918 = vld [vmem:[%s2667 + $0x7d0] sm:$0xff]
    %v2919 = vld [vmem:[%s2667 + $0x7d8] sm:$0xff]
    %v2920 = vld [vmem:[%s2667 + $0x7e0] sm:$0xff]
    %v2921 = vld [vmem:[%s2667 + $0x7e8] sm:$0xff]
    %v2922 = vld [vmem:[%s2667 + $0x7f0] sm:$0xff]
    %v2923 = vld [vmem:[%s2667 + $0x7f8] sm:$0xff]
    %v2924 = vld [vmem:[%s2667 + $0x800] sm:$0xff]
    %v2925 = vld [vmem:[%s2667 + $0x808] sm:$0xff]
    %v2926 = vld [vmem:[%s2667 + $0x810] sm:$0xff]
    %v2927 = vld [vmem:[%s2667 + $0x818] sm:$0xff]
    %v2928 = vld [vmem:[%s2667 + $0x820] sm:$0xff]
    %v2929 = vld [vmem:[%s2667 + $0x828] sm:$0xff]
    %v2930 = vld [vmem:[%s2667 + $0x830] sm:$0xff]
    %v2931 = vld [vmem:[%s2667 + $0x838] sm:$0xff]
    %v2932 = vld [vmem:[%s2667 + $0x840] sm:$0xff]
    %v2933 = vld [vmem:[%s2667 + $0x848] sm:$0xff]
    %v2934 = vld [vmem:[%s2667 + $0x850] sm:$0xff]
    %v2935 = vld [vmem:[%s2667 + $0x858] sm:$0xff]
    %v2936 = vld [vmem:[%s2667 + $0x860] sm:$0xff]
    %v2937 = vld [vmem:[%s2667 + $0x868] sm:$0xff]
    %v2938 = vld [vmem:[%s2667 + $0x870] sm:$0xff]
    %v2939 = vld [vmem:[%s2667 + $0x878] sm:$0xff]
    %v2940 = vld [vmem:[%s2667 + $0x880] sm:$0xff]
    %v2941 = vld [vmem:[%s2667 + $0x888] sm:$0xff]
    %v2942 = vld [vmem:[%s2667 + $0x890] sm:$0xff]
    %v2943 = vld [vmem:[%s2667 + $0x898] sm:$0xff]
    %v2944 = vld [vmem:[%s2667 + $0x8a0] sm:$0xff]
    %v2945 = vld [vmem:[%s2667 + $0x8a8] sm:$0xff]
    %v2946 = vld [vmem:[%s2667 + $0x8b0] sm:$0xff]
    %v2947 = vld [vmem:[%s2667 + $0x8b8] sm:$0xff]
    %v2948 = vld [vmem:[%s2667 + $0x8c0] sm:$0xff]
    %v2949 = vld [vmem:[%s2667 + $0x8c8] sm:$0xff]
    %v2950 = vld [vmem:[%s2667 + $0x8d0] sm:$0xff]
    %v2951 = vld [vmem:[%s2667 + $0x8d8] sm:$0xff]
    %v2952 = vld [vmem:[%s2667 + $0x8e0] sm:$0xff]
    %v2953 = vld [vmem:[%s2667 + $0x8e8] sm:$0xff]
    %v2954 = vld [vmem:[%s2667 + $0x8f0] sm:$0xff]
    %v2955 = vld [vmem:[%s2667 + $0x8f8] sm:$0xff]
    %v2956 = vld [vmem:[%s2667 + $0x900] sm:$0xff]
    %v2957 = vld [vmem:[%s2667 + $0x908] sm:$0xff]
    %v2958 = vld [vmem:[%s2667 + $0x910] sm:$0xff]
    %v2959 = vld [vmem:[%s2667 + $0x918] sm:$0xff]
    %v2960 = vld [vmem:[%s2667 + $0x920] sm:$0xff]
    %v2961 = vld [vmem:[%s2667 + $0x928] sm:$0xff]
    %v2962 = vld [vmem:[%s2667 + $0x930] sm:$0xff]
    %v2963 = vld [vmem:[%s2667 + $0x938] sm:$0xff]
    %v2964 = vld [vmem:[%s2667 + $0x940] sm:$0xff]
    %v2965 = vld [vmem:[%s2667 + $0x948] sm:$0xff]
    %v2966 = vld [vmem:[%s2667 + $0x950] sm:$0xff]
    %v2967 = vld [vmem:[%s2667 + $0x958] sm:$0xff]
    %v2968 = vld [vmem:[%s2667 + $0x960] sm:$0xff]
    %v2969 = vld [vmem:[%s2667 + $0x968] sm:$0xff]
    %v2970 = vld [vmem:[%s2667 + $0x970] sm:$0xff]
    %v2971 = vld [vmem:[%s2667 + $0x978] sm:$0xff]
    %v2972 = vld [vmem:[%s2667 + $0x980] sm:$0xff]
    %v2973 = vld [vmem:[%s2667 + $0x988] sm:$0xff]
    %v2974 = vld [vmem:[%s2667 + $0x990] sm:$0xff]
    %v2975 = vld [vmem:[%s2667 + $0x998] sm:$0xff]
    %v2976 = vld [vmem:[%s2667 + $0x9a0] sm:$0xff]
    %v2977 = vld [vmem:[%s2667 + $0x9a8] sm:$0xff]
    %v2978 = vld [vmem:[%s2667 + $0x9b0] sm:$0xff]
    %v2979 = vld [vmem:[%s2667 + $0x9b8] sm:$0xff]
    %v2980 = vld [vmem:[%s2667 + $0x9c0] sm:$0xff]
    %v2981 = vld [vmem:[%s2667 + $0x9c8] sm:$0xff]
    %v2982 = vld [vmem:[%s2667 + $0x9d0] sm:$0xff]
    %v2983 = vld [vmem:[%s2667 + $0x9d8] sm:$0xff]
    %v2984 = vld [vmem:[%s2667 + $0x9e0] sm:$0xff]
    %v2985 = vld [vmem:[%s2667 + $0x9e8] sm:$0xff]
    %v2986 = vld [vmem:[%s2667 + $0x9f0] sm:$0xff]
    %v2987 = vld [vmem:[%s2667 + $0x9f8] sm:$0xff]
    %v2988 = vld [vmem:[%s2667 + $0xa00] sm:$0xff]
    %v2989 = vld [vmem:[%s2667 + $0xa08] sm:$0xff]
    %v2990 = vld [vmem:[%s2667 + $0xa10] sm:$0xff]
    %v2991 = vld [vmem:[%s2667 + $0xa18] sm:$0xff]
    %v2992 = vld [vmem:[%s2667 + $0xa20] sm:$0xff]
    %v2993 = vld [vmem:[%s2667 + $0xa28] sm:$0xff]
    %v2994 = vld [vmem:[%s2667 + $0xa30] sm:$0xff]
    %v2995 = vld [vmem:[%s2667 + $0xa38] sm:$0xff]
    %v2996 = vld [vmem:[%s2667 + $0xa40] sm:$0xff]
    %v2997 = vld [vmem:[%s2667 + $0xa48] sm:$0xff]
    %v2998 = vld [vmem:[%s2667 + $0xa50] sm:$0xff]
    %v2999 = vld [vmem:[%s2667 + $0xa58] sm:$0xff]
    %v3000 = vld [vmem:[%s2667 + $0xa60] sm:$0xff]
    %v3001 = vld [vmem:[%s2667 + $0xa68] sm:$0xff]
    %v3002 = vld [vmem:[%s2667 + $0xa70] sm:$0xff]
    %v3003 = vld [vmem:[%s2667 + $0xa78] sm:$0xff]
    %v3004 = vld [vmem:[%s2667 + $0xa80] sm:$0xff]
    %v3005 = vld [vmem:[%s2667 + $0xa88] sm:$0xff]
    %v3006 = vld [vmem:[%s2667 + $0xa90] sm:$0xff]
    %v3007 = vld [vmem:[%s2667 + $0xa98] sm:$0xff]
    %v3008 = vld [vmem:[%s2667 + $0xaa0] sm:$0xff]
    %v3009 = vld [vmem:[%s2667 + $0xaa8] sm:$0xff]
    %v3010 = vld [vmem:[%s2667 + $0xab0] sm:$0xff]
    %v3011 = vld [vmem:[%s2667 + $0xab8] sm:$0xff]
    %v3012 = vld [vmem:[%s2667 + $0xac0] sm:$0xff]
    %v3013 = vld [vmem:[%s2667 + $0xac8] sm:$0xff]
    %v3014 = vld [vmem:[%s2667 + $0xad0] sm:$0xff]
    %v3015 = vld [vmem:[%s2667 + $0xad8] sm:$0xff]
    %v3016 = vld [vmem:[%s2667 + $0xae0] sm:$0xff]
    %v3017 = vld [vmem:[%s2667 + $0xae8] sm:$0xff]
    %v3018 = vld [vmem:[%s2667 + $0xaf0] sm:$0xff]
    %v3019 = vld [vmem:[%s2667 + $0xaf8] sm:$0xff]
    %v3020 = vld [vmem:[%s2667 + $0xb00] sm:$0xff]
    %v3021 = vld [vmem:[%s2667 + $0xb08] sm:$0xff]
    %v3022 = vld [vmem:[%s2667 + $0xb10] sm:$0xff]
    %v3023 = vld [vmem:[%s2667 + $0xb18] sm:$0xff]
    %v3024 = vld [vmem:[%s2667 + $0xb20] sm:$0xff]
    %v3025 = vld [vmem:[%s2667 + $0xb28] sm:$0xff]
    %v3026 = vld [vmem:[%s2667 + $0xb30] sm:$0xff]
    %v3027 = vld [vmem:[%s2667 + $0xb38] sm:$0xff]
    %v3028 = vld [vmem:[%s2667 + $0xb40] sm:$0xff]
    %v3029 = vld [vmem:[%s2667 + $0xb48] sm:$0xff]
    %v3030 = vld [vmem:[%s2667 + $0xb50] sm:$0xff]
    %v3031 = vld [vmem:[%s2667 + $0xb58] sm:$0xff]
    %v3032 = vld [vmem:[%s2667 + $0xb60] sm:$0xff]
    %v3033 = vld [vmem:[%s2667 + $0xb68] sm:$0xff]
    %v3034 = vld [vmem:[%s2667 + $0xb70] sm:$0xff]
    %v3035 = vld [vmem:[%s2667 + $0xb78] sm:$0xff]
    %v3036 = vld [vmem:[%s2667 + $0xb80] sm:$0xff]
    %v3037 = vld [vmem:[%s2667 + $0xb88] sm:$0xff]
    %v3038 = vld [vmem:[%s2667 + $0xb90] sm:$0xff]
    %v3039 = vld [vmem:[%s2667 + $0xb98] sm:$0xff]
    %v3040 = vld [vmem:[%s2667 + $0xba0] sm:$0xff]
    %v3041 = vld [vmem:[%s2667 + $0xba8] sm:$0xff]
    %v3042 = vld [vmem:[%s2667 + $0xbb0] sm:$0xff]
    %v3043 = vld [vmem:[%s2667 + $0xbb8] sm:$0xff]
    %v3044 = vld [vmem:[%s2667 + $0xbc0] sm:$0xff]
    %v3045 = vld [vmem:[%s2667 + $0xbc8] sm:$0xff]
    %v3046 = vld [vmem:[%s2667 + $0xbd0] sm:$0xff]
    %v3047 = vld [vmem:[%s2667 + $0xbd8] sm:$0xff]
    %v3048 = vld [vmem:[%s2667 + $0xbe0] sm:$0xff]
    %v3049 = vld [vmem:[%s2667 + $0xbe8] sm:$0xff]
    %v3050 = vld [vmem:[%s2667 + $0xbf0] sm:$0xff]
    %v3051 = vld [vmem:[%s2667 + $0xbf8] sm:$0xff]
    %v3052 = vld [vmem:[%s2667 + $0xc00] sm:$0xff]
    %v3053 = vld [vmem:[%s2667 + $0xc08] sm:$0xff]
    %v3054 = vld [vmem:[%s2667 + $0xc10] sm:$0xff]
    %v3055 = vld [vmem:[%s2667 + $0xc18] sm:$0xff]
    %v3056 = vld [vmem:[%s2667 + $0xc20] sm:$0xff]
    %v3057 = vld [vmem:[%s2667 + $0xc28] sm:$0xff]
    %v3058 = vld [vmem:[%s2667 + $0xc30] sm:$0xff]
    %v3059 = vld [vmem:[%s2667 + $0xc38] sm:$0xff]
    %v3060 = vld [vmem:[%s2667 + $0xc40] sm:$0xff]
    %v3061 = vld [vmem:[%s2667 + $0xc48] sm:$0xff]
    %v3062 = vld [vmem:[%s2667 + $0xc50] sm:$0xff]
    %v3063 = vld [vmem:[%s2667 + $0xc58] sm:$0xff]
    %v3064 = vld [vmem:[%s2667 + $0xc60] sm:$0xff]
    %v3065 = vld [vmem:[%s2667 + $0xc68] sm:$0xff]
    %v3066 = vld [vmem:[%s2667 + $0xc70] sm:$0xff]
    %v3067 = vld [vmem:[%s2667 + $0xc78] sm:$0xff]
    %v3068 = vld [vmem:[%s2667 + $0xc80] sm:$0xff]
    %v3069 = vld [vmem:[%s2667 + $0xc88] sm:$0xff]
    %v3070 = vld [vmem:[%s2667 + $0xc90] sm:$0xff]
    %v3071 = vld [vmem:[%s2667 + $0xc98] sm:$0xff]
    %v3072 = vld [vmem:[%s2667 + $0xca0] sm:$0xff]
    %v3073 = vld [vmem:[%s2667 + $0xca8] sm:$0xff]
    %v3074 = vld [vmem:[%s2667 + $0xcb0] sm:$0xff]
    %v3075 = vld [vmem:[%s2667 + $0xcb8] sm:$0xff]
    %v3076 = vld [vmem:[%s2667 + $0xcc0] sm:$0xff]
    %v3077 = vld [vmem:[%s2667 + $0xcc8] sm:$0xff]
    %v3078 = vld [vmem:[%s2667 + $0xcd0] sm:$0xff]
    %v3079 = vld [vmem:[%s2667 + $0xcd8] sm:$0xff]
    %v3080 = vld [vmem:[%s2667 + $0xce0] sm:$0xff]
    %v3081 = vld [vmem:[%s2667 + $0xce8] sm:$0xff]
    %v3082 = vld [vmem:[%s2667 + $0xcf0] sm:$0xff]
    %v3083 = vld [vmem:[%s2667 + $0xcf8] sm:$0xff]
    %v3084 = vld [vmem:[%s2667 + $0xd00] sm:$0xff]
    %v3085 = vld [vmem:[%s2667 + $0xd08] sm:$0xff]
    %v3086 = vld [vmem:[%s2667 + $0xd10] sm:$0xff]
    %v3087 = vld [vmem:[%s2667 + $0xd18] sm:$0xff]
    %v3088 = vld [vmem:[%s2667 + $0xd20] sm:$0xff]
    %v3089 = vld [vmem:[%s2667 + $0xd28] sm:$0xff]
    %v3090 = vld [vmem:[%s2667 + $0xd30] sm:$0xff]
    %v3091 = vld [vmem:[%s2667 + $0xd38] sm:$0xff]
    %v3092 = vld [vmem:[%s2667 + $0xd40] sm:$0xff]
    %v3093 = vld [vmem:[%s2667 + $0xd48] sm:$0xff]
    %v3094 = vld [vmem:[%s2667 + $0xd50] sm:$0xff]
    %v3095 = vld [vmem:[%s2667 + $0xd58] sm:$0xff]
    %v3096 = vld [vmem:[%s2667 + $0xd60] sm:$0xff]
    %v3097 = vld [vmem:[%s2667 + $0xd68] sm:$0xff]
    %v3098 = vld [vmem:[%s2667 + $0xd70] sm:$0xff]
    %v3099 = vld [vmem:[%s2667 + $0xd78] sm:$0xff]
    %v3100 = vld [vmem:[%s2667 + $0xd80] sm:$0xff]
    %v3101 = vld [vmem:[%s2667 + $0xd88] sm:$0xff]
    %v3102 = vld [vmem:[%s2667 + $0xd90] sm:$0xff]
    %v3103 = vld [vmem:[%s2667 + $0xd98] sm:$0xff]
    %v3104 = vld [vmem:[%s2667 + $0xda0] sm:$0xff]
    %v3105 = vld [vmem:[%s2667 + $0xda8] sm:$0xff]
    %v3106 = vld [vmem:[%s2667 + $0xdb0] sm:$0xff]
    %v3107 = vld [vmem:[%s2667 + $0xdb8] sm:$0xff]
    %v3108 = vld [vmem:[%s2667 + $0xdc0] sm:$0xff]
    %v3109 = vld [vmem:[%s2667 + $0xdc8] sm:$0xff]
    %v3110 = vld [vmem:[%s2667 + $0xdd0] sm:$0xff]
    %v3111 = vld [vmem:[%s2667 + $0xdd8] sm:$0xff]
    %v3112 = vld [vmem:[%s2667 + $0xde0] sm:$0xff]
    %v3113 = vld [vmem:[%s2667 + $0xde8] sm:$0xff]
    %v3114 = vld [vmem:[%s2667 + $0xdf0] sm:$0xff]
    %v3115 = vld [vmem:[%s2667 + $0xdf8] sm:$0xff]
    %v3116 = vld [vmem:[%s2667 + $0xe00] sm:$0xff]
    %v3117 = vld [vmem:[%s2667 + $0xe08] sm:$0xff]
    %v3118 = vld [vmem:[%s2667 + $0xe10] sm:$0xff]
    %v3119 = vld [vmem:[%s2667 + $0xe18] sm:$0xff]
    %v3120 = vld [vmem:[%s2667 + $0xe20] sm:$0xff]
    %v3121 = vld [vmem:[%s2667 + $0xe28] sm:$0xff]
    %v3122 = vld [vmem:[%s2667 + $0xe30] sm:$0xff]
    %v3123 = vld [vmem:[%s2667 + $0xe38] sm:$0xff]
    %v3124 = vld [vmem:[%s2667 + $0xe40] sm:$0xff]
    %v3125 = vld [vmem:[%s2667 + $0xe48] sm:$0xff]
    %v3126 = vld [vmem:[%s2667 + $0xe50] sm:$0xff]
    %v3127 = vld [vmem:[%s2667 + $0xe58] sm:$0xff]
    %v3128 = vld [vmem:[%s2667 + $0xe60] sm:$0xff]
    %v3129 = vld [vmem:[%s2667 + $0xe68] sm:$0xff]
    %v3130 = vld [vmem:[%s2667 + $0xe70] sm:$0xff]
    %v3131 = vld [vmem:[%s2667 + $0xe78] sm:$0xff]
    %v3132 = vld [vmem:[%s2667 + $0xe80] sm:$0xff]
    %v3133 = vld [vmem:[%s2667 + $0xe88] sm:$0xff]
    %v3134 = vld [vmem:[%s2667 + $0xe90] sm:$0xff]
    %v3135 = vld [vmem:[%s2667 + $0xe98] sm:$0xff]
    %v3136 = vld [vmem:[%s2667 + $0xea0] sm:$0xff]
    %v3137 = vld [vmem:[%s2667 + $0xea8] sm:$0xff]
    %v3138 = vld [vmem:[%s2667 + $0xeb0] sm:$0xff]
    %v3139 = vld [vmem:[%s2667 + $0xeb8] sm:$0xff]
    %v3140 = vld [vmem:[%s2667 + $0xec0] sm:$0xff]
    %v3141 = vld [vmem:[%s2667 + $0xec8] sm:$0xff]
    %v3142 = vld [vmem:[%s2667 + $0xed0] sm:$0xff]
    %v3143 = vld [vmem:[%s2667 + $0xed8] sm:$0xff]
    %v3144 = vld [vmem:[%s2667 + $0xee0] sm:$0xff]
    %v3145 = vld [vmem:[%s2667 + $0xee8] sm:$0xff]
    %v3146 = vld [vmem:[%s2667 + $0xef0] sm:$0xff]
    %v3147 = vld [vmem:[%s2667 + $0xef8] sm:$0xff]
    %v3148 = vld [vmem:[%s2667 + $0xf00] sm:$0xff]
    %v3149 = vld [vmem:[%s2667 + $0xf08] sm:$0xff]
    %v3150 = vld [vmem:[%s2667 + $0xf10] sm:$0xff]
    %v3151 = vld [vmem:[%s2667 + $0xf18] sm:$0xff]
    %v3152 = vld [vmem:[%s2667 + $0xf20] sm:$0xff]
    %v3153 = vld [vmem:[%s2667 + $0xf28] sm:$0xff]
    %v3154 = vld [vmem:[%s2667 + $0xf30] sm:$0xff]
    %v3155 = vld [vmem:[%s2667 + $0xf38] sm:$0xff]
    %v3156 = vld [vmem:[%s2667 + $0xf40] sm:$0xff]
    %v3157 = vld [vmem:[%s2667 + $0xf48] sm:$0xff]
    %v3158 = vld [vmem:[%s2667 + $0xf50] sm:$0xff]
    %v3159 = vld [vmem:[%s2667 + $0xf58] sm:$0xff]
    %v3160 = vld [vmem:[%s2667 + $0xf60] sm:$0xff]
    %v3161 = vld [vmem:[%s2667 + $0xf68] sm:$0xff]
    %v3162 = vld [vmem:[%s2667 + $0xf70] sm:$0xff]
    %v3163 = vld [vmem:[%s2667 + $0xf78] sm:$0xff]
    %v3164 = vld [vmem:[%s2667 + $0xf80] sm:$0xff]
    %v3165 = vld [vmem:[%s2667 + $0xf88] sm:$0xff]
    %v3166 = vld [vmem:[%s2667 + $0xf90] sm:$0xff]
    %v3167 = vld [vmem:[%s2667 + $0xf98] sm:$0xff]
    %v3168 = vld [vmem:[%s2667 + $0xfa0] sm:$0xff]
    %v3169 = vld [vmem:[%s2667 + $0xfa8] sm:$0xff]
    %v3170 = vld [vmem:[%s2667 + $0xfb0] sm:$0xff]
    %v3171 = vld [vmem:[%s2667 + $0xfb8] sm:$0xff]
    %v3172 = vld [vmem:[%s2667 + $0xfc0] sm:$0xff]
    %v3173 = vld [vmem:[%s2667 + $0xfc8] sm:$0xff]
    %v3174 = vld [vmem:[%s2667 + $0xfd0] sm:$0xff]
    %v3175 = vld [vmem:[%s2667 + $0xfd8] sm:$0xff]
    %v3176 = vld [vmem:[%s2667 + $0xfe0] sm:$0xff]
    %v3177 = vld [vmem:[%s2667 + $0xfe8] sm:$0xff]
    %v3178 = vld [vmem:[%s2667 + $0xff0] sm:$0xff]
    %v3179 = vld [vmem:[%s2667 + $0xff8] sm:$0xff]
    %s3180 = scalar_lea.vmem [#allocation6], 8192
    %v3181 = vld [vmem:[%s3180] sm:$0xff]
    %v3182 = vld [vmem:[%s3180 + $0x8] sm:$0xff]
    %v3183 = vld [vmem:[%s3180 + $0x10] sm:$0xff]
    %v3184 = vld [vmem:[%s3180 + $0x18] sm:$0xff]
    %v3185 = vld [vmem:[%s3180 + $0x20] sm:$0xff]
    %v3186 = vld [vmem:[%s3180 + $0x28] sm:$0xff]
    %v3187 = vld [vmem:[%s3180 + $0x30] sm:$0xff]
    %v3188 = vld [vmem:[%s3180 + $0x38] sm:$0xff]
    %v3189 = vld [vmem:[%s3180 + $0x40] sm:$0xff]
    %v3190 = vld [vmem:[%s3180 + $0x48] sm:$0xff]
    %v3191 = vld [vmem:[%s3180 + $0x50] sm:$0xff]
    %v3192 = vld [vmem:[%s3180 + $0x58] sm:$0xff]
    %v3193 = vld [vmem:[%s3180 + $0x60] sm:$0xff]
    %v3194 = vld [vmem:[%s3180 + $0x68] sm:$0xff]
    %v3195 = vld [vmem:[%s3180 + $0x70] sm:$0xff]
    %v3196 = vld [vmem:[%s3180 + $0x78] sm:$0xff]
    %v3197 = vld [vmem:[%s3180 + $0x80] sm:$0xff]
    %v3198 = vld [vmem:[%s3180 + $0x88] sm:$0xff]
    %v3199 = vld [vmem:[%s3180 + $0x90] sm:$0xff]
    %v3200 = vld [vmem:[%s3180 + $0x98] sm:$0xff]
    %v3201 = vld [vmem:[%s3180 + $0xa0] sm:$0xff]
    %v3202 = vld [vmem:[%s3180 + $0xa8] sm:$0xff]
    %v3203 = vld [vmem:[%s3180 + $0xb0] sm:$0xff]
    %v3204 = vld [vmem:[%s3180 + $0xb8] sm:$0xff]
    %v3205 = vld [vmem:[%s3180 + $0xc0] sm:$0xff]
    %v3206 = vld [vmem:[%s3180 + $0xc8] sm:$0xff]
    %v3207 = vld [vmem:[%s3180 + $0xd0] sm:$0xff]
    %v3208 = vld [vmem:[%s3180 + $0xd8] sm:$0xff]
    %v3209 = vld [vmem:[%s3180 + $0xe0] sm:$0xff]
    %v3210 = vld [vmem:[%s3180 + $0xe8] sm:$0xff]
    %v3211 = vld [vmem:[%s3180 + $0xf0] sm:$0xff]
    %v3212 = vld [vmem:[%s3180 + $0xf8] sm:$0xff]
    %v3213 = vld [vmem:[%s3180 + $0x100] sm:$0xff]
    %v3214 = vld [vmem:[%s3180 + $0x108] sm:$0xff]
    %v3215 = vld [vmem:[%s3180 + $0x110] sm:$0xff]
    %v3216 = vld [vmem:[%s3180 + $0x118] sm:$0xff]
    %v3217 = vld [vmem:[%s3180 + $0x120] sm:$0xff]
    %v3218 = vld [vmem:[%s3180 + $0x128] sm:$0xff]
    %v3219 = vld [vmem:[%s3180 + $0x130] sm:$0xff]
    %v3220 = vld [vmem:[%s3180 + $0x138] sm:$0xff]
    %v3221 = vld [vmem:[%s3180 + $0x140] sm:$0xff]
    %v3222 = vld [vmem:[%s3180 + $0x148] sm:$0xff]
    %v3223 = vld [vmem:[%s3180 + $0x150] sm:$0xff]
    %v3224 = vld [vmem:[%s3180 + $0x158] sm:$0xff]
    %v3225 = vld [vmem:[%s3180 + $0x160] sm:$0xff]
    %v3226 = vld [vmem:[%s3180 + $0x168] sm:$0xff]
    %v3227 = vld [vmem:[%s3180 + $0x170] sm:$0xff]
    %v3228 = vld [vmem:[%s3180 + $0x178] sm:$0xff]
    %v3229 = vld [vmem:[%s3180 + $0x180] sm:$0xff]
    %v3230 = vld [vmem:[%s3180 + $0x188] sm:$0xff]
    %v3231 = vld [vmem:[%s3180 + $0x190] sm:$0xff]
    %v3232 = vld [vmem:[%s3180 + $0x198] sm:$0xff]
    %v3233 = vld [vmem:[%s3180 + $0x1a0] sm:$0xff]
    %v3234 = vld [vmem:[%s3180 + $0x1a8] sm:$0xff]
    %v3235 = vld [vmem:[%s3180 + $0x1b0] sm:$0xff]
    %v3236 = vld [vmem:[%s3180 + $0x1b8] sm:$0xff]
    %v3237 = vld [vmem:[%s3180 + $0x1c0] sm:$0xff]
    %v3238 = vld [vmem:[%s3180 + $0x1c8] sm:$0xff]
    %v3239 = vld [vmem:[%s3180 + $0x1d0] sm:$0xff]
    %v3240 = vld [vmem:[%s3180 + $0x1d8] sm:$0xff]
    %v3241 = vld [vmem:[%s3180 + $0x1e0] sm:$0xff]
    %v3242 = vld [vmem:[%s3180 + $0x1e8] sm:$0xff]
    %v3243 = vld [vmem:[%s3180 + $0x1f0] sm:$0xff]
    %v3244 = vld [vmem:[%s3180 + $0x1f8] sm:$0xff]
    %v3245 = vld [vmem:[%s3180 + $0x200] sm:$0xff]
    %v3246 = vld [vmem:[%s3180 + $0x208] sm:$0xff]
    %v3247 = vld [vmem:[%s3180 + $0x210] sm:$0xff]
    %v3248 = vld [vmem:[%s3180 + $0x218] sm:$0xff]
    %v3249 = vld [vmem:[%s3180 + $0x220] sm:$0xff]
    %v3250 = vld [vmem:[%s3180 + $0x228] sm:$0xff]
    %v3251 = vld [vmem:[%s3180 + $0x230] sm:$0xff]
    %v3252 = vld [vmem:[%s3180 + $0x238] sm:$0xff]
    %v3253 = vld [vmem:[%s3180 + $0x240] sm:$0xff]
    %v3254 = vld [vmem:[%s3180 + $0x248] sm:$0xff]
    %v3255 = vld [vmem:[%s3180 + $0x250] sm:$0xff]
    %v3256 = vld [vmem:[%s3180 + $0x258] sm:$0xff]
    %v3257 = vld [vmem:[%s3180 + $0x260] sm:$0xff]
    %v3258 = vld [vmem:[%s3180 + $0x268] sm:$0xff]
    %v3259 = vld [vmem:[%s3180 + $0x270] sm:$0xff]
    %v3260 = vld [vmem:[%s3180 + $0x278] sm:$0xff]
    %v3261 = vld [vmem:[%s3180 + $0x280] sm:$0xff]
    %v3262 = vld [vmem:[%s3180 + $0x288] sm:$0xff]
    %v3263 = vld [vmem:[%s3180 + $0x290] sm:$0xff]
    %v3264 = vld [vmem:[%s3180 + $0x298] sm:$0xff]
    %v3265 = vld [vmem:[%s3180 + $0x2a0] sm:$0xff]
    %v3266 = vld [vmem:[%s3180 + $0x2a8] sm:$0xff]
    %v3267 = vld [vmem:[%s3180 + $0x2b0] sm:$0xff]
    %v3268 = vld [vmem:[%s3180 + $0x2b8] sm:$0xff]
    %v3269 = vld [vmem:[%s3180 + $0x2c0] sm:$0xff]
    %v3270 = vld [vmem:[%s3180 + $0x2c8] sm:$0xff]
    %v3271 = vld [vmem:[%s3180 + $0x2d0] sm:$0xff]
    %v3272 = vld [vmem:[%s3180 + $0x2d8] sm:$0xff]
    %v3273 = vld [vmem:[%s3180 + $0x2e0] sm:$0xff]
    %v3274 = vld [vmem:[%s3180 + $0x2e8] sm:$0xff]
    %v3275 = vld [vmem:[%s3180 + $0x2f0] sm:$0xff]
    %v3276 = vld [vmem:[%s3180 + $0x2f8] sm:$0xff]
    %v3277 = vld [vmem:[%s3180 + $0x300] sm:$0xff]
    %v3278 = vld [vmem:[%s3180 + $0x308] sm:$0xff]
    %v3279 = vld [vmem:[%s3180 + $0x310] sm:$0xff]
    %v3280 = vld [vmem:[%s3180 + $0x318] sm:$0xff]
    %v3281 = vld [vmem:[%s3180 + $0x320] sm:$0xff]
    %v3282 = vld [vmem:[%s3180 + $0x328] sm:$0xff]
    %v3283 = vld [vmem:[%s3180 + $0x330] sm:$0xff]
    %v3284 = vld [vmem:[%s3180 + $0x338] sm:$0xff]
    %v3285 = vld [vmem:[%s3180 + $0x340] sm:$0xff]
    %v3286 = vld [vmem:[%s3180 + $0x348] sm:$0xff]
    %v3287 = vld [vmem:[%s3180 + $0x350] sm:$0xff]
    %v3288 = vld [vmem:[%s3180 + $0x358] sm:$0xff]
    %v3289 = vld [vmem:[%s3180 + $0x360] sm:$0xff]
    %v3290 = vld [vmem:[%s3180 + $0x368] sm:$0xff]
    %v3291 = vld [vmem:[%s3180 + $0x370] sm:$0xff]
    %v3292 = vld [vmem:[%s3180 + $0x378] sm:$0xff]
    %v3293 = vld [vmem:[%s3180 + $0x380] sm:$0xff]
    %v3294 = vld [vmem:[%s3180 + $0x388] sm:$0xff]
    %v3295 = vld [vmem:[%s3180 + $0x390] sm:$0xff]
    %v3296 = vld [vmem:[%s3180 + $0x398] sm:$0xff]
    %v3297 = vld [vmem:[%s3180 + $0x3a0] sm:$0xff]
    %v3298 = vld [vmem:[%s3180 + $0x3a8] sm:$0xff]
    %v3299 = vld [vmem:[%s3180 + $0x3b0] sm:$0xff]
    %v3300 = vld [vmem:[%s3180 + $0x3b8] sm:$0xff]
    %v3301 = vld [vmem:[%s3180 + $0x3c0] sm:$0xff]
    %v3302 = vld [vmem:[%s3180 + $0x3c8] sm:$0xff]
    %v3303 = vld [vmem:[%s3180 + $0x3d0] sm:$0xff]
    %v3304 = vld [vmem:[%s3180 + $0x3d8] sm:$0xff]
    %v3305 = vld [vmem:[%s3180 + $0x3e0] sm:$0xff]
    %v3306 = vld [vmem:[%s3180 + $0x3e8] sm:$0xff]
    %v3307 = vld [vmem:[%s3180 + $0x3f0] sm:$0xff]
    %v3308 = vld [vmem:[%s3180 + $0x3f8] sm:$0xff]
    %v3309 = vld [vmem:[%s3180 + $0x400] sm:$0xff]
    %v3310 = vld [vmem:[%s3180 + $0x408] sm:$0xff]
    %v3311 = vld [vmem:[%s3180 + $0x410] sm:$0xff]
    %v3312 = vld [vmem:[%s3180 + $0x418] sm:$0xff]
    %v3313 = vld [vmem:[%s3180 + $0x420] sm:$0xff]
    %v3314 = vld [vmem:[%s3180 + $0x428] sm:$0xff]
    %v3315 = vld [vmem:[%s3180 + $0x430] sm:$0xff]
    %v3316 = vld [vmem:[%s3180 + $0x438] sm:$0xff]
    %v3317 = vld [vmem:[%s3180 + $0x440] sm:$0xff]
    %v3318 = vld [vmem:[%s3180 + $0x448] sm:$0xff]
    %v3319 = vld [vmem:[%s3180 + $0x450] sm:$0xff]
    %v3320 = vld [vmem:[%s3180 + $0x458] sm:$0xff]
    %v3321 = vld [vmem:[%s3180 + $0x460] sm:$0xff]
    %v3322 = vld [vmem:[%s3180 + $0x468] sm:$0xff]
    %v3323 = vld [vmem:[%s3180 + $0x470] sm:$0xff]
    %v3324 = vld [vmem:[%s3180 + $0x478] sm:$0xff]
    %v3325 = vld [vmem:[%s3180 + $0x480] sm:$0xff]
    %v3326 = vld [vmem:[%s3180 + $0x488] sm:$0xff]
    %v3327 = vld [vmem:[%s3180 + $0x490] sm:$0xff]
    %v3328 = vld [vmem:[%s3180 + $0x498] sm:$0xff]
    %v3329 = vld [vmem:[%s3180 + $0x4a0] sm:$0xff]
    %v3330 = vld [vmem:[%s3180 + $0x4a8] sm:$0xff]
    %v3331 = vld [vmem:[%s3180 + $0x4b0] sm:$0xff]
    %v3332 = vld [vmem:[%s3180 + $0x4b8] sm:$0xff]
    %v3333 = vld [vmem:[%s3180 + $0x4c0] sm:$0xff]
    %v3334 = vld [vmem:[%s3180 + $0x4c8] sm:$0xff]
    %v3335 = vld [vmem:[%s3180 + $0x4d0] sm:$0xff]
    %v3336 = vld [vmem:[%s3180 + $0x4d8] sm:$0xff]
    %v3337 = vld [vmem:[%s3180 + $0x4e0] sm:$0xff]
    %v3338 = vld [vmem:[%s3180 + $0x4e8] sm:$0xff]
    %v3339 = vld [vmem:[%s3180 + $0x4f0] sm:$0xff]
    %v3340 = vld [vmem:[%s3180 + $0x4f8] sm:$0xff]
    %v3341 = vld [vmem:[%s3180 + $0x500] sm:$0xff]
    %v3342 = vld [vmem:[%s3180 + $0x508] sm:$0xff]
    %v3343 = vld [vmem:[%s3180 + $0x510] sm:$0xff]
    %v3344 = vld [vmem:[%s3180 + $0x518] sm:$0xff]
    %v3345 = vld [vmem:[%s3180 + $0x520] sm:$0xff]
    %v3346 = vld [vmem:[%s3180 + $0x528] sm:$0xff]
    %v3347 = vld [vmem:[%s3180 + $0x530] sm:$0xff]
    %v3348 = vld [vmem:[%s3180 + $0x538] sm:$0xff]
    %v3349 = vld [vmem:[%s3180 + $0x540] sm:$0xff]
    %v3350 = vld [vmem:[%s3180 + $0x548] sm:$0xff]
    %v3351 = vld [vmem:[%s3180 + $0x550] sm:$0xff]
    %v3352 = vld [vmem:[%s3180 + $0x558] sm:$0xff]
    %v3353 = vld [vmem:[%s3180 + $0x560] sm:$0xff]
    %v3354 = vld [vmem:[%s3180 + $0x568] sm:$0xff]
    %v3355 = vld [vmem:[%s3180 + $0x570] sm:$0xff]
    %v3356 = vld [vmem:[%s3180 + $0x578] sm:$0xff]
    %v3357 = vld [vmem:[%s3180 + $0x580] sm:$0xff]
    %v3358 = vld [vmem:[%s3180 + $0x588] sm:$0xff]
    %v3359 = vld [vmem:[%s3180 + $0x590] sm:$0xff]
    %v3360 = vld [vmem:[%s3180 + $0x598] sm:$0xff]
    %v3361 = vld [vmem:[%s3180 + $0x5a0] sm:$0xff]
    %v3362 = vld [vmem:[%s3180 + $0x5a8] sm:$0xff]
    %v3363 = vld [vmem:[%s3180 + $0x5b0] sm:$0xff]
    %v3364 = vld [vmem:[%s3180 + $0x5b8] sm:$0xff]
    %v3365 = vld [vmem:[%s3180 + $0x5c0] sm:$0xff]
    %v3366 = vld [vmem:[%s3180 + $0x5c8] sm:$0xff]
    %v3367 = vld [vmem:[%s3180 + $0x5d0] sm:$0xff]
    %v3368 = vld [vmem:[%s3180 + $0x5d8] sm:$0xff]
    %v3369 = vld [vmem:[%s3180 + $0x5e0] sm:$0xff]
    %v3370 = vld [vmem:[%s3180 + $0x5e8] sm:$0xff]
    %v3371 = vld [vmem:[%s3180 + $0x5f0] sm:$0xff]
    %v3372 = vld [vmem:[%s3180 + $0x5f8] sm:$0xff]
    %v3373 = vld [vmem:[%s3180 + $0x600] sm:$0xff]
    %v3374 = vld [vmem:[%s3180 + $0x608] sm:$0xff]
    %v3375 = vld [vmem:[%s3180 + $0x610] sm:$0xff]
    %v3376 = vld [vmem:[%s3180 + $0x618] sm:$0xff]
    %v3377 = vld [vmem:[%s3180 + $0x620] sm:$0xff]
    %v3378 = vld [vmem:[%s3180 + $0x628] sm:$0xff]
    %v3379 = vld [vmem:[%s3180 + $0x630] sm:$0xff]
    %v3380 = vld [vmem:[%s3180 + $0x638] sm:$0xff]
    %v3381 = vld [vmem:[%s3180 + $0x640] sm:$0xff]
    %v3382 = vld [vmem:[%s3180 + $0x648] sm:$0xff]
    %v3383 = vld [vmem:[%s3180 + $0x650] sm:$0xff]
    %v3384 = vld [vmem:[%s3180 + $0x658] sm:$0xff]
    %v3385 = vld [vmem:[%s3180 + $0x660] sm:$0xff]
    %v3386 = vld [vmem:[%s3180 + $0x668] sm:$0xff]
    %v3387 = vld [vmem:[%s3180 + $0x670] sm:$0xff]
    %v3388 = vld [vmem:[%s3180 + $0x678] sm:$0xff]
    %v3389 = vld [vmem:[%s3180 + $0x680] sm:$0xff]
    %v3390 = vld [vmem:[%s3180 + $0x688] sm:$0xff]
    %v3391 = vld [vmem:[%s3180 + $0x690] sm:$0xff]
    %v3392 = vld [vmem:[%s3180 + $0x698] sm:$0xff]
    %v3393 = vld [vmem:[%s3180 + $0x6a0] sm:$0xff]
    %v3394 = vld [vmem:[%s3180 + $0x6a8] sm:$0xff]
    %v3395 = vld [vmem:[%s3180 + $0x6b0] sm:$0xff]
    %v3396 = vld [vmem:[%s3180 + $0x6b8] sm:$0xff]
    %v3397 = vld [vmem:[%s3180 + $0x6c0] sm:$0xff]
    %v3398 = vld [vmem:[%s3180 + $0x6c8] sm:$0xff]
    %v3399 = vld [vmem:[%s3180 + $0x6d0] sm:$0xff]
    %v3400 = vld [vmem:[%s3180 + $0x6d8] sm:$0xff]
    %v3401 = vld [vmem:[%s3180 + $0x6e0] sm:$0xff]
    %v3402 = vld [vmem:[%s3180 + $0x6e8] sm:$0xff]
    %v3403 = vld [vmem:[%s3180 + $0x6f0] sm:$0xff]
    %v3404 = vld [vmem:[%s3180 + $0x6f8] sm:$0xff]
    %v3405 = vld [vmem:[%s3180 + $0x700] sm:$0xff]
    %v3406 = vld [vmem:[%s3180 + $0x708] sm:$0xff]
    %v3407 = vld [vmem:[%s3180 + $0x710] sm:$0xff]
    %v3408 = vld [vmem:[%s3180 + $0x718] sm:$0xff]
    %v3409 = vld [vmem:[%s3180 + $0x720] sm:$0xff]
    %v3410 = vld [vmem:[%s3180 + $0x728] sm:$0xff]
    %v3411 = vld [vmem:[%s3180 + $0x730] sm:$0xff]
    %v3412 = vld [vmem:[%s3180 + $0x738] sm:$0xff]
    %v3413 = vld [vmem:[%s3180 + $0x740] sm:$0xff]
    %v3414 = vld [vmem:[%s3180 + $0x748] sm:$0xff]
    %v3415 = vld [vmem:[%s3180 + $0x750] sm:$0xff]
    %v3416 = vld [vmem:[%s3180 + $0x758] sm:$0xff]
    %v3417 = vld [vmem:[%s3180 + $0x760] sm:$0xff]
    %v3418 = vld [vmem:[%s3180 + $0x768] sm:$0xff]
    %v3419 = vld [vmem:[%s3180 + $0x770] sm:$0xff]
    %v3420 = vld [vmem:[%s3180 + $0x778] sm:$0xff]
    %v3421 = vld [vmem:[%s3180 + $0x780] sm:$0xff]
    %v3422 = vld [vmem:[%s3180 + $0x788] sm:$0xff]
    %v3423 = vld [vmem:[%s3180 + $0x790] sm:$0xff]
    %v3424 = vld [vmem:[%s3180 + $0x798] sm:$0xff]
    %v3425 = vld [vmem:[%s3180 + $0x7a0] sm:$0xff]
    %v3426 = vld [vmem:[%s3180 + $0x7a8] sm:$0xff]
    %v3427 = vld [vmem:[%s3180 + $0x7b0] sm:$0xff]
    %v3428 = vld [vmem:[%s3180 + $0x7b8] sm:$0xff]
    %v3429 = vld [vmem:[%s3180 + $0x7c0] sm:$0xff]
    %v3430 = vld [vmem:[%s3180 + $0x7c8] sm:$0xff]
    %v3431 = vld [vmem:[%s3180 + $0x7d0] sm:$0xff]
    %v3432 = vld [vmem:[%s3180 + $0x7d8] sm:$0xff]
    %v3433 = vld [vmem:[%s3180 + $0x7e0] sm:$0xff]
    %v3434 = vld [vmem:[%s3180 + $0x7e8] sm:$0xff]
    %v3435 = vld [vmem:[%s3180 + $0x7f0] sm:$0xff]
    %v3436 = vld [vmem:[%s3180 + $0x7f8] sm:$0xff]
    %v3437 = vld [vmem:[%s3180 + $0x800] sm:$0xff]
    %v3438 = vld [vmem:[%s3180 + $0x808] sm:$0xff]
    %v3439 = vld [vmem:[%s3180 + $0x810] sm:$0xff]
    %v3440 = vld [vmem:[%s3180 + $0x818] sm:$0xff]
    %v3441 = vld [vmem:[%s3180 + $0x820] sm:$0xff]
    %v3442 = vld [vmem:[%s3180 + $0x828] sm:$0xff]
    %v3443 = vld [vmem:[%s3180 + $0x830] sm:$0xff]
    %v3444 = vld [vmem:[%s3180 + $0x838] sm:$0xff]
    %v3445 = vld [vmem:[%s3180 + $0x840] sm:$0xff]
    %v3446 = vld [vmem:[%s3180 + $0x848] sm:$0xff]
    %v3447 = vld [vmem:[%s3180 + $0x850] sm:$0xff]
    %v3448 = vld [vmem:[%s3180 + $0x858] sm:$0xff]
    %v3449 = vld [vmem:[%s3180 + $0x860] sm:$0xff]
    %v3450 = vld [vmem:[%s3180 + $0x868] sm:$0xff]
    %v3451 = vld [vmem:[%s3180 + $0x870] sm:$0xff]
    %v3452 = vld [vmem:[%s3180 + $0x878] sm:$0xff]
    %v3453 = vld [vmem:[%s3180 + $0x880] sm:$0xff]
    %v3454 = vld [vmem:[%s3180 + $0x888] sm:$0xff]
    %v3455 = vld [vmem:[%s3180 + $0x890] sm:$0xff]
    %v3456 = vld [vmem:[%s3180 + $0x898] sm:$0xff]
    %v3457 = vld [vmem:[%s3180 + $0x8a0] sm:$0xff]
    %v3458 = vld [vmem:[%s3180 + $0x8a8] sm:$0xff]
    %v3459 = vld [vmem:[%s3180 + $0x8b0] sm:$0xff]
    %v3460 = vld [vmem:[%s3180 + $0x8b8] sm:$0xff]
    %v3461 = vld [vmem:[%s3180 + $0x8c0] sm:$0xff]
    %v3462 = vld [vmem:[%s3180 + $0x8c8] sm:$0xff]
    %v3463 = vld [vmem:[%s3180 + $0x8d0] sm:$0xff]
    %v3464 = vld [vmem:[%s3180 + $0x8d8] sm:$0xff]
    %v3465 = vld [vmem:[%s3180 + $0x8e0] sm:$0xff]
    %v3466 = vld [vmem:[%s3180 + $0x8e8] sm:$0xff]
    %v3467 = vld [vmem:[%s3180 + $0x8f0] sm:$0xff]
    %v3468 = vld [vmem:[%s3180 + $0x8f8] sm:$0xff]
    %v3469 = vld [vmem:[%s3180 + $0x900] sm:$0xff]
    %v3470 = vld [vmem:[%s3180 + $0x908] sm:$0xff]
    %v3471 = vld [vmem:[%s3180 + $0x910] sm:$0xff]
    %v3472 = vld [vmem:[%s3180 + $0x918] sm:$0xff]
    %v3473 = vld [vmem:[%s3180 + $0x920] sm:$0xff]
    %v3474 = vld [vmem:[%s3180 + $0x928] sm:$0xff]
    %v3475 = vld [vmem:[%s3180 + $0x930] sm:$0xff]
    %v3476 = vld [vmem:[%s3180 + $0x938] sm:$0xff]
    %v3477 = vld [vmem:[%s3180 + $0x940] sm:$0xff]
    %v3478 = vld [vmem:[%s3180 + $0x948] sm:$0xff]
    %v3479 = vld [vmem:[%s3180 + $0x950] sm:$0xff]
    %v3480 = vld [vmem:[%s3180 + $0x958] sm:$0xff]
    %v3481 = vld [vmem:[%s3180 + $0x960] sm:$0xff]
    %v3482 = vld [vmem:[%s3180 + $0x968] sm:$0xff]
    %v3483 = vld [vmem:[%s3180 + $0x970] sm:$0xff]
    %v3484 = vld [vmem:[%s3180 + $0x978] sm:$0xff]
    %v3485 = vld [vmem:[%s3180 + $0x980] sm:$0xff]
    %v3486 = vld [vmem:[%s3180 + $0x988] sm:$0xff]
    %v3487 = vld [vmem:[%s3180 + $0x990] sm:$0xff]
    %v3488 = vld [vmem:[%s3180 + $0x998] sm:$0xff]
    %v3489 = vld [vmem:[%s3180 + $0x9a0] sm:$0xff]
    %v3490 = vld [vmem:[%s3180 + $0x9a8] sm:$0xff]
    %v3491 = vld [vmem:[%s3180 + $0x9b0] sm:$0xff]
    %v3492 = vld [vmem:[%s3180 + $0x9b8] sm:$0xff]
    %v3493 = vld [vmem:[%s3180 + $0x9c0] sm:$0xff]
    %v3494 = vld [vmem:[%s3180 + $0x9c8] sm:$0xff]
    %v3495 = vld [vmem:[%s3180 + $0x9d0] sm:$0xff]
    %v3496 = vld [vmem:[%s3180 + $0x9d8] sm:$0xff]
    %v3497 = vld [vmem:[%s3180 + $0x9e0] sm:$0xff]
    %v3498 = vld [vmem:[%s3180 + $0x9e8] sm:$0xff]
    %v3499 = vld [vmem:[%s3180 + $0x9f0] sm:$0xff]
    %v3500 = vld [vmem:[%s3180 + $0x9f8] sm:$0xff]
    %v3501 = vld [vmem:[%s3180 + $0xa00] sm:$0xff]
    %v3502 = vld [vmem:[%s3180 + $0xa08] sm:$0xff]
    %v3503 = vld [vmem:[%s3180 + $0xa10] sm:$0xff]
    %v3504 = vld [vmem:[%s3180 + $0xa18] sm:$0xff]
    %v3505 = vld [vmem:[%s3180 + $0xa20] sm:$0xff]
    %v3506 = vld [vmem:[%s3180 + $0xa28] sm:$0xff]
    %v3507 = vld [vmem:[%s3180 + $0xa30] sm:$0xff]
    %v3508 = vld [vmem:[%s3180 + $0xa38] sm:$0xff]
    %v3509 = vld [vmem:[%s3180 + $0xa40] sm:$0xff]
    %v3510 = vld [vmem:[%s3180 + $0xa48] sm:$0xff]
    %v3511 = vld [vmem:[%s3180 + $0xa50] sm:$0xff]
    %v3512 = vld [vmem:[%s3180 + $0xa58] sm:$0xff]
    %v3513 = vld [vmem:[%s3180 + $0xa60] sm:$0xff]
    %v3514 = vld [vmem:[%s3180 + $0xa68] sm:$0xff]
    %v3515 = vld [vmem:[%s3180 + $0xa70] sm:$0xff]
    %v3516 = vld [vmem:[%s3180 + $0xa78] sm:$0xff]
    %v3517 = vld [vmem:[%s3180 + $0xa80] sm:$0xff]
    %v3518 = vld [vmem:[%s3180 + $0xa88] sm:$0xff]
    %v3519 = vld [vmem:[%s3180 + $0xa90] sm:$0xff]
    %v3520 = vld [vmem:[%s3180 + $0xa98] sm:$0xff]
    %v3521 = vld [vmem:[%s3180 + $0xaa0] sm:$0xff]
    %v3522 = vld [vmem:[%s3180 + $0xaa8] sm:$0xff]
    %v3523 = vld [vmem:[%s3180 + $0xab0] sm:$0xff]
    %v3524 = vld [vmem:[%s3180 + $0xab8] sm:$0xff]
    %v3525 = vld [vmem:[%s3180 + $0xac0] sm:$0xff]
    %v3526 = vld [vmem:[%s3180 + $0xac8] sm:$0xff]
    %v3527 = vld [vmem:[%s3180 + $0xad0] sm:$0xff]
    %v3528 = vld [vmem:[%s3180 + $0xad8] sm:$0xff]
    %v3529 = vld [vmem:[%s3180 + $0xae0] sm:$0xff]
    %v3530 = vld [vmem:[%s3180 + $0xae8] sm:$0xff]
    %v3531 = vld [vmem:[%s3180 + $0xaf0] sm:$0xff]
    %v3532 = vld [vmem:[%s3180 + $0xaf8] sm:$0xff]
    %v3533 = vld [vmem:[%s3180 + $0xb00] sm:$0xff]
    %v3534 = vld [vmem:[%s3180 + $0xb08] sm:$0xff]
    %v3535 = vld [vmem:[%s3180 + $0xb10] sm:$0xff]
    %v3536 = vld [vmem:[%s3180 + $0xb18] sm:$0xff]
    %v3537 = vld [vmem:[%s3180 + $0xb20] sm:$0xff]
    %v3538 = vld [vmem:[%s3180 + $0xb28] sm:$0xff]
    %v3539 = vld [vmem:[%s3180 + $0xb30] sm:$0xff]
    %v3540 = vld [vmem:[%s3180 + $0xb38] sm:$0xff]
    %v3541 = vld [vmem:[%s3180 + $0xb40] sm:$0xff]
    %v3542 = vld [vmem:[%s3180 + $0xb48] sm:$0xff]
    %v3543 = vld [vmem:[%s3180 + $0xb50] sm:$0xff]
    %v3544 = vld [vmem:[%s3180 + $0xb58] sm:$0xff]
    %v3545 = vld [vmem:[%s3180 + $0xb60] sm:$0xff]
    %v3546 = vld [vmem:[%s3180 + $0xb68] sm:$0xff]
    %v3547 = vld [vmem:[%s3180 + $0xb70] sm:$0xff]
    %v3548 = vld [vmem:[%s3180 + $0xb78] sm:$0xff]
    %v3549 = vld [vmem:[%s3180 + $0xb80] sm:$0xff]
    %v3550 = vld [vmem:[%s3180 + $0xb88] sm:$0xff]
    %v3551 = vld [vmem:[%s3180 + $0xb90] sm:$0xff]
    %v3552 = vld [vmem:[%s3180 + $0xb98] sm:$0xff]
    %v3553 = vld [vmem:[%s3180 + $0xba0] sm:$0xff]
    %v3554 = vld [vmem:[%s3180 + $0xba8] sm:$0xff]
    %v3555 = vld [vmem:[%s3180 + $0xbb0] sm:$0xff]
    %v3556 = vld [vmem:[%s3180 + $0xbb8] sm:$0xff]
    %v3557 = vld [vmem:[%s3180 + $0xbc0] sm:$0xff]
    %v3558 = vld [vmem:[%s3180 + $0xbc8] sm:$0xff]
    %v3559 = vld [vmem:[%s3180 + $0xbd0] sm:$0xff]
    %v3560 = vld [vmem:[%s3180 + $0xbd8] sm:$0xff]
    %v3561 = vld [vmem:[%s3180 + $0xbe0] sm:$0xff]
    %v3562 = vld [vmem:[%s3180 + $0xbe8] sm:$0xff]
    %v3563 = vld [vmem:[%s3180 + $0xbf0] sm:$0xff]
    %v3564 = vld [vmem:[%s3180 + $0xbf8] sm:$0xff]
    %v3565 = vld [vmem:[%s3180 + $0xc00] sm:$0xff]
    %v3566 = vld [vmem:[%s3180 + $0xc08] sm:$0xff]
    %v3567 = vld [vmem:[%s3180 + $0xc10] sm:$0xff]
    %v3568 = vld [vmem:[%s3180 + $0xc18] sm:$0xff]
    %v3569 = vld [vmem:[%s3180 + $0xc20] sm:$0xff]
    %v3570 = vld [vmem:[%s3180 + $0xc28] sm:$0xff]
    %v3571 = vld [vmem:[%s3180 + $0xc30] sm:$0xff]
    %v3572 = vld [vmem:[%s3180 + $0xc38] sm:$0xff]
    %v3573 = vld [vmem:[%s3180 + $0xc40] sm:$0xff]
    %v3574 = vld [vmem:[%s3180 + $0xc48] sm:$0xff]
    %v3575 = vld [vmem:[%s3180 + $0xc50] sm:$0xff]
    %v3576 = vld [vmem:[%s3180 + $0xc58] sm:$0xff]
    %v3577 = vld [vmem:[%s3180 + $0xc60] sm:$0xff]
    %v3578 = vld [vmem:[%s3180 + $0xc68] sm:$0xff]
    %v3579 = vld [vmem:[%s3180 + $0xc70] sm:$0xff]
    %v3580 = vld [vmem:[%s3180 + $0xc78] sm:$0xff]
    %v3581 = vld [vmem:[%s3180 + $0xc80] sm:$0xff]
    %v3582 = vld [vmem:[%s3180 + $0xc88] sm:$0xff]
    %v3583 = vld [vmem:[%s3180 + $0xc90] sm:$0xff]
    %v3584 = vld [vmem:[%s3180 + $0xc98] sm:$0xff]
    %v3585 = vld [vmem:[%s3180 + $0xca0] sm:$0xff]
    %v3586 = vld [vmem:[%s3180 + $0xca8] sm:$0xff]
    %v3587 = vld [vmem:[%s3180 + $0xcb0] sm:$0xff]
    %v3588 = vld [vmem:[%s3180 + $0xcb8] sm:$0xff]
    %v3589 = vld [vmem:[%s3180 + $0xcc0] sm:$0xff]
    %v3590 = vld [vmem:[%s3180 + $0xcc8] sm:$0xff]
    %v3591 = vld [vmem:[%s3180 + $0xcd0] sm:$0xff]
    %v3592 = vld [vmem:[%s3180 + $0xcd8] sm:$0xff]
    %v3593 = vld [vmem:[%s3180 + $0xce0] sm:$0xff]
    %v3594 = vld [vmem:[%s3180 + $0xce8] sm:$0xff]
    %v3595 = vld [vmem:[%s3180 + $0xcf0] sm:$0xff]
    %v3596 = vld [vmem:[%s3180 + $0xcf8] sm:$0xff]
    %v3597 = vld [vmem:[%s3180 + $0xd00] sm:$0xff]
    %v3598 = vld [vmem:[%s3180 + $0xd08] sm:$0xff]
    %v3599 = vld [vmem:[%s3180 + $0xd10] sm:$0xff]
    %v3600 = vld [vmem:[%s3180 + $0xd18] sm:$0xff]
    %v3601 = vld [vmem:[%s3180 + $0xd20] sm:$0xff]
    %v3602 = vld [vmem:[%s3180 + $0xd28] sm:$0xff]
    %v3603 = vld [vmem:[%s3180 + $0xd30] sm:$0xff]
    %v3604 = vld [vmem:[%s3180 + $0xd38] sm:$0xff]
    %v3605 = vld [vmem:[%s3180 + $0xd40] sm:$0xff]
    %v3606 = vld [vmem:[%s3180 + $0xd48] sm:$0xff]
    %v3607 = vld [vmem:[%s3180 + $0xd50] sm:$0xff]
    %v3608 = vld [vmem:[%s3180 + $0xd58] sm:$0xff]
    %v3609 = vld [vmem:[%s3180 + $0xd60] sm:$0xff]
    %v3610 = vld [vmem:[%s3180 + $0xd68] sm:$0xff]
    %v3611 = vld [vmem:[%s3180 + $0xd70] sm:$0xff]
    %v3612 = vld [vmem:[%s3180 + $0xd78] sm:$0xff]
    %v3613 = vld [vmem:[%s3180 + $0xd80] sm:$0xff]
    %v3614 = vld [vmem:[%s3180 + $0xd88] sm:$0xff]
    %v3615 = vld [vmem:[%s3180 + $0xd90] sm:$0xff]
    %v3616 = vld [vmem:[%s3180 + $0xd98] sm:$0xff]
    %v3617 = vld [vmem:[%s3180 + $0xda0] sm:$0xff]
    %v3618 = vld [vmem:[%s3180 + $0xda8] sm:$0xff]
    %v3619 = vld [vmem:[%s3180 + $0xdb0] sm:$0xff]
    %v3620 = vld [vmem:[%s3180 + $0xdb8] sm:$0xff]
    %v3621 = vld [vmem:[%s3180 + $0xdc0] sm:$0xff]
    %v3622 = vld [vmem:[%s3180 + $0xdc8] sm:$0xff]
    %v3623 = vld [vmem:[%s3180 + $0xdd0] sm:$0xff]
    %v3624 = vld [vmem:[%s3180 + $0xdd8] sm:$0xff]
    %v3625 = vld [vmem:[%s3180 + $0xde0] sm:$0xff]
    %v3626 = vld [vmem:[%s3180 + $0xde8] sm:$0xff]
    %v3627 = vld [vmem:[%s3180 + $0xdf0] sm:$0xff]
    %v3628 = vld [vmem:[%s3180 + $0xdf8] sm:$0xff]
    %v3629 = vld [vmem:[%s3180 + $0xe00] sm:$0xff]
    %v3630 = vld [vmem:[%s3180 + $0xe08] sm:$0xff]
    %v3631 = vld [vmem:[%s3180 + $0xe10] sm:$0xff]
    %v3632 = vld [vmem:[%s3180 + $0xe18] sm:$0xff]
    %v3633 = vld [vmem:[%s3180 + $0xe20] sm:$0xff]
    %v3634 = vld [vmem:[%s3180 + $0xe28] sm:$0xff]
    %v3635 = vld [vmem:[%s3180 + $0xe30] sm:$0xff]
    %v3636 = vld [vmem:[%s3180 + $0xe38] sm:$0xff]
    %v3637 = vld [vmem:[%s3180 + $0xe40] sm:$0xff]
    %v3638 = vld [vmem:[%s3180 + $0xe48] sm:$0xff]
    %v3639 = vld [vmem:[%s3180 + $0xe50] sm:$0xff]
    %v3640 = vld [vmem:[%s3180 + $0xe58] sm:$0xff]
    %v3641 = vld [vmem:[%s3180 + $0xe60] sm:$0xff]
    %v3642 = vld [vmem:[%s3180 + $0xe68] sm:$0xff]
    %v3643 = vld [vmem:[%s3180 + $0xe70] sm:$0xff]
    %v3644 = vld [vmem:[%s3180 + $0xe78] sm:$0xff]
    %v3645 = vld [vmem:[%s3180 + $0xe80] sm:$0xff]
    %v3646 = vld [vmem:[%s3180 + $0xe88] sm:$0xff]
    %v3647 = vld [vmem:[%s3180 + $0xe90] sm:$0xff]
    %v3648 = vld [vmem:[%s3180 + $0xe98] sm:$0xff]
    %v3649 = vld [vmem:[%s3180 + $0xea0] sm:$0xff]
    %v3650 = vld [vmem:[%s3180 + $0xea8] sm:$0xff]
    %v3651 = vld [vmem:[%s3180 + $0xeb0] sm:$0xff]
    %v3652 = vld [vmem:[%s3180 + $0xeb8] sm:$0xff]
    %v3653 = vld [vmem:[%s3180 + $0xec0] sm:$0xff]
    %v3654 = vld [vmem:[%s3180 + $0xec8] sm:$0xff]
    %v3655 = vld [vmem:[%s3180 + $0xed0] sm:$0xff]
    %v3656 = vld [vmem:[%s3180 + $0xed8] sm:$0xff]
    %v3657 = vld [vmem:[%s3180 + $0xee0] sm:$0xff]
    %v3658 = vld [vmem:[%s3180 + $0xee8] sm:$0xff]
    %v3659 = vld [vmem:[%s3180 + $0xef0] sm:$0xff]
    %v3660 = vld [vmem:[%s3180 + $0xef8] sm:$0xff]
    %v3661 = vld [vmem:[%s3180 + $0xf00] sm:$0xff]
    %v3662 = vld [vmem:[%s3180 + $0xf08] sm:$0xff]
    %v3663 = vld [vmem:[%s3180 + $0xf10] sm:$0xff]
    %v3664 = vld [vmem:[%s3180 + $0xf18] sm:$0xff]
    %v3665 = vld [vmem:[%s3180 + $0xf20] sm:$0xff]
    %v3666 = vld [vmem:[%s3180 + $0xf28] sm:$0xff]
    %v3667 = vld [vmem:[%s3180 + $0xf30] sm:$0xff]
    %v3668 = vld [vmem:[%s3180 + $0xf38] sm:$0xff]
    %v3669 = vld [vmem:[%s3180 + $0xf40] sm:$0xff]
    %v3670 = vld [vmem:[%s3180 + $0xf48] sm:$0xff]
    %v3671 = vld [vmem:[%s3180 + $0xf50] sm:$0xff]
    %v3672 = vld [vmem:[%s3180 + $0xf58] sm:$0xff]
    %v3673 = vld [vmem:[%s3180 + $0xf60] sm:$0xff]
    %v3674 = vld [vmem:[%s3180 + $0xf68] sm:$0xff]
    %v3675 = vld [vmem:[%s3180 + $0xf70] sm:$0xff]
    %v3676 = vld [vmem:[%s3180 + $0xf78] sm:$0xff]
    %v3677 = vld [vmem:[%s3180 + $0xf80] sm:$0xff]
    %v3678 = vld [vmem:[%s3180 + $0xf88] sm:$0xff]
    %v3679 = vld [vmem:[%s3180 + $0xf90] sm:$0xff]
    %v3680 = vld [vmem:[%s3180 + $0xf98] sm:$0xff]
    %v3681 = vld [vmem:[%s3180 + $0xfa0] sm:$0xff]
    %v3682 = vld [vmem:[%s3180 + $0xfa8] sm:$0xff]
    %v3683 = vld [vmem:[%s3180 + $0xfb0] sm:$0xff]
    %v3684 = vld [vmem:[%s3180 + $0xfb8] sm:$0xff]
    %v3685 = vld [vmem:[%s3180 + $0xfc0] sm:$0xff]
    %v3686 = vld [vmem:[%s3180 + $0xfc8] sm:$0xff]
    %v3687 = vld [vmem:[%s3180 + $0xfd0] sm:$0xff]
    %v3688 = vld [vmem:[%s3180 + $0xfd8] sm:$0xff]
    %v3689 = vld [vmem:[%s3180 + $0xfe0] sm:$0xff]
    %v3690 = vld [vmem:[%s3180 + $0xfe8] sm:$0xff]
    %v3691 = vld [vmem:[%s3180 + $0xff0] sm:$0xff]
    %v3692 = vld [vmem:[%s3180 + $0xff8] sm:$0xff]
    %3693 = vmatprep.subr.mxu0 %v2669
    %3694 = vmatpush1.msra.mxu0 %v2668
    %3695 = vmatprep.subr.mxu0 %v2677
    %3696 = vmatpush1.msra.mxu0 %v2676
    %3697 = vmatprep.subr.mxu0 %v2685
    %3698 = vmatpush1.msra.mxu0 %v2684
    %3699 = vmatprep.subr.mxu0 %v2693
    %3700 = vmatpush1.msra.mxu0 %v2692
    %3701 = vmatprep.subr.mxu0 %v2701
    %3702 = vmatpush1.msra.mxu0 %v2700
    %3703 = vmatprep.subr.mxu0 %v2709
    %3704 = vmatpush1.msra.mxu0 %v2708
    %3705 = vmatprep.subr.mxu0 %v2717
    %3706 = vmatpush1.msra.mxu0 %v2716
    %3707 = vmatprep.subr.mxu0 %v2725
    %3708 = vmatpush1.msra.mxu0 %v2724
    %3709 = vmatprep.subr.mxu0 %v2733
    %3710 = vmatpush1.msra.mxu0 %v2732
    %3711 = vmatprep.subr.mxu0 %v2741
    %3712 = vmatpush1.msra.mxu0 %v2740
    %3713 = vmatprep.subr.mxu0 %v2749
    %3714 = vmatpush1.msra.mxu0 %v2748
    %3715 = vmatprep.subr.mxu0 %v2757
    %3716 = vmatpush1.msra.mxu0 %v2756
    %3717 = vmatprep.subr.mxu0 %v2765
    %3718 = vmatpush1.msra.mxu0 %v2764
    %3719 = vmatprep.subr.mxu0 %v2773
    %3720 = vmatpush1.msra.mxu0 %v2772
    %3721 = vmatprep.subr.mxu0 %v2781
    %3722 = vmatpush1.msra.mxu0 %v2780
    %3723 = vmatprep.subr.mxu0 %v2789
    %3724 = vmatpush1.msra.mxu0 %v2788
    %3725 = vmatprep.subr.mxu0 %v2797
    %3726 = vmatpush1.msra.mxu0 %v2796
    %3727 = vmatprep.subr.mxu0 %v2805
    %3728 = vmatpush1.msra.mxu0 %v2804
    %3729 = vmatprep.subr.mxu0 %v2813
    %3730 = vmatpush1.msra.mxu0 %v2812
    %3731 = vmatprep.subr.mxu0 %v2821
    %3732 = vmatpush1.msra.mxu0 %v2820
    %3733 = vmatprep.subr.mxu0 %v2829
    %3734 = vmatpush1.msra.mxu0 %v2828
    %3735 = vmatprep.subr.mxu0 %v2837
    %3736 = vmatpush1.msra.mxu0 %v2836
    %3737 = vmatprep.subr.mxu0 %v2845
    %3738 = vmatpush1.msra.mxu0 %v2844
    %3739 = vmatprep.subr.mxu0 %v2853
    %3740 = vmatpush1.msra.mxu0 %v2852
    %3741 = vmatprep.subr.mxu0 %v2861
    %3742 = vmatpush1.msra.mxu0 %v2860
    %3743 = vmatprep.subr.mxu0 %v2869
    %3744 = vmatpush1.msra.mxu0 %v2868
    %3745 = vmatprep.subr.mxu0 %v2877
    %3746 = vmatpush1.msra.mxu0 %v2876
    %3747 = vmatprep.subr.mxu0 %v2885
    %3748 = vmatpush1.msra.mxu0 %v2884
    %3749 = vmatprep.subr.mxu0 %v2893
    %3750 = vmatpush1.msra.mxu0 %v2892
    %3751 = vmatprep.subr.mxu0 %v2901
    %3752 = vmatpush1.msra.mxu0 %v2900
    %3753 = vmatprep.subr.mxu0 %v2909
    %3754 = vmatpush1.msra.mxu0 %v2908
    %3755 = vmatprep.subr.mxu0 %v2917
    %3756 = vmatpush1.msra.mxu0 %v2916
    %3757 = vmatprep.mubr.f32.mxu0 %v2124
    %3758 = vmatmul.mubr.f32.gmra.mrb[0].mxu0 %v2123
    %v3759 = vpop.f32.mrb[0].mxu0
    %v3760 = vadd.f32 0.0, %v3759
    %v3761 = vpop.f32.mrb[0].mxu0
    %v3762 = vadd.f32 0.0, %v3761
    %3763 = vmatprep.mubr.f32.mxu0 %v2128
    %3764 = vmatmul.mubr.f32.gmra.mrb[0].mxu0 %v2127
    %v3765 = vpop.f32.mrb[0].mxu0
    %v3766 = vadd.f32 0.0, %v3765
    %v3767 = vpop.f32.mrb[0].mxu0
    %v3768 = vadd.f32 0.0, %v3767
    %3769 = vmatprep.mubr.f32.mxu0 %v2132
    %3770 = vmatmul.mubr.f32.gmra.mrb[0].mxu0 %v2131
    %v3771 = vpop.f32.mrb[0].mxu0
    %v3772 = vadd.f32 0.0, %v3771
    %v3773 = vpop.f32.mrb[0].mxu0
    %v3774 = vadd.f32 0.0, %v3773
    %3775 = vmatprep.mubr.f32.mxu0 %v2136
    %3776 = vmatmul.mubr.f32.gmra.mrb[0].mxu0 %v2135
    %v3777 = vpop.f32.mrb[0].mxu0
    %v3778 = vadd.f32 0.0, %v3777
    %v3779 = vpop.f32.mrb[0].mxu0
    %v3780 = vadd.f32 0.0, %v3779
    %3781 = vmatprep.mubr.f32.mxu0 %v2140
    %3782 = vmatmul.mubr.f32.gmra.mrb[0].mxu0 %v2139
    %v3783 = vpop.f32.mrb[0].mxu0
    %v3784 = vadd.f32 0.0, %v3783
    %v3785 = vpop.f32.mrb[0].mxu0
    %v3786 = vadd.f32 0.0, %v3785
    %3787 = vmatprep.mubr.f32.mxu0 %v2144
    %3788 = vmatmul.mubr.f32.gmra.mrb[0].mxu0 %v2143
    %v3789 = vpop.f32.mrb[0].mxu0
    %v3790 = vadd.f32 0.0, %v3789
    %v3791 = vpop.f32.mrb[0].mxu0
    %v3792 = vadd.f32 0.0, %v3791
    %3793 = vmatprep.mubr.f32.mxu0 %v2148
    %3794 = vmatmul.mubr.f32.gmra.mrb[0].mxu0 %v2147
    %v3795 = vpop.f32.mrb[0].mxu0
    %v3796 = vadd.f32 0.0, %v3795
    %v3797 = vpop.f32.mrb[0].mxu0
    %v3798 = vadd.f32 0.0, %v3797
    %3799 = vmatprep.mubr.f32.mxu0 %v2152
    %3800 = vmatmul.mubr.f32.gmra.mrb[0].mxu0 %v2151
    %v3801 = vpop.f32.mrb[0].mxu0
    %v3802 = vpop.f32.mrb[0].mxu0
    %3803 = vdwg.mxu0
    %3804 = vmatprep.subr.mxu0 %v2925
    %3805 = vmatpush1.msra.mxu0 %v2924
    %3806 = vmatprep.subr.mxu0 %v2933
    %3807 = vmatpush1.msra.mxu0 %v2932
    %3808 = vmatprep.subr.mxu0 %v2941
    %3809 = vmatpush1.msra.mxu0 %v2940
    %3810 = vmatprep.subr.mxu0 %v2949
    %3811 = vmatpush1.msra.mxu0 %v2948
    %3812 = vmatprep.subr.mxu0 %v2957
    %3813 = vmatpush1.msra.mxu0 %v2956
    %3814 = vmatprep.subr.mxu0 %v2965
    %3815 = vmatpush1.msra.mxu0 %v2964
    %3816 = vmatprep.subr.mxu0 %v2973
    %3817 = vmatpush1.msra.mxu0 %v2972
    %3818 = vmatprep.subr.mxu0 %v2981
    %3819 = vmatpush1.msra.mxu0 %v2980
    %3820 = vmatprep.subr.mxu0 %v2989
    %3821 = vmatpush1.msra.mxu0 %v2988
    %3822 = vmatprep.subr.mxu0 %v2997
    %3823 = vmatpush1.msra.mxu0 %v2996
    %3824 = vmatprep.subr.mxu0 %v3005
    %3825 = vmatpush1.msra.mxu0 %v3004
    %3826 = vmatprep.subr.mxu0 %v3013
    %3827 = vmatpush1.msra.mxu0 %v3012
    %3828 = vmatprep.subr.mxu0 %v3021
    %3829 = vmatpush1.msra.mxu0 %v3020
    %3830 = vmatprep.subr.mxu0 %v3029
    %3831 = vmatpush1.msra.mxu0 %v3028
    %3832 = vmatprep.subr.mxu0 %v3037
    %3833 = vmatpush1.msra.mxu0 %v3036
    %3834 = vmatprep.subr.mxu0 %v3045
    %3835 = vmatpush1.msra.mxu0 %v3044
    %3836 = vmatprep.subr.mxu0 %v3053
    %3837 = vmatpush1.msra.mxu0 %v3052
    %3838 = vmatprep.subr.mxu0 %v3061
    %3839 = vmatpush1.msra.mxu0 %v3060
    %3840 = vmatprep.subr.mxu0 %v3069
    %3841 = vmatpush1.msra.mxu0 %v3068
    %3842 = vmatprep.subr.mxu0 %v3077
    %3843 = vmatpush1.msra.mxu0 %v3076
    %3844 = vmatprep.subr.mxu0 %v3085
    %3845 = vmatpush1.msra.mxu0 %v3084
    %3846 = vmatprep.subr.mxu0 %v3093
    %3847 = vmatpush1.msra.mxu0 %v3092
    %3848 = vmatprep.subr.mxu0 %v3101
    %3849 = vmatpush1.msra.mxu0 %v3100
    %3850 = vmatprep.subr.mxu0 %v3109
    %3851 = vmatpush1.msra.mxu0 %v3108
    %3852 = vmatprep.subr.mxu0 %v3117
    %3853 = vmatpush1.msra.mxu0 %v3116
    %3854 = vmatprep.subr.mxu0 %v3125
    %3855 = vmatpush1.msra.mxu0 %v3124
    %3856 = vmatprep.subr.mxu0 %v3133
    %3857 = vmatpush1.msra.mxu0 %v3132
    %3858 = vmatprep.subr.mxu0 %v3141
    %3859 = vmatpush1.msra.mxu0 %v3140
    %3860 = vmatprep.subr.mxu0 %v3149
    %3861 = vmatpush1.msra.mxu0 %v3148
    %3862 = vmatprep.subr.mxu0 %v3157
    %3863 = vmatpush1.msra.mxu0 %v3156
    %3864 = vmatprep.subr.mxu0 %v3165
    %3865 = vmatpush1.msra.mxu0 %v3164
    %3866 = vmatprep.subr.mxu0 %v3173
    %3867 = vmatpush1.msra.mxu0 %v3172
    %3868 = vmatprep.mubr.f32.mxu0 %v2126
    %3869 = vmatmul.mubr.f32.gmra.mrb[0].mxu0 %v2125
    %v3870 = vpop.f32.mrb[0].mxu0
    %v3871 = vadd.f32 %v3760, %v3870
    %v3872 = vpop.f32.mrb[0].mxu0
    %v3873 = vadd.f32 %v3762, %v3872
    %3874 = vmatprep.mubr.f32.mxu0 %v2130
    %3875 = vmatmul.mubr.f32.gmra.mrb[0].mxu0 %v2129
    %v3876 = vpop.f32.mrb[0].mxu0
    %v3877 = vadd.f32 %v3766, %v3876
    %v3878 = vpop.f32.mrb[0].mxu0
    %v3879 = vadd.f32 %v3768, %v3878
    %3880 = vmatprep.mubr.f32.mxu0 %v2134
    %3881 = vmatmul.mubr.f32.gmra.mrb[0].mxu0 %v2133
    %v3882 = vpop.f32.mrb[0].mxu0
    %v3883 = vadd.f32 %v3772, %v3882
    %v3884 = vpop.f32.mrb[0].mxu0
    %v3885 = vadd.f32 %v3774, %v3884
    %3886 = vmatprep.mubr.f32.mxu0 %v2138
    %3887 = vmatmul.mubr.f32.gmra.mrb[0].mxu0 %v2137
    %v3888 = vpop.f32.mrb[0].mxu0
    %v3889 = vadd.f32 %v3778, %v3888
    %v3890 = vpop.f32.mrb[0].mxu0
    %v3891 = vadd.f32 %v3780, %v3890
    %3892 = vmatprep.mubr.f32.mxu0 %v2142
    %3893 = vmatmul.mubr.f32.gmra.mrb[0].mxu0 %v2141
    %v3894 = vpop.f32.mrb[0].mxu0
    %v3895 = vadd.f32 %v3784, %v3894
    %v3896 = vpop.f32.mrb[0].mxu0
    %v3897 = vadd.f32 %v3786, %v3896
    %3898 = vmatprep.mubr.f32.mxu0 %v2146
    %3899 = vmatmul.mubr.f32.gmra.mrb[0].mxu0 %v2145
    %v3900 = vpop.f32.mrb[0].mxu0
    %v3901 = vadd.f32 %v3790, %v3900
    %v3902 = vpop.f32.mrb[0].mxu0
    %v3903 = vadd.f32 %v3792, %v3902
    %3904 = vmatprep.mubr.f32.mxu0 %v2150
    %3905 = vmatmul.mubr.f32.gmra.mrb[0].mxu0 %v2149
    %v3906 = vpop.f32.mrb[0].mxu0
    %v3907 = vadd.f32 %v3796, %v3906
    %v3908 = vpop.f32.mrb[0].mxu0
    %v3909 = vadd.f32 %v3798, %v3908
    %3910 = vmatprep.mubr.f32.mxu0 %v2154
    %3911 = vmatmul.mubr.f32.gmra.mrb[0].mxu0 %v2153
    %v3912 = vpop.f32.mrb[0].mxu0
    %v3913 = vpop.f32.mrb[0].mxu0
    %3914 = vdwg.mxu0
    %3915 = vmatprep.subr.mxu0 %v2671
    %3916 = vmatpush1.msra.mxu0 %v2670
    %3917 = vmatprep.subr.mxu0 %v2679
    %3918 = vmatpush1.msra.mxu0 %v2678
    %3919 = vmatprep.subr.mxu0 %v2687
    %3920 = vmatpush1.msra.mxu0 %v2686
    %3921 = vmatprep.subr.mxu0 %v2695
    %3922 = vmatpush1.msra.mxu0 %v2694
    %3923 = vmatprep.subr.mxu0 %v2703
    %3924 = vmatpush1.msra.mxu0 %v2702
    %3925 = vmatprep.subr.mxu0 %v2711
    %3926 = vmatpush1.msra.mxu0 %v2710
    %3927 = vmatprep.subr.mxu0 %v2719
    %3928 = vmatpush1.msra.mxu0 %v2718
    %3929 = vmatprep.subr.mxu0 %v2727
    %3930 = vmatpush1.msra.mxu0 %v2726
    %3931 = vmatprep.subr.mxu0 %v2735
    %3932 = vmatpush1.msra.mxu0 %v2734
    %3933 = vmatprep.subr.mxu0 %v2743
    %3934 = vmatpush1.msra.mxu0 %v2742
    %3935 = vmatprep.subr.mxu0 %v2751
    %3936 = vmatpush1.msra.mxu0 %v2750
    %3937 = vmatprep.subr.mxu0 %v2759
    %3938 = vmatpush1.msra.mxu0 %v2758
    %3939 = vmatprep.subr.mxu0 %v2767
    %3940 = vmatpush1.msra.mxu0 %v2766
    %3941 = vmatprep.subr.mxu0 %v2775
    %3942 = vmatpush1.msra.mxu0 %v2774
    %3943 = vmatprep.subr.mxu0 %v2783
    %3944 = vmatpush1.msra.mxu0 %v2782
    %3945 = vmatprep.subr.mxu0 %v2791
    %3946 = vmatpush1.msra.mxu0 %v2790
    %3947 = vmatprep.subr.mxu0 %v2799
    %3948 = vmatpush1.msra.mxu0 %v2798
    %3949 = vmatprep.subr.mxu0 %v2807
    %3950 = vmatpush1.msra.mxu0 %v2806
    %3951 = vmatprep.subr.mxu0 %v2815
    %3952 = vmatpush1.msra.mxu0 %v2814
    %3953 = vmatprep.subr.mxu0 %v2823
    %3954 = vmatpush1.msra.mxu0 %v2822
    %3955 = vmatprep.subr.mxu0 %v2831
    %3956 = vmatpush1.msra.mxu0 %v2830
    %3957 = vmatprep.subr.mxu0 %v2839
    %3958 = vmatpush1.msra.mxu0 %v2838
    %3959 = vmatprep.subr.mxu0 %v2847
    %3960 = vmatpush1.msra.mxu0 %v2846
    %3961 = vmatprep.subr.mxu0 %v2855
    %3962 = vmatpush1.msra.mxu0 %v2854
    %3963 = vmatprep.subr.mxu0 %v2863
    %3964 = vmatpush1.msra.mxu0 %v2862
    %3965 = vmatprep.subr.mxu0 %v2871
    %3966 = vmatpush1.msra.mxu0 %v2870
    %3967 = vmatprep.subr.mxu0 %v2879
    %3968 = vmatpush1.msra.mxu0 %v2878
    %3969 = vmatprep.subr.mxu0 %v2887
    %3970 = vmatpush1.msra.mxu0 %v2886
    %3971 = vmatprep.subr.mxu0 %v2895
    %3972 = vmatpush1.msra.mxu0 %v2894
    %3973 = vmatprep.subr.mxu0 %v2903
    %3974 = vmatpush1.msra.mxu0 %v2902
    %3975 = vmatprep.subr.mxu0 %v2911
    %3976 = vmatpush1.msra.mxu0 %v2910
    %3977 = vmatprep.subr.mxu0 %v2919
    %3978 = vmatpush1.msra.mxu0 %v2918
    %3979 = vmatprep.mubr.f32.mxu0 %v2124
    %3980 = vmatmul.mubr.f32.gmra.mrb[0].mxu0 %v2123
    %v3981 = vpop.f32.mrb[0].mxu0
    %v3982 = vadd.f32 0.0, %v3981
    %v3983 = vpop.f32.mrb[0].mxu0
    %v3984 = vadd.f32 0.0, %v3983
    %3985 = vmatprep.mubr.f32.mxu0 %v2128
    %3986 = vmatmul.mubr.f32.gmra.mrb[0].mxu0 %v2127
    %v3987 = vpop.f32.mrb[0].mxu0
    %v3988 = vadd.f32 0.0, %v3987
    %v3989 = vpop.f32.mrb[0].mxu0
    %v3990 = vadd.f32 0.0, %v3989
    %3991 = vmatprep.mubr.f32.mxu0 %v2132
    %3992 = vmatmul.mubr.f32.gmra.mrb[0].mxu0 %v2131
    %v3993 = vpop.f32.mrb[0].mxu0
    %v3994 = vadd.f32 0.0, %v3993
    %v3995 = vpop.f32.mrb[0].mxu0
    %v3996 = vadd.f32 0.0, %v3995
    %3997 = vmatprep.mubr.f32.mxu0 %v2136
    %3998 = vmatmul.mubr.f32.gmra.mrb[0].mxu0 %v2135
    %v3999 = vpop.f32.mrb[0].mxu0
    %v4000 = vadd.f32 0.0, %v3999
    %v4001 = vpop.f32.mrb[0].mxu0
    %v4002 = vadd.f32 0.0, %v4001
    %4003 = vmatprep.mubr.f32.mxu0 %v2140
    %4004 = vmatmul.mubr.f32.gmra.mrb[0].mxu0 %v2139
    %v4005 = vpop.f32.mrb[0].mxu0
    %v4006 = vadd.f32 0.0, %v4005
    %v4007 = vpop.f32.mrb[0].mxu0
    %v4008 = vadd.f32 0.0, %v4007
    %4009 = vmatprep.mubr.f32.mxu0 %v2144
    %4010 = vmatmul.mubr.f32.gmra.mrb[0].mxu0 %v2143
    %v4011 = vpop.f32.mrb[0].mxu0
    %v4012 = vadd.f32 0.0, %v4011
    %v4013 = vpop.f32.mrb[0].mxu0
    %v4014 = vadd.f32 0.0, %v4013
    %4015 = vmatprep.mubr.f32.mxu0 %v2148
    %4016 = vmatmul.mubr.f32.gmra.mrb[0].mxu0 %v2147
    %v4017 = vpop.f32.mrb[0].mxu0
    %v4018 = vadd.f32 0.0, %v4017
    %v4019 = vpop.f32.mrb[0].mxu0
    %v4020 = vadd.f32 0.0, %v4019
    %4021 = vmatprep.mubr.f32.mxu0 %v2152
    %4022 = vmatmul.mubr.f32.gmra.mrb[0].mxu0 %v2151
    %v4023 = vpop.f32.mrb[0].mxu0
    %v4024 = vpop.f32.mrb[0].mxu0
    %4025 = vdwg.mxu0
    %4026 = vmatprep.subr.mxu0 %v2927
    %4027 = vmatpush1.msra.mxu0 %v2926
    %4028 = vmatprep.subr.mxu0 %v2935
    %4029 = vmatpush1.msra.mxu0 %v2934
    %4030 = vmatprep.subr.mxu0 %v2943
    %4031 = vmatpush1.msra.mxu0 %v2942
    %4032 = vmatprep.subr.mxu0 %v2951
    %4033 = vmatpush1.msra.mxu0 %v2950
    %4034 = vmatprep.subr.mxu0 %v2959
    %4035 = vmatpush1.msra.mxu0 %v2958
    %4036 = vmatprep.subr.mxu0 %v2967
    %4037 = vmatpush1.msra.mxu0 %v2966
    %4038 = vmatprep.subr.mxu0 %v2975
    %4039 = vmatpush1.msra.mxu0 %v2974
    %4040 = vmatprep.subr.mxu0 %v2983
    %4041 = vmatpush1.msra.mxu0 %v2982
    %4042 = vmatprep.subr.mxu0 %v2991
    %4043 = vmatpush1.msra.mxu0 %v2990
    %4044 = vmatprep.subr.mxu0 %v2999
    %4045 = vmatpush1.msra.mxu0 %v2998
    %4046 = vmatprep.subr.mxu0 %v3007
    %4047 = vmatpush1.msra.mxu0 %v3006
    %4048 = vmatprep.subr.mxu0 %v3015
    %4049 = vmatpush1.msra.mxu0 %v3014
    %4050 = vmatprep.subr.mxu0 %v3023
    %4051 = vmatpush1.msra.mxu0 %v3022
    %4052 = vmatprep.subr.mxu0 %v3031
    %4053 = vmatpush1.msra.mxu0 %v3030
    %4054 = vmatprep.subr.mxu0 %v3039
    %4055 = vmatpush1.msra.mxu0 %v3038
    %4056 = vmatprep.subr.mxu0 %v3047
    %4057 = vmatpush1.msra.mxu0 %v3046
    %4058 = vmatprep.subr.mxu0 %v3055
    %4059 = vmatpush1.msra.mxu0 %v3054
    %4060 = vmatprep.subr.mxu0 %v3063
    %4061 = vmatpush1.msra.mxu0 %v3062
    %4062 = vmatprep.subr.mxu0 %v3071
    %4063 = vmatpush1.msra.mxu0 %v3070
    %4064 = vmatprep.subr.mxu0 %v3079
    %4065 = vmatpush1.msra.mxu0 %v3078
    %4066 = vmatprep.subr.mxu0 %v3087
    %4067 = vmatpush1.msra.mxu0 %v3086
    %4068 = vmatprep.subr.mxu0 %v3095
    %4069 = vmatpush1.msra.mxu0 %v3094
    %4070 = vmatprep.subr.mxu0 %v3103
    %4071 = vmatpush1.msra.mxu0 %v3102
    %4072 = vmatprep.subr.mxu0 %v3111
    %4073 = vmatpush1.msra.mxu0 %v3110
    %4074 = vmatprep.subr.mxu0 %v3119
    %4075 = vmatpush1.msra.mxu0 %v3118
    %4076 = vmatprep.subr.mxu0 %v3127
    %4077 = vmatpush1.msra.mxu0 %v3126
    %4078 = vmatprep.subr.mxu0 %v3135
    %4079 = vmatpush1.msra.mxu0 %v3134
    %4080 = vmatprep.subr.mxu0 %v3143
    %4081 = vmatpush1.msra.mxu0 %v3142
    %4082 = vmatprep.subr.mxu0 %v3151
    %4083 = vmatpush1.msra.mxu0 %v3150
    %4084 = vmatprep.subr.mxu0 %v3159
    %4085 = vmatpush1.msra.mxu0 %v3158
    %4086 = vmatprep.subr.mxu0 %v3167
    %4087 = vmatpush1.msra.mxu0 %v3166
    %4088 = vmatprep.subr.mxu0 %v3175
    %4089 = vmatpush1.msra.mxu0 %v3174
    %4090 = vmatprep.mubr.f32.mxu0 %v2126
    %4091 = vmatmul.mubr.f32.gmra.mrb[0].mxu0 %v2125
    %v4092 = vpop.f32.mrb[0].mxu0
    %v4093 = vadd.f32 %v3982, %v4092
    %v4094 = vpop.f32.mrb[0].mxu0
    %v4095 = vadd.f32 %v3984, %v4094
    %4096 = vmatprep.mubr.f32.mxu0 %v2130
    %4097 = vmatmul.mubr.f32.gmra.mrb[0].mxu0 %v2129
    %v4098 = vpop.f32.mrb[0].mxu0
    %v4099 = vadd.f32 %v3988, %v4098
    %v4100 = vpop.f32.mrb[0].mxu0
    %v4101 = vadd.f32 %v3990, %v4100
    %4102 = vmatprep.mubr.f32.mxu0 %v2134
    %4103 = vmatmul.mubr.f32.gmra.mrb[0].mxu0 %v2133
    %v4104 = vpop.f32.mrb[0].mxu0
    %v4105 = vadd.f32 %v3994, %v4104
    %v4106 = vpop.f32.mrb[0].mxu0
    %v4107 = vadd.f32 %v3996, %v4106
    %4108 = vmatprep.mubr.f32.mxu0 %v2138
    %4109 = vmatmul.mubr.f32.gmra.mrb[0].mxu0 %v2137
    %v4110 = vpop.f32.mrb[0].mxu0
    %v4111 = vadd.f32 %v4000, %v4110
    %v4112 = vpop.f32.mrb[0].mxu0
    %v4113 = vadd.f32 %v4002, %v4112
    %4114 = vmatprep.mubr.f32.mxu0 %v2142
    %4115 = vmatmul.mubr.f32.gmra.mrb[0].mxu0 %v2141
    %v4116 = vpop.f32.mrb[0].mxu0
    %v4117 = vadd.f32 %v4006, %v4116
    %v4118 = vpop.f32.mrb[0].mxu0
    %v4119 = vadd.f32 %v4008, %v4118
    %4120 = vmatprep.mubr.f32.mxu0 %v2146
    %4121 = vmatmul.mubr.f32.gmra.mrb[0].mxu0 %v2145
    %v4122 = vpop.f32.mrb[0].mxu0
    %v4123 = vadd.f32 %v4012, %v4122
    %v4124 = vpop.f32.mrb[0].mxu0
    %v4125 = vadd.f32 %v4014, %v4124
    %4126 = vmatprep.mubr.f32.mxu0 %v2150
    %4127 = vmatmul.mubr.f32.gmra.mrb[0].mxu0 %v2149
    %v4128 = vpop.f32.mrb[0].mxu0
    %v4129 = vadd.f32 %v4018, %v4128
    %v4130 = vpop.f32.mrb[0].mxu0
    %v4131 = vadd.f32 %v4020, %v4130
    %4132 = vmatprep.mubr.f32.mxu0 %v2154
    %4133 = vmatmul.mubr.f32.gmra.mrb[0].mxu0 %v2153
    %v4134 = vpop.f32.mrb[0].mxu0
    %v4135 = vpop.f32.mrb[0].mxu0
    %4136 = vdwg.mxu0
    %4137 = vmatprep.subr.mxu0 %v2673
    %4138 = vmatpush1.msra.mxu0 %v2672
    %4139 = vmatprep.subr.mxu0 %v2681
    %4140 = vmatpush1.msra.mxu0 %v2680
    %4141 = vmatprep.subr.mxu0 %v2689
    %4142 = vmatpush1.msra.mxu0 %v2688
    %4143 = vmatprep.subr.mxu0 %v2697
    %4144 = vmatpush1.msra.mxu0 %v2696
    %4145 = vmatprep.subr.mxu0 %v2705
    %4146 = vmatpush1.msra.mxu0 %v2704
    %4147 = vmatprep.subr.mxu0 %v2713
    %4148 = vmatpush1.msra.mxu0 %v2712
    %4149 = vmatprep.subr.mxu0 %v2721
    %4150 = vmatpush1.msra.mxu0 %v2720
    %4151 = vmatprep.subr.mxu0 %v2729
    %4152 = vmatpush1.msra.mxu0 %v2728
    %4153 = vmatprep.subr.mxu0 %v2737
    %4154 = vmatpush1.msra.mxu0 %v2736
    %4155 = vmatprep.subr.mxu0 %v2745
    %4156 = vmatpush1.msra.mxu0 %v2744
    %4157 = vmatprep.subr.mxu0 %v2753
    %4158 = vmatpush1.msra.mxu0 %v2752
    %4159 = vmatprep.subr.mxu0 %v2761
    %4160 = vmatpush1.msra.mxu0 %v2760
    %4161 = vmatprep.subr.mxu0 %v2769
    %4162 = vmatpush1.msra.mxu0 %v2768
    %4163 = vmatprep.subr.mxu0 %v2777
    %4164 = vmatpush1.msra.mxu0 %v2776
    %4165 = vmatprep.subr.mxu0 %v2785
    %4166 = vmatpush1.msra.mxu0 %v2784
    %4167 = vmatprep.subr.mxu0 %v2793
    %4168 = vmatpush1.msra.mxu0 %v2792
    %4169 = vmatprep.subr.mxu0 %v2801
    %4170 = vmatpush1.msra.mxu0 %v2800
    %4171 = vmatprep.subr.mxu0 %v2809
    %4172 = vmatpush1.msra.mxu0 %v2808
    %4173 = vmatprep.subr.mxu0 %v2817
    %4174 = vmatpush1.msra.mxu0 %v2816
    %4175 = vmatprep.subr.mxu0 %v2825
    %4176 = vmatpush1.msra.mxu0 %v2824
    %4177 = vmatprep.subr.mxu0 %v2833
    %4178 = vmatpush1.msra.mxu0 %v2832
    %4179 = vmatprep.subr.mxu0 %v2841
    %4180 = vmatpush1.msra.mxu0 %v2840
    %4181 = vmatprep.subr.mxu0 %v2849
    %4182 = vmatpush1.msra.mxu0 %v2848
    %4183 = vmatprep.subr.mxu0 %v2857
    %4184 = vmatpush1.msra.mxu0 %v2856
    %4185 = vmatprep.subr.mxu0 %v2865
    %4186 = vmatpush1.msra.mxu0 %v2864
    %4187 = vmatprep.subr.mxu0 %v2873
    %4188 = vmatpush1.msra.mxu0 %v2872
    %4189 = vmatprep.subr.mxu0 %v2881
    %4190 = vmatpush1.msra.mxu0 %v2880
    %4191 = vmatprep.subr.mxu0 %v2889
    %4192 = vmatpush1.msra.mxu0 %v2888
    %4193 = vmatprep.subr.mxu0 %v2897
    %4194 = vmatpush1.msra.mxu0 %v2896
    %4195 = vmatprep.subr.mxu0 %v2905
    %4196 = vmatpush1.msra.mxu0 %v2904
    %4197 = vmatprep.subr.mxu0 %v2913
    %4198 = vmatpush1.msra.mxu0 %v2912
    %4199 = vmatprep.subr.mxu0 %v2921
    %4200 = vmatpush1.msra.mxu0 %v2920
    %4201 = vmatprep.mubr.f32.mxu0 %v2124
    %4202 = vmatmul.mubr.f32.gmra.mrb[0].mxu0 %v2123
    %v4203 = vpop.f32.mrb[0].mxu0
    %v4204 = vadd.f32 0.0, %v4203
    %v4205 = vpop.f32.mrb[0].mxu0
    %v4206 = vadd.f32 0.0, %v4205
    %4207 = vmatprep.mubr.f32.mxu0 %v2128
    %4208 = vmatmul.mubr.f32.gmra.mrb[0].mxu0 %v2127
    %v4209 = vpop.f32.mrb[0].mxu0
    %v4210 = vadd.f32 0.0, %v4209
    %v4211 = vpop.f32.mrb[0].mxu0
    %v4212 = vadd.f32 0.0, %v4211
    %4213 = vmatprep.mubr.f32.mxu0 %v2132
    %4214 = vmatmul.mubr.f32.gmra.mrb[0].mxu0 %v2131
    %v4215 = vpop.f32.mrb[0].mxu0
    %v4216 = vadd.f32 0.0, %v4215
    %v4217 = vpop.f32.mrb[0].mxu0
    %v4218 = vadd.f32 0.0, %v4217
    %4219 = vmatprep.mubr.f32.mxu0 %v2136
    %4220 = vmatmul.mubr.f32.gmra.mrb[0].mxu0 %v2135
    %v4221 = vpop.f32.mrb[0].mxu0
    %v4222 = vadd.f32 0.0, %v4221
    %v4223 = vpop.f32.mrb[0].mxu0
    %v4224 = vadd.f32 0.0, %v4223
    %4225 = vmatprep.mubr.f32.mxu0 %v2140
    %4226 = vmatmul.mubr.f32.gmra.mrb[0].mxu0 %v2139
    %v4227 = vpop.f32.mrb[0].mxu0
    %v4228 = vadd.f32 0.0, %v4227
    %v4229 = vpop.f32.mrb[0].mxu0
    %v4230 = vadd.f32 0.0, %v4229
    %4231 = vmatprep.mubr.f32.mxu0 %v2144
    %4232 = vmatmul.mubr.f32.gmra.mrb[0].mxu0 %v2143
    %v4233 = vpop.f32.mrb[0].mxu0
    %v4234 = vadd.f32 0.0, %v4233
    %v4235 = vpop.f32.mrb[0].mxu0
    %v4236 = vadd.f32 0.0, %v4235
    %4237 = vmatprep.mubr.f32.mxu0 %v2148
    %4238 = vmatmul.mubr.f32.gmra.mrb[0].mxu0 %v2147
    %v4239 = vpop.f32.mrb[0].mxu0
    %v4240 = vadd.f32 0.0, %v4239
    %v4241 = vpop.f32.mrb[0].mxu0
    %v4242 = vadd.f32 0.0, %v4241
    %4243 = vmatprep.mubr.f32.mxu0 %v2152
    %4244 = vmatmul.mubr.f32.gmra.mrb[0].mxu0 %v2151
    %v4245 = vpop.f32.mrb[0].mxu0
    %v4246 = vpop.f32.mrb[0].mxu0
    %4247 = vdwg.mxu0
    %4248 = vmatprep.subr.mxu0 %v2929
    %4249 = vmatpush1.msra.mxu0 %v2928
    %4250 = vmatprep.subr.mxu0 %v2937
    %4251 = vmatpush1.msra.mxu0 %v2936
    %4252 = vmatprep.subr.mxu0 %v2945
    %4253 = vmatpush1.msra.mxu0 %v2944
    %4254 = vmatprep.subr.mxu0 %v2953
    %4255 = vmatpush1.msra.mxu0 %v2952
    %4256 = vmatprep.subr.mxu0 %v2961
    %4257 = vmatpush1.msra.mxu0 %v2960
    %4258 = vmatprep.subr.mxu0 %v2969
    %4259 = vmatpush1.msra.mxu0 %v2968
    %4260 = vmatprep.subr.mxu0 %v2977
    %4261 = vmatpush1.msra.mxu0 %v2976
    %4262 = vmatprep.subr.mxu0 %v2985
    %4263 = vmatpush1.msra.mxu0 %v2984
    %4264 = vmatprep.subr.mxu0 %v2993
    %4265 = vmatpush1.msra.mxu0 %v2992
    %4266 = vmatprep.subr.mxu0 %v3001
    %4267 = vmatpush1.msra.mxu0 %v3000
    %4268 = vmatprep.subr.mxu0 %v3009
    %4269 = vmatpush1.msra.mxu0 %v3008
    %4270 = vmatprep.subr.mxu0 %v3017
    %4271 = vmatpush1.msra.mxu0 %v3016
    %4272 = vmatprep.subr.mxu0 %v3025
    %4273 = vmatpush1.msra.mxu0 %v3024
    %4274 = vmatprep.subr.mxu0 %v3033
    %4275 = vmatpush1.msra.mxu0 %v3032
    %4276 = vmatprep.subr.mxu0 %v3041
    %4277 = vmatpush1.msra.mxu0 %v3040
    %4278 = vmatprep.subr.mxu0 %v3049
    %4279 = vmatpush1.msra.mxu0 %v3048
    %4280 = vmatprep.subr.mxu0 %v3057
    %4281 = vmatpush1.msra.mxu0 %v3056
    %4282 = vmatprep.subr.mxu0 %v3065
    %4283 = vmatpush1.msra.mxu0 %v3064
    %4284 = vmatprep.subr.mxu0 %v3073
    %4285 = vmatpush1.msra.mxu0 %v3072
    %4286 = vmatprep.subr.mxu0 %v3081
    %4287 = vmatpush1.msra.mxu0 %v3080
    %4288 = vmatprep.subr.mxu0 %v3089
    %4289 = vmatpush1.msra.mxu0 %v3088
    %4290 = vmatprep.subr.mxu0 %v3097
    %4291 = vmatpush1.msra.mxu0 %v3096
    %4292 = vmatprep.subr.mxu0 %v3105
    %4293 = vmatpush1.msra.mxu0 %v3104
    %4294 = vmatprep.subr.mxu0 %v3113
    %4295 = vmatpush1.msra.mxu0 %v3112
    %4296 = vmatprep.subr.mxu0 %v3121
    %4297 = vmatpush1.msra.mxu0 %v3120
    %4298 = vmatprep.subr.mxu0 %v3129
    %4299 = vmatpush1.msra.mxu0 %v3128
    %4300 = vmatprep.subr.mxu0 %v3137
    %4301 = vmatpush1.msra.mxu0 %v3136
    %4302 = vmatprep.subr.mxu0 %v3145
    %4303 = vmatpush1.msra.mxu0 %v3144
    %4304 = vmatprep.subr.mxu0 %v3153
    %4305 = vmatpush1.msra.mxu0 %v3152
    %4306 = vmatprep.subr.mxu0 %v3161
    %4307 = vmatpush1.msra.mxu0 %v3160
    %4308 = vmatprep.subr.mxu0 %v3169
    %4309 = vmatpush1.msra.mxu0 %v3168
    %4310 = vmatprep.subr.mxu0 %v3177
    %4311 = vmatpush1.msra.mxu0 %v3176
    %4312 = vmatprep.mubr.f32.mxu0 %v2126
    %4313 = vmatmul.mubr.f32.gmra.mrb[0].mxu0 %v2125
    %v4314 = vpop.f32.mrb[0].mxu0
    %v4315 = vadd.f32 %v4204, %v4314
    %v4316 = vpop.f32.mrb[0].mxu0
    %v4317 = vadd.f32 %v4206, %v4316
    %4318 = vmatprep.mubr.f32.mxu0 %v2130
    %4319 = vmatmul.mubr.f32.gmra.mrb[0].mxu0 %v2129
    %v4320 = vpop.f32.mrb[0].mxu0
    %v4321 = vadd.f32 %v4210, %v4320
    %v4322 = vpop.f32.mrb[0].mxu0
    %v4323 = vadd.f32 %v4212, %v4322
    %4324 = vmatprep.mubr.f32.mxu0 %v2134
    %4325 = vmatmul.mubr.f32.gmra.mrb[0].mxu0 %v2133
    %v4326 = vpop.f32.mrb[0].mxu0
    %v4327 = vadd.f32 %v4216, %v4326
    %v4328 = vpop.f32.mrb[0].mxu0
    %v4329 = vadd.f32 %v4218, %v4328
    %4330 = vmatprep.mubr.f32.mxu0 %v2138
    %4331 = vmatmul.mubr.f32.gmra.mrb[0].mxu0 %v2137
    %v4332 = vpop.f32.mrb[0].mxu0
    %v4333 = vadd.f32 %v4222, %v4332
    %v4334 = vpop.f32.mrb[0].mxu0
    %v4335 = vadd.f32 %v4224, %v4334
    %4336 = vmatprep.mubr.f32.mxu0 %v2142
    %4337 = vmatmul.mubr.f32.gmra.mrb[0].mxu0 %v2141
    %v4338 = vpop.f32.mrb[0].mxu0
    %v4339 = vadd.f32 %v4228, %v4338
    %v4340 = vpop.f32.mrb[0].mxu0
    %v4341 = vadd.f32 %v4230, %v4340
    %4342 = vmatprep.mubr.f32.mxu0 %v2146
    %4343 = vmatmul.mubr.f32.gmra.mrb[0].mxu0 %v2145
    %v4344 = vpop.f32.mrb[0].mxu0
    %v4345 = vadd.f32 %v4234, %v4344
    %v4346 = vpop.f32.mrb[0].mxu0
    %v4347 = vadd.f32 %v4236, %v4346
    %4348 = vmatprep.mubr.f32.mxu0 %v2150
    %4349 = vmatmul.mubr.f32.gmra.mrb[0].mxu0 %v2149
    %v4350 = vpop.f32.mrb[0].mxu0
    %v4351 = vadd.f32 %v4240, %v4350
    %v4352 = vpop.f32.mrb[0].mxu0
    %v4353 = vadd.f32 %v4242, %v4352
    %4354 = vmatprep.mubr.f32.mxu0 %v2154
    %4355 = vmatmul.mubr.f32.gmra.mrb[0].mxu0 %v2153
    %v4356 = vpop.f32.mrb[0].mxu0
    %v4357 = vpop.f32.mrb[0].mxu0
    %4358 = vdwg.mxu0
    %4359 = vmatprep.subr.mxu0 %v2675
    %4360 = vmatpush1.msra.mxu0 %v2674
    %4361 = vmatprep.subr.mxu0 %v2683
    %4362 = vmatpush1.msra.mxu0 %v2682
    %4363 = vmatprep.subr.mxu0 %v2691
    %4364 = vmatpush1.msra.mxu0 %v2690
    %4365 = vmatprep.subr.mxu0 %v2699
    %4366 = vmatpush1.msra.mxu0 %v2698
    %4367 = vmatprep.subr.mxu0 %v2707
    %4368 = vmatpush1.msra.mxu0 %v2706
    %4369 = vmatprep.subr.mxu0 %v2715
    %4370 = vmatpush1.msra.mxu0 %v2714
    %4371 = vmatprep.subr.mxu0 %v2723
    %4372 = vmatpush1.msra.mxu0 %v2722
    %4373 = vmatprep.subr.mxu0 %v2731
    %4374 = vmatpush1.msra.mxu0 %v2730
    %4375 = vmatprep.subr.mxu0 %v2739
    %4376 = vmatpush1.msra.mxu0 %v2738
    %4377 = vmatprep.subr.mxu0 %v2747
    %4378 = vmatpush1.msra.mxu0 %v2746
    %4379 = vmatprep.subr.mxu0 %v2755
    %4380 = vmatpush1.msra.mxu0 %v2754
    %4381 = vmatprep.subr.mxu0 %v2763
    %4382 = vmatpush1.msra.mxu0 %v2762
    %4383 = vmatprep.subr.mxu0 %v2771
    %4384 = vmatpush1.msra.mxu0 %v2770
    %4385 = vmatprep.subr.mxu0 %v2779
    %4386 = vmatpush1.msra.mxu0 %v2778
    %4387 = vmatprep.subr.mxu0 %v2787
    %4388 = vmatpush1.msra.mxu0 %v2786
    %4389 = vmatprep.subr.mxu0 %v2795
    %4390 = vmatpush1.msra.mxu0 %v2794
    %4391 = vmatprep.subr.mxu0 %v2803
    %4392 = vmatpush1.msra.mxu0 %v2802
    %4393 = vmatprep.subr.mxu0 %v2811
    %4394 = vmatpush1.msra.mxu0 %v2810
    %4395 = vmatprep.subr.mxu0 %v2819
    %4396 = vmatpush1.msra.mxu0 %v2818
    %4397 = vmatprep.subr.mxu0 %v2827
    %4398 = vmatpush1.msra.mxu0 %v2826
    %4399 = vmatprep.subr.mxu0 %v2835
    %4400 = vmatpush1.msra.mxu0 %v2834
    %4401 = vmatprep.subr.mxu0 %v2843
    %4402 = vmatpush1.msra.mxu0 %v2842
    %4403 = vmatprep.subr.mxu0 %v2851
    %4404 = vmatpush1.msra.mxu0 %v2850
    %4405 = vmatprep.subr.mxu0 %v2859
    %4406 = vmatpush1.msra.mxu0 %v2858
    %4407 = vmatprep.subr.mxu0 %v2867
    %4408 = vmatpush1.msra.mxu0 %v2866
    %4409 = vmatprep.subr.mxu0 %v2875
    %4410 = vmatpush1.msra.mxu0 %v2874
    %4411 = vmatprep.subr.mxu0 %v2883
    %4412 = vmatpush1.msra.mxu0 %v2882
    %4413 = vmatprep.subr.mxu0 %v2891
    %4414 = vmatpush1.msra.mxu0 %v2890
    %4415 = vmatprep.subr.mxu0 %v2899
    %4416 = vmatpush1.msra.mxu0 %v2898
    %4417 = vmatprep.subr.mxu0 %v2907
    %4418 = vmatpush1.msra.mxu0 %v2906
    %4419 = vmatprep.subr.mxu0 %v2915
    %4420 = vmatpush1.msra.mxu0 %v2914
    %4421 = vmatprep.subr.mxu0 %v2923
    %4422 = vmatpush1.msra.mxu0 %v2922
    %4423 = vmatprep.mubr.f32.mxu0 %v2124
    %4424 = vmatmul.mubr.f32.gmra.mrb[0].mxu0 %v2123
    %v4425 = vpop.f32.mrb[0].mxu0
    %v4426 = vadd.f32 0.0, %v4425
    %v4427 = vpop.f32.mrb[0].mxu0
    %v4428 = vadd.f32 0.0, %v4427
    %4429 = vmatprep.mubr.f32.mxu0 %v2128
    %4430 = vmatmul.mubr.f32.gmra.mrb[0].mxu0 %v2127
    %v4431 = vpop.f32.mrb[0].mxu0
    %v4432 = vadd.f32 0.0, %v4431
    %v4433 = vpop.f32.mrb[0].mxu0
    %v4434 = vadd.f32 0.0, %v4433
    %4435 = vmatprep.mubr.f32.mxu0 %v2132
    %4436 = vmatmul.mubr.f32.gmra.mrb[0].mxu0 %v2131
    %v4437 = vpop.f32.mrb[0].mxu0
    %v4438 = vadd.f32 0.0, %v4437
    %v4439 = vpop.f32.mrb[0].mxu0
    %v4440 = vadd.f32 0.0, %v4439
    %4441 = vmatprep.mubr.f32.mxu0 %v2136
    %4442 = vmatmul.mubr.f32.gmra.mrb[0].mxu0 %v2135
    %v4443 = vpop.f32.mrb[0].mxu0
    %v4444 = vadd.f32 0.0, %v4443
    %v4445 = vpop.f32.mrb[0].mxu0
    %v4446 = vadd.f32 0.0, %v4445
    %4447 = vmatprep.mubr.f32.mxu0 %v2140
    %4448 = vmatmul.mubr.f32.gmra.mrb[0].mxu0 %v2139
    %v4449 = vpop.f32.mrb[0].mxu0
    %v4450 = vadd.f32 0.0, %v4449
    %v4451 = vpop.f32.mrb[0].mxu0
    %v4452 = vadd.f32 0.0, %v4451
    %4453 = vmatprep.mubr.f32.mxu0 %v2144
    %4454 = vmatmul.mubr.f32.gmra.mrb[0].mxu0 %v2143
    %v4455 = vpop.f32.mrb[0].mxu0
    %v4456 = vadd.f32 0.0, %v4455
    %v4457 = vpop.f32.mrb[0].mxu0
    %v4458 = vadd.f32 0.0, %v4457
    %4459 = vmatprep.mubr.f32.mxu0 %v2148
    %4460 = vmatmul.mubr.f32.gmra.mrb[0].mxu0 %v2147
    %v4461 = vpop.f32.mrb[0].mxu0
    %v4462 = vadd.f32 0.0, %v4461
    %v4463 = vpop.f32.mrb[0].mxu0
    %v4464 = vadd.f32 0.0, %v4463
    %4465 = vmatprep.mubr.f32.mxu0 %v2152
    %4466 = vmatmul.mubr.f32.gmra.mrb[0].mxu0 %v2151
    %v4467 = vpop.f32.mrb[0].mxu0
    %v4468 = vpop.f32.mrb[0].mxu0
    %4469 = vdwg.mxu0
    %4470 = vmatprep.subr.mxu0 %v2931
    %4471 = vmatpush1.msra.mxu0 %v2930
    %4472 = vmatprep.subr.mxu0 %v2939
    %4473 = vmatpush1.msra.mxu0 %v2938
    %4474 = vmatprep.subr.mxu0 %v2947
    %4475 = vmatpush1.msra.mxu0 %v2946
    %4476 = vmatprep.subr.mxu0 %v2955
    %4477 = vmatpush1.msra.mxu0 %v2954
    %4478 = vmatprep.subr.mxu0 %v2963
    %4479 = vmatpush1.msra.mxu0 %v2962
    %4480 = vmatprep.subr.mxu0 %v2971
    %4481 = vmatpush1.msra.mxu0 %v2970
    %4482 = vmatprep.subr.mxu0 %v2979
    %4483 = vmatpush1.msra.mxu0 %v2978
    %4484 = vmatprep.subr.mxu0 %v2987
    %4485 = vmatpush1.msra.mxu0 %v2986
    %4486 = vmatprep.subr.mxu0 %v2995
    %4487 = vmatpush1.msra.mxu0 %v2994
    %4488 = vmatprep.subr.mxu0 %v3003
    %4489 = vmatpush1.msra.mxu0 %v3002
    %4490 = vmatprep.subr.mxu0 %v3011
    %4491 = vmatpush1.msra.mxu0 %v3010
    %4492 = vmatprep.subr.mxu0 %v3019
    %4493 = vmatpush1.msra.mxu0 %v3018
    %4494 = vmatprep.subr.mxu0 %v3027
    %4495 = vmatpush1.msra.mxu0 %v3026
    %4496 = vmatprep.subr.mxu0 %v3035
    %4497 = vmatpush1.msra.mxu0 %v3034
    %4498 = vmatprep.subr.mxu0 %v3043
    %4499 = vmatpush1.msra.mxu0 %v3042
    %4500 = vmatprep.subr.mxu0 %v3051
    %4501 = vmatpush1.msra.mxu0 %v3050
    %4502 = vmatprep.subr.mxu0 %v3059
    %4503 = vmatpush1.msra.mxu0 %v3058
    %4504 = vmatprep.subr.mxu0 %v3067
    %4505 = vmatpush1.msra.mxu0 %v3066
    %4506 = vmatprep.subr.mxu0 %v3075
    %4507 = vmatpush1.msra.mxu0 %v3074
    %4508 = vmatprep.subr.mxu0 %v3083
    %4509 = vmatpush1.msra.mxu0 %v3082
    %4510 = vmatprep.subr.mxu0 %v3091
    %4511 = vmatpush1.msra.mxu0 %v3090
    %4512 = vmatprep.subr.mxu0 %v3099
    %4513 = vmatpush1.msra.mxu0 %v3098
    %4514 = vmatprep.subr.mxu0 %v3107
    %4515 = vmatpush1.msra.mxu0 %v3106
    %4516 = vmatprep.subr.mxu0 %v3115
    %4517 = vmatpush1.msra.mxu0 %v3114
    %4518 = vmatprep.subr.mxu0 %v3123
    %4519 = vmatpush1.msra.mxu0 %v3122
    %4520 = vmatprep.subr.mxu0 %v3131
    %4521 = vmatpush1.msra.mxu0 %v3130
    %4522 = vmatprep.subr.mxu0 %v3139
    %4523 = vmatpush1.msra.mxu0 %v3138
    %4524 = vmatprep.subr.mxu0 %v3147
    %4525 = vmatpush1.msra.mxu0 %v3146
    %4526 = vmatprep.subr.mxu0 %v3155
    %4527 = vmatpush1.msra.mxu0 %v3154
    %4528 = vmatprep.subr.mxu0 %v3163
    %4529 = vmatpush1.msra.mxu0 %v3162
    %4530 = vmatprep.subr.mxu0 %v3171
    %4531 = vmatpush1.msra.mxu0 %v3170
    %4532 = vmatprep.subr.mxu0 %v3179
    %4533 = vmatpush1.msra.mxu0 %v3178
    %4534 = vmatprep.mubr.f32.mxu0 %v2126
    %4535 = vmatmul.mubr.f32.gmra.mrb[0].mxu0 %v2125
    %v4536 = vpop.f32.mrb[0].mxu0
    %v4537 = vadd.f32 %v4426, %v4536
    %v4538 = vpop.f32.mrb[0].mxu0
    %v4539 = vadd.f32 %v4428, %v4538
    %4540 = vmatprep.mubr.f32.mxu0 %v2130
    %4541 = vmatmul.mubr.f32.gmra.mrb[0].mxu0 %v2129
    %v4542 = vpop.f32.mrb[0].mxu0
    %v4543 = vadd.f32 %v4432, %v4542
    %v4544 = vpop.f32.mrb[0].mxu0
    %v4545 = vadd.f32 %v4434, %v4544
    %4546 = vmatprep.mubr.f32.mxu0 %v2134
    %4547 = vmatmul.mubr.f32.gmra.mrb[0].mxu0 %v2133
    %v4548 = vpop.f32.mrb[0].mxu0
    %v4549 = vadd.f32 %v4438, %v4548
    %v4550 = vpop.f32.mrb[0].mxu0
    %v4551 = vadd.f32 %v4440, %v4550
    %4552 = vmatprep.mubr.f32.mxu0 %v2138
    %4553 = vmatmul.mubr.f32.gmra.mrb[0].mxu0 %v2137
    %v4554 = vpop.f32.mrb[0].mxu0
    %v4555 = vadd.f32 %v4444, %v4554
    %v4556 = vpop.f32.mrb[0].mxu0
    %v4557 = vadd.f32 %v4446, %v4556
    %4558 = vmatprep.mubr.f32.mxu0 %v2142
    %4559 = vmatmul.mubr.f32.gmra.mrb[0].mxu0 %v2141
    %v4560 = vpop.f32.mrb[0].mxu0
    %v4561 = vadd.f32 %v4450, %v4560
    %v4562 = vpop.f32.mrb[0].mxu0
    %v4563 = vadd.f32 %v4452, %v4562
    %4564 = vmatprep.mubr.f32.mxu0 %v2146
    %4565 = vmatmul.mubr.f32.gmra.mrb[0].mxu0 %v2145
    %v4566 = vpop.f32.mrb[0].mxu0
    %v4567 = vadd.f32 %v4456, %v4566
    %v4568 = vpop.f32.mrb[0].mxu0
    %v4569 = vadd.f32 %v4458, %v4568
    %4570 = vmatprep.mubr.f32.mxu0 %v2150
    %4571 = vmatmul.mubr.f32.gmra.mrb[0].mxu0 %v2149
    %v4572 = vpop.f32.mrb[0].mxu0
    %v4573 = vadd.f32 %v4462, %v4572
    %v4574 = vpop.f32.mrb[0].mxu0
    %v4575 = vadd.f32 %v4464, %v4574
    %4576 = vmatprep.mubr.f32.mxu0 %v2154
    %4577 = vmatmul.mubr.f32.gmra.mrb[0].mxu0 %v2153
    %v4578 = vpop.f32.mrb[0].mxu0
    %v4579 = vpop.f32.mrb[0].mxu0
    %4580 = vdwg.mxu0
    %4581 = vmatprep.subr.mxu0 %v2156
    %4582 = vmatpush1.msra.mxu0 %v2155
    %4583 = vmatprep.subr.mxu0 %v2164
    %4584 = vmatpush1.msra.mxu0 %v2163
    %4585 = vmatprep.subr.mxu0 %v2172
    %4586 = vmatpush1.msra.mxu0 %v2171
    %4587 = vmatprep.subr.mxu0 %v2180
    %4588 = vmatpush1.msra.mxu0 %v2179
    %4589 = vmatprep.subr.mxu0 %v2188
    %4590 = vmatpush1.msra.mxu0 %v2187
    %4591 = vmatprep.subr.mxu0 %v2196
    %4592 = vmatpush1.msra.mxu0 %v2195
    %4593 = vmatprep.subr.mxu0 %v2204
    %4594 = vmatpush1.msra.mxu0 %v2203
    %4595 = vmatprep.subr.mxu0 %v2212
    %4596 = vmatpush1.msra.mxu0 %v2211
    %4597 = vmatprep.subr.mxu0 %v2220
    %4598 = vmatpush1.msra.mxu0 %v2219
    %4599 = vmatprep.subr.mxu0 %v2228
    %4600 = vmatpush1.msra.mxu0 %v2227
    %4601 = vmatprep.subr.mxu0 %v2236
    %4602 = vmatpush1.msra.mxu0 %v2235
    %4603 = vmatprep.subr.mxu0 %v2244
    %4604 = vmatpush1.msra.mxu0 %v2243
    %4605 = vmatprep.subr.mxu0 %v2252
    %4606 = vmatpush1.msra.mxu0 %v2251
    %4607 = vmatprep.subr.mxu0 %v2260
    %4608 = vmatpush1.msra.mxu0 %v2259
    %4609 = vmatprep.subr.mxu0 %v2268
    %4610 = vmatpush1.msra.mxu0 %v2267
    %4611 = vmatprep.subr.mxu0 %v2276
    %4612 = vmatpush1.msra.mxu0 %v2275
    %4613 = vmatprep.subr.mxu0 %v2284
    %4614 = vmatpush1.msra.mxu0 %v2283
    %4615 = vmatprep.subr.mxu0 %v2292
    %4616 = vmatpush1.msra.mxu0 %v2291
    %4617 = vmatprep.subr.mxu0 %v2300
    %4618 = vmatpush1.msra.mxu0 %v2299
    %4619 = vmatprep.subr.mxu0 %v2308
    %4620 = vmatpush1.msra.mxu0 %v2307
    %4621 = vmatprep.subr.mxu0 %v2316
    %4622 = vmatpush1.msra.mxu0 %v2315
    %4623 = vmatprep.subr.mxu0 %v2324
    %4624 = vmatpush1.msra.mxu0 %v2323
    %4625 = vmatprep.subr.mxu0 %v2332
    %4626 = vmatpush1.msra.mxu0 %v2331
    %4627 = vmatprep.subr.mxu0 %v2340
    %4628 = vmatpush1.msra.mxu0 %v2339
    %4629 = vmatprep.subr.mxu0 %v2348
    %4630 = vmatpush1.msra.mxu0 %v2347
    %4631 = vmatprep.subr.mxu0 %v2356
    %4632 = vmatpush1.msra.mxu0 %v2355
    %4633 = vmatprep.subr.mxu0 %v2364
    %4634 = vmatpush1.msra.mxu0 %v2363
    %4635 = vmatprep.subr.mxu0 %v2372
    %4636 = vmatpush1.msra.mxu0 %v2371
    %4637 = vmatprep.subr.mxu0 %v2380
    %4638 = vmatpush1.msra.mxu0 %v2379
    %4639 = vmatprep.subr.mxu0 %v2388
    %4640 = vmatpush1.msra.mxu0 %v2387
    %4641 = vmatprep.subr.mxu0 %v2396
    %4642 = vmatpush1.msra.mxu0 %v2395
    %4643 = vmatprep.subr.mxu0 %v2404
    %4644 = vmatpush1.msra.mxu0 %v2403
    %4645 = vmatprep.mubr.f32.mxu0 %v2092
    %4646 = vmatmul.mubr.f32.gmra.mrb[0].mxu0 %v2091
    %v4647 = vpop.f32.mrb[0].mxu0
    %v4648 = vadd.f32 %v3871, %v4647
    %v4649 = vpop.f32.mrb[0].mxu0
    %v4650 = vadd.f32 %v3873, %v4649
    %4651 = vmatprep.mubr.f32.mxu0 %v2096
    %4652 = vmatmul.mubr.f32.gmra.mrb[0].mxu0 %v2095
    %v4653 = vpop.f32.mrb[0].mxu0
    %v4654 = vadd.f32 %v3877, %v4653
    %v4655 = vpop.f32.mrb[0].mxu0
    %v4656 = vadd.f32 %v3879, %v4655
    %4657 = vmatprep.mubr.f32.mxu0 %v2100
    %4658 = vmatmul.mubr.f32.gmra.mrb[0].mxu0 %v2099
    %v4659 = vpop.f32.mrb[0].mxu0
    %v4660 = vadd.f32 %v3883, %v4659
    %v4661 = vpop.f32.mrb[0].mxu0
    %v4662 = vadd.f32 %v3885, %v4661
    %4663 = vmatprep.mubr.f32.mxu0 %v2104
    %4664 = vmatmul.mubr.f32.gmra.mrb[0].mxu0 %v2103
    %v4665 = vpop.f32.mrb[0].mxu0
    %v4666 = vadd.f32 %v3889, %v4665
    %v4667 = vpop.f32.mrb[0].mxu0
    %v4668 = vadd.f32 %v3891, %v4667
    %4669 = vmatprep.mubr.f32.mxu0 %v2108
    %4670 = vmatmul.mubr.f32.gmra.mrb[0].mxu0 %v2107
    %v4671 = vpop.f32.mrb[0].mxu0
    %v4672 = vadd.f32 %v3895, %v4671
    %v4673 = vpop.f32.mrb[0].mxu0
    %v4674 = vadd.f32 %v3897, %v4673
    %4675 = vmatprep.mubr.f32.mxu0 %v2112
    %4676 = vmatmul.mubr.f32.gmra.mrb[0].mxu0 %v2111
    %v4677 = vpop.f32.mrb[0].mxu0
    %v4678 = vadd.f32 %v3901, %v4677
    %v4679 = vpop.f32.mrb[0].mxu0
    %v4680 = vadd.f32 %v3903, %v4679
    %4681 = vmatprep.mubr.f32.mxu0 %v2116
    %4682 = vmatmul.mubr.f32.gmra.mrb[0].mxu0 %v2115
    %v4683 = vpop.f32.mrb[0].mxu0
    %v4684 = vadd.f32 %v3907, %v4683
    %v4685 = vpop.f32.mrb[0].mxu0
    %v4686 = vadd.f32 %v3909, %v4685
    %4687 = vmatprep.mubr.f32.mxu0 %v2120
    %4688 = vmatmul.mubr.f32.gmra.mrb[0].mxu0 %v2119
    %v4689 = vpop.f32.mrb[0].mxu0
    %v4690 = vpop.f32.mrb[0].mxu0
    %4691 = vdwg.mxu0
    %4692 = vmatprep.subr.mxu0 %v2412
    %4693 = vmatpush1.msra.mxu0 %v2411
    %4694 = vmatprep.subr.mxu0 %v2420
    %4695 = vmatpush1.msra.mxu0 %v2419
    %4696 = vmatprep.subr.mxu0 %v2428
    %4697 = vmatpush1.msra.mxu0 %v2427
    %4698 = vmatprep.subr.mxu0 %v2436
    %4699 = vmatpush1.msra.mxu0 %v2435
    %4700 = vmatprep.subr.mxu0 %v2444
    %4701 = vmatpush1.msra.mxu0 %v2443
    %4702 = vmatprep.subr.mxu0 %v2452
    %4703 = vmatpush1.msra.mxu0 %v2451
    %4704 = vmatprep.subr.mxu0 %v2460
    %4705 = vmatpush1.msra.mxu0 %v2459
    %4706 = vmatprep.subr.mxu0 %v2468
    %4707 = vmatpush1.msra.mxu0 %v2467
    %4708 = vmatprep.subr.mxu0 %v2476
    %4709 = vmatpush1.msra.mxu0 %v2475
    %4710 = vmatprep.subr.mxu0 %v2484
    %4711 = vmatpush1.msra.mxu0 %v2483
    %4712 = vmatprep.subr.mxu0 %v2492
    %4713 = vmatpush1.msra.mxu0 %v2491
    %4714 = vmatprep.subr.mxu0 %v2500
    %4715 = vmatpush1.msra.mxu0 %v2499
    %4716 = vmatprep.subr.mxu0 %v2508
    %4717 = vmatpush1.msra.mxu0 %v2507
    %4718 = vmatprep.subr.mxu0 %v2516
    %4719 = vmatpush1.msra.mxu0 %v2515
    %4720 = vmatprep.subr.mxu0 %v2524
    %4721 = vmatpush1.msra.mxu0 %v2523
    %4722 = vmatprep.subr.mxu0 %v2532
    %4723 = vmatpush1.msra.mxu0 %v2531
    %4724 = vmatprep.subr.mxu0 %v2540
    %4725 = vmatpush1.msra.mxu0 %v2539
    %4726 = vmatprep.subr.mxu0 %v2548
    %4727 = vmatpush1.msra.mxu0 %v2547
    %4728 = vmatprep.subr.mxu0 %v2556
    %4729 = vmatpush1.msra.mxu0 %v2555
    %4730 = vmatprep.subr.mxu0 %v2564
    %4731 = vmatpush1.msra.mxu0 %v2563
    %4732 = vmatprep.subr.mxu0 %v2572
    %4733 = vmatpush1.msra.mxu0 %v2571
    %4734 = vmatprep.subr.mxu0 %v2580
    %4735 = vmatpush1.msra.mxu0 %v2579
    %4736 = vmatprep.subr.mxu0 %v2588
    %4737 = vmatpush1.msra.mxu0 %v2587
    %4738 = vmatprep.subr.mxu0 %v2596
    %4739 = vmatpush1.msra.mxu0 %v2595
    %4740 = vmatprep.subr.mxu0 %v2604
    %4741 = vmatpush1.msra.mxu0 %v2603
    %4742 = vmatprep.subr.mxu0 %v2612
    %4743 = vmatpush1.msra.mxu0 %v2611
    %4744 = vmatprep.subr.mxu0 %v2620
    %4745 = vmatpush1.msra.mxu0 %v2619
    %4746 = vmatprep.subr.mxu0 %v2628
    %4747 = vmatpush1.msra.mxu0 %v2627
    %4748 = vmatprep.subr.mxu0 %v2636
    %4749 = vmatpush1.msra.mxu0 %v2635
    %4750 = vmatprep.subr.mxu0 %v2644
    %4751 = vmatpush1.msra.mxu0 %v2643
    %4752 = vmatprep.subr.mxu0 %v2652
    %4753 = vmatpush1.msra.mxu0 %v2651
    %4754 = vmatprep.subr.mxu0 %v2660
    %4755 = vmatpush1.msra.mxu0 %v2659
    %4756 = vmatprep.mubr.f32.mxu0 %v2094
    %4757 = vmatmul.mubr.f32.gmra.mrb[0].mxu0 %v2093
    %v4758 = vpop.f32.mrb[0].mxu0
    %v4759 = vadd.f32 %v4648, %v4758
    %v4760 = vpop.f32.mrb[0].mxu0
    %v4761 = vadd.f32 %v4650, %v4760
    %4762 = vmatprep.mubr.f32.mxu0 %v2098
    %4763 = vmatmul.mubr.f32.gmra.mrb[0].mxu0 %v2097
    %v4764 = vpop.f32.mrb[0].mxu0
    %v4765 = vadd.f32 %v4654, %v4764
    %v4766 = vpop.f32.mrb[0].mxu0
    %v4767 = vadd.f32 %v4656, %v4766
    %4768 = vmatprep.mubr.f32.mxu0 %v2102
    %4769 = vmatmul.mubr.f32.gmra.mrb[0].mxu0 %v2101
    %v4770 = vpop.f32.mrb[0].mxu0
    %v4771 = vadd.f32 %v4660, %v4770
    %v4772 = vpop.f32.mrb[0].mxu0
    %v4773 = vadd.f32 %v4662, %v4772
    %4774 = vmatprep.mubr.f32.mxu0 %v2106
    %4775 = vmatmul.mubr.f32.gmra.mrb[0].mxu0 %v2105
    %v4776 = vpop.f32.mrb[0].mxu0
    %v4777 = vadd.f32 %v4666, %v4776
    %v4778 = vpop.f32.mrb[0].mxu0
    %v4779 = vadd.f32 %v4668, %v4778
    %4780 = vmatprep.mubr.f32.mxu0 %v2110
    %4781 = vmatmul.mubr.f32.gmra.mrb[0].mxu0 %v2109
    %v4782 = vpop.f32.mrb[0].mxu0
    %v4783 = vadd.f32 %v4672, %v4782
    %v4784 = vpop.f32.mrb[0].mxu0
    %v4785 = vadd.f32 %v4674, %v4784
    %4786 = vmatprep.mubr.f32.mxu0 %v2114
    %4787 = vmatmul.mubr.f32.gmra.mrb[0].mxu0 %v2113
    %v4788 = vpop.f32.mrb[0].mxu0
    %v4789 = vadd.f32 %v4678, %v4788
    %v4790 = vpop.f32.mrb[0].mxu0
    %v4791 = vadd.f32 %v4680, %v4790
    %4792 = vmatprep.mubr.f32.mxu0 %v2118
    %4793 = vmatmul.mubr.f32.gmra.mrb[0].mxu0 %v2117
    %v4794 = vpop.f32.mrb[0].mxu0
    %v4795 = vadd.f32 %v4684, %v4794
    %v4796 = vpop.f32.mrb[0].mxu0
    %v4797 = vadd.f32 %v4686, %v4796
    %4798 = vmatprep.mubr.f32.mxu0 %v2122
    %4799 = vmatmul.mubr.f32.gmra.mrb[0].mxu0 %v2121
    %v4800 = vpop.f32.mrb[0].mxu0
    %v4801 = vpop.f32.mrb[0].mxu0
    %4802 = vdwg.mxu0
    %4803 = vmatprep.subr.mxu0 %v2158
    %4804 = vmatpush1.msra.mxu0 %v2157
    %4805 = vmatprep.subr.mxu0 %v2166
    %4806 = vmatpush1.msra.mxu0 %v2165
    %4807 = vmatprep.subr.mxu0 %v2174
    %4808 = vmatpush1.msra.mxu0 %v2173
    %4809 = vmatprep.subr.mxu0 %v2182
    %4810 = vmatpush1.msra.mxu0 %v2181
    %4811 = vmatprep.subr.mxu0 %v2190
    %4812 = vmatpush1.msra.mxu0 %v2189
    %4813 = vmatprep.subr.mxu0 %v2198
    %4814 = vmatpush1.msra.mxu0 %v2197
    %4815 = vmatprep.subr.mxu0 %v2206
    %4816 = vmatpush1.msra.mxu0 %v2205
    %4817 = vmatprep.subr.mxu0 %v2214
    %4818 = vmatpush1.msra.mxu0 %v2213
    %4819 = vmatprep.subr.mxu0 %v2222
    %4820 = vmatpush1.msra.mxu0 %v2221
    %4821 = vmatprep.subr.mxu0 %v2230
    %4822 = vmatpush1.msra.mxu0 %v2229
    %4823 = vmatprep.subr.mxu0 %v2238
    %4824 = vmatpush1.msra.mxu0 %v2237
    %4825 = vmatprep.subr.mxu0 %v2246
    %4826 = vmatpush1.msra.mxu0 %v2245
    %4827 = vmatprep.subr.mxu0 %v2254
    %4828 = vmatpush1.msra.mxu0 %v2253
    %4829 = vmatprep.subr.mxu0 %v2262
    %4830 = vmatpush1.msra.mxu0 %v2261
    %4831 = vmatprep.subr.mxu0 %v2270
    %4832 = vmatpush1.msra.mxu0 %v2269
    %4833 = vmatprep.subr.mxu0 %v2278
    %4834 = vmatpush1.msra.mxu0 %v2277
    %4835 = vmatprep.subr.mxu0 %v2286
    %4836 = vmatpush1.msra.mxu0 %v2285
    %4837 = vmatprep.subr.mxu0 %v2294
    %4838 = vmatpush1.msra.mxu0 %v2293
    %4839 = vmatprep.subr.mxu0 %v2302
    %4840 = vmatpush1.msra.mxu0 %v2301
    %4841 = vmatprep.subr.mxu0 %v2310
    %4842 = vmatpush1.msra.mxu0 %v2309
    %4843 = vmatprep.subr.mxu0 %v2318
    %4844 = vmatpush1.msra.mxu0 %v2317
    %4845 = vmatprep.subr.mxu0 %v2326
    %4846 = vmatpush1.msra.mxu0 %v2325
    %4847 = vmatprep.subr.mxu0 %v2334
    %4848 = vmatpush1.msra.mxu0 %v2333
    %4849 = vmatprep.subr.mxu0 %v2342
    %4850 = vmatpush1.msra.mxu0 %v2341
    %4851 = vmatprep.subr.mxu0 %v2350
    %4852 = vmatpush1.msra.mxu0 %v2349
    %4853 = vmatprep.subr.mxu0 %v2358
    %4854 = vmatpush1.msra.mxu0 %v2357
    %4855 = vmatprep.subr.mxu0 %v2366
    %4856 = vmatpush1.msra.mxu0 %v2365
    %4857 = vmatprep.subr.mxu0 %v2374
    %4858 = vmatpush1.msra.mxu0 %v2373
    %4859 = vmatprep.subr.mxu0 %v2382
    %4860 = vmatpush1.msra.mxu0 %v2381
    %4861 = vmatprep.subr.mxu0 %v2390
    %4862 = vmatpush1.msra.mxu0 %v2389
    %4863 = vmatprep.subr.mxu0 %v2398
    %4864 = vmatpush1.msra.mxu0 %v2397
    %4865 = vmatprep.subr.mxu0 %v2406
    %4866 = vmatpush1.msra.mxu0 %v2405
    %4867 = vmatprep.mubr.f32.mxu0 %v2092
    %4868 = vmatmul.mubr.f32.gmra.mrb[0].mxu0 %v2091
    %v4869 = vpop.f32.mrb[0].mxu0
    %v4870 = vadd.f32 %v4093, %v4869
    %v4871 = vpop.f32.mrb[0].mxu0
    %v4872 = vadd.f32 %v4095, %v4871
    %4873 = vmatprep.mubr.f32.mxu0 %v2096
    %4874 = vmatmul.mubr.f32.gmra.mrb[0].mxu0 %v2095
    %v4875 = vpop.f32.mrb[0].mxu0
    %v4876 = vadd.f32 %v4099, %v4875
    %v4877 = vpop.f32.mrb[0].mxu0
    %v4878 = vadd.f32 %v4101, %v4877
    %4879 = vmatprep.mubr.f32.mxu0 %v2100
    %4880 = vmatmul.mubr.f32.gmra.mrb[0].mxu0 %v2099
    %v4881 = vpop.f32.mrb[0].mxu0
    %v4882 = vadd.f32 %v4105, %v4881
    %v4883 = vpop.f32.mrb[0].mxu0
    %v4884 = vadd.f32 %v4107, %v4883
    %4885 = vmatprep.mubr.f32.mxu0 %v2104
    %4886 = vmatmul.mubr.f32.gmra.mrb[0].mxu0 %v2103
    %v4887 = vpop.f32.mrb[0].mxu0
    %v4888 = vadd.f32 %v4111, %v4887
    %v4889 = vpop.f32.mrb[0].mxu0
    %v4890 = vadd.f32 %v4113, %v4889
    %4891 = vmatprep.mubr.f32.mxu0 %v2108
    %4892 = vmatmul.mubr.f32.gmra.mrb[0].mxu0 %v2107
    %v4893 = vpop.f32.mrb[0].mxu0
    %v4894 = vadd.f32 %v4117, %v4893
    %v4895 = vpop.f32.mrb[0].mxu0
    %v4896 = vadd.f32 %v4119, %v4895
    %4897 = vmatprep.mubr.f32.mxu0 %v2112
    %4898 = vmatmul.mubr.f32.gmra.mrb[0].mxu0 %v2111
    %v4899 = vpop.f32.mrb[0].mxu0
    %v4900 = vadd.f32 %v4123, %v4899
    %v4901 = vpop.f32.mrb[0].mxu0
    %v4902 = vadd.f32 %v4125, %v4901
    %4903 = vmatprep.mubr.f32.mxu0 %v2116
    %4904 = vmatmul.mubr.f32.gmra.mrb[0].mxu0 %v2115
    %v4905 = vpop.f32.mrb[0].mxu0
    %v4906 = vadd.f32 %v4129, %v4905
    %v4907 = vpop.f32.mrb[0].mxu0
    %v4908 = vadd.f32 %v4131, %v4907
    %4909 = vmatprep.mubr.f32.mxu0 %v2120
    %4910 = vmatmul.mubr.f32.gmra.mrb[0].mxu0 %v2119
    %v4911 = vpop.f32.mrb[0].mxu0
    %v4912 = vpop.f32.mrb[0].mxu0
    %4913 = vdwg.mxu0
    %4914 = vmatprep.subr.mxu0 %v2414
    %4915 = vmatpush1.msra.mxu0 %v2413
    %4916 = vmatprep.subr.mxu0 %v2422
    %4917 = vmatpush1.msra.mxu0 %v2421
    %4918 = vmatprep.subr.mxu0 %v2430
    %4919 = vmatpush1.msra.mxu0 %v2429
    %4920 = vmatprep.subr.mxu0 %v2438
    %4921 = vmatpush1.msra.mxu0 %v2437
    %4922 = vmatprep.subr.mxu0 %v2446
    %4923 = vmatpush1.msra.mxu0 %v2445
    %4924 = vmatprep.subr.mxu0 %v2454
    %4925 = vmatpush1.msra.mxu0 %v2453
    %4926 = vmatprep.subr.mxu0 %v2462
    %4927 = vmatpush1.msra.mxu0 %v2461
    %4928 = vmatprep.subr.mxu0 %v2470
    %4929 = vmatpush1.msra.mxu0 %v2469
    %4930 = vmatprep.subr.mxu0 %v2478
    %4931 = vmatpush1.msra.mxu0 %v2477
    %4932 = vmatprep.subr.mxu0 %v2486
    %4933 = vmatpush1.msra.mxu0 %v2485
    %4934 = vmatprep.subr.mxu0 %v2494
    %4935 = vmatpush1.msra.mxu0 %v2493
    %4936 = vmatprep.subr.mxu0 %v2502
    %4937 = vmatpush1.msra.mxu0 %v2501
    %4938 = vmatprep.subr.mxu0 %v2510
    %4939 = vmatpush1.msra.mxu0 %v2509
    %4940 = vmatprep.subr.mxu0 %v2518
    %4941 = vmatpush1.msra.mxu0 %v2517
    %4942 = vmatprep.subr.mxu0 %v2526
    %4943 = vmatpush1.msra.mxu0 %v2525
    %4944 = vmatprep.subr.mxu0 %v2534
    %4945 = vmatpush1.msra.mxu0 %v2533
    %4946 = vmatprep.subr.mxu0 %v2542
    %4947 = vmatpush1.msra.mxu0 %v2541
    %4948 = vmatprep.subr.mxu0 %v2550
    %4949 = vmatpush1.msra.mxu0 %v2549
    %4950 = vmatprep.subr.mxu0 %v2558
    %4951 = vmatpush1.msra.mxu0 %v2557
    %4952 = vmatprep.subr.mxu0 %v2566
    %4953 = vmatpush1.msra.mxu0 %v2565
    %4954 = vmatprep.subr.mxu0 %v2574
    %4955 = vmatpush1.msra.mxu0 %v2573
    %4956 = vmatprep.subr.mxu0 %v2582
    %4957 = vmatpush1.msra.mxu0 %v2581
    %4958 = vmatprep.subr.mxu0 %v2590
    %4959 = vmatpush1.msra.mxu0 %v2589
    %4960 = vmatprep.subr.mxu0 %v2598
    %4961 = vmatpush1.msra.mxu0 %v2597
    %4962 = vmatprep.subr.mxu0 %v2606
    %4963 = vmatpush1.msra.mxu0 %v2605
    %4964 = vmatprep.subr.mxu0 %v2614
    %4965 = vmatpush1.msra.mxu0 %v2613
    %4966 = vmatprep.subr.mxu0 %v2622
    %4967 = vmatpush1.msra.mxu0 %v2621
    %4968 = vmatprep.subr.mxu0 %v2630
    %4969 = vmatpush1.msra.mxu0 %v2629
    %4970 = vmatprep.subr.mxu0 %v2638
    %4971 = vmatpush1.msra.mxu0 %v2637
    %4972 = vmatprep.subr.mxu0 %v2646
    %4973 = vmatpush1.msra.mxu0 %v2645
    %4974 = vmatprep.subr.mxu0 %v2654
    %4975 = vmatpush1.msra.mxu0 %v2653
    %4976 = vmatprep.subr.mxu0 %v2662
    %4977 = vmatpush1.msra.mxu0 %v2661
    %4978 = vmatprep.mubr.f32.mxu0 %v2094
    %4979 = vmatmul.mubr.f32.gmra.mrb[0].mxu0 %v2093
    %v4980 = vpop.f32.mrb[0].mxu0
    %v4981 = vadd.f32 %v4870, %v4980
    %v4982 = vpop.f32.mrb[0].mxu0
    %v4983 = vadd.f32 %v4872, %v4982
    %4984 = vmatprep.mubr.f32.mxu0 %v2098
    %4985 = vmatmul.mubr.f32.gmra.mrb[0].mxu0 %v2097
    %v4986 = vpop.f32.mrb[0].mxu0
    %v4987 = vadd.f32 %v4876, %v4986
    %v4988 = vpop.f32.mrb[0].mxu0
    %v4989 = vadd.f32 %v4878, %v4988
    %4990 = vmatprep.mubr.f32.mxu0 %v2102
    %4991 = vmatmul.mubr.f32.gmra.mrb[0].mxu0 %v2101
    %v4992 = vpop.f32.mrb[0].mxu0
    %v4993 = vadd.f32 %v4882, %v4992
    %v4994 = vpop.f32.mrb[0].mxu0
    %v4995 = vadd.f32 %v4884, %v4994
    %4996 = vmatprep.mubr.f32.mxu0 %v2106
    %4997 = vmatmul.mubr.f32.gmra.mrb[0].mxu0 %v2105
    %v4998 = vpop.f32.mrb[0].mxu0
    %v4999 = vadd.f32 %v4888, %v4998
    %v5000 = vpop.f32.mrb[0].mxu0
    %v5001 = vadd.f32 %v4890, %v5000
    %5002 = vmatprep.mubr.f32.mxu0 %v2110
    %5003 = vmatmul.mubr.f32.gmra.mrb[0].mxu0 %v2109
    %v5004 = vpop.f32.mrb[0].mxu0
    %v5005 = vadd.f32 %v4894, %v5004
    %v5006 = vpop.f32.mrb[0].mxu0
    %v5007 = vadd.f32 %v4896, %v5006
    %5008 = vmatprep.mubr.f32.mxu0 %v2114
    %5009 = vmatmul.mubr.f32.gmra.mrb[0].mxu0 %v2113
    %v5010 = vpop.f32.mrb[0].mxu0
    %v5011 = vadd.f32 %v4900, %v5010
    %v5012 = vpop.f32.mrb[0].mxu0
    %v5013 = vadd.f32 %v4902, %v5012
    %5014 = vmatprep.mubr.f32.mxu0 %v2118
    %5015 = vmatmul.mubr.f32.gmra.mrb[0].mxu0 %v2117
    %v5016 = vpop.f32.mrb[0].mxu0
    %v5017 = vadd.f32 %v4906, %v5016
    %v5018 = vpop.f32.mrb[0].mxu0
    %v5019 = vadd.f32 %v4908, %v5018
    %5020 = vmatprep.mubr.f32.mxu0 %v2122
    %5021 = vmatmul.mubr.f32.gmra.mrb[0].mxu0 %v2121
    %v5022 = vpop.f32.mrb[0].mxu0
    %v5023 = vpop.f32.mrb[0].mxu0
    %5024 = vdwg.mxu0
    %5025 = vmatprep.subr.mxu0 %v2160
    %5026 = vmatpush1.msra.mxu0 %v2159
    %5027 = vmatprep.subr.mxu0 %v2168
    %5028 = vmatpush1.msra.mxu0 %v2167
    %5029 = vmatprep.subr.mxu0 %v2176
    %5030 = vmatpush1.msra.mxu0 %v2175
    %5031 = vmatprep.subr.mxu0 %v2184
    %5032 = vmatpush1.msra.mxu0 %v2183
    %5033 = vmatprep.subr.mxu0 %v2192
    %5034 = vmatpush1.msra.mxu0 %v2191
    %5035 = vmatprep.subr.mxu0 %v2200
    %5036 = vmatpush1.msra.mxu0 %v2199
    %5037 = vmatprep.subr.mxu0 %v2208
    %5038 = vmatpush1.msra.mxu0 %v2207
    %5039 = vmatprep.subr.mxu0 %v2216
    %5040 = vmatpush1.msra.mxu0 %v2215
    %5041 = vmatprep.subr.mxu0 %v2224
    %5042 = vmatpush1.msra.mxu0 %v2223
    %5043 = vmatprep.subr.mxu0 %v2232
    %5044 = vmatpush1.msra.mxu0 %v2231
    %5045 = vmatprep.subr.mxu0 %v2240
    %5046 = vmatpush1.msra.mxu0 %v2239
    %5047 = vmatprep.subr.mxu0 %v2248
    %5048 = vmatpush1.msra.mxu0 %v2247
    %5049 = vmatprep.subr.mxu0 %v2256
    %5050 = vmatpush1.msra.mxu0 %v2255
    %5051 = vmatprep.subr.mxu0 %v2264
    %5052 = vmatpush1.msra.mxu0 %v2263
    %5053 = vmatprep.subr.mxu0 %v2272
    %5054 = vmatpush1.msra.mxu0 %v2271
    %5055 = vmatprep.subr.mxu0 %v2280
    %5056 = vmatpush1.msra.mxu0 %v2279
    %5057 = vmatprep.subr.mxu0 %v2288
    %5058 = vmatpush1.msra.mxu0 %v2287
    %5059 = vmatprep.subr.mxu0 %v2296
    %5060 = vmatpush1.msra.mxu0 %v2295
    %5061 = vmatprep.subr.mxu0 %v2304
    %5062 = vmatpush1.msra.mxu0 %v2303
    %5063 = vmatprep.subr.mxu0 %v2312
    %5064 = vmatpush1.msra.mxu0 %v2311
    %5065 = vmatprep.subr.mxu0 %v2320
    %5066 = vmatpush1.msra.mxu0 %v2319
    %5067 = vmatprep.subr.mxu0 %v2328
    %5068 = vmatpush1.msra.mxu0 %v2327
    %5069 = vmatprep.subr.mxu0 %v2336
    %5070 = vmatpush1.msra.mxu0 %v2335
    %5071 = vmatprep.subr.mxu0 %v2344
    %5072 = vmatpush1.msra.mxu0 %v2343
    %5073 = vmatprep.subr.mxu0 %v2352
    %5074 = vmatpush1.msra.mxu0 %v2351
    %5075 = vmatprep.subr.mxu0 %v2360
    %5076 = vmatpush1.msra.mxu0 %v2359
    %5077 = vmatprep.subr.mxu0 %v2368
    %5078 = vmatpush1.msra.mxu0 %v2367
    %5079 = vmatprep.subr.mxu0 %v2376
    %5080 = vmatpush1.msra.mxu0 %v2375
    %5081 = vmatprep.subr.mxu0 %v2384
    %5082 = vmatpush1.msra.mxu0 %v2383
    %5083 = vmatprep.subr.mxu0 %v2392
    %5084 = vmatpush1.msra.mxu0 %v2391
    %5085 = vmatprep.subr.mxu0 %v2400
    %5086 = vmatpush1.msra.mxu0 %v2399
    %5087 = vmatprep.subr.mxu0 %v2408
    %5088 = vmatpush1.msra.mxu0 %v2407
    %5089 = vmatprep.mubr.f32.mxu0 %v2092
    %5090 = vmatmul.mubr.f32.gmra.mrb[0].mxu0 %v2091
    %v5091 = vpop.f32.mrb[0].mxu0
    %v5092 = vadd.f32 %v4315, %v5091
    %v5093 = vpop.f32.mrb[0].mxu0
    %v5094 = vadd.f32 %v4317, %v5093
    %5095 = vmatprep.mubr.f32.mxu0 %v2096
    %5096 = vmatmul.mubr.f32.gmra.mrb[0].mxu0 %v2095
    %v5097 = vpop.f32.mrb[0].mxu0
    %v5098 = vadd.f32 %v4321, %v5097
    %v5099 = vpop.f32.mrb[0].mxu0
    %v5100 = vadd.f32 %v4323, %v5099
    %5101 = vmatprep.mubr.f32.mxu0 %v2100
    %5102 = vmatmul.mubr.f32.gmra.mrb[0].mxu0 %v2099
    %v5103 = vpop.f32.mrb[0].mxu0
    %v5104 = vadd.f32 %v4327, %v5103
    %v5105 = vpop.f32.mrb[0].mxu0
    %v5106 = vadd.f32 %v4329, %v5105
    %5107 = vmatprep.mubr.f32.mxu0 %v2104
    %5108 = vmatmul.mubr.f32.gmra.mrb[0].mxu0 %v2103
    %v5109 = vpop.f32.mrb[0].mxu0
    %v5110 = vadd.f32 %v4333, %v5109
    %v5111 = vpop.f32.mrb[0].mxu0
    %v5112 = vadd.f32 %v4335, %v5111
    %5113 = vmatprep.mubr.f32.mxu0 %v2108
    %5114 = vmatmul.mubr.f32.gmra.mrb[0].mxu0 %v2107
    %v5115 = vpop.f32.mrb[0].mxu0
    %v5116 = vadd.f32 %v4339, %v5115
    %v5117 = vpop.f32.mrb[0].mxu0
    %v5118 = vadd.f32 %v4341, %v5117
    %5119 = vmatprep.mubr.f32.mxu0 %v2112
    %5120 = vmatmul.mubr.f32.gmra.mrb[0].mxu0 %v2111
    %v5121 = vpop.f32.mrb[0].mxu0
    %v5122 = vadd.f32 %v4345, %v5121
    %v5123 = vpop.f32.mrb[0].mxu0
    %v5124 = vadd.f32 %v4347, %v5123
    %5125 = vmatprep.mubr.f32.mxu0 %v2116
    %5126 = vmatmul.mubr.f32.gmra.mrb[0].mxu0 %v2115
    %v5127 = vpop.f32.mrb[0].mxu0
    %v5128 = vadd.f32 %v4351, %v5127
    %v5129 = vpop.f32.mrb[0].mxu0
    %v5130 = vadd.f32 %v4353, %v5129
    %5131 = vmatprep.mubr.f32.mxu0 %v2120
    %5132 = vmatmul.mubr.f32.gmra.mrb[0].mxu0 %v2119
    %v5133 = vpop.f32.mrb[0].mxu0
    %v5134 = vpop.f32.mrb[0].mxu0
    %5135 = vdwg.mxu0
    %5136 = vmatprep.subr.mxu0 %v2416
    %5137 = vmatpush1.msra.mxu0 %v2415
    %5138 = vmatprep.subr.mxu0 %v2424
    %5139 = vmatpush1.msra.mxu0 %v2423
    %5140 = vmatprep.subr.mxu0 %v2432
    %5141 = vmatpush1.msra.mxu0 %v2431
    %5142 = vmatprep.subr.mxu0 %v2440
    %5143 = vmatpush1.msra.mxu0 %v2439
    %5144 = vmatprep.subr.mxu0 %v2448
    %5145 = vmatpush1.msra.mxu0 %v2447
    %5146 = vmatprep.subr.mxu0 %v2456
    %5147 = vmatpush1.msra.mxu0 %v2455
    %5148 = vmatprep.subr.mxu0 %v2464
    %5149 = vmatpush1.msra.mxu0 %v2463
    %5150 = vmatprep.subr.mxu0 %v2472
    %5151 = vmatpush1.msra.mxu0 %v2471
    %5152 = vmatprep.subr.mxu0 %v2480
    %5153 = vmatpush1.msra.mxu0 %v2479
    %5154 = vmatprep.subr.mxu0 %v2488
    %5155 = vmatpush1.msra.mxu0 %v2487
    %5156 = vmatprep.subr.mxu0 %v2496
    %5157 = vmatpush1.msra.mxu0 %v2495
    %5158 = vmatprep.subr.mxu0 %v2504
    %5159 = vmatpush1.msra.mxu0 %v2503
    %5160 = vmatprep.subr.mxu0 %v2512
    %5161 = vmatpush1.msra.mxu0 %v2511
    %5162 = vmatprep.subr.mxu0 %v2520
    %5163 = vmatpush1.msra.mxu0 %v2519
    %5164 = vmatprep.subr.mxu0 %v2528
    %5165 = vmatpush1.msra.mxu0 %v2527
    %5166 = vmatprep.subr.mxu0 %v2536
    %5167 = vmatpush1.msra.mxu0 %v2535
    %5168 = vmatprep.subr.mxu0 %v2544
    %5169 = vmatpush1.msra.mxu0 %v2543
    %5170 = vmatprep.subr.mxu0 %v2552
    %5171 = vmatpush1.msra.mxu0 %v2551
    %5172 = vmatprep.subr.mxu0 %v2560
    %5173 = vmatpush1.msra.mxu0 %v2559
    %5174 = vmatprep.subr.mxu0 %v2568
    %5175 = vmatpush1.msra.mxu0 %v2567
    %5176 = vmatprep.subr.mxu0 %v2576
    %5177 = vmatpush1.msra.mxu0 %v2575
    %5178 = vmatprep.subr.mxu0 %v2584
    %5179 = vmatpush1.msra.mxu0 %v2583
    %5180 = vmatprep.subr.mxu0 %v2592
    %5181 = vmatpush1.msra.mxu0 %v2591
    %5182 = vmatprep.subr.mxu0 %v2600
    %5183 = vmatpush1.msra.mxu0 %v2599
    %5184 = vmatprep.subr.mxu0 %v2608
    %5185 = vmatpush1.msra.mxu0 %v2607
    %5186 = vmatprep.subr.mxu0 %v2616
    %5187 = vmatpush1.msra.mxu0 %v2615
    %5188 = vmatprep.subr.mxu0 %v2624
    %5189 = vmatpush1.msra.mxu0 %v2623
    %5190 = vmatprep.subr.mxu0 %v2632
    %5191 = vmatpush1.msra.mxu0 %v2631
    %5192 = vmatprep.subr.mxu0 %v2640
    %5193 = vmatpush1.msra.mxu0 %v2639
    %5194 = vmatprep.subr.mxu0 %v2648
    %5195 = vmatpush1.msra.mxu0 %v2647
    %5196 = vmatprep.subr.mxu0 %v2656
    %5197 = vmatpush1.msra.mxu0 %v2655
    %5198 = vmatprep.subr.mxu0 %v2664
    %5199 = vmatpush1.msra.mxu0 %v2663
    %5200 = vmatprep.mubr.f32.mxu0 %v2094
    %5201 = vmatmul.mubr.f32.gmra.mrb[0].mxu0 %v2093
    %v5202 = vpop.f32.mrb[0].mxu0
    %v5203 = vadd.f32 %v5092, %v5202
    %v5204 = vpop.f32.mrb[0].mxu0
    %v5205 = vadd.f32 %v5094, %v5204
    %5206 = vmatprep.mubr.f32.mxu0 %v2098
    %5207 = vmatmul.mubr.f32.gmra.mrb[0].mxu0 %v2097
    %v5208 = vpop.f32.mrb[0].mxu0
    %v5209 = vadd.f32 %v5098, %v5208
    %v5210 = vpop.f32.mrb[0].mxu0
    %v5211 = vadd.f32 %v5100, %v5210
    %5212 = vmatprep.mubr.f32.mxu0 %v2102
    %5213 = vmatmul.mubr.f32.gmra.mrb[0].mxu0 %v2101
    %v5214 = vpop.f32.mrb[0].mxu0
    %v5215 = vadd.f32 %v5104, %v5214
    %v5216 = vpop.f32.mrb[0].mxu0
    %v5217 = vadd.f32 %v5106, %v5216
    %5218 = vmatprep.mubr.f32.mxu0 %v2106
    %5219 = vmatmul.mubr.f32.gmra.mrb[0].mxu0 %v2105
    %v5220 = vpop.f32.mrb[0].mxu0
    %v5221 = vadd.f32 %v5110, %v5220
    %v5222 = vpop.f32.mrb[0].mxu0
    %v5223 = vadd.f32 %v5112, %v5222
    %5224 = vmatprep.mubr.f32.mxu0 %v2110
    %5225 = vmatmul.mubr.f32.gmra.mrb[0].mxu0 %v2109
    %v5226 = vpop.f32.mrb[0].mxu0
    %v5227 = vadd.f32 %v5116, %v5226
    %v5228 = vpop.f32.mrb[0].mxu0
    %v5229 = vadd.f32 %v5118, %v5228
    %5230 = vmatprep.mubr.f32.mxu0 %v2114
    %5231 = vmatmul.mubr.f32.gmra.mrb[0].mxu0 %v2113
    %v5232 = vpop.f32.mrb[0].mxu0
    %v5233 = vadd.f32 %v5122, %v5232
    %v5234 = vpop.f32.mrb[0].mxu0
    %v5235 = vadd.f32 %v5124, %v5234
    %5236 = vmatprep.mubr.f32.mxu0 %v2118
    %5237 = vmatmul.mubr.f32.gmra.mrb[0].mxu0 %v2117
    %v5238 = vpop.f32.mrb[0].mxu0
    %v5239 = vadd.f32 %v5128, %v5238
    %v5240 = vpop.f32.mrb[0].mxu0
    %v5241 = vadd.f32 %v5130, %v5240
    %5242 = vmatprep.mubr.f32.mxu0 %v2122
    %5243 = vmatmul.mubr.f32.gmra.mrb[0].mxu0 %v2121
    %v5244 = vpop.f32.mrb[0].mxu0
    %v5245 = vpop.f32.mrb[0].mxu0
    %5246 = vdwg.mxu0
    %5247 = vmatprep.subr.mxu0 %v2162
    %5248 = vmatpush1.msra.mxu0 %v2161
    %5249 = vmatprep.subr.mxu0 %v2170
    %5250 = vmatpush1.msra.mxu0 %v2169
    %5251 = vmatprep.subr.mxu0 %v2178
    %5252 = vmatpush1.msra.mxu0 %v2177
    %5253 = vmatprep.subr.mxu0 %v2186
    %5254 = vmatpush1.msra.mxu0 %v2185
    %5255 = vmatprep.subr.mxu0 %v2194
    %5256 = vmatpush1.msra.mxu0 %v2193
    %5257 = vmatprep.subr.mxu0 %v2202
    %5258 = vmatpush1.msra.mxu0 %v2201
    %5259 = vmatprep.subr.mxu0 %v2210
    %5260 = vmatpush1.msra.mxu0 %v2209
    %5261 = vmatprep.subr.mxu0 %v2218
    %5262 = vmatpush1.msra.mxu0 %v2217
    %5263 = vmatprep.subr.mxu0 %v2226
    %5264 = vmatpush1.msra.mxu0 %v2225
    %5265 = vmatprep.subr.mxu0 %v2234
    %5266 = vmatpush1.msra.mxu0 %v2233
    %5267 = vmatprep.subr.mxu0 %v2242
    %5268 = vmatpush1.msra.mxu0 %v2241
    %5269 = vmatprep.subr.mxu0 %v2250
    %5270 = vmatpush1.msra.mxu0 %v2249
    %5271 = vmatprep.subr.mxu0 %v2258
    %5272 = vmatpush1.msra.mxu0 %v2257
    %5273 = vmatprep.subr.mxu0 %v2266
    %5274 = vmatpush1.msra.mxu0 %v2265
    %5275 = vmatprep.subr.mxu0 %v2274
    %5276 = vmatpush1.msra.mxu0 %v2273
    %5277 = vmatprep.subr.mxu0 %v2282
    %5278 = vmatpush1.msra.mxu0 %v2281
    %5279 = vmatprep.subr.mxu0 %v2290
    %5280 = vmatpush1.msra.mxu0 %v2289
    %5281 = vmatprep.subr.mxu0 %v2298
    %5282 = vmatpush1.msra.mxu0 %v2297
    %5283 = vmatprep.subr.mxu0 %v2306
    %5284 = vmatpush1.msra.mxu0 %v2305
    %5285 = vmatprep.subr.mxu0 %v2314
    %5286 = vmatpush1.msra.mxu0 %v2313
    %5287 = vmatprep.subr.mxu0 %v2322
    %5288 = vmatpush1.msra.mxu0 %v2321
    %5289 = vmatprep.subr.mxu0 %v2330
    %5290 = vmatpush1.msra.mxu0 %v2329
    %5291 = vmatprep.subr.mxu0 %v2338
    %5292 = vmatpush1.msra.mxu0 %v2337
    %5293 = vmatprep.subr.mxu0 %v2346
    %5294 = vmatpush1.msra.mxu0 %v2345
    %5295 = vmatprep.subr.mxu0 %v2354
    %5296 = vmatpush1.msra.mxu0 %v2353
    %5297 = vmatprep.subr.mxu0 %v2362
    %5298 = vmatpush1.msra.mxu0 %v2361
    %5299 = vmatprep.subr.mxu0 %v2370
    %5300 = vmatpush1.msra.mxu0 %v2369
    %5301 = vmatprep.subr.mxu0 %v2378
    %5302 = vmatpush1.msra.mxu0 %v2377
    %5303 = vmatprep.subr.mxu0 %v2386
    %5304 = vmatpush1.msra.mxu0 %v2385
    %5305 = vmatprep.subr.mxu0 %v2394
    %5306 = vmatpush1.msra.mxu0 %v2393
    %5307 = vmatprep.subr.mxu0 %v2402
    %5308 = vmatpush1.msra.mxu0 %v2401
    %5309 = vmatprep.subr.mxu0 %v2410
    %5310 = vmatpush1.msra.mxu0 %v2409
    %5311 = vmatprep.mubr.f32.mxu0 %v2092
    %5312 = vmatmul.mubr.f32.gmra.mrb[0].mxu0 %v2091
    %v5313 = vpop.f32.mrb[0].mxu0
    %v5314 = vadd.f32 %v4537, %v5313
    %v5315 = vpop.f32.mrb[0].mxu0
    %v5316 = vadd.f32 %v4539, %v5315
    %5317 = vmatprep.mubr.f32.mxu0 %v2096
    %5318 = vmatmul.mubr.f32.gmra.mrb[0].mxu0 %v2095
    %v5319 = vpop.f32.mrb[0].mxu0
    %v5320 = vadd.f32 %v4543, %v5319
    %v5321 = vpop.f32.mrb[0].mxu0
    %v5322 = vadd.f32 %v4545, %v5321
    %5323 = vmatprep.mubr.f32.mxu0 %v2100
    %5324 = vmatmul.mubr.f32.gmra.mrb[0].mxu0 %v2099
    %v5325 = vpop.f32.mrb[0].mxu0
    %v5326 = vadd.f32 %v4549, %v5325
    %v5327 = vpop.f32.mrb[0].mxu0
    %v5328 = vadd.f32 %v4551, %v5327
    %5329 = vmatprep.mubr.f32.mxu0 %v2104
    %5330 = vmatmul.mubr.f32.gmra.mrb[0].mxu0 %v2103
    %v5331 = vpop.f32.mrb[0].mxu0
    %v5332 = vadd.f32 %v4555, %v5331
    %v5333 = vpop.f32.mrb[0].mxu0
    %v5334 = vadd.f32 %v4557, %v5333
    %5335 = vmatprep.mubr.f32.mxu0 %v2108
    %5336 = vmatmul.mubr.f32.gmra.mrb[0].mxu0 %v2107
    %v5337 = vpop.f32.mrb[0].mxu0
    %v5338 = vadd.f32 %v4561, %v5337
    %v5339 = vpop.f32.mrb[0].mxu0
    %v5340 = vadd.f32 %v4563, %v5339
    %5341 = vmatprep.mubr.f32.mxu0 %v2112
    %5342 = vmatmul.mubr.f32.gmra.mrb[0].mxu0 %v2111
    %v5343 = vpop.f32.mrb[0].mxu0
    %v5344 = vadd.f32 %v4567, %v5343
    %v5345 = vpop.f32.mrb[0].mxu0
    %v5346 = vadd.f32 %v4569, %v5345
    %5347 = vmatprep.mubr.f32.mxu0 %v2116
    %5348 = vmatmul.mubr.f32.gmra.mrb[0].mxu0 %v2115
    %v5349 = vpop.f32.mrb[0].mxu0
    %v5350 = vadd.f32 %v4573, %v5349
    %v5351 = vpop.f32.mrb[0].mxu0
    %v5352 = vadd.f32 %v4575, %v5351
    %5353 = vmatprep.mubr.f32.mxu0 %v2120
    %5354 = vmatmul.mubr.f32.gmra.mrb[0].mxu0 %v2119
    %v5355 = vpop.f32.mrb[0].mxu0
    %v5356 = vpop.f32.mrb[0].mxu0
    %5357 = vdwg.mxu0
    %5358 = vmatprep.subr.mxu0 %v2418
    %5359 = vmatpush1.msra.mxu0 %v2417
    %5360 = vmatprep.subr.mxu0 %v2426
    %5361 = vmatpush1.msra.mxu0 %v2425
    %5362 = vmatprep.subr.mxu0 %v2434
    %5363 = vmatpush1.msra.mxu0 %v2433
    %5364 = vmatprep.subr.mxu0 %v2442
    %5365 = vmatpush1.msra.mxu0 %v2441
    %5366 = vmatprep.subr.mxu0 %v2450
    %5367 = vmatpush1.msra.mxu0 %v2449
    %5368 = vmatprep.subr.mxu0 %v2458
    %5369 = vmatpush1.msra.mxu0 %v2457
    %5370 = vmatprep.subr.mxu0 %v2466
    %5371 = vmatpush1.msra.mxu0 %v2465
    %5372 = vmatprep.subr.mxu0 %v2474
    %5373 = vmatpush1.msra.mxu0 %v2473
    %5374 = vmatprep.subr.mxu0 %v2482
    %5375 = vmatpush1.msra.mxu0 %v2481
    %5376 = vmatprep.subr.mxu0 %v2490
    %5377 = vmatpush1.msra.mxu0 %v2489
    %5378 = vmatprep.subr.mxu0 %v2498
    %5379 = vmatpush1.msra.mxu0 %v2497
    %5380 = vmatprep.subr.mxu0 %v2506
    %5381 = vmatpush1.msra.mxu0 %v2505
    %5382 = vmatprep.subr.mxu0 %v2514
    %5383 = vmatpush1.msra.mxu0 %v2513
    %5384 = vmatprep.subr.mxu0 %v2522
    %5385 = vmatpush1.msra.mxu0 %v2521
    %5386 = vmatprep.subr.mxu0 %v2530
    %5387 = vmatpush1.msra.mxu0 %v2529
    %5388 = vmatprep.subr.mxu0 %v2538
    %5389 = vmatpush1.msra.mxu0 %v2537
    %5390 = vmatprep.subr.mxu0 %v2546
    %5391 = vmatpush1.msra.mxu0 %v2545
    %5392 = vmatprep.subr.mxu0 %v2554
    %5393 = vmatpush1.msra.mxu0 %v2553
    %5394 = vmatprep.subr.mxu0 %v2562
    %5395 = vmatpush1.msra.mxu0 %v2561
    %5396 = vmatprep.subr.mxu0 %v2570
    %5397 = vmatpush1.msra.mxu0 %v2569
    %5398 = vmatprep.subr.mxu0 %v2578
    %5399 = vmatpush1.msra.mxu0 %v2577
    %5400 = vmatprep.subr.mxu0 %v2586
    %5401 = vmatpush1.msra.mxu0 %v2585
    %5402 = vmatprep.subr.mxu0 %v2594
    %5403 = vmatpush1.msra.mxu0 %v2593
    %5404 = vmatprep.subr.mxu0 %v2602
    %5405 = vmatpush1.msra.mxu0 %v2601
    %5406 = vmatprep.subr.mxu0 %v2610
    %5407 = vmatpush1.msra.mxu0 %v2609
    %5408 = vmatprep.subr.mxu0 %v2618
    %5409 = vmatpush1.msra.mxu0 %v2617
    %5410 = vmatprep.subr.mxu0 %v2626
    %5411 = vmatpush1.msra.mxu0 %v2625
    %5412 = vmatprep.subr.mxu0 %v2634
    %5413 = vmatpush1.msra.mxu0 %v2633
    %5414 = vmatprep.subr.mxu0 %v2642
    %5415 = vmatpush1.msra.mxu0 %v2641
    %5416 = vmatprep.subr.mxu0 %v2650
    %5417 = vmatpush1.msra.mxu0 %v2649
    %5418 = vmatprep.subr.mxu0 %v2658
    %5419 = vmatpush1.msra.mxu0 %v2657
    %5420 = vmatprep.subr.mxu0 %v2666
    %5421 = vmatpush1.msra.mxu0 %v2665
    %5422 = vmatprep.mubr.f32.mxu0 %v2094
    %5423 = vmatmul.mubr.f32.gmra.mrb[0].mxu0 %v2093
    %v5424 = vpop.f32.mrb[0].mxu0
    %v5425 = vadd.f32 %v5314, %v5424
    %v5426 = vpop.f32.mrb[0].mxu0
    %v5427 = vadd.f32 %v5316, %v5426
    %5428 = vmatprep.mubr.f32.mxu0 %v2098
    %5429 = vmatmul.mubr.f32.gmra.mrb[0].mxu0 %v2097
    %v5430 = vpop.f32.mrb[0].mxu0
    %v5431 = vadd.f32 %v5320, %v5430
    %v5432 = vpop.f32.mrb[0].mxu0
    %v5433 = vadd.f32 %v5322, %v5432
    %5434 = vmatprep.mubr.f32.mxu0 %v2102
    %5435 = vmatmul.mubr.f32.gmra.mrb[0].mxu0 %v2101
    %v5436 = vpop.f32.mrb[0].mxu0
    %v5437 = vadd.f32 %v5326, %v5436
    %v5438 = vpop.f32.mrb[0].mxu0
    %v5439 = vadd.f32 %v5328, %v5438
    %5440 = vmatprep.mubr.f32.mxu0 %v2106
    %5441 = vmatmul.mubr.f32.gmra.mrb[0].mxu0 %v2105
    %v5442 = vpop.f32.mrb[0].mxu0
    %v5443 = vadd.f32 %v5332, %v5442
    %v5444 = vpop.f32.mrb[0].mxu0
    %v5445 = vadd.f32 %v5334, %v5444
    %5446 = vmatprep.mubr.f32.mxu0 %v2110
    %5447 = vmatmul.mubr.f32.gmra.mrb[0].mxu0 %v2109
    %v5448 = vpop.f32.mrb[0].mxu0
    %v5449 = vadd.f32 %v5338, %v5448
    %v5450 = vpop.f32.mrb[0].mxu0
    %v5451 = vadd.f32 %v5340, %v5450
    %5452 = vmatprep.mubr.f32.mxu0 %v2114
    %5453 = vmatmul.mubr.f32.gmra.mrb[0].mxu0 %v2113
    %v5454 = vpop.f32.mrb[0].mxu0
    %v5455 = vadd.f32 %v5344, %v5454
    %v5456 = vpop.f32.mrb[0].mxu0
    %v5457 = vadd.f32 %v5346, %v5456
    %5458 = vmatprep.mubr.f32.mxu0 %v2118
    %5459 = vmatmul.mubr.f32.gmra.mrb[0].mxu0 %v2117
    %v5460 = vpop.f32.mrb[0].mxu0
    %v5461 = vadd.f32 %v5350, %v5460
    %v5462 = vpop.f32.mrb[0].mxu0
    %v5463 = vadd.f32 %v5352, %v5462
    %5464 = vmatprep.mubr.f32.mxu0 %v2122
    %5465 = vmatmul.mubr.f32.gmra.mrb[0].mxu0 %v2121
    %v5466 = vpop.f32.mrb[0].mxu0
    %v5467 = vpop.f32.mrb[0].mxu0
    %5468 = vdwg.mxu0
    %5469 = vmatprep.subr.mxu0 %v3182
    %5470 = vmatpush1.msra.mxu0 %v3181
    %5471 = vmatprep.subr.mxu0 %v3190
    %5472 = vmatpush1.msra.mxu0 %v3189
    %5473 = vmatprep.subr.mxu0 %v3198
    %5474 = vmatpush1.msra.mxu0 %v3197
    %5475 = vmatprep.subr.mxu0 %v3206
    %5476 = vmatpush1.msra.mxu0 %v3205
    %5477 = vmatprep.subr.mxu0 %v3214
    %5478 = vmatpush1.msra.mxu0 %v3213
    %5479 = vmatprep.subr.mxu0 %v3222
    %5480 = vmatpush1.msra.mxu0 %v3221
    %5481 = vmatprep.subr.mxu0 %v3230
    %5482 = vmatpush1.msra.mxu0 %v3229
    %5483 = vmatprep.subr.mxu0 %v3238
    %5484 = vmatpush1.msra.mxu0 %v3237
    %5485 = vmatprep.subr.mxu0 %v3246
    %5486 = vmatpush1.msra.mxu0 %v3245
    %5487 = vmatprep.subr.mxu0 %v3254
    %5488 = vmatpush1.msra.mxu0 %v3253
    %5489 = vmatprep.subr.mxu0 %v3262
    %5490 = vmatpush1.msra.mxu0 %v3261
    %5491 = vmatprep.subr.mxu0 %v3270
    %5492 = vmatpush1.msra.mxu0 %v3269
    %5493 = vmatprep.subr.mxu0 %v3278
    %5494 = vmatpush1.msra.mxu0 %v3277
    %5495 = vmatprep.subr.mxu0 %v3286
    %5496 = vmatpush1.msra.mxu0 %v3285
    %5497 = vmatprep.subr.mxu0 %v3294
    %5498 = vmatpush1.msra.mxu0 %v3293
    %5499 = vmatprep.subr.mxu0 %v3302
    %5500 = vmatpush1.msra.mxu0 %v3301
    %5501 = vmatprep.subr.mxu0 %v3310
    %5502 = vmatpush1.msra.mxu0 %v3309
    %5503 = vmatprep.subr.mxu0 %v3318
    %5504 = vmatpush1.msra.mxu0 %v3317
    %5505 = vmatprep.subr.mxu0 %v3326
    %5506 = vmatpush1.msra.mxu0 %v3325
    %5507 = vmatprep.subr.mxu0 %v3334
    %5508 = vmatpush1.msra.mxu0 %v3333
    %5509 = vmatprep.subr.mxu0 %v3342
    %5510 = vmatpush1.msra.mxu0 %v3341
    %5511 = vmatprep.subr.mxu0 %v3350
    %5512 = vmatpush1.msra.mxu0 %v3349
    %5513 = vmatprep.subr.mxu0 %v3358
    %5514 = vmatpush1.msra.mxu0 %v3357
    %5515 = vmatprep.subr.mxu0 %v3366
    %5516 = vmatpush1.msra.mxu0 %v3365
    %5517 = vmatprep.subr.mxu0 %v3374
    %5518 = vmatpush1.msra.mxu0 %v3373
    %5519 = vmatprep.subr.mxu0 %v3382
    %5520 = vmatpush1.msra.mxu0 %v3381
    %5521 = vmatprep.subr.mxu0 %v3390
    %5522 = vmatpush1.msra.mxu0 %v3389
    %5523 = vmatprep.subr.mxu0 %v3398
    %5524 = vmatpush1.msra.mxu0 %v3397
    %5525 = vmatprep.subr.mxu0 %v3406
    %5526 = vmatpush1.msra.mxu0 %v3405
    %5527 = vmatprep.subr.mxu0 %v3414
    %5528 = vmatpush1.msra.mxu0 %v3413
    %5529 = vmatprep.subr.mxu0 %v3422
    %5530 = vmatpush1.msra.mxu0 %v3421
    %5531 = vmatprep.subr.mxu0 %v3430
    %5532 = vmatpush1.msra.mxu0 %v3429
    %5533 = vmatprep.mubr.f32.mxu0 %v2096
    %5534 = vmatmul.mubr.f32.gmra.mrb[0].mxu0 %v2095
    %v5535 = vpop.f32.mrb[0].mxu0
    %v5536 = vadd.f32 0.0, %v5535
    %v5537 = vpop.f32.mrb[0].mxu0
    %v5538 = vadd.f32 0.0, %v5537
    %5539 = vmatprep.mubr.f32.mxu0 %v2100
    %5540 = vmatmul.mubr.f32.gmra.mrb[0].mxu0 %v2099
    %v5541 = vpop.f32.mrb[0].mxu0
    %v5542 = vadd.f32 0.0, %v5541
    %v5543 = vpop.f32.mrb[0].mxu0
    %v5544 = vadd.f32 0.0, %v5543
    %5545 = vmatprep.mubr.f32.mxu0 %v2104
    %5546 = vmatmul.mubr.f32.gmra.mrb[0].mxu0 %v2103
    %v5547 = vpop.f32.mrb[0].mxu0
    %v5548 = vadd.f32 0.0, %v5547
    %v5549 = vpop.f32.mrb[0].mxu0
    %v5550 = vadd.f32 0.0, %v5549
    %5551 = vmatprep.mubr.f32.mxu0 %v2108
    %5552 = vmatmul.mubr.f32.gmra.mrb[0].mxu0 %v2107
    %v5553 = vpop.f32.mrb[0].mxu0
    %v5554 = vadd.f32 0.0, %v5553
    %v5555 = vpop.f32.mrb[0].mxu0
    %v5556 = vadd.f32 0.0, %v5555
    %5557 = vmatprep.mubr.f32.mxu0 %v2112
    %5558 = vmatmul.mubr.f32.gmra.mrb[0].mxu0 %v2111
    %v5559 = vpop.f32.mrb[0].mxu0
    %v5560 = vadd.f32 0.0, %v5559
    %v5561 = vpop.f32.mrb[0].mxu0
    %v5562 = vadd.f32 0.0, %v5561
    %5563 = vmatprep.mubr.f32.mxu0 %v2116
    %5564 = vmatmul.mubr.f32.gmra.mrb[0].mxu0 %v2115
    %v5565 = vpop.f32.mrb[0].mxu0
    %v5566 = vadd.f32 0.0, %v5565
    %v5567 = vpop.f32.mrb[0].mxu0
    %v5568 = vadd.f32 0.0, %v5567
    %5569 = vmatprep.mubr.f32.mxu0 %v2120
    %5570 = vmatmul.mubr.f32.gmra.mrb[0].mxu0 %v2119
    %v5571 = vpop.f32.mrb[0].mxu0
    %v5572 = vadd.f32 0.0, %v5571
    %v5573 = vpop.f32.mrb[0].mxu0
    %v5574 = vadd.f32 0.0, %v5573
    %5575 = vmatprep.mubr.f32.mxu0 %v2124
    %5576 = vmatmul.mubr.f32.gmra.mrb[0].mxu0 %v2123
    %v5577 = vpop.f32.mrb[0].mxu0
    %v5578 = vpop.f32.mrb[0].mxu0
    %5579 = vdwg.mxu0
    %5580 = vmatprep.subr.mxu0 %v3438
    %5581 = vmatpush1.msra.mxu0 %v3437
    %5582 = vmatprep.subr.mxu0 %v3446
    %5583 = vmatpush1.msra.mxu0 %v3445
    %5584 = vmatprep.subr.mxu0 %v3454
    %5585 = vmatpush1.msra.mxu0 %v3453
    %5586 = vmatprep.subr.mxu0 %v3462
    %5587 = vmatpush1.msra.mxu0 %v3461
    %5588 = vmatprep.subr.mxu0 %v3470
    %5589 = vmatpush1.msra.mxu0 %v3469
    %5590 = vmatprep.subr.mxu0 %v3478
    %5591 = vmatpush1.msra.mxu0 %v3477
    %5592 = vmatprep.subr.mxu0 %v3486
    %5593 = vmatpush1.msra.mxu0 %v3485
    %5594 = vmatprep.subr.mxu0 %v3494
    %5595 = vmatpush1.msra.mxu0 %v3493
    %5596 = vmatprep.subr.mxu0 %v3502
    %5597 = vmatpush1.msra.mxu0 %v3501
    %5598 = vmatprep.subr.mxu0 %v3510
    %5599 = vmatpush1.msra.mxu0 %v3509
    %5600 = vmatprep.subr.mxu0 %v3518
    %5601 = vmatpush1.msra.mxu0 %v3517
    %5602 = vmatprep.subr.mxu0 %v3526
    %5603 = vmatpush1.msra.mxu0 %v3525
    %5604 = vmatprep.subr.mxu0 %v3534
    %5605 = vmatpush1.msra.mxu0 %v3533
    %5606 = vmatprep.subr.mxu0 %v3542
    %5607 = vmatpush1.msra.mxu0 %v3541
    %5608 = vmatprep.subr.mxu0 %v3550
    %5609 = vmatpush1.msra.mxu0 %v3549
    %5610 = vmatprep.subr.mxu0 %v3558
    %5611 = vmatpush1.msra.mxu0 %v3557
    %5612 = vmatprep.subr.mxu0 %v3566
    %5613 = vmatpush1.msra.mxu0 %v3565
    %5614 = vmatprep.subr.mxu0 %v3574
    %5615 = vmatpush1.msra.mxu0 %v3573
    %5616 = vmatprep.subr.mxu0 %v3582
    %5617 = vmatpush1.msra.mxu0 %v3581
    %5618 = vmatprep.subr.mxu0 %v3590
    %5619 = vmatpush1.msra.mxu0 %v3589
    %5620 = vmatprep.subr.mxu0 %v3598
    %5621 = vmatpush1.msra.mxu0 %v3597
    %5622 = vmatprep.subr.mxu0 %v3606
    %5623 = vmatpush1.msra.mxu0 %v3605
    %5624 = vmatprep.subr.mxu0 %v3614
    %5625 = vmatpush1.msra.mxu0 %v3613
    %5626 = vmatprep.subr.mxu0 %v3622
    %5627 = vmatpush1.msra.mxu0 %v3621
    %5628 = vmatprep.subr.mxu0 %v3630
    %5629 = vmatpush1.msra.mxu0 %v3629
    %5630 = vmatprep.subr.mxu0 %v3638
    %5631 = vmatpush1.msra.mxu0 %v3637
    %5632 = vmatprep.subr.mxu0 %v3646
    %5633 = vmatpush1.msra.mxu0 %v3645
    %5634 = vmatprep.subr.mxu0 %v3654
    %5635 = vmatpush1.msra.mxu0 %v3653
    %5636 = vmatprep.subr.mxu0 %v3662
    %5637 = vmatpush1.msra.mxu0 %v3661
    %5638 = vmatprep.subr.mxu0 %v3670
    %5639 = vmatpush1.msra.mxu0 %v3669
    %5640 = vmatprep.subr.mxu0 %v3678
    %5641 = vmatpush1.msra.mxu0 %v3677
    %5642 = vmatprep.subr.mxu0 %v3686
    %5643 = vmatpush1.msra.mxu0 %v3685
    %5644 = vmatprep.mubr.f32.mxu0 %v2098
    %5645 = vmatmul.mubr.f32.gmra.mrb[0].mxu0 %v2097
    %v5646 = vpop.f32.mrb[0].mxu0
    %v5647 = vadd.f32 %v5536, %v5646
    %v5648 = vpop.f32.mrb[0].mxu0
    %v5649 = vadd.f32 %v5538, %v5648
    %5650 = vmatprep.mubr.f32.mxu0 %v2102
    %5651 = vmatmul.mubr.f32.gmra.mrb[0].mxu0 %v2101
    %v5652 = vpop.f32.mrb[0].mxu0
    %v5653 = vadd.f32 %v5542, %v5652
    %v5654 = vpop.f32.mrb[0].mxu0
    %v5655 = vadd.f32 %v5544, %v5654
    %5656 = vmatprep.mubr.f32.mxu0 %v2106
    %5657 = vmatmul.mubr.f32.gmra.mrb[0].mxu0 %v2105
    %v5658 = vpop.f32.mrb[0].mxu0
    %v5659 = vadd.f32 %v5548, %v5658
    %v5660 = vpop.f32.mrb[0].mxu0
    %v5661 = vadd.f32 %v5550, %v5660
    %5662 = vmatprep.mubr.f32.mxu0 %v2110
    %5663 = vmatmul.mubr.f32.gmra.mrb[0].mxu0 %v2109
    %v5664 = vpop.f32.mrb[0].mxu0
    %v5665 = vadd.f32 %v5554, %v5664
    %v5666 = vpop.f32.mrb[0].mxu0
    %v5667 = vadd.f32 %v5556, %v5666
    %5668 = vmatprep.mubr.f32.mxu0 %v2114
    %5669 = vmatmul.mubr.f32.gmra.mrb[0].mxu0 %v2113
    %v5670 = vpop.f32.mrb[0].mxu0
    %v5671 = vadd.f32 %v5560, %v5670
    %v5672 = vpop.f32.mrb[0].mxu0
    %v5673 = vadd.f32 %v5562, %v5672
    %5674 = vmatprep.mubr.f32.mxu0 %v2118
    %5675 = vmatmul.mubr.f32.gmra.mrb[0].mxu0 %v2117
    %v5676 = vpop.f32.mrb[0].mxu0
    %v5677 = vadd.f32 %v5566, %v5676
    %v5678 = vpop.f32.mrb[0].mxu0
    %v5679 = vadd.f32 %v5568, %v5678
    %5680 = vmatprep.mubr.f32.mxu0 %v2122
    %5681 = vmatmul.mubr.f32.gmra.mrb[0].mxu0 %v2121
    %v5682 = vpop.f32.mrb[0].mxu0
    %v5683 = vadd.f32 %v5572, %v5682
    %v5684 = vpop.f32.mrb[0].mxu0
    %v5685 = vadd.f32 %v5574, %v5684
    %5686 = vmatprep.mubr.f32.mxu0 %v2126
    %5687 = vmatmul.mubr.f32.gmra.mrb[0].mxu0 %v2125
    %v5688 = vpop.f32.mrb[0].mxu0
    %v5689 = vpop.f32.mrb[0].mxu0
    %5690 = vdwg.mxu0
    %5691 = vmatprep.subr.mxu0 %v3184
    %5692 = vmatpush1.msra.mxu0 %v3183
    %5693 = vmatprep.subr.mxu0 %v3192
    %5694 = vmatpush1.msra.mxu0 %v3191
    %5695 = vmatprep.subr.mxu0 %v3200
    %5696 = vmatpush1.msra.mxu0 %v3199
    %5697 = vmatprep.subr.mxu0 %v3208
    %5698 = vmatpush1.msra.mxu0 %v3207
    %5699 = vmatprep.subr.mxu0 %v3216
    %5700 = vmatpush1.msra.mxu0 %v3215
    %5701 = vmatprep.subr.mxu0 %v3224
    %5702 = vmatpush1.msra.mxu0 %v3223
    %5703 = vmatprep.subr.mxu0 %v3232
    %5704 = vmatpush1.msra.mxu0 %v3231
    %5705 = vmatprep.subr.mxu0 %v3240
    %5706 = vmatpush1.msra.mxu0 %v3239
    %5707 = vmatprep.subr.mxu0 %v3248
    %5708 = vmatpush1.msra.mxu0 %v3247
    %5709 = vmatprep.subr.mxu0 %v3256
    %5710 = vmatpush1.msra.mxu0 %v3255
    %5711 = vmatprep.subr.mxu0 %v3264
    %5712 = vmatpush1.msra.mxu0 %v3263
    %5713 = vmatprep.subr.mxu0 %v3272
    %5714 = vmatpush1.msra.mxu0 %v3271
    %5715 = vmatprep.subr.mxu0 %v3280
    %5716 = vmatpush1.msra.mxu0 %v3279
    %5717 = vmatprep.subr.mxu0 %v3288
    %5718 = vmatpush1.msra.mxu0 %v3287
    %5719 = vmatprep.subr.mxu0 %v3296
    %5720 = vmatpush1.msra.mxu0 %v3295
    %5721 = vmatprep.subr.mxu0 %v3304
    %5722 = vmatpush1.msra.mxu0 %v3303
    %5723 = vmatprep.subr.mxu0 %v3312
    %5724 = vmatpush1.msra.mxu0 %v3311
    %5725 = vmatprep.subr.mxu0 %v3320
    %5726 = vmatpush1.msra.mxu0 %v3319
    %5727 = vmatprep.subr.mxu0 %v3328
    %5728 = vmatpush1.msra.mxu0 %v3327
    %5729 = vmatprep.subr.mxu0 %v3336
    %5730 = vmatpush1.msra.mxu0 %v3335
    %5731 = vmatprep.subr.mxu0 %v3344
    %5732 = vmatpush1.msra.mxu0 %v3343
    %5733 = vmatprep.subr.mxu0 %v3352
    %5734 = vmatpush1.msra.mxu0 %v3351
    %5735 = vmatprep.subr.mxu0 %v3360
    %5736 = vmatpush1.msra.mxu0 %v3359
    %5737 = vmatprep.subr.mxu0 %v3368
    %5738 = vmatpush1.msra.mxu0 %v3367
    %5739 = vmatprep.subr.mxu0 %v3376
    %5740 = vmatpush1.msra.mxu0 %v3375
    %5741 = vmatprep.subr.mxu0 %v3384
    %5742 = vmatpush1.msra.mxu0 %v3383
    %5743 = vmatprep.subr.mxu0 %v3392
    %5744 = vmatpush1.msra.mxu0 %v3391
    %5745 = vmatprep.subr.mxu0 %v3400
    %5746 = vmatpush1.msra.mxu0 %v3399
    %5747 = vmatprep.subr.mxu0 %v3408
    %5748 = vmatpush1.msra.mxu0 %v3407
    %5749 = vmatprep.subr.mxu0 %v3416
    %5750 = vmatpush1.msra.mxu0 %v3415
    %5751 = vmatprep.subr.mxu0 %v3424
    %5752 = vmatpush1.msra.mxu0 %v3423
    %5753 = vmatprep.subr.mxu0 %v3432
    %5754 = vmatpush1.msra.mxu0 %v3431
    %5755 = vmatprep.mubr.f32.mxu0 %v2096
    %5756 = vmatmul.mubr.f32.gmra.mrb[0].mxu0 %v2095
    %v5757 = vpop.f32.mrb[0].mxu0
    %v5758 = vadd.f32 0.0, %v5757
    %v5759 = vpop.f32.mrb[0].mxu0
    %v5760 = vadd.f32 0.0, %v5759
    %5761 = vmatprep.mubr.f32.mxu0 %v2100
    %5762 = vmatmul.mubr.f32.gmra.mrb[0].mxu0 %v2099
    %v5763 = vpop.f32.mrb[0].mxu0
    %v5764 = vadd.f32 0.0, %v5763
    %v5765 = vpop.f32.mrb[0].mxu0
    %v5766 = vadd.f32 0.0, %v5765
    %5767 = vmatprep.mubr.f32.mxu0 %v2104
    %5768 = vmatmul.mubr.f32.gmra.mrb[0].mxu0 %v2103
    %v5769 = vpop.f32.mrb[0].mxu0
    %v5770 = vadd.f32 0.0, %v5769
    %v5771 = vpop.f32.mrb[0].mxu0
    %v5772 = vadd.f32 0.0, %v5771
    %5773 = vmatprep.mubr.f32.mxu0 %v2108
    %5774 = vmatmul.mubr.f32.gmra.mrb[0].mxu0 %v2107
    %v5775 = vpop.f32.mrb[0].mxu0
    %v5776 = vadd.f32 0.0, %v5775
    %v5777 = vpop.f32.mrb[0].mxu0
    %v5778 = vadd.f32 0.0, %v5777
    %5779 = vmatprep.mubr.f32.mxu0 %v2112
    %5780 = vmatmul.mubr.f32.gmra.mrb[0].mxu0 %v2111
    %v5781 = vpop.f32.mrb[0].mxu0
    %v5782 = vadd.f32 0.0, %v5781
    %v5783 = vpop.f32.mrb[0].mxu0
    %v5784 = vadd.f32 0.0, %v5783
    %5785 = vmatprep.mubr.f32.mxu0 %v2116
    %5786 = vmatmul.mubr.f32.gmra.mrb[0].mxu0 %v2115
    %v5787 = vpop.f32.mrb[0].mxu0
    %v5788 = vadd.f32 0.0, %v5787
    %v5789 = vpop.f32.mrb[0].mxu0
    %v5790 = vadd.f32 0.0, %v5789
    %5791 = vmatprep.mubr.f32.mxu0 %v2120
    %5792 = vmatmul.mubr.f32.gmra.mrb[0].mxu0 %v2119
    %v5793 = vpop.f32.mrb[0].mxu0
    %v5794 = vadd.f32 0.0, %v5793
    %v5795 = vpop.f32.mrb[0].mxu0
    %v5796 = vadd.f32 0.0, %v5795
    %5797 = vmatprep.mubr.f32.mxu0 %v2124
    %5798 = vmatmul.mubr.f32.gmra.mrb[0].mxu0 %v2123
    %v5799 = vpop.f32.mrb[0].mxu0
    %v5800 = vpop.f32.mrb[0].mxu0
    %5801 = vdwg.mxu0
    %5802 = vmatprep.subr.mxu0 %v3440
    %5803 = vmatpush1.msra.mxu0 %v3439
    %5804 = vmatprep.subr.mxu0 %v3448
    %5805 = vmatpush1.msra.mxu0 %v3447
    %5806 = vmatprep.subr.mxu0 %v3456
    %5807 = vmatpush1.msra.mxu0 %v3455
    %5808 = vmatprep.subr.mxu0 %v3464
    %5809 = vmatpush1.msra.mxu0 %v3463
    %5810 = vmatprep.subr.mxu0 %v3472
    %5811 = vmatpush1.msra.mxu0 %v3471
    %5812 = vmatprep.subr.mxu0 %v3480
    %5813 = vmatpush1.msra.mxu0 %v3479
    %5814 = vmatprep.subr.mxu0 %v3488
    %5815 = vmatpush1.msra.mxu0 %v3487
    %5816 = vmatprep.subr.mxu0 %v3496
    %5817 = vmatpush1.msra.mxu0 %v3495
    %5818 = vmatprep.subr.mxu0 %v3504
    %5819 = vmatpush1.msra.mxu0 %v3503
    %5820 = vmatprep.subr.mxu0 %v3512
    %5821 = vmatpush1.msra.mxu0 %v3511
    %5822 = vmatprep.subr.mxu0 %v3520
    %5823 = vmatpush1.msra.mxu0 %v3519
    %5824 = vmatprep.subr.mxu0 %v3528
    %5825 = vmatpush1.msra.mxu0 %v3527
    %5826 = vmatprep.subr.mxu0 %v3536
    %5827 = vmatpush1.msra.mxu0 %v3535
    %5828 = vmatprep.subr.mxu0 %v3544
    %5829 = vmatpush1.msra.mxu0 %v3543
    %5830 = vmatprep.subr.mxu0 %v3552
    %5831 = vmatpush1.msra.mxu0 %v3551
    %5832 = vmatprep.subr.mxu0 %v3560
    %5833 = vmatpush1.msra.mxu0 %v3559
    %5834 = vmatprep.subr.mxu0 %v3568
    %5835 = vmatpush1.msra.mxu0 %v3567
    %5836 = vmatprep.subr.mxu0 %v3576
    %5837 = vmatpush1.msra.mxu0 %v3575
    %5838 = vmatprep.subr.mxu0 %v3584
    %5839 = vmatpush1.msra.mxu0 %v3583
    %5840 = vmatprep.subr.mxu0 %v3592
    %5841 = vmatpush1.msra.mxu0 %v3591
    %5842 = vmatprep.subr.mxu0 %v3600
    %5843 = vmatpush1.msra.mxu0 %v3599
    %5844 = vmatprep.subr.mxu0 %v3608
    %5845 = vmatpush1.msra.mxu0 %v3607
    %5846 = vmatprep.subr.mxu0 %v3616
    %5847 = vmatpush1.msra.mxu0 %v3615
    %5848 = vmatprep.subr.mxu0 %v3624
    %5849 = vmatpush1.msra.mxu0 %v3623
    %5850 = vmatprep.subr.mxu0 %v3632
    %5851 = vmatpush1.msra.mxu0 %v3631
    %5852 = vmatprep.subr.mxu0 %v3640
    %5853 = vmatpush1.msra.mxu0 %v3639
    %5854 = vmatprep.subr.mxu0 %v3648
    %5855 = vmatpush1.msra.mxu0 %v3647
    %5856 = vmatprep.subr.mxu0 %v3656
    %5857 = vmatpush1.msra.mxu0 %v3655
    %5858 = vmatprep.subr.mxu0 %v3664
    %5859 = vmatpush1.msra.mxu0 %v3663
    %5860 = vmatprep.subr.mxu0 %v3672
    %5861 = vmatpush1.msra.mxu0 %v3671
    %5862 = vmatprep.subr.mxu0 %v3680
    %5863 = vmatpush1.msra.mxu0 %v3679
    %5864 = vmatprep.subr.mxu0 %v3688
    %5865 = vmatpush1.msra.mxu0 %v3687
    %5866 = vmatprep.mubr.f32.mxu0 %v2098
    %5867 = vmatmul.mubr.f32.gmra.mrb[0].mxu0 %v2097
    %v5868 = vpop.f32.mrb[0].mxu0
    %v5869 = vadd.f32 %v5758, %v5868
    %v5870 = vpop.f32.mrb[0].mxu0
    %v5871 = vadd.f32 %v5760, %v5870
    %5872 = vmatprep.mubr.f32.mxu0 %v2102
    %5873 = vmatmul.mubr.f32.gmra.mrb[0].mxu0 %v2101
    %v5874 = vpop.f32.mrb[0].mxu0
    %v5875 = vadd.f32 %v5764, %v5874
    %v5876 = vpop.f32.mrb[0].mxu0
    %v5877 = vadd.f32 %v5766, %v5876
    %5878 = vmatprep.mubr.f32.mxu0 %v2106
    %5879 = vmatmul.mubr.f32.gmra.mrb[0].mxu0 %v2105
    %v5880 = vpop.f32.mrb[0].mxu0
    %v5881 = vadd.f32 %v5770, %v5880
    %v5882 = vpop.f32.mrb[0].mxu0
    %v5883 = vadd.f32 %v5772, %v5882
    %5884 = vmatprep.mubr.f32.mxu0 %v2110
    %5885 = vmatmul.mubr.f32.gmra.mrb[0].mxu0 %v2109
    %v5886 = vpop.f32.mrb[0].mxu0
    %v5887 = vadd.f32 %v5776, %v5886
    %v5888 = vpop.f32.mrb[0].mxu0
    %v5889 = vadd.f32 %v5778, %v5888
    %5890 = vmatprep.mubr.f32.mxu0 %v2114
    %5891 = vmatmul.mubr.f32.gmra.mrb[0].mxu0 %v2113
    %v5892 = vpop.f32.mrb[0].mxu0
    %v5893 = vadd.f32 %v5782, %v5892
    %v5894 = vpop.f32.mrb[0].mxu0
    %v5895 = vadd.f32 %v5784, %v5894
    %5896 = vmatprep.mubr.f32.mxu0 %v2118
    %5897 = vmatmul.mubr.f32.gmra.mrb[0].mxu0 %v2117
    %v5898 = vpop.f32.mrb[0].mxu0
    %v5899 = vadd.f32 %v5788, %v5898
    %v5900 = vpop.f32.mrb[0].mxu0
    %v5901 = vadd.f32 %v5790, %v5900
    %5902 = vmatprep.mubr.f32.mxu0 %v2122
    %5903 = vmatmul.mubr.f32.gmra.mrb[0].mxu0 %v2121
    %v5904 = vpop.f32.mrb[0].mxu0
    %v5905 = vadd.f32 %v5794, %v5904
    %v5906 = vpop.f32.mrb[0].mxu0
    %v5907 = vadd.f32 %v5796, %v5906
    %5908 = vmatprep.mubr.f32.mxu0 %v2126
    %5909 = vmatmul.mubr.f32.gmra.mrb[0].mxu0 %v2125
    %v5910 = vpop.f32.mrb[0].mxu0
    %v5911 = vpop.f32.mrb[0].mxu0
    %5912 = vdwg.mxu0
    %5913 = vmatprep.subr.mxu0 %v3186
    %5914 = vmatpush1.msra.mxu0 %v3185
    %5915 = vmatprep.subr.mxu0 %v3194
    %5916 = vmatpush1.msra.mxu0 %v3193
    %5917 = vmatprep.subr.mxu0 %v3202
    %5918 = vmatpush1.msra.mxu0 %v3201
    %5919 = vmatprep.subr.mxu0 %v3210
    %5920 = vmatpush1.msra.mxu0 %v3209
    %5921 = vmatprep.subr.mxu0 %v3218
    %5922 = vmatpush1.msra.mxu0 %v3217
    %5923 = vmatprep.subr.mxu0 %v3226
    %5924 = vmatpush1.msra.mxu0 %v3225
    %5925 = vmatprep.subr.mxu0 %v3234
    %5926 = vmatpush1.msra.mxu0 %v3233
    %5927 = vmatprep.subr.mxu0 %v3242
    %5928 = vmatpush1.msra.mxu0 %v3241
    %5929 = vmatprep.subr.mxu0 %v3250
    %5930 = vmatpush1.msra.mxu0 %v3249
    %5931 = vmatprep.subr.mxu0 %v3258
    %5932 = vmatpush1.msra.mxu0 %v3257
    %5933 = vmatprep.subr.mxu0 %v3266
    %5934 = vmatpush1.msra.mxu0 %v3265
    %5935 = vmatprep.subr.mxu0 %v3274
    %5936 = vmatpush1.msra.mxu0 %v3273
    %5937 = vmatprep.subr.mxu0 %v3282
    %5938 = vmatpush1.msra.mxu0 %v3281
    %5939 = vmatprep.subr.mxu0 %v3290
    %5940 = vmatpush1.msra.mxu0 %v3289
    %5941 = vmatprep.subr.mxu0 %v3298
    %5942 = vmatpush1.msra.mxu0 %v3297
    %5943 = vmatprep.subr.mxu0 %v3306
    %5944 = vmatpush1.msra.mxu0 %v3305
    %5945 = vmatprep.subr.mxu0 %v3314
    %5946 = vmatpush1.msra.mxu0 %v3313
    %5947 = vmatprep.subr.mxu0 %v3322
    %5948 = vmatpush1.msra.mxu0 %v3321
    %5949 = vmatprep.subr.mxu0 %v3330
    %5950 = vmatpush1.msra.mxu0 %v3329
    %5951 = vmatprep.subr.mxu0 %v3338
    %5952 = vmatpush1.msra.mxu0 %v3337
    %5953 = vmatprep.subr.mxu0 %v3346
    %5954 = vmatpush1.msra.mxu0 %v3345
    %5955 = vmatprep.subr.mxu0 %v3354
    %5956 = vmatpush1.msra.mxu0 %v3353
    %5957 = vmatprep.subr.mxu0 %v3362
    %5958 = vmatpush1.msra.mxu0 %v3361
    %5959 = vmatprep.subr.mxu0 %v3370
    %5960 = vmatpush1.msra.mxu0 %v3369
    %5961 = vmatprep.subr.mxu0 %v3378
    %5962 = vmatpush1.msra.mxu0 %v3377
    %5963 = vmatprep.subr.mxu0 %v3386
    %5964 = vmatpush1.msra.mxu0 %v3385
    %5965 = vmatprep.subr.mxu0 %v3394
    %5966 = vmatpush1.msra.mxu0 %v3393
    %5967 = vmatprep.subr.mxu0 %v3402
    %5968 = vmatpush1.msra.mxu0 %v3401
    %5969 = vmatprep.subr.mxu0 %v3410
    %5970 = vmatpush1.msra.mxu0 %v3409
    %5971 = vmatprep.subr.mxu0 %v3418
    %5972 = vmatpush1.msra.mxu0 %v3417
    %5973 = vmatprep.subr.mxu0 %v3426
    %5974 = vmatpush1.msra.mxu0 %v3425
    %5975 = vmatprep.subr.mxu0 %v3434
    %5976 = vmatpush1.msra.mxu0 %v3433
    %5977 = vmatprep.mubr.f32.mxu0 %v2096
    %5978 = vmatmul.mubr.f32.gmra.mrb[0].mxu0 %v2095
    %v5979 = vpop.f32.mrb[0].mxu0
    %v5980 = vadd.f32 0.0, %v5979
    %v5981 = vpop.f32.mrb[0].mxu0
    %v5982 = vadd.f32 0.0, %v5981
    %5983 = vmatprep.mubr.f32.mxu0 %v2100
    %5984 = vmatmul.mubr.f32.gmra.mrb[0].mxu0 %v2099
    %v5985 = vpop.f32.mrb[0].mxu0
    %v5986 = vadd.f32 0.0, %v5985
    %v5987 = vpop.f32.mrb[0].mxu0
    %v5988 = vadd.f32 0.0, %v5987
    %5989 = vmatprep.mubr.f32.mxu0 %v2104
    %5990 = vmatmul.mubr.f32.gmra.mrb[0].mxu0 %v2103
    %v5991 = vpop.f32.mrb[0].mxu0
    %v5992 = vadd.f32 0.0, %v5991
    %v5993 = vpop.f32.mrb[0].mxu0
    %v5994 = vadd.f32 0.0, %v5993
    %5995 = vmatprep.mubr.f32.mxu0 %v2108
    %5996 = vmatmul.mubr.f32.gmra.mrb[0].mxu0 %v2107
    %v5997 = vpop.f32.mrb[0].mxu0
    %v5998 = vadd.f32 0.0, %v5997
    %v5999 = vpop.f32.mrb[0].mxu0
    %v6000 = vadd.f32 0.0, %v5999
    %6001 = vmatprep.mubr.f32.mxu0 %v2112
    %6002 = vmatmul.mubr.f32.gmra.mrb[0].mxu0 %v2111
    %v6003 = vpop.f32.mrb[0].mxu0
    %v6004 = vadd.f32 0.0, %v6003
    %v6005 = vpop.f32.mrb[0].mxu0
    %v6006 = vadd.f32 0.0, %v6005
    %6007 = vmatprep.mubr.f32.mxu0 %v2116
    %6008 = vmatmul.mubr.f32.gmra.mrb[0].mxu0 %v2115
    %v6009 = vpop.f32.mrb[0].mxu0
    %v6010 = vadd.f32 0.0, %v6009
    %v6011 = vpop.f32.mrb[0].mxu0
    %v6012 = vadd.f32 0.0, %v6011
    %6013 = vmatprep.mubr.f32.mxu0 %v2120
    %6014 = vmatmul.mubr.f32.gmra.mrb[0].mxu0 %v2119
    %v6015 = vpop.f32.mrb[0].mxu0
    %v6016 = vadd.f32 0.0, %v6015
    %v6017 = vpop.f32.mrb[0].mxu0
    %v6018 = vadd.f32 0.0, %v6017
    %6019 = vmatprep.mubr.f32.mxu0 %v2124
    %6020 = vmatmul.mubr.f32.gmra.mrb[0].mxu0 %v2123
    %v6021 = vpop.f32.mrb[0].mxu0
    %v6022 = vpop.f32.mrb[0].mxu0
    %6023 = vdwg.mxu0
    %6024 = vmatprep.subr.mxu0 %v3442
    %6025 = vmatpush1.msra.mxu0 %v3441
    %6026 = vmatprep.subr.mxu0 %v3450
    %6027 = vmatpush1.msra.mxu0 %v3449
    %6028 = vmatprep.subr.mxu0 %v3458
    %6029 = vmatpush1.msra.mxu0 %v3457
    %6030 = vmatprep.subr.mxu0 %v3466
    %6031 = vmatpush1.msra.mxu0 %v3465
    %6032 = vmatprep.subr.mxu0 %v3474
    %6033 = vmatpush1.msra.mxu0 %v3473
    %6034 = vmatprep.subr.mxu0 %v3482
    %6035 = vmatpush1.msra.mxu0 %v3481
    %6036 = vmatprep.subr.mxu0 %v3490
    %6037 = vmatpush1.msra.mxu0 %v3489
    %6038 = vmatprep.subr.mxu0 %v3498
    %6039 = vmatpush1.msra.mxu0 %v3497
    %6040 = vmatprep.subr.mxu0 %v3506
    %6041 = vmatpush1.msra.mxu0 %v3505
    %6042 = vmatprep.subr.mxu0 %v3514
    %6043 = vmatpush1.msra.mxu0 %v3513
    %6044 = vmatprep.subr.mxu0 %v3522
    %6045 = vmatpush1.msra.mxu0 %v3521
    %6046 = vmatprep.subr.mxu0 %v3530
    %6047 = vmatpush1.msra.mxu0 %v3529
    %6048 = vmatprep.subr.mxu0 %v3538
    %6049 = vmatpush1.msra.mxu0 %v3537
    %6050 = vmatprep.subr.mxu0 %v3546
    %6051 = vmatpush1.msra.mxu0 %v3545
    %6052 = vmatprep.subr.mxu0 %v3554
    %6053 = vmatpush1.msra.mxu0 %v3553
    %6054 = vmatprep.subr.mxu0 %v3562
    %6055 = vmatpush1.msra.mxu0 %v3561
    %6056 = vmatprep.subr.mxu0 %v3570
    %6057 = vmatpush1.msra.mxu0 %v3569
    %6058 = vmatprep.subr.mxu0 %v3578
    %6059 = vmatpush1.msra.mxu0 %v3577
    %6060 = vmatprep.subr.mxu0 %v3586
    %6061 = vmatpush1.msra.mxu0 %v3585
    %6062 = vmatprep.subr.mxu0 %v3594
    %6063 = vmatpush1.msra.mxu0 %v3593
    %6064 = vmatprep.subr.mxu0 %v3602
    %6065 = vmatpush1.msra.mxu0 %v3601
    %6066 = vmatprep.subr.mxu0 %v3610
    %6067 = vmatpush1.msra.mxu0 %v3609
    %6068 = vmatprep.subr.mxu0 %v3618
    %6069 = vmatpush1.msra.mxu0 %v3617
    %6070 = vmatprep.subr.mxu0 %v3626
    %6071 = vmatpush1.msra.mxu0 %v3625
    %6072 = vmatprep.subr.mxu0 %v3634
    %6073 = vmatpush1.msra.mxu0 %v3633
    %6074 = vmatprep.subr.mxu0 %v3642
    %6075 = vmatpush1.msra.mxu0 %v3641
    %6076 = vmatprep.subr.mxu0 %v3650
    %6077 = vmatpush1.msra.mxu0 %v3649
    %6078 = vmatprep.subr.mxu0 %v3658
    %6079 = vmatpush1.msra.mxu0 %v3657
    %6080 = vmatprep.subr.mxu0 %v3666
    %6081 = vmatpush1.msra.mxu0 %v3665
    %6082 = vmatprep.subr.mxu0 %v3674
    %6083 = vmatpush1.msra.mxu0 %v3673
    %6084 = vmatprep.subr.mxu0 %v3682
    %6085 = vmatpush1.msra.mxu0 %v3681
    %6086 = vmatprep.subr.mxu0 %v3690
    %6087 = vmatpush1.msra.mxu0 %v3689
    %6088 = vmatprep.mubr.f32.mxu0 %v2098
    %6089 = vmatmul.mubr.f32.gmra.mrb[0].mxu0 %v2097
    %v6090 = vpop.f32.mrb[0].mxu0
    %v6091 = vadd.f32 %v5980, %v6090
    %v6092 = vpop.f32.mrb[0].mxu0
    %v6093 = vadd.f32 %v5982, %v6092
    %6094 = vmatprep.mubr.f32.mxu0 %v2102
    %6095 = vmatmul.mubr.f32.gmra.mrb[0].mxu0 %v2101
    %v6096 = vpop.f32.mrb[0].mxu0
    %v6097 = vadd.f32 %v5986, %v6096
    %v6098 = vpop.f32.mrb[0].mxu0
    %v6099 = vadd.f32 %v5988, %v6098
    %6100 = vmatprep.mubr.f32.mxu0 %v2106
    %6101 = vmatmul.mubr.f32.gmra.mrb[0].mxu0 %v2105
    %v6102 = vpop.f32.mrb[0].mxu0
    %v6103 = vadd.f32 %v5992, %v6102
    %v6104 = vpop.f32.mrb[0].mxu0
    %v6105 = vadd.f32 %v5994, %v6104
    %6106 = vmatprep.mubr.f32.mxu0 %v2110
    %6107 = vmatmul.mubr.f32.gmra.mrb[0].mxu0 %v2109
    %v6108 = vpop.f32.mrb[0].mxu0
    %v6109 = vadd.f32 %v5998, %v6108
    %v6110 = vpop.f32.mrb[0].mxu0
    %v6111 = vadd.f32 %v6000, %v6110
    %6112 = vmatprep.mubr.f32.mxu0 %v2114
    %6113 = vmatmul.mubr.f32.gmra.mrb[0].mxu0 %v2113
    %v6114 = vpop.f32.mrb[0].mxu0
    %v6115 = vadd.f32 %v6004, %v6114
    %v6116 = vpop.f32.mrb[0].mxu0
    %v6117 = vadd.f32 %v6006, %v6116
    %6118 = vmatprep.mubr.f32.mxu0 %v2118
    %6119 = vmatmul.mubr.f32.gmra.mrb[0].mxu0 %v2117
    %v6120 = vpop.f32.mrb[0].mxu0
    %v6121 = vadd.f32 %v6010, %v6120
    %v6122 = vpop.f32.mrb[0].mxu0
    %v6123 = vadd.f32 %v6012, %v6122
    %6124 = vmatprep.mubr.f32.mxu0 %v2122
    %6125 = vmatmul.mubr.f32.gmra.mrb[0].mxu0 %v2121
    %v6126 = vpop.f32.mrb[0].mxu0
    %v6127 = vadd.f32 %v6016, %v6126
    %v6128 = vpop.f32.mrb[0].mxu0
    %v6129 = vadd.f32 %v6018, %v6128
    %6130 = vmatprep.mubr.f32.mxu0 %v2126
    %6131 = vmatmul.mubr.f32.gmra.mrb[0].mxu0 %v2125
    %v6132 = vpop.f32.mrb[0].mxu0
    %v6133 = vpop.f32.mrb[0].mxu0
    %6134 = vdwg.mxu0
    %6135 = vmatprep.subr.mxu0 %v3188
    %6136 = vmatpush1.msra.mxu0 %v3187
    %6137 = vmatprep.subr.mxu0 %v3196
    %6138 = vmatpush1.msra.mxu0 %v3195
    %6139 = vmatprep.subr.mxu0 %v3204
    %6140 = vmatpush1.msra.mxu0 %v3203
    %6141 = vmatprep.subr.mxu0 %v3212
    %6142 = vmatpush1.msra.mxu0 %v3211
    %6143 = vmatprep.subr.mxu0 %v3220
    %6144 = vmatpush1.msra.mxu0 %v3219
    %6145 = vmatprep.subr.mxu0 %v3228
    %6146 = vmatpush1.msra.mxu0 %v3227
    %6147 = vmatprep.subr.mxu0 %v3236
    %6148 = vmatpush1.msra.mxu0 %v3235
    %6149 = vmatprep.subr.mxu0 %v3244
    %6150 = vmatpush1.msra.mxu0 %v3243
    %6151 = vmatprep.subr.mxu0 %v3252
    %6152 = vmatpush1.msra.mxu0 %v3251
    %6153 = vmatprep.subr.mxu0 %v3260
    %6154 = vmatpush1.msra.mxu0 %v3259
    %6155 = vmatprep.subr.mxu0 %v3268
    %6156 = vmatpush1.msra.mxu0 %v3267
    %6157 = vmatprep.subr.mxu0 %v3276
    %6158 = vmatpush1.msra.mxu0 %v3275
    %6159 = vmatprep.subr.mxu0 %v3284
    %6160 = vmatpush1.msra.mxu0 %v3283
    %6161 = vmatprep.subr.mxu0 %v3292
    %6162 = vmatpush1.msra.mxu0 %v3291
    %6163 = vmatprep.subr.mxu0 %v3300
    %6164 = vmatpush1.msra.mxu0 %v3299
    %6165 = vmatprep.subr.mxu0 %v3308
    %6166 = vmatpush1.msra.mxu0 %v3307
    %6167 = vmatprep.subr.mxu0 %v3316
    %6168 = vmatpush1.msra.mxu0 %v3315
    %6169 = vmatprep.subr.mxu0 %v3324
    %6170 = vmatpush1.msra.mxu0 %v3323
    %6171 = vmatprep.subr.mxu0 %v3332
    %6172 = vmatpush1.msra.mxu0 %v3331
    %6173 = vmatprep.subr.mxu0 %v3340
    %6174 = vmatpush1.msra.mxu0 %v3339
    %6175 = vmatprep.subr.mxu0 %v3348
    %6176 = vmatpush1.msra.mxu0 %v3347
    %6177 = vmatprep.subr.mxu0 %v3356
    %6178 = vmatpush1.msra.mxu0 %v3355
    %6179 = vmatprep.subr.mxu0 %v3364
    %6180 = vmatpush1.msra.mxu0 %v3363
    %6181 = vmatprep.subr.mxu0 %v3372
    %6182 = vmatpush1.msra.mxu0 %v3371
    %6183 = vmatprep.subr.mxu0 %v3380
    %6184 = vmatpush1.msra.mxu0 %v3379
    %6185 = vmatprep.subr.mxu0 %v3388
    %6186 = vmatpush1.msra.mxu0 %v3387
    %6187 = vmatprep.subr.mxu0 %v3396
    %6188 = vmatpush1.msra.mxu0 %v3395
    %6189 = vmatprep.subr.mxu0 %v3404
    %6190 = vmatpush1.msra.mxu0 %v3403
    %6191 = vmatprep.subr.mxu0 %v3412
    %6192 = vmatpush1.msra.mxu0 %v3411
    %6193 = vmatprep.subr.mxu0 %v3420
    %6194 = vmatpush1.msra.mxu0 %v3419
    %6195 = vmatprep.subr.mxu0 %v3428
    %6196 = vmatpush1.msra.mxu0 %v3427
    %6197 = vmatprep.subr.mxu0 %v3436
    %6198 = vmatpush1.msra.mxu0 %v3435
    %6199 = vmatprep.mubr.f32.mxu0 %v2096
    %6200 = vmatmul.mubr.f32.gmra.mrb[0].mxu0 %v2095
    %v6201 = vpop.f32.mrb[0].mxu0
    %v6202 = vadd.f32 0.0, %v6201
    %v6203 = vpop.f32.mrb[0].mxu0
    %v6204 = vadd.f32 0.0, %v6203
    %6205 = vmatprep.mubr.f32.mxu0 %v2100
    %6206 = vmatmul.mubr.f32.gmra.mrb[0].mxu0 %v2099
    %v6207 = vpop.f32.mrb[0].mxu0
    %v6208 = vadd.f32 0.0, %v6207
    %v6209 = vpop.f32.mrb[0].mxu0
    %v6210 = vadd.f32 0.0, %v6209
    %6211 = vmatprep.mubr.f32.mxu0 %v2104
    %6212 = vmatmul.mubr.f32.gmra.mrb[0].mxu0 %v2103
    %v6213 = vpop.f32.mrb[0].mxu0
    %v6214 = vadd.f32 0.0, %v6213
    %v6215 = vpop.f32.mrb[0].mxu0
    %v6216 = vadd.f32 0.0, %v6215
    %6217 = vmatprep.mubr.f32.mxu0 %v2108
    %6218 = vmatmul.mubr.f32.gmra.mrb[0].mxu0 %v2107
    %v6219 = vpop.f32.mrb[0].mxu0
    %v6220 = vadd.f32 0.0, %v6219
    %v6221 = vpop.f32.mrb[0].mxu0
    %v6222 = vadd.f32 0.0, %v6221
    %6223 = vmatprep.mubr.f32.mxu0 %v2112
    %6224 = vmatmul.mubr.f32.gmra.mrb[0].mxu0 %v2111
    %v6225 = vpop.f32.mrb[0].mxu0
    %v6226 = vadd.f32 0.0, %v6225
    %v6227 = vpop.f32.mrb[0].mxu0
    %v6228 = vadd.f32 0.0, %v6227
    %6229 = vmatprep.mubr.f32.mxu0 %v2116
    %6230 = vmatmul.mubr.f32.gmra.mrb[0].mxu0 %v2115
    %v6231 = vpop.f32.mrb[0].mxu0
    %v6232 = vadd.f32 0.0, %v6231
    %v6233 = vpop.f32.mrb[0].mxu0
    %v6234 = vadd.f32 0.0, %v6233
    %6235 = vmatprep.mubr.f32.mxu0 %v2120
    %6236 = vmatmul.mubr.f32.gmra.mrb[0].mxu0 %v2119
    %v6237 = vpop.f32.mrb[0].mxu0
    %v6238 = vadd.f32 0.0, %v6237
    %v6239 = vpop.f32.mrb[0].mxu0
    %v6240 = vadd.f32 0.0, %v6239
    %6241 = vmatprep.mubr.f32.mxu0 %v2124
    %6242 = vmatmul.mubr.f32.gmra.mrb[0].mxu0 %v2123
    %v6243 = vpop.f32.mrb[0].mxu0
    %v6244 = vpop.f32.mrb[0].mxu0
    %6245 = vdwg.mxu0
    %6246 = vmatprep.subr.mxu0 %v3444
    %6247 = vmatpush1.msra.mxu0 %v3443
    %6248 = vmatprep.subr.mxu0 %v3452
    %6249 = vmatpush1.msra.mxu0 %v3451
    %6250 = vmatprep.subr.mxu0 %v3460
    %6251 = vmatpush1.msra.mxu0 %v3459
    %6252 = vmatprep.subr.mxu0 %v3468
    %6253 = vmatpush1.msra.mxu0 %v3467
    %6254 = vmatprep.subr.mxu0 %v3476
    %6255 = vmatpush1.msra.mxu0 %v3475
    %6256 = vmatprep.subr.mxu0 %v3484
    %6257 = vmatpush1.msra.mxu0 %v3483
    %6258 = vmatprep.subr.mxu0 %v3492
    %6259 = vmatpush1.msra.mxu0 %v3491
    %6260 = vmatprep.subr.mxu0 %v3500
    %6261 = vmatpush1.msra.mxu0 %v3499
    %6262 = vmatprep.subr.mxu0 %v3508
    %6263 = vmatpush1.msra.mxu0 %v3507
    %6264 = vmatprep.subr.mxu0 %v3516
    %6265 = vmatpush1.msra.mxu0 %v3515
    %6266 = vmatprep.subr.mxu0 %v3524
    %6267 = vmatpush1.msra.mxu0 %v3523
    %6268 = vmatprep.subr.mxu0 %v3532
    %6269 = vmatpush1.msra.mxu0 %v3531
    %6270 = vmatprep.subr.mxu0 %v3540
    %6271 = vmatpush1.msra.mxu0 %v3539
    %6272 = vmatprep.subr.mxu0 %v3548
    %6273 = vmatpush1.msra.mxu0 %v3547
    %6274 = vmatprep.subr.mxu0 %v3556
    %6275 = vmatpush1.msra.mxu0 %v3555
    %6276 = vmatprep.subr.mxu0 %v3564
    %6277 = vmatpush1.msra.mxu0 %v3563
    %6278 = vmatprep.subr.mxu0 %v3572
    %6279 = vmatpush1.msra.mxu0 %v3571
    %6280 = vmatprep.subr.mxu0 %v3580
    %6281 = vmatpush1.msra.mxu0 %v3579
    %6282 = vmatprep.subr.mxu0 %v3588
    %6283 = vmatpush1.msra.mxu0 %v3587
    %6284 = vmatprep.subr.mxu0 %v3596
    %6285 = vmatpush1.msra.mxu0 %v3595
    %6286 = vmatprep.subr.mxu0 %v3604
    %6287 = vmatpush1.msra.mxu0 %v3603
    %6288 = vmatprep.subr.mxu0 %v3612
    %6289 = vmatpush1.msra.mxu0 %v3611
    %6290 = vmatprep.subr.mxu0 %v3620
    %6291 = vmatpush1.msra.mxu0 %v3619
    %6292 = vmatprep.subr.mxu0 %v3628
    %6293 = vmatpush1.msra.mxu0 %v3627
    %6294 = vmatprep.subr.mxu0 %v3636
    %6295 = vmatpush1.msra.mxu0 %v3635
    %6296 = vmatprep.subr.mxu0 %v3644
    %6297 = vmatpush1.msra.mxu0 %v3643
    %6298 = vmatprep.subr.mxu0 %v3652
    %6299 = vmatpush1.msra.mxu0 %v3651
    %6300 = vmatprep.subr.mxu0 %v3660
    %6301 = vmatpush1.msra.mxu0 %v3659
    %6302 = vmatprep.subr.mxu0 %v3668
    %6303 = vmatpush1.msra.mxu0 %v3667
    %6304 = vmatprep.subr.mxu0 %v3676
    %6305 = vmatpush1.msra.mxu0 %v3675
    %6306 = vmatprep.subr.mxu0 %v3684
    %6307 = vmatpush1.msra.mxu0 %v3683
    %6308 = vmatprep.subr.mxu0 %v3692
    %6309 = vmatpush1.msra.mxu0 %v3691
    %6310 = vmatprep.mubr.f32.mxu0 %v2098
    %6311 = vmatmul.mubr.f32.gmra.mrb[0].mxu0 %v2097
    %v6312 = vpop.f32.mrb[0].mxu0
    %v6313 = vadd.f32 %v6202, %v6312
    %v6314 = vpop.f32.mrb[0].mxu0
    %v6315 = vadd.f32 %v6204, %v6314
    %6316 = vmatprep.mubr.f32.mxu0 %v2102
    %6317 = vmatmul.mubr.f32.gmra.mrb[0].mxu0 %v2101
    %v6318 = vpop.f32.mrb[0].mxu0
    %v6319 = vadd.f32 %v6208, %v6318
    %v6320 = vpop.f32.mrb[0].mxu0
    %v6321 = vadd.f32 %v6210, %v6320
    %6322 = vmatprep.mubr.f32.mxu0 %v2106
    %6323 = vmatmul.mubr.f32.gmra.mrb[0].mxu0 %v2105
    %v6324 = vpop.f32.mrb[0].mxu0
    %v6325 = vadd.f32 %v6214, %v6324
    %v6326 = vpop.f32.mrb[0].mxu0
    %v6327 = vadd.f32 %v6216, %v6326
    %6328 = vmatprep.mubr.f32.mxu0 %v2110
    %6329 = vmatmul.mubr.f32.gmra.mrb[0].mxu0 %v2109
    %v6330 = vpop.f32.mrb[0].mxu0
    %v6331 = vadd.f32 %v6220, %v6330
    %v6332 = vpop.f32.mrb[0].mxu0
    %v6333 = vadd.f32 %v6222, %v6332
    %6334 = vmatprep.mubr.f32.mxu0 %v2114
    %6335 = vmatmul.mubr.f32.gmra.mrb[0].mxu0 %v2113
    %v6336 = vpop.f32.mrb[0].mxu0
    %v6337 = vadd.f32 %v6226, %v6336
    %v6338 = vpop.f32.mrb[0].mxu0
    %v6339 = vadd.f32 %v6228, %v6338
    %6340 = vmatprep.mubr.f32.mxu0 %v2118
    %6341 = vmatmul.mubr.f32.gmra.mrb[0].mxu0 %v2117
    %v6342 = vpop.f32.mrb[0].mxu0
    %v6343 = vadd.f32 %v6232, %v6342
    %v6344 = vpop.f32.mrb[0].mxu0
    %v6345 = vadd.f32 %v6234, %v6344
    %6346 = vmatprep.mubr.f32.mxu0 %v2122
    %6347 = vmatmul.mubr.f32.gmra.mrb[0].mxu0 %v2121
    %v6348 = vpop.f32.mrb[0].mxu0
    %v6349 = vadd.f32 %v6238, %v6348
    %v6350 = vpop.f32.mrb[0].mxu0
    %v6351 = vadd.f32 %v6240, %v6350
    %6352 = vmatprep.mubr.f32.mxu0 %v2126
    %6353 = vmatmul.mubr.f32.gmra.mrb[0].mxu0 %v2125
    %v6354 = vpop.f32.mrb[0].mxu0
    %v6355 = vpop.f32.mrb[0].mxu0
    %6356 = vdwg.mxu0
    %v6357 = vadd.f32 %v4759, %v5647
    %v6358 = vadd.f32 %v4761, %v5649
    %v6359 = vadd.f32 %v4981, %v5869
    %v6360 = vadd.f32 %v4983, %v5871
    %v6361 = vadd.f32 %v5203, %v6091
    %v6362 = vadd.f32 %v5205, %v6093
    %v6363 = vadd.f32 %v5425, %v6313
    %v6364 = vadd.f32 %v5427, %v6315
    %v6365 = vadd.f32 %v4765, %v5653
    %v6366 = vadd.f32 %v4767, %v5655
    %v6367 = vadd.f32 %v4987, %v5875
    %v6368 = vadd.f32 %v4989, %v5877
    %v6369 = vadd.f32 %v5209, %v6097
    %v6370 = vadd.f32 %v5211, %v6099
    %v6371 = vadd.f32 %v5431, %v6319
    %v6372 = vadd.f32 %v5433, %v6321
    %v6373 = vadd.f32 %v4771, %v5659
    %v6374 = vadd.f32 %v4773, %v5661
    %v6375 = vadd.f32 %v4993, %v5881
    %v6376 = vadd.f32 %v4995, %v5883
    %v6377 = vadd.f32 %v5215, %v6103
    %v6378 = vadd.f32 %v5217, %v6105
    %v6379 = vadd.f32 %v5437, %v6325
    %v6380 = vadd.f32 %v5439, %v6327
    %v6381 = vadd.f32 %v4777, %v5665
    %v6382 = vadd.f32 %v4779, %v5667
    %v6383 = vadd.f32 %v4999, %v5887
    %v6384 = vadd.f32 %v5001, %v5889
    %v6385 = vadd.f32 %v5221, %v6109
    %v6386 = vadd.f32 %v5223, %v6111
    %v6387 = vadd.f32 %v5443, %v6331
    %v6388 = vadd.f32 %v5445, %v6333
    %v6389 = vadd.f32 %v4783, %v5671
    %v6390 = vadd.f32 %v4785, %v5673
    %v6391 = vadd.f32 %v5005, %v5893
    %v6392 = vadd.f32 %v5007, %v5895
    %v6393 = vadd.f32 %v5227, %v6115
    %v6394 = vadd.f32 %v5229, %v6117
    %v6395 = vadd.f32 %v5449, %v6337
    %v6396 = vadd.f32 %v5451, %v6339
    %v6397 = vadd.f32 %v4789, %v5677
    %v6398 = vadd.f32 %v4791, %v5679
    %v6399 = vadd.f32 %v5011, %v5899
    %v6400 = vadd.f32 %v5013, %v5901
    %v6401 = vadd.f32 %v5233, %v6121
    %v6402 = vadd.f32 %v5235, %v6123
    %v6403 = vadd.f32 %v5455, %v6343
    %v6404 = vadd.f32 %v5457, %v6345
    %v6405 = vadd.f32 %v4795, %v5683
    %v6406 = vadd.f32 %v4797, %v5685
    %v6407 = vadd.f32 %v5017, %v5905
    %v6408 = vadd.f32 %v5019, %v5907
    %v6409 = vadd.f32 %v5239, %v6127
    %v6410 = vadd.f32 %v5241, %v6129
    %v6411 = vadd.f32 %v5461, %v6349
    %v6412 = vadd.f32 %v5463, %v6351
    %6413 = vmatprep.subr.mxu0 %v2669
    %6414 = vmatpush1.msra.mxu0 %v2668
    %6415 = vmatprep.subr.mxu0 %v2677
    %6416 = vmatpush1.msra.mxu0 %v2676
    %6417 = vmatprep.subr.mxu0 %v2685
    %6418 = vmatpush1.msra.mxu0 %v2684
    %6419 = vmatprep.subr.mxu0 %v2693
    %6420 = vmatpush1.msra.mxu0 %v2692
    %6421 = vmatprep.subr.mxu0 %v2701
    %6422 = vmatpush1.msra.mxu0 %v2700
    %6423 = vmatprep.subr.mxu0 %v2709
    %6424 = vmatpush1.msra.mxu0 %v2708
    %6425 = vmatprep.subr.mxu0 %v2717
    %6426 = vmatpush1.msra.mxu0 %v2716
    %6427 = vmatprep.subr.mxu0 %v2725
    %6428 = vmatpush1.msra.mxu0 %v2724
    %6429 = vmatprep.subr.mxu0 %v2733
    %6430 = vmatpush1.msra.mxu0 %v2732
    %6431 = vmatprep.subr.mxu0 %v2741
    %6432 = vmatpush1.msra.mxu0 %v2740
    %6433 = vmatprep.subr.mxu0 %v2749
    %6434 = vmatpush1.msra.mxu0 %v2748
    %6435 = vmatprep.subr.mxu0 %v2757
    %6436 = vmatpush1.msra.mxu0 %v2756
    %6437 = vmatprep.subr.mxu0 %v2765
    %6438 = vmatpush1.msra.mxu0 %v2764
    %6439 = vmatprep.subr.mxu0 %v2773
    %6440 = vmatpush1.msra.mxu0 %v2772
    %6441 = vmatprep.subr.mxu0 %v2781
    %6442 = vmatpush1.msra.mxu0 %v2780
    %6443 = vmatprep.subr.mxu0 %v2789
    %6444 = vmatpush1.msra.mxu0 %v2788
    %6445 = vmatprep.subr.mxu0 %v2797
    %6446 = vmatpush1.msra.mxu0 %v2796
    %6447 = vmatprep.subr.mxu0 %v2805
    %6448 = vmatpush1.msra.mxu0 %v2804
    %6449 = vmatprep.subr.mxu0 %v2813
    %6450 = vmatpush1.msra.mxu0 %v2812
    %6451 = vmatprep.subr.mxu0 %v2821
    %6452 = vmatpush1.msra.mxu0 %v2820
    %6453 = vmatprep.subr.mxu0 %v2829
    %6454 = vmatpush1.msra.mxu0 %v2828
    %6455 = vmatprep.subr.mxu0 %v2837
    %6456 = vmatpush1.msra.mxu0 %v2836
    %6457 = vmatprep.subr.mxu0 %v2845
    %6458 = vmatpush1.msra.mxu0 %v2844
    %6459 = vmatprep.subr.mxu0 %v2853
    %6460 = vmatpush1.msra.mxu0 %v2852
    %6461 = vmatprep.subr.mxu0 %v2861
    %6462 = vmatpush1.msra.mxu0 %v2860
    %6463 = vmatprep.subr.mxu0 %v2869
    %6464 = vmatpush1.msra.mxu0 %v2868
    %6465 = vmatprep.subr.mxu0 %v2877
    %6466 = vmatpush1.msra.mxu0 %v2876
    %6467 = vmatprep.subr.mxu0 %v2885
    %6468 = vmatpush1.msra.mxu0 %v2884
    %6469 = vmatprep.subr.mxu0 %v2893
    %6470 = vmatpush1.msra.mxu0 %v2892
    %6471 = vmatprep.subr.mxu0 %v2901
    %6472 = vmatpush1.msra.mxu0 %v2900
    %6473 = vmatprep.subr.mxu0 %v2909
    %6474 = vmatpush1.msra.mxu0 %v2908
    %6475 = vmatprep.subr.mxu0 %v2917
    %6476 = vmatpush1.msra.mxu0 %v2916
    %6477 = vmatprep.mubr.f32.mxu0 %v2096
    %6478 = vmatmul.mubr.f32.gmra.mrb[0].mxu0 %v2095
    %v6479 = vpop.f32.mrb[0].mxu0
    %v6480 = vadd.f32 0.0, %v6479
    %v6481 = vpop.f32.mrb[0].mxu0
    %v6482 = vadd.f32 0.0, %v6481
    %6483 = vmatprep.mubr.f32.mxu0 %v2100
    %6484 = vmatmul.mubr.f32.gmra.mrb[0].mxu0 %v2099
    %v6485 = vpop.f32.mrb[0].mxu0
    %v6486 = vadd.f32 0.0, %v6485
    %v6487 = vpop.f32.mrb[0].mxu0
    %v6488 = vadd.f32 0.0, %v6487
    %6489 = vmatprep.mubr.f32.mxu0 %v2104
    %6490 = vmatmul.mubr.f32.gmra.mrb[0].mxu0 %v2103
    %v6491 = vpop.f32.mrb[0].mxu0
    %v6492 = vadd.f32 0.0, %v6491
    %v6493 = vpop.f32.mrb[0].mxu0
    %v6494 = vadd.f32 0.0, %v6493
    %6495 = vmatprep.mubr.f32.mxu0 %v2108
    %6496 = vmatmul.mubr.f32.gmra.mrb[0].mxu0 %v2107
    %v6497 = vpop.f32.mrb[0].mxu0
    %v6498 = vadd.f32 0.0, %v6497
    %v6499 = vpop.f32.mrb[0].mxu0
    %v6500 = vadd.f32 0.0, %v6499
    %6501 = vmatprep.mubr.f32.mxu0 %v2112
    %6502 = vmatmul.mubr.f32.gmra.mrb[0].mxu0 %v2111
    %v6503 = vpop.f32.mrb[0].mxu0
    %v6504 = vadd.f32 0.0, %v6503
    %v6505 = vpop.f32.mrb[0].mxu0
    %v6506 = vadd.f32 0.0, %v6505
    %6507 = vmatprep.mubr.f32.mxu0 %v2116
    %6508 = vmatmul.mubr.f32.gmra.mrb[0].mxu0 %v2115
    %v6509 = vpop.f32.mrb[0].mxu0
    %v6510 = vadd.f32 0.0, %v6509
    %v6511 = vpop.f32.mrb[0].mxu0
    %v6512 = vadd.f32 0.0, %v6511
    %6513 = vmatprep.mubr.f32.mxu0 %v2120
    %6514 = vmatmul.mubr.f32.gmra.mrb[0].mxu0 %v2119
    %v6515 = vpop.f32.mrb[0].mxu0
    %v6516 = vadd.f32 0.0, %v6515
    %v6517 = vpop.f32.mrb[0].mxu0
    %v6518 = vadd.f32 0.0, %v6517
    %6519 = vmatprep.mubr.f32.mxu0 %v2124
    %6520 = vmatmul.mubr.f32.gmra.mrb[0].mxu0 %v2123
    %v6521 = vpop.f32.mrb[0].mxu0
    %v6522 = vpop.f32.mrb[0].mxu0
    %6523 = vdwg.mxu0
    %6524 = vmatprep.subr.mxu0 %v2925
    %6525 = vmatpush1.msra.mxu0 %v2924
    %6526 = vmatprep.subr.mxu0 %v2933
    %6527 = vmatpush1.msra.mxu0 %v2932
    %6528 = vmatprep.subr.mxu0 %v2941
    %6529 = vmatpush1.msra.mxu0 %v2940
    %6530 = vmatprep.subr.mxu0 %v2949
    %6531 = vmatpush1.msra.mxu0 %v2948
    %6532 = vmatprep.subr.mxu0 %v2957
    %6533 = vmatpush1.msra.mxu0 %v2956
    %6534 = vmatprep.subr.mxu0 %v2965
    %6535 = vmatpush1.msra.mxu0 %v2964
    %6536 = vmatprep.subr.mxu0 %v2973
    %6537 = vmatpush1.msra.mxu0 %v2972
    %6538 = vmatprep.subr.mxu0 %v2981
    %6539 = vmatpush1.msra.mxu0 %v2980
    %6540 = vmatprep.subr.mxu0 %v2989
    %6541 = vmatpush1.msra.mxu0 %v2988
    %6542 = vmatprep.subr.mxu0 %v2997
    %6543 = vmatpush1.msra.mxu0 %v2996
    %6544 = vmatprep.subr.mxu0 %v3005
    %6545 = vmatpush1.msra.mxu0 %v3004
    %6546 = vmatprep.subr.mxu0 %v3013
    %6547 = vmatpush1.msra.mxu0 %v3012
    %6548 = vmatprep.subr.mxu0 %v3021
    %6549 = vmatpush1.msra.mxu0 %v3020
    %6550 = vmatprep.subr.mxu0 %v3029
    %6551 = vmatpush1.msra.mxu0 %v3028
    %6552 = vmatprep.subr.mxu0 %v3037
    %6553 = vmatpush1.msra.mxu0 %v3036
    %6554 = vmatprep.subr.mxu0 %v3045
    %6555 = vmatpush1.msra.mxu0 %v3044
    %6556 = vmatprep.subr.mxu0 %v3053
    %6557 = vmatpush1.msra.mxu0 %v3052
    %6558 = vmatprep.subr.mxu0 %v3061
    %6559 = vmatpush1.msra.mxu0 %v3060
    %6560 = vmatprep.subr.mxu0 %v3069
    %6561 = vmatpush1.msra.mxu0 %v3068
    %6562 = vmatprep.subr.mxu0 %v3077
    %6563 = vmatpush1.msra.mxu0 %v3076
    %6564 = vmatprep.subr.mxu0 %v3085
    %6565 = vmatpush1.msra.mxu0 %v3084
    %6566 = vmatprep.subr.mxu0 %v3093
    %6567 = vmatpush1.msra.mxu0 %v3092
    %6568 = vmatprep.subr.mxu0 %v3101
    %6569 = vmatpush1.msra.mxu0 %v3100
    %6570 = vmatprep.subr.mxu0 %v3109
    %6571 = vmatpush1.msra.mxu0 %v3108
    %6572 = vmatprep.subr.mxu0 %v3117
    %6573 = vmatpush1.msra.mxu0 %v3116
    %6574 = vmatprep.subr.mxu0 %v3125
    %6575 = vmatpush1.msra.mxu0 %v3124
    %6576 = vmatprep.subr.mxu0 %v3133
    %6577 = vmatpush1.msra.mxu0 %v3132
    %6578 = vmatprep.subr.mxu0 %v3141
    %6579 = vmatpush1.msra.mxu0 %v3140
    %6580 = vmatprep.subr.mxu0 %v3149
    %6581 = vmatpush1.msra.mxu0 %v3148
    %6582 = vmatprep.subr.mxu0 %v3157
    %6583 = vmatpush1.msra.mxu0 %v3156
    %6584 = vmatprep.subr.mxu0 %v3165
    %6585 = vmatpush1.msra.mxu0 %v3164
    %6586 = vmatprep.subr.mxu0 %v3173
    %6587 = vmatpush1.msra.mxu0 %v3172
    %6588 = vmatprep.mubr.f32.mxu0 %v2098
    %6589 = vmatmul.mubr.f32.gmra.mrb[0].mxu0 %v2097
    %v6590 = vpop.f32.mrb[0].mxu0
    %v6591 = vadd.f32 %v6480, %v6590
    %v6592 = vpop.f32.mrb[0].mxu0
    %v6593 = vadd.f32 %v6482, %v6592
    %6594 = vmatprep.mubr.f32.mxu0 %v2102
    %6595 = vmatmul.mubr.f32.gmra.mrb[0].mxu0 %v2101
    %v6596 = vpop.f32.mrb[0].mxu0
    %v6597 = vadd.f32 %v6486, %v6596
    %v6598 = vpop.f32.mrb[0].mxu0
    %v6599 = vadd.f32 %v6488, %v6598
    %6600 = vmatprep.mubr.f32.mxu0 %v2106
    %6601 = vmatmul.mubr.f32.gmra.mrb[0].mxu0 %v2105
    %v6602 = vpop.f32.mrb[0].mxu0
    %v6603 = vadd.f32 %v6492, %v6602
    %v6604 = vpop.f32.mrb[0].mxu0
    %v6605 = vadd.f32 %v6494, %v6604
    %6606 = vmatprep.mubr.f32.mxu0 %v2110
    %6607 = vmatmul.mubr.f32.gmra.mrb[0].mxu0 %v2109
    %v6608 = vpop.f32.mrb[0].mxu0
    %v6609 = vadd.f32 %v6498, %v6608
    %v6610 = vpop.f32.mrb[0].mxu0
    %v6611 = vadd.f32 %v6500, %v6610
    %6612 = vmatprep.mubr.f32.mxu0 %v2114
    %6613 = vmatmul.mubr.f32.gmra.mrb[0].mxu0 %v2113
    %v6614 = vpop.f32.mrb[0].mxu0
    %v6615 = vadd.f32 %v6504, %v6614
    %v6616 = vpop.f32.mrb[0].mxu0
    %v6617 = vadd.f32 %v6506, %v6616
    %6618 = vmatprep.mubr.f32.mxu0 %v2118
    %6619 = vmatmul.mubr.f32.gmra.mrb[0].mxu0 %v2117
    %v6620 = vpop.f32.mrb[0].mxu0
    %v6621 = vadd.f32 %v6510, %v6620
    %v6622 = vpop.f32.mrb[0].mxu0
    %v6623 = vadd.f32 %v6512, %v6622
    %6624 = vmatprep.mubr.f32.mxu0 %v2122
    %6625 = vmatmul.mubr.f32.gmra.mrb[0].mxu0 %v2121
    %v6626 = vpop.f32.mrb[0].mxu0
    %v6627 = vadd.f32 %v6516, %v6626
    %v6628 = vpop.f32.mrb[0].mxu0
    %v6629 = vadd.f32 %v6518, %v6628
    %6630 = vmatprep.mubr.f32.mxu0 %v2126
    %6631 = vmatmul.mubr.f32.gmra.mrb[0].mxu0 %v2125
    %v6632 = vpop.f32.mrb[0].mxu0
    %v6633 = vpop.f32.mrb[0].mxu0
    %6634 = vdwg.mxu0
    %6635 = vmatprep.subr.mxu0 %v2671
    %6636 = vmatpush1.msra.mxu0 %v2670
    %6637 = vmatprep.subr.mxu0 %v2679
    %6638 = vmatpush1.msra.mxu0 %v2678
    %6639 = vmatprep.subr.mxu0 %v2687
    %6640 = vmatpush1.msra.mxu0 %v2686
    %6641 = vmatprep.subr.mxu0 %v2695
    %6642 = vmatpush1.msra.mxu0 %v2694
    %6643 = vmatprep.subr.mxu0 %v2703
    %6644 = vmatpush1.msra.mxu0 %v2702
    %6645 = vmatprep.subr.mxu0 %v2711
    %6646 = vmatpush1.msra.mxu0 %v2710
    %6647 = vmatprep.subr.mxu0 %v2719
    %6648 = vmatpush1.msra.mxu0 %v2718
    %6649 = vmatprep.subr.mxu0 %v2727
    %6650 = vmatpush1.msra.mxu0 %v2726
    %6651 = vmatprep.subr.mxu0 %v2735
    %6652 = vmatpush1.msra.mxu0 %v2734
    %6653 = vmatprep.subr.mxu0 %v2743
    %6654 = vmatpush1.msra.mxu0 %v2742
    %6655 = vmatprep.subr.mxu0 %v2751
    %6656 = vmatpush1.msra.mxu0 %v2750
    %6657 = vmatprep.subr.mxu0 %v2759
    %6658 = vmatpush1.msra.mxu0 %v2758
    %6659 = vmatprep.subr.mxu0 %v2767
    %6660 = vmatpush1.msra.mxu0 %v2766
    %6661 = vmatprep.subr.mxu0 %v2775
    %6662 = vmatpush1.msra.mxu0 %v2774
    %6663 = vmatprep.subr.mxu0 %v2783
    %6664 = vmatpush1.msra.mxu0 %v2782
    %6665 = vmatprep.subr.mxu0 %v2791
    %6666 = vmatpush1.msra.mxu0 %v2790
    %6667 = vmatprep.subr.mxu0 %v2799
    %6668 = vmatpush1.msra.mxu0 %v2798
    %6669 = vmatprep.subr.mxu0 %v2807
    %6670 = vmatpush1.msra.mxu0 %v2806
    %6671 = vmatprep.subr.mxu0 %v2815
    %6672 = vmatpush1.msra.mxu0 %v2814
    %6673 = vmatprep.subr.mxu0 %v2823
    %6674 = vmatpush1.msra.mxu0 %v2822
    %6675 = vmatprep.subr.mxu0 %v2831
    %6676 = vmatpush1.msra.mxu0 %v2830
    %6677 = vmatprep.subr.mxu0 %v2839
    %6678 = vmatpush1.msra.mxu0 %v2838
    %6679 = vmatprep.subr.mxu0 %v2847
    %6680 = vmatpush1.msra.mxu0 %v2846
    %6681 = vmatprep.subr.mxu0 %v2855
    %6682 = vmatpush1.msra.mxu0 %v2854
    %6683 = vmatprep.subr.mxu0 %v2863
    %6684 = vmatpush1.msra.mxu0 %v2862
    %6685 = vmatprep.subr.mxu0 %v2871
    %6686 = vmatpush1.msra.mxu0 %v2870
    %6687 = vmatprep.subr.mxu0 %v2879
    %6688 = vmatpush1.msra.mxu0 %v2878
    %6689 = vmatprep.subr.mxu0 %v2887
    %6690 = vmatpush1.msra.mxu0 %v2886
    %6691 = vmatprep.subr.mxu0 %v2895
    %6692 = vmatpush1.msra.mxu0 %v2894
    %6693 = vmatprep.subr.mxu0 %v2903
    %6694 = vmatpush1.msra.mxu0 %v2902
    %6695 = vmatprep.subr.mxu0 %v2911
    %6696 = vmatpush1.msra.mxu0 %v2910
    %6697 = vmatprep.subr.mxu0 %v2919
    %6698 = vmatpush1.msra.mxu0 %v2918
    %6699 = vmatprep.mubr.f32.mxu0 %v2096
    %6700 = vmatmul.mubr.f32.gmra.mrb[0].mxu0 %v2095
    %v6701 = vpop.f32.mrb[0].mxu0
    %v6702 = vadd.f32 0.0, %v6701
    %v6703 = vpop.f32.mrb[0].mxu0
    %v6704 = vadd.f32 0.0, %v6703
    %6705 = vmatprep.mubr.f32.mxu0 %v2100
    %6706 = vmatmul.mubr.f32.gmra.mrb[0].mxu0 %v2099
    %v6707 = vpop.f32.mrb[0].mxu0
    %v6708 = vadd.f32 0.0, %v6707
    %v6709 = vpop.f32.mrb[0].mxu0
    %v6710 = vadd.f32 0.0, %v6709
    %6711 = vmatprep.mubr.f32.mxu0 %v2104
    %6712 = vmatmul.mubr.f32.gmra.mrb[0].mxu0 %v2103
    %v6713 = vpop.f32.mrb[0].mxu0
    %v6714 = vadd.f32 0.0, %v6713
    %v6715 = vpop.f32.mrb[0].mxu0
    %v6716 = vadd.f32 0.0, %v6715
    %6717 = vmatprep.mubr.f32.mxu0 %v2108
    %6718 = vmatmul.mubr.f32.gmra.mrb[0].mxu0 %v2107
    %v6719 = vpop.f32.mrb[0].mxu0
    %v6720 = vadd.f32 0.0, %v6719
    %v6721 = vpop.f32.mrb[0].mxu0
    %v6722 = vadd.f32 0.0, %v6721
    %6723 = vmatprep.mubr.f32.mxu0 %v2112
    %6724 = vmatmul.mubr.f32.gmra.mrb[0].mxu0 %v2111
    %v6725 = vpop.f32.mrb[0].mxu0
    %v6726 = vadd.f32 0.0, %v6725
    %v6727 = vpop.f32.mrb[0].mxu0
    %v6728 = vadd.f32 0.0, %v6727
    %6729 = vmatprep.mubr.f32.mxu0 %v2116
    %6730 = vmatmul.mubr.f32.gmra.mrb[0].mxu0 %v2115
    %v6731 = vpop.f32.mrb[0].mxu0
    %v6732 = vadd.f32 0.0, %v6731
    %v6733 = vpop.f32.mrb[0].mxu0
    %v6734 = vadd.f32 0.0, %v6733
    %6735 = vmatprep.mubr.f32.mxu0 %v2120
    %6736 = vmatmul.mubr.f32.gmra.mrb[0].mxu0 %v2119
    %v6737 = vpop.f32.mrb[0].mxu0
    %v6738 = vadd.f32 0.0, %v6737
    %v6739 = vpop.f32.mrb[0].mxu0
    %v6740 = vadd.f32 0.0, %v6739
    %6741 = vmatprep.mubr.f32.mxu0 %v2124
    %6742 = vmatmul.mubr.f32.gmra.mrb[0].mxu0 %v2123
    %v6743 = vpop.f32.mrb[0].mxu0
    %v6744 = vpop.f32.mrb[0].mxu0
    %6745 = vdwg.mxu0
    %6746 = vmatprep.subr.mxu0 %v2927
    %6747 = vmatpush1.msra.mxu0 %v2926
    %6748 = vmatprep.subr.mxu0 %v2935
    %6749 = vmatpush1.msra.mxu0 %v2934
    %6750 = vmatprep.subr.mxu0 %v2943
    %6751 = vmatpush1.msra.mxu0 %v2942
    %6752 = vmatprep.subr.mxu0 %v2951
    %6753 = vmatpush1.msra.mxu0 %v2950
    %6754 = vmatprep.subr.mxu0 %v2959
    %6755 = vmatpush1.msra.mxu0 %v2958
    %6756 = vmatprep.subr.mxu0 %v2967
    %6757 = vmatpush1.msra.mxu0 %v2966
    %6758 = vmatprep.subr.mxu0 %v2975
    %6759 = vmatpush1.msra.mxu0 %v2974
    %6760 = vmatprep.subr.mxu0 %v2983
    %6761 = vmatpush1.msra.mxu0 %v2982
    %6762 = vmatprep.subr.mxu0 %v2991
    %6763 = vmatpush1.msra.mxu0 %v2990
    %6764 = vmatprep.subr.mxu0 %v2999
    %6765 = vmatpush1.msra.mxu0 %v2998
    %6766 = vmatprep.subr.mxu0 %v3007
    %6767 = vmatpush1.msra.mxu0 %v3006
    %6768 = vmatprep.subr.mxu0 %v3015
    %6769 = vmatpush1.msra.mxu0 %v3014
    %6770 = vmatprep.subr.mxu0 %v3023
    %6771 = vmatpush1.msra.mxu0 %v3022
    %6772 = vmatprep.subr.mxu0 %v3031
    %6773 = vmatpush1.msra.mxu0 %v3030
    %6774 = vmatprep.subr.mxu0 %v3039
    %6775 = vmatpush1.msra.mxu0 %v3038
    %6776 = vmatprep.subr.mxu0 %v3047
    %6777 = vmatpush1.msra.mxu0 %v3046
    %6778 = vmatprep.subr.mxu0 %v3055
    %6779 = vmatpush1.msra.mxu0 %v3054
    %6780 = vmatprep.subr.mxu0 %v3063
    %6781 = vmatpush1.msra.mxu0 %v3062
    %6782 = vmatprep.subr.mxu0 %v3071
    %6783 = vmatpush1.msra.mxu0 %v3070
    %6784 = vmatprep.subr.mxu0 %v3079
    %6785 = vmatpush1.msra.mxu0 %v3078
    %6786 = vmatprep.subr.mxu0 %v3087
    %6787 = vmatpush1.msra.mxu0 %v3086
    %6788 = vmatprep.subr.mxu0 %v3095
    %6789 = vmatpush1.msra.mxu0 %v3094
    %6790 = vmatprep.subr.mxu0 %v3103
    %6791 = vmatpush1.msra.mxu0 %v3102
    %6792 = vmatprep.subr.mxu0 %v3111
    %6793 = vmatpush1.msra.mxu0 %v3110
    %6794 = vmatprep.subr.mxu0 %v3119
    %6795 = vmatpush1.msra.mxu0 %v3118
    %6796 = vmatprep.subr.mxu0 %v3127
    %6797 = vmatpush1.msra.mxu0 %v3126
    %6798 = vmatprep.subr.mxu0 %v3135
    %6799 = vmatpush1.msra.mxu0 %v3134
    %6800 = vmatprep.subr.mxu0 %v3143
    %6801 = vmatpush1.msra.mxu0 %v3142
    %6802 = vmatprep.subr.mxu0 %v3151
    %6803 = vmatpush1.msra.mxu0 %v3150
    %6804 = vmatprep.subr.mxu0 %v3159
    %6805 = vmatpush1.msra.mxu0 %v3158
    %6806 = vmatprep.subr.mxu0 %v3167
    %6807 = vmatpush1.msra.mxu0 %v3166
    %6808 = vmatprep.subr.mxu0 %v3175
    %6809 = vmatpush1.msra.mxu0 %v3174
    %6810 = vmatprep.mubr.f32.mxu0 %v2098
    %6811 = vmatmul.mubr.f32.gmra.mrb[0].mxu0 %v2097
    %v6812 = vpop.f32.mrb[0].mxu0
    %v6813 = vadd.f32 %v6702, %v6812
    %v6814 = vpop.f32.mrb[0].mxu0
    %v6815 = vadd.f32 %v6704, %v6814
    %6816 = vmatprep.mubr.f32.mxu0 %v2102
    %6817 = vmatmul.mubr.f32.gmra.mrb[0].mxu0 %v2101
    %v6818 = vpop.f32.mrb[0].mxu0
    %v6819 = vadd.f32 %v6708, %v6818
    %v6820 = vpop.f32.mrb[0].mxu0
    %v6821 = vadd.f32 %v6710, %v6820
    %6822 = vmatprep.mubr.f32.mxu0 %v2106
    %6823 = vmatmul.mubr.f32.gmra.mrb[0].mxu0 %v2105
    %v6824 = vpop.f32.mrb[0].mxu0
    %v6825 = vadd.f32 %v6714, %v6824
    %v6826 = vpop.f32.mrb[0].mxu0
    %v6827 = vadd.f32 %v6716, %v6826
    %6828 = vmatprep.mubr.f32.mxu0 %v2110
    %6829 = vmatmul.mubr.f32.gmra.mrb[0].mxu0 %v2109
    %v6830 = vpop.f32.mrb[0].mxu0
    %v6831 = vadd.f32 %v6720, %v6830
    %v6832 = vpop.f32.mrb[0].mxu0
    %v6833 = vadd.f32 %v6722, %v6832
    %6834 = vmatprep.mubr.f32.mxu0 %v2114
    %6835 = vmatmul.mubr.f32.gmra.mrb[0].mxu0 %v2113
    %v6836 = vpop.f32.mrb[0].mxu0
    %v6837 = vadd.f32 %v6726, %v6836
    %v6838 = vpop.f32.mrb[0].mxu0
    %v6839 = vadd.f32 %v6728, %v6838
    %6840 = vmatprep.mubr.f32.mxu0 %v2118
    %6841 = vmatmul.mubr.f32.gmra.mrb[0].mxu0 %v2117
    %v6842 = vpop.f32.mrb[0].mxu0
    %v6843 = vadd.f32 %v6732, %v6842
    %v6844 = vpop.f32.mrb[0].mxu0
    %v6845 = vadd.f32 %v6734, %v6844
    %6846 = vmatprep.mubr.f32.mxu0 %v2122
    %6847 = vmatmul.mubr.f32.gmra.mrb[0].mxu0 %v2121
    %v6848 = vpop.f32.mrb[0].mxu0
    %v6849 = vadd.f32 %v6738, %v6848
    %v6850 = vpop.f32.mrb[0].mxu0
    %v6851 = vadd.f32 %v6740, %v6850
    %6852 = vmatprep.mubr.f32.mxu0 %v2126
    %6853 = vmatmul.mubr.f32.gmra.mrb[0].mxu0 %v2125
    %v6854 = vpop.f32.mrb[0].mxu0
    %v6855 = vpop.f32.mrb[0].mxu0
    %6856 = vdwg.mxu0
    %6857 = vmatprep.subr.mxu0 %v2673
    %6858 = vmatpush1.msra.mxu0 %v2672
    %6859 = vmatprep.subr.mxu0 %v2681
    %6860 = vmatpush1.msra.mxu0 %v2680
    %6861 = vmatprep.subr.mxu0 %v2689
    %6862 = vmatpush1.msra.mxu0 %v2688
    %6863 = vmatprep.subr.mxu0 %v2697
    %6864 = vmatpush1.msra.mxu0 %v2696
    %6865 = vmatprep.subr.mxu0 %v2705
    %6866 = vmatpush1.msra.mxu0 %v2704
    %6867 = vmatprep.subr.mxu0 %v2713
    %6868 = vmatpush1.msra.mxu0 %v2712
    %6869 = vmatprep.subr.mxu0 %v2721
    %6870 = vmatpush1.msra.mxu0 %v2720
    %6871 = vmatprep.subr.mxu0 %v2729
    %6872 = vmatpush1.msra.mxu0 %v2728
    %6873 = vmatprep.subr.mxu0 %v2737
    %6874 = vmatpush1.msra.mxu0 %v2736
    %6875 = vmatprep.subr.mxu0 %v2745
    %6876 = vmatpush1.msra.mxu0 %v2744
    %6877 = vmatprep.subr.mxu0 %v2753
    %6878 = vmatpush1.msra.mxu0 %v2752
    %6879 = vmatprep.subr.mxu0 %v2761
    %6880 = vmatpush1.msra.mxu0 %v2760
    %6881 = vmatprep.subr.mxu0 %v2769
    %6882 = vmatpush1.msra.mxu0 %v2768
    %6883 = vmatprep.subr.mxu0 %v2777
    %6884 = vmatpush1.msra.mxu0 %v2776
    %6885 = vmatprep.subr.mxu0 %v2785
    %6886 = vmatpush1.msra.mxu0 %v2784
    %6887 = vmatprep.subr.mxu0 %v2793
    %6888 = vmatpush1.msra.mxu0 %v2792
    %6889 = vmatprep.subr.mxu0 %v2801
    %6890 = vmatpush1.msra.mxu0 %v2800
    %6891 = vmatprep.subr.mxu0 %v2809
    %6892 = vmatpush1.msra.mxu0 %v2808
    %6893 = vmatprep.subr.mxu0 %v2817
    %6894 = vmatpush1.msra.mxu0 %v2816
    %6895 = vmatprep.subr.mxu0 %v2825
    %6896 = vmatpush1.msra.mxu0 %v2824
    %6897 = vmatprep.subr.mxu0 %v2833
    %6898 = vmatpush1.msra.mxu0 %v2832
    %6899 = vmatprep.subr.mxu0 %v2841
    %6900 = vmatpush1.msra.mxu0 %v2840
    %6901 = vmatprep.subr.mxu0 %v2849
    %6902 = vmatpush1.msra.mxu0 %v2848
    %6903 = vmatprep.subr.mxu0 %v2857
    %6904 = vmatpush1.msra.mxu0 %v2856
    %6905 = vmatprep.subr.mxu0 %v2865
    %6906 = vmatpush1.msra.mxu0 %v2864
    %6907 = vmatprep.subr.mxu0 %v2873
    %6908 = vmatpush1.msra.mxu0 %v2872
    %6909 = vmatprep.subr.mxu0 %v2881
    %6910 = vmatpush1.msra.mxu0 %v2880
    %6911 = vmatprep.subr.mxu0 %v2889
    %6912 = vmatpush1.msra.mxu0 %v2888
    %6913 = vmatprep.subr.mxu0 %v2897
    %6914 = vmatpush1.msra.mxu0 %v2896
    %6915 = vmatprep.subr.mxu0 %v2905
    %6916 = vmatpush1.msra.mxu0 %v2904
    %6917 = vmatprep.subr.mxu0 %v2913
    %6918 = vmatpush1.msra.mxu0 %v2912
    %6919 = vmatprep.subr.mxu0 %v2921
    %6920 = vmatpush1.msra.mxu0 %v2920
    %6921 = vmatprep.mubr.f32.mxu0 %v2096
    %6922 = vmatmul.mubr.f32.gmra.mrb[0].mxu0 %v2095
    %v6923 = vpop.f32.mrb[0].mxu0
    %v6924 = vadd.f32 0.0, %v6923
    %v6925 = vpop.f32.mrb[0].mxu0
    %v6926 = vadd.f32 0.0, %v6925
    %6927 = vmatprep.mubr.f32.mxu0 %v2100
    %6928 = vmatmul.mubr.f32.gmra.mrb[0].mxu0 %v2099
    %v6929 = vpop.f32.mrb[0].mxu0
    %v6930 = vadd.f32 0.0, %v6929
    %v6931 = vpop.f32.mrb[0].mxu0
    %v6932 = vadd.f32 0.0, %v6931
    %6933 = vmatprep.mubr.f32.mxu0 %v2104
    %6934 = vmatmul.mubr.f32.gmra.mrb[0].mxu0 %v2103
    %v6935 = vpop.f32.mrb[0].mxu0
    %v6936 = vadd.f32 0.0, %v6935
    %v6937 = vpop.f32.mrb[0].mxu0
    %v6938 = vadd.f32 0.0, %v6937
    %6939 = vmatprep.mubr.f32.mxu0 %v2108
    %6940 = vmatmul.mubr.f32.gmra.mrb[0].mxu0 %v2107
    %v6941 = vpop.f32.mrb[0].mxu0
    %v6942 = vadd.f32 0.0, %v6941
    %v6943 = vpop.f32.mrb[0].mxu0
    %v6944 = vadd.f32 0.0, %v6943
    %6945 = vmatprep.mubr.f32.mxu0 %v2112
    %6946 = vmatmul.mubr.f32.gmra.mrb[0].mxu0 %v2111
    %v6947 = vpop.f32.mrb[0].mxu0
    %v6948 = vadd.f32 0.0, %v6947
    %v6949 = vpop.f32.mrb[0].mxu0
    %v6950 = vadd.f32 0.0, %v6949
    %6951 = vmatprep.mubr.f32.mxu0 %v2116
    %6952 = vmatmul.mubr.f32.gmra.mrb[0].mxu0 %v2115
    %v6953 = vpop.f32.mrb[0].mxu0
    %v6954 = vadd.f32 0.0, %v6953
    %v6955 = vpop.f32.mrb[0].mxu0
    %v6956 = vadd.f32 0.0, %v6955
    %6957 = vmatprep.mubr.f32.mxu0 %v2120
    %6958 = vmatmul.mubr.f32.gmra.mrb[0].mxu0 %v2119
    %v6959 = vpop.f32.mrb[0].mxu0
    %v6960 = vadd.f32 0.0, %v6959
    %v6961 = vpop.f32.mrb[0].mxu0
    %v6962 = vadd.f32 0.0, %v6961
    %6963 = vmatprep.mubr.f32.mxu0 %v2124
    %6964 = vmatmul.mubr.f32.gmra.mrb[0].mxu0 %v2123
    %v6965 = vpop.f32.mrb[0].mxu0
    %v6966 = vpop.f32.mrb[0].mxu0
    %6967 = vdwg.mxu0
    %6968 = vmatprep.subr.mxu0 %v2929
    %6969 = vmatpush1.msra.mxu0 %v2928
    %6970 = vmatprep.subr.mxu0 %v2937
    %6971 = vmatpush1.msra.mxu0 %v2936
    %6972 = vmatprep.subr.mxu0 %v2945
    %6973 = vmatpush1.msra.mxu0 %v2944
    %6974 = vmatprep.subr.mxu0 %v2953
    %6975 = vmatpush1.msra.mxu0 %v2952
    %6976 = vmatprep.subr.mxu0 %v2961
    %6977 = vmatpush1.msra.mxu0 %v2960
    %6978 = vmatprep.subr.mxu0 %v2969
    %6979 = vmatpush1.msra.mxu0 %v2968
    %6980 = vmatprep.subr.mxu0 %v2977
    %6981 = vmatpush1.msra.mxu0 %v2976
    %6982 = vmatprep.subr.mxu0 %v2985
    %6983 = vmatpush1.msra.mxu0 %v2984
    %6984 = vmatprep.subr.mxu0 %v2993
    %6985 = vmatpush1.msra.mxu0 %v2992
    %6986 = vmatprep.subr.mxu0 %v3001
    %6987 = vmatpush1.msra.mxu0 %v3000
    %6988 = vmatprep.subr.mxu0 %v3009
    %6989 = vmatpush1.msra.mxu0 %v3008
    %6990 = vmatprep.subr.mxu0 %v3017
    %6991 = vmatpush1.msra.mxu0 %v3016
    %6992 = vmatprep.subr.mxu0 %v3025
    %6993 = vmatpush1.msra.mxu0 %v3024
    %6994 = vmatprep.subr.mxu0 %v3033
    %6995 = vmatpush1.msra.mxu0 %v3032
    %6996 = vmatprep.subr.mxu0 %v3041
    %6997 = vmatpush1.msra.mxu0 %v3040
    %6998 = vmatprep.subr.mxu0 %v3049
    %6999 = vmatpush1.msra.mxu0 %v3048
    %7000 = vmatprep.subr.mxu0 %v3057
    %7001 = vmatpush1.msra.mxu0 %v3056
    %7002 = vmatprep.subr.mxu0 %v3065
    %7003 = vmatpush1.msra.mxu0 %v3064
    %7004 = vmatprep.subr.mxu0 %v3073
    %7005 = vmatpush1.msra.mxu0 %v3072
    %7006 = vmatprep.subr.mxu0 %v3081
    %7007 = vmatpush1.msra.mxu0 %v3080
    %7008 = vmatprep.subr.mxu0 %v3089
    %7009 = vmatpush1.msra.mxu0 %v3088
    %7010 = vmatprep.subr.mxu0 %v3097
    %7011 = vmatpush1.msra.mxu0 %v3096
    %7012 = vmatprep.subr.mxu0 %v3105
    %7013 = vmatpush1.msra.mxu0 %v3104
    %7014 = vmatprep.subr.mxu0 %v3113
    %7015 = vmatpush1.msra.mxu0 %v3112
    %7016 = vmatprep.subr.mxu0 %v3121
    %7017 = vmatpush1.msra.mxu0 %v3120
    %7018 = vmatprep.subr.mxu0 %v3129
    %7019 = vmatpush1.msra.mxu0 %v3128
    %7020 = vmatprep.subr.mxu0 %v3137
    %7021 = vmatpush1.msra.mxu0 %v3136
    %7022 = vmatprep.subr.mxu0 %v3145
    %7023 = vmatpush1.msra.mxu0 %v3144
    %7024 = vmatprep.subr.mxu0 %v3153
    %7025 = vmatpush1.msra.mxu0 %v3152
    %7026 = vmatprep.subr.mxu0 %v3161
    %7027 = vmatpush1.msra.mxu0 %v3160
    %7028 = vmatprep.subr.mxu0 %v3169
    %7029 = vmatpush1.msra.mxu0 %v3168
    %7030 = vmatprep.subr.mxu0 %v3177
    %7031 = vmatpush1.msra.mxu0 %v3176
    %7032 = vmatprep.mubr.f32.mxu0 %v2098
    %7033 = vmatmul.mubr.f32.gmra.mrb[0].mxu0 %v2097
    %v7034 = vpop.f32.mrb[0].mxu0
    %v7035 = vadd.f32 %v6924, %v7034
    %v7036 = vpop.f32.mrb[0].mxu0
    %v7037 = vadd.f32 %v6926, %v7036
    %7038 = vmatprep.mubr.f32.mxu0 %v2102
    %7039 = vmatmul.mubr.f32.gmra.mrb[0].mxu0 %v2101
    %v7040 = vpop.f32.mrb[0].mxu0
    %v7041 = vadd.f32 %v6930, %v7040
    %v7042 = vpop.f32.mrb[0].mxu0
    %v7043 = vadd.f32 %v6932, %v7042
    %7044 = vmatprep.mubr.f32.mxu0 %v2106
    %7045 = vmatmul.mubr.f32.gmra.mrb[0].mxu0 %v2105
    %v7046 = vpop.f32.mrb[0].mxu0
    %v7047 = vadd.f32 %v6936, %v7046
    %v7048 = vpop.f32.mrb[0].mxu0
    %v7049 = vadd.f32 %v6938, %v7048
    %7050 = vmatprep.mubr.f32.mxu0 %v2110
    %7051 = vmatmul.mubr.f32.gmra.mrb[0].mxu0 %v2109
    %v7052 = vpop.f32.mrb[0].mxu0
    %v7053 = vadd.f32 %v6942, %v7052
    %v7054 = vpop.f32.mrb[0].mxu0
    %v7055 = vadd.f32 %v6944, %v7054
    %7056 = vmatprep.mubr.f32.mxu0 %v2114
    %7057 = vmatmul.mubr.f32.gmra.mrb[0].mxu0 %v2113
    %v7058 = vpop.f32.mrb[0].mxu0
    %v7059 = vadd.f32 %v6948, %v7058
    %v7060 = vpop.f32.mrb[0].mxu0
    %v7061 = vadd.f32 %v6950, %v7060
    %7062 = vmatprep.mubr.f32.mxu0 %v2118
    %7063 = vmatmul.mubr.f32.gmra.mrb[0].mxu0 %v2117
    %v7064 = vpop.f32.mrb[0].mxu0
    %v7065 = vadd.f32 %v6954, %v7064
    %v7066 = vpop.f32.mrb[0].mxu0
    %v7067 = vadd.f32 %v6956, %v7066
    %7068 = vmatprep.mubr.f32.mxu0 %v2122
    %7069 = vmatmul.mubr.f32.gmra.mrb[0].mxu0 %v2121
    %v7070 = vpop.f32.mrb[0].mxu0
    %v7071 = vadd.f32 %v6960, %v7070
    %v7072 = vpop.f32.mrb[0].mxu0
    %v7073 = vadd.f32 %v6962, %v7072
    %7074 = vmatprep.mubr.f32.mxu0 %v2126
    %7075 = vmatmul.mubr.f32.gmra.mrb[0].mxu0 %v2125
    %v7076 = vpop.f32.mrb[0].mxu0
    %v7077 = vpop.f32.mrb[0].mxu0
    %7078 = vdwg.mxu0
    %7079 = vmatprep.subr.mxu0 %v2675
    %7080 = vmatpush1.msra.mxu0 %v2674
    %7081 = vmatprep.subr.mxu0 %v2683
    %7082 = vmatpush1.msra.mxu0 %v2682
    %7083 = vmatprep.subr.mxu0 %v2691
    %7084 = vmatpush1.msra.mxu0 %v2690
    %7085 = vmatprep.subr.mxu0 %v2699
    %7086 = vmatpush1.msra.mxu0 %v2698
    %7087 = vmatprep.subr.mxu0 %v2707
    %7088 = vmatpush1.msra.mxu0 %v2706
    %7089 = vmatprep.subr.mxu0 %v2715
    %7090 = vmatpush1.msra.mxu0 %v2714
    %7091 = vmatprep.subr.mxu0 %v2723
    %7092 = vmatpush1.msra.mxu0 %v2722
    %7093 = vmatprep.subr.mxu0 %v2731
    %7094 = vmatpush1.msra.mxu0 %v2730
    %7095 = vmatprep.subr.mxu0 %v2739
    %7096 = vmatpush1.msra.mxu0 %v2738
    %7097 = vmatprep.subr.mxu0 %v2747
    %7098 = vmatpush1.msra.mxu0 %v2746
    %7099 = vmatprep.subr.mxu0 %v2755
    %7100 = vmatpush1.msra.mxu0 %v2754
    %7101 = vmatprep.subr.mxu0 %v2763
    %7102 = vmatpush1.msra.mxu0 %v2762
    %7103 = vmatprep.subr.mxu0 %v2771
    %7104 = vmatpush1.msra.mxu0 %v2770
    %7105 = vmatprep.subr.mxu0 %v2779
    %7106 = vmatpush1.msra.mxu0 %v2778
    %7107 = vmatprep.subr.mxu0 %v2787
    %7108 = vmatpush1.msra.mxu0 %v2786
    %7109 = vmatprep.subr.mxu0 %v2795
    %7110 = vmatpush1.msra.mxu0 %v2794
    %7111 = vmatprep.subr.mxu0 %v2803
    %7112 = vmatpush1.msra.mxu0 %v2802
    %7113 = vmatprep.subr.mxu0 %v2811
    %7114 = vmatpush1.msra.mxu0 %v2810
    %7115 = vmatprep.subr.mxu0 %v2819
    %7116 = vmatpush1.msra.mxu0 %v2818
    %7117 = vmatprep.subr.mxu0 %v2827
    %7118 = vmatpush1.msra.mxu0 %v2826
    %7119 = vmatprep.subr.mxu0 %v2835
    %7120 = vmatpush1.msra.mxu0 %v2834
    %7121 = vmatprep.subr.mxu0 %v2843
    %7122 = vmatpush1.msra.mxu0 %v2842
    %7123 = vmatprep.subr.mxu0 %v2851
    %7124 = vmatpush1.msra.mxu0 %v2850
    %7125 = vmatprep.subr.mxu0 %v2859
    %7126 = vmatpush1.msra.mxu0 %v2858
    %7127 = vmatprep.subr.mxu0 %v2867
    %7128 = vmatpush1.msra.mxu0 %v2866
    %7129 = vmatprep.subr.mxu0 %v2875
    %7130 = vmatpush1.msra.mxu0 %v2874
    %7131 = vmatprep.subr.mxu0 %v2883
    %7132 = vmatpush1.msra.mxu0 %v2882
    %7133 = vmatprep.subr.mxu0 %v2891
    %7134 = vmatpush1.msra.mxu0 %v2890
    %7135 = vmatprep.subr.mxu0 %v2899
    %7136 = vmatpush1.msra.mxu0 %v2898
    %7137 = vmatprep.subr.mxu0 %v2907
    %7138 = vmatpush1.msra.mxu0 %v2906
    %7139 = vmatprep.subr.mxu0 %v2915
    %7140 = vmatpush1.msra.mxu0 %v2914
    %7141 = vmatprep.subr.mxu0 %v2923
    %7142 = vmatpush1.msra.mxu0 %v2922
    %7143 = vmatprep.mubr.f32.mxu0 %v2096
    %7144 = vmatmul.mubr.f32.gmra.mrb[0].mxu0 %v2095
    %v7145 = vpop.f32.mrb[0].mxu0
    %v7146 = vadd.f32 0.0, %v7145
    %v7147 = vpop.f32.mrb[0].mxu0
    %v7148 = vadd.f32 0.0, %v7147
    %7149 = vmatprep.mubr.f32.mxu0 %v2100
    %7150 = vmatmul.mubr.f32.gmra.mrb[0].mxu0 %v2099
    %v7151 = vpop.f32.mrb[0].mxu0
    %v7152 = vadd.f32 0.0, %v7151
    %v7153 = vpop.f32.mrb[0].mxu0
    %v7154 = vadd.f32 0.0, %v7153
    %7155 = vmatprep.mubr.f32.mxu0 %v2104
    %7156 = vmatmul.mubr.f32.gmra.mrb[0].mxu0 %v2103
    %v7157 = vpop.f32.mrb[0].mxu0
    %v7158 = vadd.f32 0.0, %v7157
    %v7159 = vpop.f32.mrb[0].mxu0
    %v7160 = vadd.f32 0.0, %v7159
    %7161 = vmatprep.mubr.f32.mxu0 %v2108
    %7162 = vmatmul.mubr.f32.gmra.mrb[0].mxu0 %v2107
    %v7163 = vpop.f32.mrb[0].mxu0
    %v7164 = vadd.f32 0.0, %v7163
    %v7165 = vpop.f32.mrb[0].mxu0
    %v7166 = vadd.f32 0.0, %v7165
    %7167 = vmatprep.mubr.f32.mxu0 %v2112
    %7168 = vmatmul.mubr.f32.gmra.mrb[0].mxu0 %v2111
    %v7169 = vpop.f32.mrb[0].mxu0
    %v7170 = vadd.f32 0.0, %v7169
    %v7171 = vpop.f32.mrb[0].mxu0
    %v7172 = vadd.f32 0.0, %v7171
    %7173 = vmatprep.mubr.f32.mxu0 %v2116
    %7174 = vmatmul.mubr.f32.gmra.mrb[0].mxu0 %v2115
    %v7175 = vpop.f32.mrb[0].mxu0
    %v7176 = vadd.f32 0.0, %v7175
    %v7177 = vpop.f32.mrb[0].mxu0
    %v7178 = vadd.f32 0.0, %v7177
    %7179 = vmatprep.mubr.f32.mxu0 %v2120
    %7180 = vmatmul.mubr.f32.gmra.mrb[0].mxu0 %v2119
    %v7181 = vpop.f32.mrb[0].mxu0
    %v7182 = vadd.f32 0.0, %v7181
    %v7183 = vpop.f32.mrb[0].mxu0
    %v7184 = vadd.f32 0.0, %v7183
    %7185 = vmatprep.mubr.f32.mxu0 %v2124
    %7186 = vmatmul.mubr.f32.gmra.mrb[0].mxu0 %v2123
    %v7187 = vpop.f32.mrb[0].mxu0
    %v7188 = vpop.f32.mrb[0].mxu0
    %7189 = vdwg.mxu0
    %7190 = vmatprep.subr.mxu0 %v2931
    %7191 = vmatpush1.msra.mxu0 %v2930
    %7192 = vmatprep.subr.mxu0 %v2939
    %7193 = vmatpush1.msra.mxu0 %v2938
    %7194 = vmatprep.subr.mxu0 %v2947
    %7195 = vmatpush1.msra.mxu0 %v2946
    %7196 = vmatprep.subr.mxu0 %v2955
    %7197 = vmatpush1.msra.mxu0 %v2954
    %7198 = vmatprep.subr.mxu0 %v2963
    %7199 = vmatpush1.msra.mxu0 %v2962
    %7200 = vmatprep.subr.mxu0 %v2971
    %7201 = vmatpush1.msra.mxu0 %v2970
    %7202 = vmatprep.subr.mxu0 %v2979
    %7203 = vmatpush1.msra.mxu0 %v2978
    %7204 = vmatprep.subr.mxu0 %v2987
    %7205 = vmatpush1.msra.mxu0 %v2986
    %7206 = vmatprep.subr.mxu0 %v2995
    %7207 = vmatpush1.msra.mxu0 %v2994
    %7208 = vmatprep.subr.mxu0 %v3003
    %7209 = vmatpush1.msra.mxu0 %v3002
    %7210 = vmatprep.subr.mxu0 %v3011
    %7211 = vmatpush1.msra.mxu0 %v3010
    %7212 = vmatprep.subr.mxu0 %v3019
    %7213 = vmatpush1.msra.mxu0 %v3018
    %7214 = vmatprep.subr.mxu0 %v3027
    %7215 = vmatpush1.msra.mxu0 %v3026
    %7216 = vmatprep.subr.mxu0 %v3035
    %7217 = vmatpush1.msra.mxu0 %v3034
    %7218 = vmatprep.subr.mxu0 %v3043
    %7219 = vmatpush1.msra.mxu0 %v3042
    %7220 = vmatprep.subr.mxu0 %v3051
    %7221 = vmatpush1.msra.mxu0 %v3050
    %7222 = vmatprep.subr.mxu0 %v3059
    %7223 = vmatpush1.msra.mxu0 %v3058
    %7224 = vmatprep.subr.mxu0 %v3067
    %7225 = vmatpush1.msra.mxu0 %v3066
    %7226 = vmatprep.subr.mxu0 %v3075
    %7227 = vmatpush1.msra.mxu0 %v3074
    %7228 = vmatprep.subr.mxu0 %v3083
    %7229 = vmatpush1.msra.mxu0 %v3082
    %7230 = vmatprep.subr.mxu0 %v3091
    %7231 = vmatpush1.msra.mxu0 %v3090
    %7232 = vmatprep.subr.mxu0 %v3099
    %7233 = vmatpush1.msra.mxu0 %v3098
    %7234 = vmatprep.subr.mxu0 %v3107
    %7235 = vmatpush1.msra.mxu0 %v3106
    %7236 = vmatprep.subr.mxu0 %v3115
    %7237 = vmatpush1.msra.mxu0 %v3114
    %7238 = vmatprep.subr.mxu0 %v3123
    %7239 = vmatpush1.msra.mxu0 %v3122
    %7240 = vmatprep.subr.mxu0 %v3131
    %7241 = vmatpush1.msra.mxu0 %v3130
    %7242 = vmatprep.subr.mxu0 %v3139
    %7243 = vmatpush1.msra.mxu0 %v3138
    %7244 = vmatprep.subr.mxu0 %v3147
    %7245 = vmatpush1.msra.mxu0 %v3146
    %7246 = vmatprep.subr.mxu0 %v3155
    %7247 = vmatpush1.msra.mxu0 %v3154
    %7248 = vmatprep.subr.mxu0 %v3163
    %7249 = vmatpush1.msra.mxu0 %v3162
    %7250 = vmatprep.subr.mxu0 %v3171
    %7251 = vmatpush1.msra.mxu0 %v3170
    %7252 = vmatprep.subr.mxu0 %v3179
    %7253 = vmatpush1.msra.mxu0 %v3178
    %7254 = vmatprep.mubr.f32.mxu0 %v2098
    %7255 = vmatmul.mubr.f32.gmra.mrb[0].mxu0 %v2097
    %v7256 = vpop.f32.mrb[0].mxu0
    %v7257 = vadd.f32 %v7146, %v7256
    %v7258 = vpop.f32.mrb[0].mxu0
    %v7259 = vadd.f32 %v7148, %v7258
    %7260 = vmatprep.mubr.f32.mxu0 %v2102
    %7261 = vmatmul.mubr.f32.gmra.mrb[0].mxu0 %v2101
    %v7262 = vpop.f32.mrb[0].mxu0
    %v7263 = vadd.f32 %v7152, %v7262
    %v7264 = vpop.f32.mrb[0].mxu0
    %v7265 = vadd.f32 %v7154, %v7264
    %7266 = vmatprep.mubr.f32.mxu0 %v2106
    %7267 = vmatmul.mubr.f32.gmra.mrb[0].mxu0 %v2105
    %v7268 = vpop.f32.mrb[0].mxu0
    %v7269 = vadd.f32 %v7158, %v7268
    %v7270 = vpop.f32.mrb[0].mxu0
    %v7271 = vadd.f32 %v7160, %v7270
    %7272 = vmatprep.mubr.f32.mxu0 %v2110
    %7273 = vmatmul.mubr.f32.gmra.mrb[0].mxu0 %v2109
    %v7274 = vpop.f32.mrb[0].mxu0
    %v7275 = vadd.f32 %v7164, %v7274
    %v7276 = vpop.f32.mrb[0].mxu0
    %v7277 = vadd.f32 %v7166, %v7276
    %7278 = vmatprep.mubr.f32.mxu0 %v2114
    %7279 = vmatmul.mubr.f32.gmra.mrb[0].mxu0 %v2113
    %v7280 = vpop.f32.mrb[0].mxu0
    %v7281 = vadd.f32 %v7170, %v7280
    %v7282 = vpop.f32.mrb[0].mxu0
    %v7283 = vadd.f32 %v7172, %v7282
    %7284 = vmatprep.mubr.f32.mxu0 %v2118
    %7285 = vmatmul.mubr.f32.gmra.mrb[0].mxu0 %v2117
    %v7286 = vpop.f32.mrb[0].mxu0
    %v7287 = vadd.f32 %v7176, %v7286
    %v7288 = vpop.f32.mrb[0].mxu0
    %v7289 = vadd.f32 %v7178, %v7288
    %7290 = vmatprep.mubr.f32.mxu0 %v2122
    %7291 = vmatmul.mubr.f32.gmra.mrb[0].mxu0 %v2121
    %v7292 = vpop.f32.mrb[0].mxu0
    %v7293 = vadd.f32 %v7182, %v7292
    %v7294 = vpop.f32.mrb[0].mxu0
    %v7295 = vadd.f32 %v7184, %v7294
    %7296 = vmatprep.mubr.f32.mxu0 %v2126
    %7297 = vmatmul.mubr.f32.gmra.mrb[0].mxu0 %v2125
    %v7298 = vpop.f32.mrb[0].mxu0
    %v7299 = vpop.f32.mrb[0].mxu0
    %7300 = vdwg.mxu0
    %7301 = vmatprep.subr.mxu0 %v2156
    %7302 = vmatpush1.msra.mxu0 %v2155
    %7303 = vmatprep.subr.mxu0 %v2164
    %7304 = vmatpush1.msra.mxu0 %v2163
    %7305 = vmatprep.subr.mxu0 %v2172
    %7306 = vmatpush1.msra.mxu0 %v2171
    %7307 = vmatprep.subr.mxu0 %v2180
    %7308 = vmatpush1.msra.mxu0 %v2179
    %7309 = vmatprep.subr.mxu0 %v2188
    %7310 = vmatpush1.msra.mxu0 %v2187
    %7311 = vmatprep.subr.mxu0 %v2196
    %7312 = vmatpush1.msra.mxu0 %v2195
    %7313 = vmatprep.subr.mxu0 %v2204
    %7314 = vmatpush1.msra.mxu0 %v2203
    %7315 = vmatprep.subr.mxu0 %v2212
    %7316 = vmatpush1.msra.mxu0 %v2211
    %7317 = vmatprep.subr.mxu0 %v2220
    %7318 = vmatpush1.msra.mxu0 %v2219
    %7319 = vmatprep.subr.mxu0 %v2228
    %7320 = vmatpush1.msra.mxu0 %v2227
    %7321 = vmatprep.subr.mxu0 %v2236
    %7322 = vmatpush1.msra.mxu0 %v2235
    %7323 = vmatprep.subr.mxu0 %v2244
    %7324 = vmatpush1.msra.mxu0 %v2243
    %7325 = vmatprep.subr.mxu0 %v2252
    %7326 = vmatpush1.msra.mxu0 %v2251
    %7327 = vmatprep.subr.mxu0 %v2260
    %7328 = vmatpush1.msra.mxu0 %v2259
    %7329 = vmatprep.subr.mxu0 %v2268
    %7330 = vmatpush1.msra.mxu0 %v2267
    %7331 = vmatprep.subr.mxu0 %v2276
    %7332 = vmatpush1.msra.mxu0 %v2275
    %7333 = vmatprep.subr.mxu0 %v2284
    %7334 = vmatpush1.msra.mxu0 %v2283
    %7335 = vmatprep.subr.mxu0 %v2292
    %7336 = vmatpush1.msra.mxu0 %v2291
    %7337 = vmatprep.subr.mxu0 %v2300
    %7338 = vmatpush1.msra.mxu0 %v2299
    %7339 = vmatprep.subr.mxu0 %v2308
    %7340 = vmatpush1.msra.mxu0 %v2307
    %7341 = vmatprep.subr.mxu0 %v2316
    %7342 = vmatpush1.msra.mxu0 %v2315
    %7343 = vmatprep.subr.mxu0 %v2324
    %7344 = vmatpush1.msra.mxu0 %v2323
    %7345 = vmatprep.subr.mxu0 %v2332
    %7346 = vmatpush1.msra.mxu0 %v2331
    %7347 = vmatprep.subr.mxu0 %v2340
    %7348 = vmatpush1.msra.mxu0 %v2339
    %7349 = vmatprep.subr.mxu0 %v2348
    %7350 = vmatpush1.msra.mxu0 %v2347
    %7351 = vmatprep.subr.mxu0 %v2356
    %7352 = vmatpush1.msra.mxu0 %v2355
    %7353 = vmatprep.subr.mxu0 %v2364
    %7354 = vmatpush1.msra.mxu0 %v2363
    %7355 = vmatprep.subr.mxu0 %v2372
    %7356 = vmatpush1.msra.mxu0 %v2371
    %7357 = vmatprep.subr.mxu0 %v2380
    %7358 = vmatpush1.msra.mxu0 %v2379
    %7359 = vmatprep.subr.mxu0 %v2388
    %7360 = vmatpush1.msra.mxu0 %v2387
    %7361 = vmatprep.subr.mxu0 %v2396
    %7362 = vmatpush1.msra.mxu0 %v2395
    %7363 = vmatprep.subr.mxu0 %v2404
    %7364 = vmatpush1.msra.mxu0 %v2403
    %7365 = vmatprep.mubr.f32.mxu0 %v2124
    %7366 = vmatmul.mubr.f32.gmra.mrb[0].mxu0 %v2123
    %v7367 = vpop.f32.mrb[0].mxu0
    %v7368 = vadd.f32 %v6591, %v7367
    %v7369 = vpop.f32.mrb[0].mxu0
    %v7370 = vadd.f32 %v6593, %v7369
    %7371 = vmatprep.mubr.f32.mxu0 %v2128
    %7372 = vmatmul.mubr.f32.gmra.mrb[0].mxu0 %v2127
    %v7373 = vpop.f32.mrb[0].mxu0
    %v7374 = vadd.f32 %v6597, %v7373
    %v7375 = vpop.f32.mrb[0].mxu0
    %v7376 = vadd.f32 %v6599, %v7375
    %7377 = vmatprep.mubr.f32.mxu0 %v2132
    %7378 = vmatmul.mubr.f32.gmra.mrb[0].mxu0 %v2131
    %v7379 = vpop.f32.mrb[0].mxu0
    %v7380 = vadd.f32 %v6603, %v7379
    %v7381 = vpop.f32.mrb[0].mxu0
    %v7382 = vadd.f32 %v6605, %v7381
    %7383 = vmatprep.mubr.f32.mxu0 %v2136
    %7384 = vmatmul.mubr.f32.gmra.mrb[0].mxu0 %v2135
    %v7385 = vpop.f32.mrb[0].mxu0
    %v7386 = vadd.f32 %v6609, %v7385
    %v7387 = vpop.f32.mrb[0].mxu0
    %v7388 = vadd.f32 %v6611, %v7387
    %7389 = vmatprep.mubr.f32.mxu0 %v2140
    %7390 = vmatmul.mubr.f32.gmra.mrb[0].mxu0 %v2139
    %v7391 = vpop.f32.mrb[0].mxu0
    %v7392 = vadd.f32 %v6615, %v7391
    %v7393 = vpop.f32.mrb[0].mxu0
    %v7394 = vadd.f32 %v6617, %v7393
    %7395 = vmatprep.mubr.f32.mxu0 %v2144
    %7396 = vmatmul.mubr.f32.gmra.mrb[0].mxu0 %v2143
    %v7397 = vpop.f32.mrb[0].mxu0
    %v7398 = vadd.f32 %v6621, %v7397
    %v7399 = vpop.f32.mrb[0].mxu0
    %v7400 = vadd.f32 %v6623, %v7399
    %7401 = vmatprep.mubr.f32.mxu0 %v2148
    %7402 = vmatmul.mubr.f32.gmra.mrb[0].mxu0 %v2147
    %v7403 = vpop.f32.mrb[0].mxu0
    %v7404 = vadd.f32 %v6627, %v7403
    %v7405 = vpop.f32.mrb[0].mxu0
    %v7406 = vadd.f32 %v6629, %v7405
    %7407 = vmatprep.mubr.f32.mxu0 %v2152
    %7408 = vmatmul.mubr.f32.gmra.mrb[0].mxu0 %v2151
    %v7409 = vpop.f32.mrb[0].mxu0
    %v7410 = vpop.f32.mrb[0].mxu0
    %7411 = vdwg.mxu0
    %7412 = vmatprep.subr.mxu0 %v2412
    %7413 = vmatpush1.msra.mxu0 %v2411
    %7414 = vmatprep.subr.mxu0 %v2420
    %7415 = vmatpush1.msra.mxu0 %v2419
    %7416 = vmatprep.subr.mxu0 %v2428
    %7417 = vmatpush1.msra.mxu0 %v2427
    %7418 = vmatprep.subr.mxu0 %v2436
    %7419 = vmatpush1.msra.mxu0 %v2435
    %7420 = vmatprep.subr.mxu0 %v2444
    %7421 = vmatpush1.msra.mxu0 %v2443
    %7422 = vmatprep.subr.mxu0 %v2452
    %7423 = vmatpush1.msra.mxu0 %v2451
    %7424 = vmatprep.subr.mxu0 %v2460
    %7425 = vmatpush1.msra.mxu0 %v2459
    %7426 = vmatprep.subr.mxu0 %v2468
    %7427 = vmatpush1.msra.mxu0 %v2467
    %7428 = vmatprep.subr.mxu0 %v2476
    %7429 = vmatpush1.msra.mxu0 %v2475
    %7430 = vmatprep.subr.mxu0 %v2484
    %7431 = vmatpush1.msra.mxu0 %v2483
    %7432 = vmatprep.subr.mxu0 %v2492
    %7433 = vmatpush1.msra.mxu0 %v2491
    %7434 = vmatprep.subr.mxu0 %v2500
    %7435 = vmatpush1.msra.mxu0 %v2499
    %7436 = vmatprep.subr.mxu0 %v2508
    %7437 = vmatpush1.msra.mxu0 %v2507
    %7438 = vmatprep.subr.mxu0 %v2516
    %7439 = vmatpush1.msra.mxu0 %v2515
    %7440 = vmatprep.subr.mxu0 %v2524
    %7441 = vmatpush1.msra.mxu0 %v2523
    %7442 = vmatprep.subr.mxu0 %v2532
    %7443 = vmatpush1.msra.mxu0 %v2531
    %7444 = vmatprep.subr.mxu0 %v2540
    %7445 = vmatpush1.msra.mxu0 %v2539
    %7446 = vmatprep.subr.mxu0 %v2548
    %7447 = vmatpush1.msra.mxu0 %v2547
    %7448 = vmatprep.subr.mxu0 %v2556
    %7449 = vmatpush1.msra.mxu0 %v2555
    %7450 = vmatprep.subr.mxu0 %v2564
    %7451 = vmatpush1.msra.mxu0 %v2563
    %7452 = vmatprep.subr.mxu0 %v2572
    %7453 = vmatpush1.msra.mxu0 %v2571
    %7454 = vmatprep.subr.mxu0 %v2580
    %7455 = vmatpush1.msra.mxu0 %v2579
    %7456 = vmatprep.subr.mxu0 %v2588
    %7457 = vmatpush1.msra.mxu0 %v2587
    %7458 = vmatprep.subr.mxu0 %v2596
    %7459 = vmatpush1.msra.mxu0 %v2595
    %7460 = vmatprep.subr.mxu0 %v2604
    %7461 = vmatpush1.msra.mxu0 %v2603
    %7462 = vmatprep.subr.mxu0 %v2612
    %7463 = vmatpush1.msra.mxu0 %v2611
    %7464 = vmatprep.subr.mxu0 %v2620
    %7465 = vmatpush1.msra.mxu0 %v2619
    %7466 = vmatprep.subr.mxu0 %v2628
    %7467 = vmatpush1.msra.mxu0 %v2627
    %7468 = vmatprep.subr.mxu0 %v2636
    %7469 = vmatpush1.msra.mxu0 %v2635
    %7470 = vmatprep.subr.mxu0 %v2644
    %7471 = vmatpush1.msra.mxu0 %v2643
    %7472 = vmatprep.subr.mxu0 %v2652
    %7473 = vmatpush1.msra.mxu0 %v2651
    %7474 = vmatprep.subr.mxu0 %v2660
    %7475 = vmatpush1.msra.mxu0 %v2659
    %7476 = vmatprep.mubr.f32.mxu0 %v2126
    %7477 = vmatmul.mubr.f32.gmra.mrb[0].mxu0 %v2125
    %v7478 = vpop.f32.mrb[0].mxu0
    %v7479 = vadd.f32 %v7368, %v7478
    %v7480 = vpop.f32.mrb[0].mxu0
    %v7481 = vadd.f32 %v7370, %v7480
    %7482 = vmatprep.mubr.f32.mxu0 %v2130
    %7483 = vmatmul.mubr.f32.gmra.mrb[0].mxu0 %v2129
    %v7484 = vpop.f32.mrb[0].mxu0
    %v7485 = vadd.f32 %v7374, %v7484
    %v7486 = vpop.f32.mrb[0].mxu0
    %v7487 = vadd.f32 %v7376, %v7486
    %7488 = vmatprep.mubr.f32.mxu0 %v2134
    %7489 = vmatmul.mubr.f32.gmra.mrb[0].mxu0 %v2133
    %v7490 = vpop.f32.mrb[0].mxu0
    %v7491 = vadd.f32 %v7380, %v7490
    %v7492 = vpop.f32.mrb[0].mxu0
    %v7493 = vadd.f32 %v7382, %v7492
    %7494 = vmatprep.mubr.f32.mxu0 %v2138
    %7495 = vmatmul.mubr.f32.gmra.mrb[0].mxu0 %v2137
    %v7496 = vpop.f32.mrb[0].mxu0
    %v7497 = vadd.f32 %v7386, %v7496
    %v7498 = vpop.f32.mrb[0].mxu0
    %v7499 = vadd.f32 %v7388, %v7498
    %7500 = vmatprep.mubr.f32.mxu0 %v2142
    %7501 = vmatmul.mubr.f32.gmra.mrb[0].mxu0 %v2141
    %v7502 = vpop.f32.mrb[0].mxu0
    %v7503 = vadd.f32 %v7392, %v7502
    %v7504 = vpop.f32.mrb[0].mxu0
    %v7505 = vadd.f32 %v7394, %v7504
    %7506 = vmatprep.mubr.f32.mxu0 %v2146
    %7507 = vmatmul.mubr.f32.gmra.mrb[0].mxu0 %v2145
    %v7508 = vpop.f32.mrb[0].mxu0
    %v7509 = vadd.f32 %v7398, %v7508
    %v7510 = vpop.f32.mrb[0].mxu0
    %v7511 = vadd.f32 %v7400, %v7510
    %7512 = vmatprep.mubr.f32.mxu0 %v2150
    %7513 = vmatmul.mubr.f32.gmra.mrb[0].mxu0 %v2149
    %v7514 = vpop.f32.mrb[0].mxu0
    %v7515 = vadd.f32 %v7404, %v7514
    %v7516 = vpop.f32.mrb[0].mxu0
    %v7517 = vadd.f32 %v7406, %v7516
    %7518 = vmatprep.mubr.f32.mxu0 %v2154
    %7519 = vmatmul.mubr.f32.gmra.mrb[0].mxu0 %v2153
    %v7520 = vpop.f32.mrb[0].mxu0
    %v7521 = vpop.f32.mrb[0].mxu0
    %7522 = vdwg.mxu0
    %7523 = vmatprep.subr.mxu0 %v2158
    %7524 = vmatpush1.msra.mxu0 %v2157
    %7525 = vmatprep.subr.mxu0 %v2166
    %7526 = vmatpush1.msra.mxu0 %v2165
    %7527 = vmatprep.subr.mxu0 %v2174
    %7528 = vmatpush1.msra.mxu0 %v2173
    %7529 = vmatprep.subr.mxu0 %v2182
    %7530 = vmatpush1.msra.mxu0 %v2181
    %7531 = vmatprep.subr.mxu0 %v2190
    %7532 = vmatpush1.msra.mxu0 %v2189
    %7533 = vmatprep.subr.mxu0 %v2198
    %7534 = vmatpush1.msra.mxu0 %v2197
    %7535 = vmatprep.subr.mxu0 %v2206
    %7536 = vmatpush1.msra.mxu0 %v2205
    %7537 = vmatprep.subr.mxu0 %v2214
    %7538 = vmatpush1.msra.mxu0 %v2213
    %7539 = vmatprep.subr.mxu0 %v2222
    %7540 = vmatpush1.msra.mxu0 %v2221
    %7541 = vmatprep.subr.mxu0 %v2230
    %7542 = vmatpush1.msra.mxu0 %v2229
    %7543 = vmatprep.subr.mxu0 %v2238
    %7544 = vmatpush1.msra.mxu0 %v2237
    %7545 = vmatprep.subr.mxu0 %v2246
    %7546 = vmatpush1.msra.mxu0 %v2245
    %7547 = vmatprep.subr.mxu0 %v2254
    %7548 = vmatpush1.msra.mxu0 %v2253
    %7549 = vmatprep.subr.mxu0 %v2262
    %7550 = vmatpush1.msra.mxu0 %v2261
    %7551 = vmatprep.subr.mxu0 %v2270
    %7552 = vmatpush1.msra.mxu0 %v2269
    %7553 = vmatprep.subr.mxu0 %v2278
    %7554 = vmatpush1.msra.mxu0 %v2277
    %7555 = vmatprep.subr.mxu0 %v2286
    %7556 = vmatpush1.msra.mxu0 %v2285
    %7557 = vmatprep.subr.mxu0 %v2294
    %7558 = vmatpush1.msra.mxu0 %v2293
    %7559 = vmatprep.subr.mxu0 %v2302
    %7560 = vmatpush1.msra.mxu0 %v2301
    %7561 = vmatprep.subr.mxu0 %v2310
    %7562 = vmatpush1.msra.mxu0 %v2309
    %7563 = vmatprep.subr.mxu0 %v2318
    %7564 = vmatpush1.msra.mxu0 %v2317
    %7565 = vmatprep.subr.mxu0 %v2326
    %7566 = vmatpush1.msra.mxu0 %v2325
    %7567 = vmatprep.subr.mxu0 %v2334
    %7568 = vmatpush1.msra.mxu0 %v2333
    %7569 = vmatprep.subr.mxu0 %v2342
    %7570 = vmatpush1.msra.mxu0 %v2341
    %7571 = vmatprep.subr.mxu0 %v2350
    %7572 = vmatpush1.msra.mxu0 %v2349
    %7573 = vmatprep.subr.mxu0 %v2358
    %7574 = vmatpush1.msra.mxu0 %v2357
    %7575 = vmatprep.subr.mxu0 %v2366
    %7576 = vmatpush1.msra.mxu0 %v2365
    %7577 = vmatprep.subr.mxu0 %v2374
    %7578 = vmatpush1.msra.mxu0 %v2373
    %7579 = vmatprep.subr.mxu0 %v2382
    %7580 = vmatpush1.msra.mxu0 %v2381
    %7581 = vmatprep.subr.mxu0 %v2390
    %7582 = vmatpush1.msra.mxu0 %v2389
    %7583 = vmatprep.subr.mxu0 %v2398
    %7584 = vmatpush1.msra.mxu0 %v2397
    %7585 = vmatprep.subr.mxu0 %v2406
    %7586 = vmatpush1.msra.mxu0 %v2405
    %7587 = vmatprep.mubr.f32.mxu0 %v2124
    %7588 = vmatmul.mubr.f32.gmra.mrb[0].mxu0 %v2123
    %v7589 = vpop.f32.mrb[0].mxu0
    %v7590 = vadd.f32 %v6813, %v7589
    %v7591 = vpop.f32.mrb[0].mxu0
    %v7592 = vadd.f32 %v6815, %v7591
    %7593 = vmatprep.mubr.f32.mxu0 %v2128
    %7594 = vmatmul.mubr.f32.gmra.mrb[0].mxu0 %v2127
    %v7595 = vpop.f32.mrb[0].mxu0
    %v7596 = vadd.f32 %v6819, %v7595
    %v7597 = vpop.f32.mrb[0].mxu0
    %v7598 = vadd.f32 %v6821, %v7597
    %7599 = vmatprep.mubr.f32.mxu0 %v2132
    %7600 = vmatmul.mubr.f32.gmra.mrb[0].mxu0 %v2131
    %v7601 = vpop.f32.mrb[0].mxu0
    %v7602 = vadd.f32 %v6825, %v7601
    %v7603 = vpop.f32.mrb[0].mxu0
    %v7604 = vadd.f32 %v6827, %v7603
    %7605 = vmatprep.mubr.f32.mxu0 %v2136
    %7606 = vmatmul.mubr.f32.gmra.mrb[0].mxu0 %v2135
    %v7607 = vpop.f32.mrb[0].mxu0
    %v7608 = vadd.f32 %v6831, %v7607
    %v7609 = vpop.f32.mrb[0].mxu0
    %v7610 = vadd.f32 %v6833, %v7609
    %7611 = vmatprep.mubr.f32.mxu0 %v2140
    %7612 = vmatmul.mubr.f32.gmra.mrb[0].mxu0 %v2139
    %v7613 = vpop.f32.mrb[0].mxu0
    %v7614 = vadd.f32 %v6837, %v7613
    %v7615 = vpop.f32.mrb[0].mxu0
    %v7616 = vadd.f32 %v6839, %v7615
    %7617 = vmatprep.mubr.f32.mxu0 %v2144
    %7618 = vmatmul.mubr.f32.gmra.mrb[0].mxu0 %v2143
    %v7619 = vpop.f32.mrb[0].mxu0
    %v7620 = vadd.f32 %v6843, %v7619
    %v7621 = vpop.f32.mrb[0].mxu0
    %v7622 = vadd.f32 %v6845, %v7621
    %7623 = vmatprep.mubr.f32.mxu0 %v2148
    %7624 = vmatmul.mubr.f32.gmra.mrb[0].mxu0 %v2147
    %v7625 = vpop.f32.mrb[0].mxu0
    %v7626 = vadd.f32 %v6849, %v7625
    %v7627 = vpop.f32.mrb[0].mxu0
    %v7628 = vadd.f32 %v6851, %v7627
    %7629 = vmatprep.mubr.f32.mxu0 %v2152
    %7630 = vmatmul.mubr.f32.gmra.mrb[0].mxu0 %v2151
    %v7631 = vpop.f32.mrb[0].mxu0
    %v7632 = vpop.f32.mrb[0].mxu0
    %7633 = vdwg.mxu0
    %7634 = vmatprep.subr.mxu0 %v2414
    %7635 = vmatpush1.msra.mxu0 %v2413
    %7636 = vmatprep.subr.mxu0 %v2422
    %7637 = vmatpush1.msra.mxu0 %v2421
    %7638 = vmatprep.subr.mxu0 %v2430
    %7639 = vmatpush1.msra.mxu0 %v2429
    %7640 = vmatprep.subr.mxu0 %v2438
    %7641 = vmatpush1.msra.mxu0 %v2437
    %7642 = vmatprep.subr.mxu0 %v2446
    %7643 = vmatpush1.msra.mxu0 %v2445
    %7644 = vmatprep.subr.mxu0 %v2454
    %7645 = vmatpush1.msra.mxu0 %v2453
    %7646 = vmatprep.subr.mxu0 %v2462
    %7647 = vmatpush1.msra.mxu0 %v2461
    %7648 = vmatprep.subr.mxu0 %v2470
    %7649 = vmatpush1.msra.mxu0 %v2469
    %7650 = vmatprep.subr.mxu0 %v2478
    %7651 = vmatpush1.msra.mxu0 %v2477
    %7652 = vmatprep.subr.mxu0 %v2486
    %7653 = vmatpush1.msra.mxu0 %v2485
    %7654 = vmatprep.subr.mxu0 %v2494
    %7655 = vmatpush1.msra.mxu0 %v2493
    %7656 = vmatprep.subr.mxu0 %v2502
    %7657 = vmatpush1.msra.mxu0 %v2501
    %7658 = vmatprep.subr.mxu0 %v2510
    %7659 = vmatpush1.msra.mxu0 %v2509
    %7660 = vmatprep.subr.mxu0 %v2518
    %7661 = vmatpush1.msra.mxu0 %v2517
    %7662 = vmatprep.subr.mxu0 %v2526
    %7663 = vmatpush1.msra.mxu0 %v2525
    %7664 = vmatprep.subr.mxu0 %v2534
    %7665 = vmatpush1.msra.mxu0 %v2533
    %7666 = vmatprep.subr.mxu0 %v2542
    %7667 = vmatpush1.msra.mxu0 %v2541
    %7668 = vmatprep.subr.mxu0 %v2550
    %7669 = vmatpush1.msra.mxu0 %v2549
    %7670 = vmatprep.subr.mxu0 %v2558
    %7671 = vmatpush1.msra.mxu0 %v2557
    %7672 = vmatprep.subr.mxu0 %v2566
    %7673 = vmatpush1.msra.mxu0 %v2565
    %7674 = vmatprep.subr.mxu0 %v2574
    %7675 = vmatpush1.msra.mxu0 %v2573
    %7676 = vmatprep.subr.mxu0 %v2582
    %7677 = vmatpush1.msra.mxu0 %v2581
    %7678 = vmatprep.subr.mxu0 %v2590
    %7679 = vmatpush1.msra.mxu0 %v2589
    %7680 = vmatprep.subr.mxu0 %v2598
    %7681 = vmatpush1.msra.mxu0 %v2597
    %7682 = vmatprep.subr.mxu0 %v2606
    %7683 = vmatpush1.msra.mxu0 %v2605
    %7684 = vmatprep.subr.mxu0 %v2614
    %7685 = vmatpush1.msra.mxu0 %v2613
    %7686 = vmatprep.subr.mxu0 %v2622
    %7687 = vmatpush1.msra.mxu0 %v2621
    %7688 = vmatprep.subr.mxu0 %v2630
    %7689 = vmatpush1.msra.mxu0 %v2629
    %7690 = vmatprep.subr.mxu0 %v2638
    %7691 = vmatpush1.msra.mxu0 %v2637
    %7692 = vmatprep.subr.mxu0 %v2646
    %7693 = vmatpush1.msra.mxu0 %v2645
    %7694 = vmatprep.subr.mxu0 %v2654
    %7695 = vmatpush1.msra.mxu0 %v2653
    %7696 = vmatprep.subr.mxu0 %v2662
    %7697 = vmatpush1.msra.mxu0 %v2661
    %7698 = vmatprep.mubr.f32.mxu0 %v2126
    %7699 = vmatmul.mubr.f32.gmra.mrb[0].mxu0 %v2125
    %v7700 = vpop.f32.mrb[0].mxu0
    %v7701 = vadd.f32 %v7590, %v7700
    %v7702 = vpop.f32.mrb[0].mxu0
    %v7703 = vadd.f32 %v7592, %v7702
    %7704 = vmatprep.mubr.f32.mxu0 %v2130
    %7705 = vmatmul.mubr.f32.gmra.mrb[0].mxu0 %v2129
    %v7706 = vpop.f32.mrb[0].mxu0
    %v7707 = vadd.f32 %v7596, %v7706
    %v7708 = vpop.f32.mrb[0].mxu0
    %v7709 = vadd.f32 %v7598, %v7708
    %7710 = vmatprep.mubr.f32.mxu0 %v2134
    %7711 = vmatmul.mubr.f32.gmra.mrb[0].mxu0 %v2133
    %v7712 = vpop.f32.mrb[0].mxu0
    %v7713 = vadd.f32 %v7602, %v7712
    %v7714 = vpop.f32.mrb[0].mxu0
    %v7715 = vadd.f32 %v7604, %v7714
    %7716 = vmatprep.mubr.f32.mxu0 %v2138
    %7717 = vmatmul.mubr.f32.gmra.mrb[0].mxu0 %v2137
    %v7718 = vpop.f32.mrb[0].mxu0
    %v7719 = vadd.f32 %v7608, %v7718
    %v7720 = vpop.f32.mrb[0].mxu0
    %v7721 = vadd.f32 %v7610, %v7720
    %7722 = vmatprep.mubr.f32.mxu0 %v2142
    %7723 = vmatmul.mubr.f32.gmra.mrb[0].mxu0 %v2141
    %v7724 = vpop.f32.mrb[0].mxu0
    %v7725 = vadd.f32 %v7614, %v7724
    %v7726 = vpop.f32.mrb[0].mxu0
    %v7727 = vadd.f32 %v7616, %v7726
    %7728 = vmatprep.mubr.f32.mxu0 %v2146
    %7729 = vmatmul.mubr.f32.gmra.mrb[0].mxu0 %v2145
    %v7730 = vpop.f32.mrb[0].mxu0
    %v7731 = vadd.f32 %v7620, %v7730
    %v7732 = vpop.f32.mrb[0].mxu0
    %v7733 = vadd.f32 %v7622, %v7732
    %7734 = vmatprep.mubr.f32.mxu0 %v2150
    %7735 = vmatmul.mubr.f32.gmra.mrb[0].mxu0 %v2149
    %v7736 = vpop.f32.mrb[0].mxu0
    %v7737 = vadd.f32 %v7626, %v7736
    %v7738 = vpop.f32.mrb[0].mxu0
    %v7739 = vadd.f32 %v7628, %v7738
    %7740 = vmatprep.mubr.f32.mxu0 %v2154
    %7741 = vmatmul.mubr.f32.gmra.mrb[0].mxu0 %v2153
    %v7742 = vpop.f32.mrb[0].mxu0
    %v7743 = vpop.f32.mrb[0].mxu0
    %7744 = vdwg.mxu0
    %7745 = vmatprep.subr.mxu0 %v2160
    %7746 = vmatpush1.msra.mxu0 %v2159
    %7747 = vmatprep.subr.mxu0 %v2168
    %7748 = vmatpush1.msra.mxu0 %v2167
    %7749 = vmatprep.subr.mxu0 %v2176
    %7750 = vmatpush1.msra.mxu0 %v2175
    %7751 = vmatprep.subr.mxu0 %v2184
    %7752 = vmatpush1.msra.mxu0 %v2183
    %7753 = vmatprep.subr.mxu0 %v2192
    %7754 = vmatpush1.msra.mxu0 %v2191
    %7755 = vmatprep.subr.mxu0 %v2200
    %7756 = vmatpush1.msra.mxu0 %v2199
    %7757 = vmatprep.subr.mxu0 %v2208
    %7758 = vmatpush1.msra.mxu0 %v2207
    %7759 = vmatprep.subr.mxu0 %v2216
    %7760 = vmatpush1.msra.mxu0 %v2215
    %7761 = vmatprep.subr.mxu0 %v2224
    %7762 = vmatpush1.msra.mxu0 %v2223
    %7763 = vmatprep.subr.mxu0 %v2232
    %7764 = vmatpush1.msra.mxu0 %v2231
    %7765 = vmatprep.subr.mxu0 %v2240
    %7766 = vmatpush1.msra.mxu0 %v2239
    %7767 = vmatprep.subr.mxu0 %v2248
    %7768 = vmatpush1.msra.mxu0 %v2247
    %7769 = vmatprep.subr.mxu0 %v2256
    %7770 = vmatpush1.msra.mxu0 %v2255
    %7771 = vmatprep.subr.mxu0 %v2264
    %7772 = vmatpush1.msra.mxu0 %v2263
    %7773 = vmatprep.subr.mxu0 %v2272
    %7774 = vmatpush1.msra.mxu0 %v2271
    %7775 = vmatprep.subr.mxu0 %v2280
    %7776 = vmatpush1.msra.mxu0 %v2279
    %7777 = vmatprep.subr.mxu0 %v2288
    %7778 = vmatpush1.msra.mxu0 %v2287
    %7779 = vmatprep.subr.mxu0 %v2296
    %7780 = vmatpush1.msra.mxu0 %v2295
    %7781 = vmatprep.subr.mxu0 %v2304
    %7782 = vmatpush1.msra.mxu0 %v2303
    %7783 = vmatprep.subr.mxu0 %v2312
    %7784 = vmatpush1.msra.mxu0 %v2311
    %7785 = vmatprep.subr.mxu0 %v2320
    %7786 = vmatpush1.msra.mxu0 %v2319
    %7787 = vmatprep.subr.mxu0 %v2328
    %7788 = vmatpush1.msra.mxu0 %v2327
    %7789 = vmatprep.subr.mxu0 %v2336
    %7790 = vmatpush1.msra.mxu0 %v2335
    %7791 = vmatprep.subr.mxu0 %v2344
    %7792 = vmatpush1.msra.mxu0 %v2343
    %7793 = vmatprep.subr.mxu0 %v2352
    %7794 = vmatpush1.msra.mxu0 %v2351
    %7795 = vmatprep.subr.mxu0 %v2360
    %7796 = vmatpush1.msra.mxu0 %v2359
    %7797 = vmatprep.subr.mxu0 %v2368
    %7798 = vmatpush1.msra.mxu0 %v2367
    %7799 = vmatprep.subr.mxu0 %v2376
    %7800 = vmatpush1.msra.mxu0 %v2375
    %7801 = vmatprep.subr.mxu0 %v2384
    %7802 = vmatpush1.msra.mxu0 %v2383
    %7803 = vmatprep.subr.mxu0 %v2392
    %7804 = vmatpush1.msra.mxu0 %v2391
    %7805 = vmatprep.subr.mxu0 %v2400
    %7806 = vmatpush1.msra.mxu0 %v2399
    %7807 = vmatprep.subr.mxu0 %v2408
    %7808 = vmatpush1.msra.mxu0 %v2407
    %7809 = vmatprep.mubr.f32.mxu0 %v2124
    %7810 = vmatmul.mubr.f32.gmra.mrb[0].mxu0 %v2123
    %v7811 = vpop.f32.mrb[0].mxu0
    %v7812 = vadd.f32 %v7035, %v7811
    %v7813 = vpop.f32.mrb[0].mxu0
    %v7814 = vadd.f32 %v7037, %v7813
    %7815 = vmatprep.mubr.f32.mxu0 %v2128
    %7816 = vmatmul.mubr.f32.gmra.mrb[0].mxu0 %v2127
    %v7817 = vpop.f32.mrb[0].mxu0
    %v7818 = vadd.f32 %v7041, %v7817
    %v7819 = vpop.f32.mrb[0].mxu0
    %v7820 = vadd.f32 %v7043, %v7819
    %7821 = vmatprep.mubr.f32.mxu0 %v2132
    %7822 = vmatmul.mubr.f32.gmra.mrb[0].mxu0 %v2131
    %v7823 = vpop.f32.mrb[0].mxu0
    %v7824 = vadd.f32 %v7047, %v7823
    %v7825 = vpop.f32.mrb[0].mxu0
    %v7826 = vadd.f32 %v7049, %v7825
    %7827 = vmatprep.mubr.f32.mxu0 %v2136
    %7828 = vmatmul.mubr.f32.gmra.mrb[0].mxu0 %v2135
    %v7829 = vpop.f32.mrb[0].mxu0
    %v7830 = vadd.f32 %v7053, %v7829
    %v7831 = vpop.f32.mrb[0].mxu0
    %v7832 = vadd.f32 %v7055, %v7831
    %7833 = vmatprep.mubr.f32.mxu0 %v2140
    %7834 = vmatmul.mubr.f32.gmra.mrb[0].mxu0 %v2139
    %v7835 = vpop.f32.mrb[0].mxu0
    %v7836 = vadd.f32 %v7059, %v7835
    %v7837 = vpop.f32.mrb[0].mxu0
    %v7838 = vadd.f32 %v7061, %v7837
    %7839 = vmatprep.mubr.f32.mxu0 %v2144
    %7840 = vmatmul.mubr.f32.gmra.mrb[0].mxu0 %v2143
    %v7841 = vpop.f32.mrb[0].mxu0
    %v7842 = vadd.f32 %v7065, %v7841
    %v7843 = vpop.f32.mrb[0].mxu0
    %v7844 = vadd.f32 %v7067, %v7843
    %7845 = vmatprep.mubr.f32.mxu0 %v2148
    %7846 = vmatmul.mubr.f32.gmra.mrb[0].mxu0 %v2147
    %v7847 = vpop.f32.mrb[0].mxu0
    %v7848 = vadd.f32 %v7071, %v7847
    %v7849 = vpop.f32.mrb[0].mxu0
    %v7850 = vadd.f32 %v7073, %v7849
    %7851 = vmatprep.mubr.f32.mxu0 %v2152
    %7852 = vmatmul.mubr.f32.gmra.mrb[0].mxu0 %v2151
    %v7853 = vpop.f32.mrb[0].mxu0
    %v7854 = vpop.f32.mrb[0].mxu0
    %7855 = vdwg.mxu0
    %7856 = vmatprep.subr.mxu0 %v2416
    %7857 = vmatpush1.msra.mxu0 %v2415
    %7858 = vmatprep.subr.mxu0 %v2424
    %7859 = vmatpush1.msra.mxu0 %v2423
    %7860 = vmatprep.subr.mxu0 %v2432
    %7861 = vmatpush1.msra.mxu0 %v2431
    %7862 = vmatprep.subr.mxu0 %v2440
    %7863 = vmatpush1.msra.mxu0 %v2439
    %7864 = vmatprep.subr.mxu0 %v2448
    %7865 = vmatpush1.msra.mxu0 %v2447
    %7866 = vmatprep.subr.mxu0 %v2456
    %7867 = vmatpush1.msra.mxu0 %v2455
    %7868 = vmatprep.subr.mxu0 %v2464
    %7869 = vmatpush1.msra.mxu0 %v2463
    %7870 = vmatprep.subr.mxu0 %v2472
    %7871 = vmatpush1.msra.mxu0 %v2471
    %7872 = vmatprep.subr.mxu0 %v2480
    %7873 = vmatpush1.msra.mxu0 %v2479
    %7874 = vmatprep.subr.mxu0 %v2488
    %7875 = vmatpush1.msra.mxu0 %v2487
    %7876 = vmatprep.subr.mxu0 %v2496
    %7877 = vmatpush1.msra.mxu0 %v2495
    %7878 = vmatprep.subr.mxu0 %v2504
    %7879 = vmatpush1.msra.mxu0 %v2503
    %7880 = vmatprep.subr.mxu0 %v2512
    %7881 = vmatpush1.msra.mxu0 %v2511
    %7882 = vmatprep.subr.mxu0 %v2520
    %7883 = vmatpush1.msra.mxu0 %v2519
    %7884 = vmatprep.subr.mxu0 %v2528
    %7885 = vmatpush1.msra.mxu0 %v2527
    %7886 = vmatprep.subr.mxu0 %v2536
    %7887 = vmatpush1.msra.mxu0 %v2535
    %7888 = vmatprep.subr.mxu0 %v2544
    %7889 = vmatpush1.msra.mxu0 %v2543
    %7890 = vmatprep.subr.mxu0 %v2552
    %7891 = vmatpush1.msra.mxu0 %v2551
    %7892 = vmatprep.subr.mxu0 %v2560
    %7893 = vmatpush1.msra.mxu0 %v2559
    %7894 = vmatprep.subr.mxu0 %v2568
    %7895 = vmatpush1.msra.mxu0 %v2567
    %7896 = vmatprep.subr.mxu0 %v2576
    %7897 = vmatpush1.msra.mxu0 %v2575
    %7898 = vmatprep.subr.mxu0 %v2584
    %7899 = vmatpush1.msra.mxu0 %v2583
    %7900 = vmatprep.subr.mxu0 %v2592
    %7901 = vmatpush1.msra.mxu0 %v2591
    %7902 = vmatprep.subr.mxu0 %v2600
    %7903 = vmatpush1.msra.mxu0 %v2599
    %7904 = vmatprep.subr.mxu0 %v2608
    %7905 = vmatpush1.msra.mxu0 %v2607
    %7906 = vmatprep.subr.mxu0 %v2616
    %7907 = vmatpush1.msra.mxu0 %v2615
    %7908 = vmatprep.subr.mxu0 %v2624
    %7909 = vmatpush1.msra.mxu0 %v2623
    %7910 = vmatprep.subr.mxu0 %v2632
    %7911 = vmatpush1.msra.mxu0 %v2631
    %7912 = vmatprep.subr.mxu0 %v2640
    %7913 = vmatpush1.msra.mxu0 %v2639
    %7914 = vmatprep.subr.mxu0 %v2648
    %7915 = vmatpush1.msra.mxu0 %v2647
    %7916 = vmatprep.subr.mxu0 %v2656
    %7917 = vmatpush1.msra.mxu0 %v2655
    %7918 = vmatprep.subr.mxu0 %v2664
    %7919 = vmatpush1.msra.mxu0 %v2663
    %7920 = vmatprep.mubr.f32.mxu0 %v2126
    %7921 = vmatmul.mubr.f32.gmra.mrb[0].mxu0 %v2125
    %v7922 = vpop.f32.mrb[0].mxu0
    %v7923 = vadd.f32 %v7812, %v7922
    %v7924 = vpop.f32.mrb[0].mxu0
    %v7925 = vadd.f32 %v7814, %v7924
    %7926 = vmatprep.mubr.f32.mxu0 %v2130
    %7927 = vmatmul.mubr.f32.gmra.mrb[0].mxu0 %v2129
    %v7928 = vpop.f32.mrb[0].mxu0
    %v7929 = vadd.f32 %v7818, %v7928
    %v7930 = vpop.f32.mrb[0].mxu0
    %v7931 = vadd.f32 %v7820, %v7930
    %7932 = vmatprep.mubr.f32.mxu0 %v2134
    %7933 = vmatmul.mubr.f32.gmra.mrb[0].mxu0 %v2133
    %v7934 = vpop.f32.mrb[0].mxu0
    %v7935 = vadd.f32 %v7824, %v7934
    %v7936 = vpop.f32.mrb[0].mxu0
    %v7937 = vadd.f32 %v7826, %v7936
    %7938 = vmatprep.mubr.f32.mxu0 %v2138
    %7939 = vmatmul.mubr.f32.gmra.mrb[0].mxu0 %v2137
    %v7940 = vpop.f32.mrb[0].mxu0
    %v7941 = vadd.f32 %v7830, %v7940
    %v7942 = vpop.f32.mrb[0].mxu0
    %v7943 = vadd.f32 %v7832, %v7942
    %7944 = vmatprep.mubr.f32.mxu0 %v2142
    %7945 = vmatmul.mubr.f32.gmra.mrb[0].mxu0 %v2141
    %v7946 = vpop.f32.mrb[0].mxu0
    %v7947 = vadd.f32 %v7836, %v7946
    %v7948 = vpop.f32.mrb[0].mxu0
    %v7949 = vadd.f32 %v7838, %v7948
    %7950 = vmatprep.mubr.f32.mxu0 %v2146
    %7951 = vmatmul.mubr.f32.gmra.mrb[0].mxu0 %v2145
    %v7952 = vpop.f32.mrb[0].mxu0
    %v7953 = vadd.f32 %v7842, %v7952
    %v7954 = vpop.f32.mrb[0].mxu0
    %v7955 = vadd.f32 %v7844, %v7954
    %7956 = vmatprep.mubr.f32.mxu0 %v2150
    %7957 = vmatmul.mubr.f32.gmra.mrb[0].mxu0 %v2149
    %v7958 = vpop.f32.mrb[0].mxu0
    %v7959 = vadd.f32 %v7848, %v7958
    %v7960 = vpop.f32.mrb[0].mxu0
    %v7961 = vadd.f32 %v7850, %v7960
    %7962 = vmatprep.mubr.f32.mxu0 %v2154
    %7963 = vmatmul.mubr.f32.gmra.mrb[0].mxu0 %v2153
    %v7964 = vpop.f32.mrb[0].mxu0
    %v7965 = vpop.f32.mrb[0].mxu0
    %7966 = vdwg.mxu0
    %7967 = vmatprep.subr.mxu0 %v2162
    %7968 = vmatpush1.msra.mxu0 %v2161
    %7969 = vmatprep.subr.mxu0 %v2170
    %7970 = vmatpush1.msra.mxu0 %v2169
    %7971 = vmatprep.subr.mxu0 %v2178
    %7972 = vmatpush1.msra.mxu0 %v2177
    %7973 = vmatprep.subr.mxu0 %v2186
    %7974 = vmatpush1.msra.mxu0 %v2185
    %7975 = vmatprep.subr.mxu0 %v2194
    %7976 = vmatpush1.msra.mxu0 %v2193
    %7977 = vmatprep.subr.mxu0 %v2202
    %7978 = vmatpush1.msra.mxu0 %v2201
    %7979 = vmatprep.subr.mxu0 %v2210
    %7980 = vmatpush1.msra.mxu0 %v2209
    %7981 = vmatprep.subr.mxu0 %v2218
    %7982 = vmatpush1.msra.mxu0 %v2217
    %7983 = vmatprep.subr.mxu0 %v2226
    %7984 = vmatpush1.msra.mxu0 %v2225
    %7985 = vmatprep.subr.mxu0 %v2234
    %7986 = vmatpush1.msra.mxu0 %v2233
    %7987 = vmatprep.subr.mxu0 %v2242
    %7988 = vmatpush1.msra.mxu0 %v2241
    %7989 = vmatprep.subr.mxu0 %v2250
    %7990 = vmatpush1.msra.mxu0 %v2249
    %7991 = vmatprep.subr.mxu0 %v2258
    %7992 = vmatpush1.msra.mxu0 %v2257
    %7993 = vmatprep.subr.mxu0 %v2266
    %7994 = vmatpush1.msra.mxu0 %v2265
    %7995 = vmatprep.subr.mxu0 %v2274
    %7996 = vmatpush1.msra.mxu0 %v2273
    %7997 = vmatprep.subr.mxu0 %v2282
    %7998 = vmatpush1.msra.mxu0 %v2281
    %7999 = vmatprep.subr.mxu0 %v2290
    %8000 = vmatpush1.msra.mxu0 %v2289
    %8001 = vmatprep.subr.mxu0 %v2298
    %8002 = vmatpush1.msra.mxu0 %v2297
    %8003 = vmatprep.subr.mxu0 %v2306
    %8004 = vmatpush1.msra.mxu0 %v2305
    %8005 = vmatprep.subr.mxu0 %v2314
    %8006 = vmatpush1.msra.mxu0 %v2313
    %8007 = vmatprep.subr.mxu0 %v2322
    %8008 = vmatpush1.msra.mxu0 %v2321
    %8009 = vmatprep.subr.mxu0 %v2330
    %8010 = vmatpush1.msra.mxu0 %v2329
    %8011 = vmatprep.subr.mxu0 %v2338
    %8012 = vmatpush1.msra.mxu0 %v2337
    %8013 = vmatprep.subr.mxu0 %v2346
    %8014 = vmatpush1.msra.mxu0 %v2345
    %8015 = vmatprep.subr.mxu0 %v2354
    %8016 = vmatpush1.msra.mxu0 %v2353
    %8017 = vmatprep.subr.mxu0 %v2362
    %8018 = vmatpush1.msra.mxu0 %v2361
    %8019 = vmatprep.subr.mxu0 %v2370
    %8020 = vmatpush1.msra.mxu0 %v2369
    %8021 = vmatprep.subr.mxu0 %v2378
    %8022 = vmatpush1.msra.mxu0 %v2377
    %8023 = vmatprep.subr.mxu0 %v2386
    %8024 = vmatpush1.msra.mxu0 %v2385
    %8025 = vmatprep.subr.mxu0 %v2394
    %8026 = vmatpush1.msra.mxu0 %v2393
    %8027 = vmatprep.subr.mxu0 %v2402
    %8028 = vmatpush1.msra.mxu0 %v2401
    %8029 = vmatprep.subr.mxu0 %v2410
    %8030 = vmatpush1.msra.mxu0 %v2409
    %8031 = vmatprep.mubr.f32.mxu0 %v2124
    %8032 = vmatmul.mubr.f32.gmra.mrb[0].mxu0 %v2123
    %v8033 = vpop.f32.mrb[0].mxu0
    %v8034 = vadd.f32 %v7257, %v8033
    %v8035 = vpop.f32.mrb[0].mxu0
    %v8036 = vadd.f32 %v7259, %v8035
    %8037 = vmatprep.mubr.f32.mxu0 %v2128
    %8038 = vmatmul.mubr.f32.gmra.mrb[0].mxu0 %v2127
    %v8039 = vpop.f32.mrb[0].mxu0
    %v8040 = vadd.f32 %v7263, %v8039
    %v8041 = vpop.f32.mrb[0].mxu0
    %v8042 = vadd.f32 %v7265, %v8041
    %8043 = vmatprep.mubr.f32.mxu0 %v2132
    %8044 = vmatmul.mubr.f32.gmra.mrb[0].mxu0 %v2131
    %v8045 = vpop.f32.mrb[0].mxu0
    %v8046 = vadd.f32 %v7269, %v8045
    %v8047 = vpop.f32.mrb[0].mxu0
    %v8048 = vadd.f32 %v7271, %v8047
    %8049 = vmatprep.mubr.f32.mxu0 %v2136
    %8050 = vmatmul.mubr.f32.gmra.mrb[0].mxu0 %v2135
    %v8051 = vpop.f32.mrb[0].mxu0
    %v8052 = vadd.f32 %v7275, %v8051
    %v8053 = vpop.f32.mrb[0].mxu0
    %v8054 = vadd.f32 %v7277, %v8053
    %8055 = vmatprep.mubr.f32.mxu0 %v2140
    %8056 = vmatmul.mubr.f32.gmra.mrb[0].mxu0 %v2139
    %v8057 = vpop.f32.mrb[0].mxu0
    %v8058 = vadd.f32 %v7281, %v8057
    %v8059 = vpop.f32.mrb[0].mxu0
    %v8060 = vadd.f32 %v7283, %v8059
    %8061 = vmatprep.mubr.f32.mxu0 %v2144
    %8062 = vmatmul.mubr.f32.gmra.mrb[0].mxu0 %v2143
    %v8063 = vpop.f32.mrb[0].mxu0
    %v8064 = vadd.f32 %v7287, %v8063
    %v8065 = vpop.f32.mrb[0].mxu0
    %v8066 = vadd.f32 %v7289, %v8065
    %8067 = vmatprep.mubr.f32.mxu0 %v2148
    %8068 = vmatmul.mubr.f32.gmra.mrb[0].mxu0 %v2147
    %v8069 = vpop.f32.mrb[0].mxu0
    %v8070 = vadd.f32 %v7293, %v8069
    %v8071 = vpop.f32.mrb[0].mxu0
    %v8072 = vadd.f32 %v7295, %v8071
    %8073 = vmatprep.mubr.f32.mxu0 %v2152
    %8074 = vmatmul.mubr.f32.gmra.mrb[0].mxu0 %v2151
    %v8075 = vpop.f32.mrb[0].mxu0
    %v8076 = vpop.f32.mrb[0].mxu0
    %8077 = vdwg.mxu0
    %8078 = vmatprep.subr.mxu0 %v2418
    %8079 = vmatpush1.msra.mxu0 %v2417
    %8080 = vmatprep.subr.mxu0 %v2426
    %8081 = vmatpush1.msra.mxu0 %v2425
    %8082 = vmatprep.subr.mxu0 %v2434
    %8083 = vmatpush1.msra.mxu0 %v2433
    %8084 = vmatprep.subr.mxu0 %v2442
    %8085 = vmatpush1.msra.mxu0 %v2441
    %8086 = vmatprep.subr.mxu0 %v2450
    %8087 = vmatpush1.msra.mxu0 %v2449
    %8088 = vmatprep.subr.mxu0 %v2458
    %8089 = vmatpush1.msra.mxu0 %v2457
    %8090 = vmatprep.subr.mxu0 %v2466
    %8091 = vmatpush1.msra.mxu0 %v2465
    %8092 = vmatprep.subr.mxu0 %v2474
    %8093 = vmatpush1.msra.mxu0 %v2473
    %8094 = vmatprep.subr.mxu0 %v2482
    %8095 = vmatpush1.msra.mxu0 %v2481
    %8096 = vmatprep.subr.mxu0 %v2490
    %8097 = vmatpush1.msra.mxu0 %v2489
    %8098 = vmatprep.subr.mxu0 %v2498
    %8099 = vmatpush1.msra.mxu0 %v2497
    %8100 = vmatprep.subr.mxu0 %v2506
    %8101 = vmatpush1.msra.mxu0 %v2505
    %8102 = vmatprep.subr.mxu0 %v2514
    %8103 = vmatpush1.msra.mxu0 %v2513
    %8104 = vmatprep.subr.mxu0 %v2522
    %8105 = vmatpush1.msra.mxu0 %v2521
    %8106 = vmatprep.subr.mxu0 %v2530
    %8107 = vmatpush1.msra.mxu0 %v2529
    %8108 = vmatprep.subr.mxu0 %v2538
    %8109 = vmatpush1.msra.mxu0 %v2537
    %8110 = vmatprep.subr.mxu0 %v2546
    %8111 = vmatpush1.msra.mxu0 %v2545
    %8112 = vmatprep.subr.mxu0 %v2554
    %8113 = vmatpush1.msra.mxu0 %v2553
    %8114 = vmatprep.subr.mxu0 %v2562
    %8115 = vmatpush1.msra.mxu0 %v2561
    %8116 = vmatprep.subr.mxu0 %v2570
    %8117 = vmatpush1.msra.mxu0 %v2569
    %8118 = vmatprep.subr.mxu0 %v2578
    %8119 = vmatpush1.msra.mxu0 %v2577
    %8120 = vmatprep.subr.mxu0 %v2586
    %8121 = vmatpush1.msra.mxu0 %v2585
    %8122 = vmatprep.subr.mxu0 %v2594
    %8123 = vmatpush1.msra.mxu0 %v2593
    %8124 = vmatprep.subr.mxu0 %v2602
    %8125 = vmatpush1.msra.mxu0 %v2601
    %8126 = vmatprep.subr.mxu0 %v2610
    %8127 = vmatpush1.msra.mxu0 %v2609
    %8128 = vmatprep.subr.mxu0 %v2618
    %8129 = vmatpush1.msra.mxu0 %v2617
    %8130 = vmatprep.subr.mxu0 %v2626
    %8131 = vmatpush1.msra.mxu0 %v2625
    %8132 = vmatprep.subr.mxu0 %v2634
    %8133 = vmatpush1.msra.mxu0 %v2633
    %8134 = vmatprep.subr.mxu0 %v2642
    %8135 = vmatpush1.msra.mxu0 %v2641
    %8136 = vmatprep.subr.mxu0 %v2650
    %8137 = vmatpush1.msra.mxu0 %v2649
    %8138 = vmatprep.subr.mxu0 %v2658
    %8139 = vmatpush1.msra.mxu0 %v2657
    %8140 = vmatprep.subr.mxu0 %v2666
    %8141 = vmatpush1.msra.mxu0 %v2665
    %8142 = vmatprep.mubr.f32.mxu0 %v2126
    %8143 = vmatmul.mubr.f32.gmra.mrb[0].mxu0 %v2125
    %v8144 = vpop.f32.mrb[0].mxu0
    %v8145 = vadd.f32 %v8034, %v8144
    %v8146 = vpop.f32.mrb[0].mxu0
    %v8147 = vadd.f32 %v8036, %v8146
    %8148 = vmatprep.mubr.f32.mxu0 %v2130
    %8149 = vmatmul.mubr.f32.gmra.mrb[0].mxu0 %v2129
    %v8150 = vpop.f32.mrb[0].mxu0
    %v8151 = vadd.f32 %v8040, %v8150
    %v8152 = vpop.f32.mrb[0].mxu0
    %v8153 = vadd.f32 %v8042, %v8152
    %8154 = vmatprep.mubr.f32.mxu0 %v2134
    %8155 = vmatmul.mubr.f32.gmra.mrb[0].mxu0 %v2133
    %v8156 = vpop.f32.mrb[0].mxu0
    %v8157 = vadd.f32 %v8046, %v8156
    %v8158 = vpop.f32.mrb[0].mxu0
    %v8159 = vadd.f32 %v8048, %v8158
    %8160 = vmatprep.mubr.f32.mxu0 %v2138
    %8161 = vmatmul.mubr.f32.gmra.mrb[0].mxu0 %v2137
    %v8162 = vpop.f32.mrb[0].mxu0
    %v8163 = vadd.f32 %v8052, %v8162
    %v8164 = vpop.f32.mrb[0].mxu0
    %v8165 = vadd.f32 %v8054, %v8164
    %8166 = vmatprep.mubr.f32.mxu0 %v2142
    %8167 = vmatmul.mubr.f32.gmra.mrb[0].mxu0 %v2141
    %v8168 = vpop.f32.mrb[0].mxu0
    %v8169 = vadd.f32 %v8058, %v8168
    %v8170 = vpop.f32.mrb[0].mxu0
    %v8171 = vadd.f32 %v8060, %v8170
    %8172 = vmatprep.mubr.f32.mxu0 %v2146
    %8173 = vmatmul.mubr.f32.gmra.mrb[0].mxu0 %v2145
    %v8174 = vpop.f32.mrb[0].mxu0
    %v8175 = vadd.f32 %v8064, %v8174
    %v8176 = vpop.f32.mrb[0].mxu0
    %v8177 = vadd.f32 %v8066, %v8176
    %8178 = vmatprep.mubr.f32.mxu0 %v2150
    %8179 = vmatmul.mubr.f32.gmra.mrb[0].mxu0 %v2149
    %v8180 = vpop.f32.mrb[0].mxu0
    %v8181 = vadd.f32 %v8070, %v8180
    %v8182 = vpop.f32.mrb[0].mxu0
    %v8183 = vadd.f32 %v8072, %v8182
    %8184 = vmatprep.mubr.f32.mxu0 %v2154
    %8185 = vmatmul.mubr.f32.gmra.mrb[0].mxu0 %v2153
    %v8186 = vpop.f32.mrb[0].mxu0
    %v8187 = vpop.f32.mrb[0].mxu0
    %8188 = vdwg.mxu0
    %8189 = vmatprep.subr.mxu0 %v3182
    %8190 = vmatpush1.msra.mxu0 %v3181
    %8191 = vmatprep.subr.mxu0 %v3190
    %8192 = vmatpush1.msra.mxu0 %v3189
    %8193 = vmatprep.subr.mxu0 %v3198
    %8194 = vmatpush1.msra.mxu0 %v3197
    %8195 = vmatprep.subr.mxu0 %v3206
    %8196 = vmatpush1.msra.mxu0 %v3205
    %8197 = vmatprep.subr.mxu0 %v3214
    %8198 = vmatpush1.msra.mxu0 %v3213
    %8199 = vmatprep.subr.mxu0 %v3222
    %8200 = vmatpush1.msra.mxu0 %v3221
    %8201 = vmatprep.subr.mxu0 %v3230
    %8202 = vmatpush1.msra.mxu0 %v3229
    %8203 = vmatprep.subr.mxu0 %v3238
    %8204 = vmatpush1.msra.mxu0 %v3237
    %8205 = vmatprep.subr.mxu0 %v3246
    %8206 = vmatpush1.msra.mxu0 %v3245
    %8207 = vmatprep.subr.mxu0 %v3254
    %8208 = vmatpush1.msra.mxu0 %v3253
    %8209 = vmatprep.subr.mxu0 %v3262
    %8210 = vmatpush1.msra.mxu0 %v3261
    %8211 = vmatprep.subr.mxu0 %v3270
    %8212 = vmatpush1.msra.mxu0 %v3269
    %8213 = vmatprep.subr.mxu0 %v3278
    %8214 = vmatpush1.msra.mxu0 %v3277
    %8215 = vmatprep.subr.mxu0 %v3286
    %8216 = vmatpush1.msra.mxu0 %v3285
    %8217 = vmatprep.subr.mxu0 %v3294
    %8218 = vmatpush1.msra.mxu0 %v3293
    %8219 = vmatprep.subr.mxu0 %v3302
    %8220 = vmatpush1.msra.mxu0 %v3301
    %8221 = vmatprep.subr.mxu0 %v3310
    %8222 = vmatpush1.msra.mxu0 %v3309
    %8223 = vmatprep.subr.mxu0 %v3318
    %8224 = vmatpush1.msra.mxu0 %v3317
    %8225 = vmatprep.subr.mxu0 %v3326
    %8226 = vmatpush1.msra.mxu0 %v3325
    %8227 = vmatprep.subr.mxu0 %v3334
    %8228 = vmatpush1.msra.mxu0 %v3333
    %8229 = vmatprep.subr.mxu0 %v3342
    %8230 = vmatpush1.msra.mxu0 %v3341
    %8231 = vmatprep.subr.mxu0 %v3350
    %8232 = vmatpush1.msra.mxu0 %v3349
    %8233 = vmatprep.subr.mxu0 %v3358
    %8234 = vmatpush1.msra.mxu0 %v3357
    %8235 = vmatprep.subr.mxu0 %v3366
    %8236 = vmatpush1.msra.mxu0 %v3365
    %8237 = vmatprep.subr.mxu0 %v3374
    %8238 = vmatpush1.msra.mxu0 %v3373
    %8239 = vmatprep.subr.mxu0 %v3382
    %8240 = vmatpush1.msra.mxu0 %v3381
    %8241 = vmatprep.subr.mxu0 %v3390
    %8242 = vmatpush1.msra.mxu0 %v3389
    %8243 = vmatprep.subr.mxu0 %v3398
    %8244 = vmatpush1.msra.mxu0 %v3397
    %8245 = vmatprep.subr.mxu0 %v3406
    %8246 = vmatpush1.msra.mxu0 %v3405
    %8247 = vmatprep.subr.mxu0 %v3414
    %8248 = vmatpush1.msra.mxu0 %v3413
    %8249 = vmatprep.subr.mxu0 %v3422
    %8250 = vmatpush1.msra.mxu0 %v3421
    %8251 = vmatprep.subr.mxu0 %v3430
    %8252 = vmatpush1.msra.mxu0 %v3429
    %8253 = vmatprep.mubr.f32.mxu0 %v2128
    %8254 = vmatmul.mubr.f32.gmra.mrb[0].mxu0 %v2127
    %v8255 = vpop.f32.mrb[0].mxu0
    %v8256 = vadd.f32 0.0, %v8255
    %v8257 = vpop.f32.mrb[0].mxu0
    %v8258 = vadd.f32 0.0, %v8257
    %8259 = vmatprep.mubr.f32.mxu0 %v2132
    %8260 = vmatmul.mubr.f32.gmra.mrb[0].mxu0 %v2131
    %v8261 = vpop.f32.mrb[0].mxu0
    %v8262 = vadd.f32 0.0, %v8261
    %v8263 = vpop.f32.mrb[0].mxu0
    %v8264 = vadd.f32 0.0, %v8263
    %8265 = vmatprep.mubr.f32.mxu0 %v2136
    %8266 = vmatmul.mubr.f32.gmra.mrb[0].mxu0 %v2135
    %v8267 = vpop.f32.mrb[0].mxu0
    %v8268 = vadd.f32 0.0, %v8267
    %v8269 = vpop.f32.mrb[0].mxu0
    %v8270 = vadd.f32 0.0, %v8269
    %8271 = vmatprep.mubr.f32.mxu0 %v2140
    %8272 = vmatmul.mubr.f32.gmra.mrb[0].mxu0 %v2139
    %v8273 = vpop.f32.mrb[0].mxu0
    %v8274 = vadd.f32 0.0, %v8273
    %v8275 = vpop.f32.mrb[0].mxu0
    %v8276 = vadd.f32 0.0, %v8275
    %8277 = vmatprep.mubr.f32.mxu0 %v2144
    %8278 = vmatmul.mubr.f32.gmra.mrb[0].mxu0 %v2143
    %v8279 = vpop.f32.mrb[0].mxu0
    %v8280 = vadd.f32 0.0, %v8279
    %v8281 = vpop.f32.mrb[0].mxu0
    %v8282 = vadd.f32 0.0, %v8281
    %8283 = vmatprep.mubr.f32.mxu0 %v2148
    %8284 = vmatmul.mubr.f32.gmra.mrb[0].mxu0 %v2147
    %v8285 = vpop.f32.mrb[0].mxu0
    %v8286 = vadd.f32 0.0, %v8285
    %v8287 = vpop.f32.mrb[0].mxu0
    %v8288 = vadd.f32 0.0, %v8287
    %8289 = vmatprep.mubr.f32.mxu0 %v2152
    %8290 = vmatmul.mubr.f32.gmra.mrb[0].mxu0 %v2151
    %v8291 = vpop.f32.mrb[0].mxu0
    %v8292 = vadd.f32 0.0, %v8291
    %v8293 = vpop.f32.mrb[0].mxu0
    %v8294 = vadd.f32 0.0, %v8293
    %8295 = vmatprep.mubr.f32.mxu0 0.0
    %8296 = vmatmul.mubr.f32.gmra.mrb[0].mxu0 0.0
    %v8297 = vpop.f32.mrb[0].mxu0
    %v8298 = vpop.f32.mrb[0].mxu0
    %8299 = vdwg.mxu0
    %8300 = vmatprep.subr.mxu0 %v3438
    %8301 = vmatpush1.msra.mxu0 %v3437
    %8302 = vmatprep.subr.mxu0 %v3446
    %8303 = vmatpush1.msra.mxu0 %v3445
    %8304 = vmatprep.subr.mxu0 %v3454
    %8305 = vmatpush1.msra.mxu0 %v3453
    %8306 = vmatprep.subr.mxu0 %v3462
    %8307 = vmatpush1.msra.mxu0 %v3461
    %8308 = vmatprep.subr.mxu0 %v3470
    %8309 = vmatpush1.msra.mxu0 %v3469
    %8310 = vmatprep.subr.mxu0 %v3478
    %8311 = vmatpush1.msra.mxu0 %v3477
    %8312 = vmatprep.subr.mxu0 %v3486
    %8313 = vmatpush1.msra.mxu0 %v3485
    %8314 = vmatprep.subr.mxu0 %v3494
    %8315 = vmatpush1.msra.mxu0 %v3493
    %8316 = vmatprep.subr.mxu0 %v3502
    %8317 = vmatpush1.msra.mxu0 %v3501
    %8318 = vmatprep.subr.mxu0 %v3510
    %8319 = vmatpush1.msra.mxu0 %v3509
    %8320 = vmatprep.subr.mxu0 %v3518
    %8321 = vmatpush1.msra.mxu0 %v3517
    %8322 = vmatprep.subr.mxu0 %v3526
    %8323 = vmatpush1.msra.mxu0 %v3525
    %8324 = vmatprep.subr.mxu0 %v3534
    %8325 = vmatpush1.msra.mxu0 %v3533
    %8326 = vmatprep.subr.mxu0 %v3542
    %8327 = vmatpush1.msra.mxu0 %v3541
    %8328 = vmatprep.subr.mxu0 %v3550
    %8329 = vmatpush1.msra.mxu0 %v3549
    %8330 = vmatprep.subr.mxu0 %v3558
    %8331 = vmatpush1.msra.mxu0 %v3557
    %8332 = vmatprep.subr.mxu0 %v3566
    %8333 = vmatpush1.msra.mxu0 %v3565
    %8334 = vmatprep.subr.mxu0 %v3574
    %8335 = vmatpush1.msra.mxu0 %v3573
    %8336 = vmatprep.subr.mxu0 %v3582
    %8337 = vmatpush1.msra.mxu0 %v3581
    %8338 = vmatprep.subr.mxu0 %v3590
    %8339 = vmatpush1.msra.mxu0 %v3589
    %8340 = vmatprep.subr.mxu0 %v3598
    %8341 = vmatpush1.msra.mxu0 %v3597
    %8342 = vmatprep.subr.mxu0 %v3606
    %8343 = vmatpush1.msra.mxu0 %v3605
    %8344 = vmatprep.subr.mxu0 %v3614
    %8345 = vmatpush1.msra.mxu0 %v3613
    %8346 = vmatprep.subr.mxu0 %v3622
    %8347 = vmatpush1.msra.mxu0 %v3621
    %8348 = vmatprep.subr.mxu0 %v3630
    %8349 = vmatpush1.msra.mxu0 %v3629
    %8350 = vmatprep.subr.mxu0 %v3638
    %8351 = vmatpush1.msra.mxu0 %v3637
    %8352 = vmatprep.subr.mxu0 %v3646
    %8353 = vmatpush1.msra.mxu0 %v3645
    %8354 = vmatprep.subr.mxu0 %v3654
    %8355 = vmatpush1.msra.mxu0 %v3653
    %8356 = vmatprep.subr.mxu0 %v3662
    %8357 = vmatpush1.msra.mxu0 %v3661
    %8358 = vmatprep.subr.mxu0 %v3670
    %8359 = vmatpush1.msra.mxu0 %v3669
    %8360 = vmatprep.subr.mxu0 %v3678
    %8361 = vmatpush1.msra.mxu0 %v3677
    %8362 = vmatprep.subr.mxu0 %v3686
    %8363 = vmatpush1.msra.mxu0 %v3685
    %8364 = vmatprep.mubr.f32.mxu0 %v2130
    %8365 = vmatmul.mubr.f32.gmra.mrb[0].mxu0 %v2129
    %v8366 = vpop.f32.mrb[0].mxu0
    %v8367 = vadd.f32 %v8256, %v8366
    %v8368 = vpop.f32.mrb[0].mxu0
    %v8369 = vadd.f32 %v8258, %v8368
    %8370 = vmatprep.mubr.f32.mxu0 %v2134
    %8371 = vmatmul.mubr.f32.gmra.mrb[0].mxu0 %v2133
    %v8372 = vpop.f32.mrb[0].mxu0
    %v8373 = vadd.f32 %v8262, %v8372
    %v8374 = vpop.f32.mrb[0].mxu0
    %v8375 = vadd.f32 %v8264, %v8374
    %8376 = vmatprep.mubr.f32.mxu0 %v2138
    %8377 = vmatmul.mubr.f32.gmra.mrb[0].mxu0 %v2137
    %v8378 = vpop.f32.mrb[0].mxu0
    %v8379 = vadd.f32 %v8268, %v8378
    %v8380 = vpop.f32.mrb[0].mxu0
    %v8381 = vadd.f32 %v8270, %v8380
    %8382 = vmatprep.mubr.f32.mxu0 %v2142
    %8383 = vmatmul.mubr.f32.gmra.mrb[0].mxu0 %v2141
    %v8384 = vpop.f32.mrb[0].mxu0
    %v8385 = vadd.f32 %v8274, %v8384
    %v8386 = vpop.f32.mrb[0].mxu0
    %v8387 = vadd.f32 %v8276, %v8386
    %8388 = vmatprep.mubr.f32.mxu0 %v2146
    %8389 = vmatmul.mubr.f32.gmra.mrb[0].mxu0 %v2145
    %v8390 = vpop.f32.mrb[0].mxu0
    %v8391 = vadd.f32 %v8280, %v8390
    %v8392 = vpop.f32.mrb[0].mxu0
    %v8393 = vadd.f32 %v8282, %v8392
    %8394 = vmatprep.mubr.f32.mxu0 %v2150
    %8395 = vmatmul.mubr.f32.gmra.mrb[0].mxu0 %v2149
    %v8396 = vpop.f32.mrb[0].mxu0
    %v8397 = vadd.f32 %v8286, %v8396
    %v8398 = vpop.f32.mrb[0].mxu0
    %v8399 = vadd.f32 %v8288, %v8398
    %8400 = vmatprep.mubr.f32.mxu0 %v2154
    %8401 = vmatmul.mubr.f32.gmra.mrb[0].mxu0 %v2153
    %v8402 = vpop.f32.mrb[0].mxu0
    %v8403 = vadd.f32 %v8292, %v8402
    %v8404 = vpop.f32.mrb[0].mxu0
    %v8405 = vadd.f32 %v8294, %v8404
    %8406 = vmatprep.mubr.f32.mxu0 0.0
    %8407 = vmatmul.mubr.f32.gmra.mrb[0].mxu0 0.0
    %v8408 = vpop.f32.mrb[0].mxu0
    %v8409 = vpop.f32.mrb[0].mxu0
    %8410 = vdwg.mxu0
    %8411 = vmatprep.subr.mxu0 %v3184
    %8412 = vmatpush1.msra.mxu0 %v3183
    %8413 = vmatprep.subr.mxu0 %v3192
    %8414 = vmatpush1.msra.mxu0 %v3191
    %8415 = vmatprep.subr.mxu0 %v3200
    %8416 = vmatpush1.msra.mxu0 %v3199
    %8417 = vmatprep.subr.mxu0 %v3208
    %8418 = vmatpush1.msra.mxu0 %v3207
    %8419 = vmatprep.subr.mxu0 %v3216
    %8420 = vmatpush1.msra.mxu0 %v3215
    %8421 = vmatprep.subr.mxu0 %v3224
    %8422 = vmatpush1.msra.mxu0 %v3223
    %8423 = vmatprep.subr.mxu0 %v3232
    %8424 = vmatpush1.msra.mxu0 %v3231
    %8425 = vmatprep.subr.mxu0 %v3240
    %8426 = vmatpush1.msra.mxu0 %v3239
    %8427 = vmatprep.subr.mxu0 %v3248
    %8428 = vmatpush1.msra.mxu0 %v3247
    %8429 = vmatprep.subr.mxu0 %v3256
    %8430 = vmatpush1.msra.mxu0 %v3255
    %8431 = vmatprep.subr.mxu0 %v3264
    %8432 = vmatpush1.msra.mxu0 %v3263
    %8433 = vmatprep.subr.mxu0 %v3272
    %8434 = vmatpush1.msra.mxu0 %v3271
    %8435 = vmatprep.subr.mxu0 %v3280
    %8436 = vmatpush1.msra.mxu0 %v3279
    %8437 = vmatprep.subr.mxu0 %v3288
    %8438 = vmatpush1.msra.mxu0 %v3287
    %8439 = vmatprep.subr.mxu0 %v3296
    %8440 = vmatpush1.msra.mxu0 %v3295
    %8441 = vmatprep.subr.mxu0 %v3304
    %8442 = vmatpush1.msra.mxu0 %v3303
    %8443 = vmatprep.subr.mxu0 %v3312
    %8444 = vmatpush1.msra.mxu0 %v3311
    %8445 = vmatprep.subr.mxu0 %v3320
    %8446 = vmatpush1.msra.mxu0 %v3319
    %8447 = vmatprep.subr.mxu0 %v3328
    %8448 = vmatpush1.msra.mxu0 %v3327
    %8449 = vmatprep.subr.mxu0 %v3336
    %8450 = vmatpush1.msra.mxu0 %v3335
    %8451 = vmatprep.subr.mxu0 %v3344
    %8452 = vmatpush1.msra.mxu0 %v3343
    %8453 = vmatprep.subr.mxu0 %v3352
    %8454 = vmatpush1.msra.mxu0 %v3351
    %8455 = vmatprep.subr.mxu0 %v3360
    %8456 = vmatpush1.msra.mxu0 %v3359
    %8457 = vmatprep.subr.mxu0 %v3368
    %8458 = vmatpush1.msra.mxu0 %v3367
    %8459 = vmatprep.subr.mxu0 %v3376
    %8460 = vmatpush1.msra.mxu0 %v3375
    %8461 = vmatprep.subr.mxu0 %v3384
    %8462 = vmatpush1.msra.mxu0 %v3383
    %8463 = vmatprep.subr.mxu0 %v3392
    %8464 = vmatpush1.msra.mxu0 %v3391
    %8465 = vmatprep.subr.mxu0 %v3400
    %8466 = vmatpush1.msra.mxu0 %v3399
    %8467 = vmatprep.subr.mxu0 %v3408
    %8468 = vmatpush1.msra.mxu0 %v3407
    %8469 = vmatprep.subr.mxu0 %v3416
    %8470 = vmatpush1.msra.mxu0 %v3415
    %8471 = vmatprep.subr.mxu0 %v3424
    %8472 = vmatpush1.msra.mxu0 %v3423
    %8473 = vmatprep.subr.mxu0 %v3432
    %8474 = vmatpush1.msra.mxu0 %v3431
    %8475 = vmatprep.mubr.f32.mxu0 %v2128
    %8476 = vmatmul.mubr.f32.gmra.mrb[0].mxu0 %v2127
    %v8477 = vpop.f32.mrb[0].mxu0
    %v8478 = vadd.f32 0.0, %v8477
    %v8479 = vpop.f32.mrb[0].mxu0
    %v8480 = vadd.f32 0.0, %v8479
    %8481 = vmatprep.mubr.f32.mxu0 %v2132
    %8482 = vmatmul.mubr.f32.gmra.mrb[0].mxu0 %v2131
    %v8483 = vpop.f32.mrb[0].mxu0
    %v8484 = vadd.f32 0.0, %v8483
    %v8485 = vpop.f32.mrb[0].mxu0
    %v8486 = vadd.f32 0.0, %v8485
    %8487 = vmatprep.mubr.f32.mxu0 %v2136
    %8488 = vmatmul.mubr.f32.gmra.mrb[0].mxu0 %v2135
    %v8489 = vpop.f32.mrb[0].mxu0
    %v8490 = vadd.f32 0.0, %v8489
    %v8491 = vpop.f32.mrb[0].mxu0
    %v8492 = vadd.f32 0.0, %v8491
    %8493 = vmatprep.mubr.f32.mxu0 %v2140
    %8494 = vmatmul.mubr.f32.gmra.mrb[0].mxu0 %v2139
    %v8495 = vpop.f32.mrb[0].mxu0
    %v8496 = vadd.f32 0.0, %v8495
    %v8497 = vpop.f32.mrb[0].mxu0
    %v8498 = vadd.f32 0.0, %v8497
    %8499 = vmatprep.mubr.f32.mxu0 %v2144
    %8500 = vmatmul.mubr.f32.gmra.mrb[0].mxu0 %v2143
    %v8501 = vpop.f32.mrb[0].mxu0
    %v8502 = vadd.f32 0.0, %v8501
    %v8503 = vpop.f32.mrb[0].mxu0
    %v8504 = vadd.f32 0.0, %v8503
    %8505 = vmatprep.mubr.f32.mxu0 %v2148
    %8506 = vmatmul.mubr.f32.gmra.mrb[0].mxu0 %v2147
    %v8507 = vpop.f32.mrb[0].mxu0
    %v8508 = vadd.f32 0.0, %v8507
    %v8509 = vpop.f32.mrb[0].mxu0
    %v8510 = vadd.f32 0.0, %v8509
    %8511 = vmatprep.mubr.f32.mxu0 %v2152
    %8512 = vmatmul.mubr.f32.gmra.mrb[0].mxu0 %v2151
    %v8513 = vpop.f32.mrb[0].mxu0
    %v8514 = vadd.f32 0.0, %v8513
    %v8515 = vpop.f32.mrb[0].mxu0
    %v8516 = vadd.f32 0.0, %v8515
    %8517 = vmatprep.mubr.f32.mxu0 0.0
    %8518 = vmatmul.mubr.f32.gmra.mrb[0].mxu0 0.0
    %v8519 = vpop.f32.mrb[0].mxu0
    %v8520 = vpop.f32.mrb[0].mxu0
    %8521 = vdwg.mxu0
    %8522 = vmatprep.subr.mxu0 %v3440
    %8523 = vmatpush1.msra.mxu0 %v3439
    %8524 = vmatprep.subr.mxu0 %v3448
    %8525 = vmatpush1.msra.mxu0 %v3447
    %8526 = vmatprep.subr.mxu0 %v3456
    %8527 = vmatpush1.msra.mxu0 %v3455
    %8528 = vmatprep.subr.mxu0 %v3464
    %8529 = vmatpush1.msra.mxu0 %v3463
    %8530 = vmatprep.subr.mxu0 %v3472
    %8531 = vmatpush1.msra.mxu0 %v3471
    %8532 = vmatprep.subr.mxu0 %v3480
    %8533 = vmatpush1.msra.mxu0 %v3479
    %8534 = vmatprep.subr.mxu0 %v3488
    %8535 = vmatpush1.msra.mxu0 %v3487
    %8536 = vmatprep.subr.mxu0 %v3496
    %8537 = vmatpush1.msra.mxu0 %v3495
    %8538 = vmatprep.subr.mxu0 %v3504
    %8539 = vmatpush1.msra.mxu0 %v3503
    %8540 = vmatprep.subr.mxu0 %v3512
    %8541 = vmatpush1.msra.mxu0 %v3511
    %8542 = vmatprep.subr.mxu0 %v3520
    %8543 = vmatpush1.msra.mxu0 %v3519
    %8544 = vmatprep.subr.mxu0 %v3528
    %8545 = vmatpush1.msra.mxu0 %v3527
    %8546 = vmatprep.subr.mxu0 %v3536
    %8547 = vmatpush1.msra.mxu0 %v3535
    %8548 = vmatprep.subr.mxu0 %v3544
    %8549 = vmatpush1.msra.mxu0 %v3543
    %8550 = vmatprep.subr.mxu0 %v3552
    %8551 = vmatpush1.msra.mxu0 %v3551
    %8552 = vmatprep.subr.mxu0 %v3560
    %8553 = vmatpush1.msra.mxu0 %v3559
    %8554 = vmatprep.subr.mxu0 %v3568
    %8555 = vmatpush1.msra.mxu0 %v3567
    %8556 = vmatprep.subr.mxu0 %v3576
    %8557 = vmatpush1.msra.mxu0 %v3575
    %8558 = vmatprep.subr.mxu0 %v3584
    %8559 = vmatpush1.msra.mxu0 %v3583
    %8560 = vmatprep.subr.mxu0 %v3592
    %8561 = vmatpush1.msra.mxu0 %v3591
    %8562 = vmatprep.subr.mxu0 %v3600
    %8563 = vmatpush1.msra.mxu0 %v3599
    %8564 = vmatprep.subr.mxu0 %v3608
    %8565 = vmatpush1.msra.mxu0 %v3607
    %8566 = vmatprep.subr.mxu0 %v3616
    %8567 = vmatpush1.msra.mxu0 %v3615
    %8568 = vmatprep.subr.mxu0 %v3624
    %8569 = vmatpush1.msra.mxu0 %v3623
    %8570 = vmatprep.subr.mxu0 %v3632
    %8571 = vmatpush1.msra.mxu0 %v3631
    %8572 = vmatprep.subr.mxu0 %v3640
    %8573 = vmatpush1.msra.mxu0 %v3639
    %8574 = vmatprep.subr.mxu0 %v3648
    %8575 = vmatpush1.msra.mxu0 %v3647
    %8576 = vmatprep.subr.mxu0 %v3656
    %8577 = vmatpush1.msra.mxu0 %v3655
    %8578 = vmatprep.subr.mxu0 %v3664
    %8579 = vmatpush1.msra.mxu0 %v3663
    %8580 = vmatprep.subr.mxu0 %v3672
    %8581 = vmatpush1.msra.mxu0 %v3671
    %8582 = vmatprep.subr.mxu0 %v3680
    %8583 = vmatpush1.msra.mxu0 %v3679
    %8584 = vmatprep.subr.mxu0 %v3688
    %8585 = vmatpush1.msra.mxu0 %v3687
    %8586 = vmatprep.mubr.f32.mxu0 %v2130
    %8587 = vmatmul.mubr.f32.gmra.mrb[0].mxu0 %v2129
    %v8588 = vpop.f32.mrb[0].mxu0
    %v8589 = vadd.f32 %v8478, %v8588
    %v8590 = vpop.f32.mrb[0].mxu0
    %v8591 = vadd.f32 %v8480, %v8590
    %8592 = vmatprep.mubr.f32.mxu0 %v2134
    %8593 = vmatmul.mubr.f32.gmra.mrb[0].mxu0 %v2133
    %v8594 = vpop.f32.mrb[0].mxu0
    %v8595 = vadd.f32 %v8484, %v8594
    %v8596 = vpop.f32.mrb[0].mxu0
    %v8597 = vadd.f32 %v8486, %v8596
    %8598 = vmatprep.mubr.f32.mxu0 %v2138
    %8599 = vmatmul.mubr.f32.gmra.mrb[0].mxu0 %v2137
    %v8600 = vpop.f32.mrb[0].mxu0
    %v8601 = vadd.f32 %v8490, %v8600
    %v8602 = vpop.f32.mrb[0].mxu0
    %v8603 = vadd.f32 %v8492, %v8602
    %8604 = vmatprep.mubr.f32.mxu0 %v2142
    %8605 = vmatmul.mubr.f32.gmra.mrb[0].mxu0 %v2141
    %v8606 = vpop.f32.mrb[0].mxu0
    %v8607 = vadd.f32 %v8496, %v8606
    %v8608 = vpop.f32.mrb[0].mxu0
    %v8609 = vadd.f32 %v8498, %v8608
    %8610 = vmatprep.mubr.f32.mxu0 %v2146
    %8611 = vmatmul.mubr.f32.gmra.mrb[0].mxu0 %v2145
    %v8612 = vpop.f32.mrb[0].mxu0
    %v8613 = vadd.f32 %v8502, %v8612
    %v8614 = vpop.f32.mrb[0].mxu0
    %v8615 = vadd.f32 %v8504, %v8614
    %8616 = vmatprep.mubr.f32.mxu0 %v2150
    %8617 = vmatmul.mubr.f32.gmra.mrb[0].mxu0 %v2149
    %v8618 = vpop.f32.mrb[0].mxu0
    %v8619 = vadd.f32 %v8508, %v8618
    %v8620 = vpop.f32.mrb[0].mxu0
    %v8621 = vadd.f32 %v8510, %v8620
    %8622 = vmatprep.mubr.f32.mxu0 %v2154
    %8623 = vmatmul.mubr.f32.gmra.mrb[0].mxu0 %v2153
    %v8624 = vpop.f32.mrb[0].mxu0
    %v8625 = vadd.f32 %v8514, %v8624
    %v8626 = vpop.f32.mrb[0].mxu0
    %v8627 = vadd.f32 %v8516, %v8626
    %8628 = vmatprep.mubr.f32.mxu0 0.0
    %8629 = vmatmul.mubr.f32.gmra.mrb[0].mxu0 0.0
    %v8630 = vpop.f32.mrb[0].mxu0
    %v8631 = vpop.f32.mrb[0].mxu0
    %8632 = vdwg.mxu0
    %8633 = vmatprep.subr.mxu0 %v3186
    %8634 = vmatpush1.msra.mxu0 %v3185
    %8635 = vmatprep.subr.mxu0 %v3194
    %8636 = vmatpush1.msra.mxu0 %v3193
    %8637 = vmatprep.subr.mxu0 %v3202
    %8638 = vmatpush1.msra.mxu0 %v3201
    %8639 = vmatprep.subr.mxu0 %v3210
    %8640 = vmatpush1.msra.mxu0 %v3209
    %8641 = vmatprep.subr.mxu0 %v3218
    %8642 = vmatpush1.msra.mxu0 %v3217
    %8643 = vmatprep.subr.mxu0 %v3226
    %8644 = vmatpush1.msra.mxu0 %v3225
    %8645 = vmatprep.subr.mxu0 %v3234
    %8646 = vmatpush1.msra.mxu0 %v3233
    %8647 = vmatprep.subr.mxu0 %v3242
    %8648 = vmatpush1.msra.mxu0 %v3241
    %8649 = vmatprep.subr.mxu0 %v3250
    %8650 = vmatpush1.msra.mxu0 %v3249
    %8651 = vmatprep.subr.mxu0 %v3258
    %8652 = vmatpush1.msra.mxu0 %v3257
    %8653 = vmatprep.subr.mxu0 %v3266
    %8654 = vmatpush1.msra.mxu0 %v3265
    %8655 = vmatprep.subr.mxu0 %v3274
    %8656 = vmatpush1.msra.mxu0 %v3273
    %8657 = vmatprep.subr.mxu0 %v3282
    %8658 = vmatpush1.msra.mxu0 %v3281
    %8659 = vmatprep.subr.mxu0 %v3290
    %8660 = vmatpush1.msra.mxu0 %v3289
    %8661 = vmatprep.subr.mxu0 %v3298
    %8662 = vmatpush1.msra.mxu0 %v3297
    %8663 = vmatprep.subr.mxu0 %v3306
    %8664 = vmatpush1.msra.mxu0 %v3305
    %8665 = vmatprep.subr.mxu0 %v3314
    %8666 = vmatpush1.msra.mxu0 %v3313
    %8667 = vmatprep.subr.mxu0 %v3322
    %8668 = vmatpush1.msra.mxu0 %v3321
    %8669 = vmatprep.subr.mxu0 %v3330
    %8670 = vmatpush1.msra.mxu0 %v3329
    %8671 = vmatprep.subr.mxu0 %v3338
    %8672 = vmatpush1.msra.mxu0 %v3337
    %8673 = vmatprep.subr.mxu0 %v3346
    %8674 = vmatpush1.msra.mxu0 %v3345
    %8675 = vmatprep.subr.mxu0 %v3354
    %8676 = vmatpush1.msra.mxu0 %v3353
    %8677 = vmatprep.subr.mxu0 %v3362
    %8678 = vmatpush1.msra.mxu0 %v3361
    %8679 = vmatprep.subr.mxu0 %v3370
    %8680 = vmatpush1.msra.mxu0 %v3369
    %8681 = vmatprep.subr.mxu0 %v3378
    %8682 = vmatpush1.msra.mxu0 %v3377
    %8683 = vmatprep.subr.mxu0 %v3386
    %8684 = vmatpush1.msra.mxu0 %v3385
    %8685 = vmatprep.subr.mxu0 %v3394
    %8686 = vmatpush1.msra.mxu0 %v3393
    %8687 = vmatprep.subr.mxu0 %v3402
    %8688 = vmatpush1.msra.mxu0 %v3401
    %8689 = vmatprep.subr.mxu0 %v3410
    %8690 = vmatpush1.msra.mxu0 %v3409
    %8691 = vmatprep.subr.mxu0 %v3418
    %8692 = vmatpush1.msra.mxu0 %v3417
    %8693 = vmatprep.subr.mxu0 %v3426
    %8694 = vmatpush1.msra.mxu0 %v3425
    %8695 = vmatprep.subr.mxu0 %v3434
    %8696 = vmatpush1.msra.mxu0 %v3433
    %8697 = vmatprep.mubr.f32.mxu0 %v2128
    %8698 = vmatmul.mubr.f32.gmra.mrb[0].mxu0 %v2127
    %v8699 = vpop.f32.mrb[0].mxu0
    %v8700 = vadd.f32 0.0, %v8699
    %v8701 = vpop.f32.mrb[0].mxu0
    %v8702 = vadd.f32 0.0, %v8701
    %8703 = vmatprep.mubr.f32.mxu0 %v2132
    %8704 = vmatmul.mubr.f32.gmra.mrb[0].mxu0 %v2131
    %v8705 = vpop.f32.mrb[0].mxu0
    %v8706 = vadd.f32 0.0, %v8705
    %v8707 = vpop.f32.mrb[0].mxu0
    %v8708 = vadd.f32 0.0, %v8707
    %8709 = vmatprep.mubr.f32.mxu0 %v2136
    %8710 = vmatmul.mubr.f32.gmra.mrb[0].mxu0 %v2135
    %v8711 = vpop.f32.mrb[0].mxu0
    %v8712 = vadd.f32 0.0, %v8711
    %v8713 = vpop.f32.mrb[0].mxu0
    %v8714 = vadd.f32 0.0, %v8713
    %8715 = vmatprep.mubr.f32.mxu0 %v2140
    %8716 = vmatmul.mubr.f32.gmra.mrb[0].mxu0 %v2139
    %v8717 = vpop.f32.mrb[0].mxu0
    %v8718 = vadd.f32 0.0, %v8717
    %v8719 = vpop.f32.mrb[0].mxu0
    %v8720 = vadd.f32 0.0, %v8719
    %8721 = vmatprep.mubr.f32.mxu0 %v2144
    %8722 = vmatmul.mubr.f32.gmra.mrb[0].mxu0 %v2143
    %v8723 = vpop.f32.mrb[0].mxu0
    %v8724 = vadd.f32 0.0, %v8723
    %v8725 = vpop.f32.mrb[0].mxu0
    %v8726 = vadd.f32 0.0, %v8725
    %8727 = vmatprep.mubr.f32.mxu0 %v2148
    %8728 = vmatmul.mubr.f32.gmra.mrb[0].mxu0 %v2147
    %v8729 = vpop.f32.mrb[0].mxu0
    %v8730 = vadd.f32 0.0, %v8729
    %v8731 = vpop.f32.mrb[0].mxu0
    %v8732 = vadd.f32 0.0, %v8731
    %8733 = vmatprep.mubr.f32.mxu0 %v2152
    %8734 = vmatmul.mubr.f32.gmra.mrb[0].mxu0 %v2151
    %v8735 = vpop.f32.mrb[0].mxu0
    %v8736 = vadd.f32 0.0, %v8735
    %v8737 = vpop.f32.mrb[0].mxu0
    %v8738 = vadd.f32 0.0, %v8737
    %8739 = vmatprep.mubr.f32.mxu0 0.0
    %8740 = vmatmul.mubr.f32.gmra.mrb[0].mxu0 0.0
    %v8741 = vpop.f32.mrb[0].mxu0
    %v8742 = vpop.f32.mrb[0].mxu0
    %8743 = vdwg.mxu0
    %8744 = vmatprep.subr.mxu0 %v3442
    %8745 = vmatpush1.msra.mxu0 %v3441
    %8746 = vmatprep.subr.mxu0 %v3450
    %8747 = vmatpush1.msra.mxu0 %v3449
    %8748 = vmatprep.subr.mxu0 %v3458
    %8749 = vmatpush1.msra.mxu0 %v3457
    %8750 = vmatprep.subr.mxu0 %v3466
    %8751 = vmatpush1.msra.mxu0 %v3465
    %8752 = vmatprep.subr.mxu0 %v3474
    %8753 = vmatpush1.msra.mxu0 %v3473
    %8754 = vmatprep.subr.mxu0 %v3482
    %8755 = vmatpush1.msra.mxu0 %v3481
    %8756 = vmatprep.subr.mxu0 %v3490
    %8757 = vmatpush1.msra.mxu0 %v3489
    %8758 = vmatprep.subr.mxu0 %v3498
    %8759 = vmatpush1.msra.mxu0 %v3497
    %8760 = vmatprep.subr.mxu0 %v3506
    %8761 = vmatpush1.msra.mxu0 %v3505
    %8762 = vmatprep.subr.mxu0 %v3514
    %8763 = vmatpush1.msra.mxu0 %v3513
    %8764 = vmatprep.subr.mxu0 %v3522
    %8765 = vmatpush1.msra.mxu0 %v3521
    %8766 = vmatprep.subr.mxu0 %v3530
    %8767 = vmatpush1.msra.mxu0 %v3529
    %8768 = vmatprep.subr.mxu0 %v3538
    %8769 = vmatpush1.msra.mxu0 %v3537
    %8770 = vmatprep.subr.mxu0 %v3546
    %8771 = vmatpush1.msra.mxu0 %v3545
    %8772 = vmatprep.subr.mxu0 %v3554
    %8773 = vmatpush1.msra.mxu0 %v3553
    %8774 = vmatprep.subr.mxu0 %v3562
    %8775 = vmatpush1.msra.mxu0 %v3561
    %8776 = vmatprep.subr.mxu0 %v3570
    %8777 = vmatpush1.msra.mxu0 %v3569
    %8778 = vmatprep.subr.mxu0 %v3578
    %8779 = vmatpush1.msra.mxu0 %v3577
    %8780 = vmatprep.subr.mxu0 %v3586
    %8781 = vmatpush1.msra.mxu0 %v3585
    %8782 = vmatprep.subr.mxu0 %v3594
    %8783 = vmatpush1.msra.mxu0 %v3593
    %8784 = vmatprep.subr.mxu0 %v3602
    %8785 = vmatpush1.msra.mxu0 %v3601
    %8786 = vmatprep.subr.mxu0 %v3610
    %8787 = vmatpush1.msra.mxu0 %v3609
    %8788 = vmatprep.subr.mxu0 %v3618
    %8789 = vmatpush1.msra.mxu0 %v3617
    %8790 = vmatprep.subr.mxu0 %v3626
    %8791 = vmatpush1.msra.mxu0 %v3625
    %8792 = vmatprep.subr.mxu0 %v3634
    %8793 = vmatpush1.msra.mxu0 %v3633
    %8794 = vmatprep.subr.mxu0 %v3642
    %8795 = vmatpush1.msra.mxu0 %v3641
    %8796 = vmatprep.subr.mxu0 %v3650
    %8797 = vmatpush1.msra.mxu0 %v3649
    %8798 = vmatprep.subr.mxu0 %v3658
    %8799 = vmatpush1.msra.mxu0 %v3657
    %8800 = vmatprep.subr.mxu0 %v3666
    %8801 = vmatpush1.msra.mxu0 %v3665
    %8802 = vmatprep.subr.mxu0 %v3674
    %8803 = vmatpush1.msra.mxu0 %v3673
    %8804 = vmatprep.subr.mxu0 %v3682
    %8805 = vmatpush1.msra.mxu0 %v3681
    %8806 = vmatprep.subr.mxu0 %v3690
    %8807 = vmatpush1.msra.mxu0 %v3689
    %8808 = vmatprep.mubr.f32.mxu0 %v2130
    %8809 = vmatmul.mubr.f32.gmra.mrb[0].mxu0 %v2129
    %v8810 = vpop.f32.mrb[0].mxu0
    %v8811 = vadd.f32 %v8700, %v8810
    %v8812 = vpop.f32.mrb[0].mxu0
    %v8813 = vadd.f32 %v8702, %v8812
    %8814 = vmatprep.mubr.f32.mxu0 %v2134
    %8815 = vmatmul.mubr.f32.gmra.mrb[0].mxu0 %v2133
    %v8816 = vpop.f32.mrb[0].mxu0
    %v8817 = vadd.f32 %v8706, %v8816
    %v8818 = vpop.f32.mrb[0].mxu0
    %v8819 = vadd.f32 %v8708, %v8818
    %8820 = vmatprep.mubr.f32.mxu0 %v2138
    %8821 = vmatmul.mubr.f32.gmra.mrb[0].mxu0 %v2137
    %v8822 = vpop.f32.mrb[0].mxu0
    %v8823 = vadd.f32 %v8712, %v8822
    %v8824 = vpop.f32.mrb[0].mxu0
    %v8825 = vadd.f32 %v8714, %v8824
    %8826 = vmatprep.mubr.f32.mxu0 %v2142
    %8827 = vmatmul.mubr.f32.gmra.mrb[0].mxu0 %v2141
    %v8828 = vpop.f32.mrb[0].mxu0
    %v8829 = vadd.f32 %v8718, %v8828
    %v8830 = vpop.f32.mrb[0].mxu0
    %v8831 = vadd.f32 %v8720, %v8830
    %8832 = vmatprep.mubr.f32.mxu0 %v2146
    %8833 = vmatmul.mubr.f32.gmra.mrb[0].mxu0 %v2145
    %v8834 = vpop.f32.mrb[0].mxu0
    %v8835 = vadd.f32 %v8724, %v8834
    %v8836 = vpop.f32.mrb[0].mxu0
    %v8837 = vadd.f32 %v8726, %v8836
    %8838 = vmatprep.mubr.f32.mxu0 %v2150
    %8839 = vmatmul.mubr.f32.gmra.mrb[0].mxu0 %v2149
    %v8840 = vpop.f32.mrb[0].mxu0
    %v8841 = vadd.f32 %v8730, %v8840
    %v8842 = vpop.f32.mrb[0].mxu0
    %v8843 = vadd.f32 %v8732, %v8842
    %8844 = vmatprep.mubr.f32.mxu0 %v2154
    %8845 = vmatmul.mubr.f32.gmra.mrb[0].mxu0 %v2153
    %v8846 = vpop.f32.mrb[0].mxu0
    %v8847 = vadd.f32 %v8736, %v8846
    %v8848 = vpop.f32.mrb[0].mxu0
    %v8849 = vadd.f32 %v8738, %v8848
    %8850 = vmatprep.mubr.f32.mxu0 0.0
    %8851 = vmatmul.mubr.f32.gmra.mrb[0].mxu0 0.0
    %v8852 = vpop.f32.mrb[0].mxu0
    %v8853 = vpop.f32.mrb[0].mxu0
    %8854 = vdwg.mxu0
    %8855 = vmatprep.subr.mxu0 %v3188
    %8856 = vmatpush1.msra.mxu0 %v3187
    %8857 = vmatprep.subr.mxu0 %v3196
    %8858 = vmatpush1.msra.mxu0 %v3195
    %8859 = vmatprep.subr.mxu0 %v3204
    %8860 = vmatpush1.msra.mxu0 %v3203
    %8861 = vmatprep.subr.mxu0 %v3212
    %8862 = vmatpush1.msra.mxu0 %v3211
    %8863 = vmatprep.subr.mxu0 %v3220
    %8864 = vmatpush1.msra.mxu0 %v3219
    %8865 = vmatprep.subr.mxu0 %v3228
    %8866 = vmatpush1.msra.mxu0 %v3227
    %8867 = vmatprep.subr.mxu0 %v3236
    %8868 = vmatpush1.msra.mxu0 %v3235
    %8869 = vmatprep.subr.mxu0 %v3244
    %8870 = vmatpush1.msra.mxu0 %v3243
    %8871 = vmatprep.subr.mxu0 %v3252
    %8872 = vmatpush1.msra.mxu0 %v3251
    %8873 = vmatprep.subr.mxu0 %v3260
    %8874 = vmatpush1.msra.mxu0 %v3259
    %8875 = vmatprep.subr.mxu0 %v3268
    %8876 = vmatpush1.msra.mxu0 %v3267
    %8877 = vmatprep.subr.mxu0 %v3276
    %8878 = vmatpush1.msra.mxu0 %v3275
    %8879 = vmatprep.subr.mxu0 %v3284
    %8880 = vmatpush1.msra.mxu0 %v3283
    %8881 = vmatprep.subr.mxu0 %v3292
    %8882 = vmatpush1.msra.mxu0 %v3291
    %8883 = vmatprep.subr.mxu0 %v3300
    %8884 = vmatpush1.msra.mxu0 %v3299
    %8885 = vmatprep.subr.mxu0 %v3308
    %8886 = vmatpush1.msra.mxu0 %v3307
    %8887 = vmatprep.subr.mxu0 %v3316
    %8888 = vmatpush1.msra.mxu0 %v3315
    %8889 = vmatprep.subr.mxu0 %v3324
    %8890 = vmatpush1.msra.mxu0 %v3323
    %8891 = vmatprep.subr.mxu0 %v3332
    %8892 = vmatpush1.msra.mxu0 %v3331
    %8893 = vmatprep.subr.mxu0 %v3340
    %8894 = vmatpush1.msra.mxu0 %v3339
    %8895 = vmatprep.subr.mxu0 %v3348
    %8896 = vmatpush1.msra.mxu0 %v3347
    %8897 = vmatprep.subr.mxu0 %v3356
    %8898 = vmatpush1.msra.mxu0 %v3355
    %8899 = vmatprep.subr.mxu0 %v3364
    %8900 = vmatpush1.msra.mxu0 %v3363
    %8901 = vmatprep.subr.mxu0 %v3372
    %8902 = vmatpush1.msra.mxu0 %v3371
    %8903 = vmatprep.subr.mxu0 %v3380
    %8904 = vmatpush1.msra.mxu0 %v3379
    %8905 = vmatprep.subr.mxu0 %v3388
    %8906 = vmatpush1.msra.mxu0 %v3387
    %8907 = vmatprep.subr.mxu0 %v3396
    %8908 = vmatpush1.msra.mxu0 %v3395
    %8909 = vmatprep.subr.mxu0 %v3404
    %8910 = vmatpush1.msra.mxu0 %v3403
    %8911 = vmatprep.subr.mxu0 %v3412
    %8912 = vmatpush1.msra.mxu0 %v3411
    %8913 = vmatprep.subr.mxu0 %v3420
    %8914 = vmatpush1.msra.mxu0 %v3419
    %8915 = vmatprep.subr.mxu0 %v3428
    %8916 = vmatpush1.msra.mxu0 %v3427
    %8917 = vmatprep.subr.mxu0 %v3436
    %8918 = vmatpush1.msra.mxu0 %v3435
    %8919 = vmatprep.mubr.f32.mxu0 %v2128
    %8920 = vmatmul.mubr.f32.gmra.mrb[0].mxu0 %v2127
    %v8921 = vpop.f32.mrb[0].mxu0
    %v8922 = vadd.f32 0.0, %v8921
    %v8923 = vpop.f32.mrb[0].mxu0
    %v8924 = vadd.f32 0.0, %v8923
    %8925 = vmatprep.mubr.f32.mxu0 %v2132
    %8926 = vmatmul.mubr.f32.gmra.mrb[0].mxu0 %v2131
    %v8927 = vpop.f32.mrb[0].mxu0
    %v8928 = vadd.f32 0.0, %v8927
    %v8929 = vpop.f32.mrb[0].mxu0
    %v8930 = vadd.f32 0.0, %v8929
    %8931 = vmatprep.mubr.f32.mxu0 %v2136
    %8932 = vmatmul.mubr.f32.gmra.mrb[0].mxu0 %v2135
    %v8933 = vpop.f32.mrb[0].mxu0
    %v8934 = vadd.f32 0.0, %v8933
    %v8935 = vpop.f32.mrb[0].mxu0
    %v8936 = vadd.f32 0.0, %v8935
    %8937 = vmatprep.mubr.f32.mxu0 %v2140
    %8938 = vmatmul.mubr.f32.gmra.mrb[0].mxu0 %v2139
    %v8939 = vpop.f32.mrb[0].mxu0
    %v8940 = vadd.f32 0.0, %v8939
    %v8941 = vpop.f32.mrb[0].mxu0
    %v8942 = vadd.f32 0.0, %v8941
    %8943 = vmatprep.mubr.f32.mxu0 %v2144
    %8944 = vmatmul.mubr.f32.gmra.mrb[0].mxu0 %v2143
    %v8945 = vpop.f32.mrb[0].mxu0
    %v8946 = vadd.f32 0.0, %v8945
    %v8947 = vpop.f32.mrb[0].mxu0
    %v8948 = vadd.f32 0.0, %v8947
    %8949 = vmatprep.mubr.f32.mxu0 %v2148
    %8950 = vmatmul.mubr.f32.gmra.mrb[0].mxu0 %v2147
    %v8951 = vpop.f32.mrb[0].mxu0
    %v8952 = vadd.f32 0.0, %v8951
    %v8953 = vpop.f32.mrb[0].mxu0
    %v8954 = vadd.f32 0.0, %v8953
    %8955 = vmatprep.mubr.f32.mxu0 %v2152
    %8956 = vmatmul.mubr.f32.gmra.mrb[0].mxu0 %v2151
    %v8957 = vpop.f32.mrb[0].mxu0
    %v8958 = vadd.f32 0.0, %v8957
    %v8959 = vpop.f32.mrb[0].mxu0
    %v8960 = vadd.f32 0.0, %v8959
    %8961 = vmatprep.mubr.f32.mxu0 0.0
    %8962 = vmatmul.mubr.f32.gmra.mrb[0].mxu0 0.0
    %v8963 = vpop.f32.mrb[0].mxu0
    %v8964 = vpop.f32.mrb[0].mxu0
    %8965 = vdwg.mxu0
    %8966 = vmatprep.subr.mxu0 %v3444
    %8967 = vmatpush1.msra.mxu0 %v3443
    %8968 = vmatprep.subr.mxu0 %v3452
    %8969 = vmatpush1.msra.mxu0 %v3451
    %8970 = vmatprep.subr.mxu0 %v3460
    %8971 = vmatpush1.msra.mxu0 %v3459
    %8972 = vmatprep.subr.mxu0 %v3468
    %8973 = vmatpush1.msra.mxu0 %v3467
    %8974 = vmatprep.subr.mxu0 %v3476
    %8975 = vmatpush1.msra.mxu0 %v3475
    %8976 = vmatprep.subr.mxu0 %v3484
    %8977 = vmatpush1.msra.mxu0 %v3483
    %8978 = vmatprep.subr.mxu0 %v3492
    %8979 = vmatpush1.msra.mxu0 %v3491
    %8980 = vmatprep.subr.mxu0 %v3500
    %8981 = vmatpush1.msra.mxu0 %v3499
    %8982 = vmatprep.subr.mxu0 %v3508
    %8983 = vmatpush1.msra.mxu0 %v3507
    %8984 = vmatprep.subr.mxu0 %v3516
    %8985 = vmatpush1.msra.mxu0 %v3515
    %8986 = vmatprep.subr.mxu0 %v3524
    %8987 = vmatpush1.msra.mxu0 %v3523
    %8988 = vmatprep.subr.mxu0 %v3532
    %8989 = vmatpush1.msra.mxu0 %v3531
    %8990 = vmatprep.subr.mxu0 %v3540
    %8991 = vmatpush1.msra.mxu0 %v3539
    %8992 = vmatprep.subr.mxu0 %v3548
    %8993 = vmatpush1.msra.mxu0 %v3547
    %8994 = vmatprep.subr.mxu0 %v3556
    %8995 = vmatpush1.msra.mxu0 %v3555
    %8996 = vmatprep.subr.mxu0 %v3564
    %8997 = vmatpush1.msra.mxu0 %v3563
    %8998 = vmatprep.subr.mxu0 %v3572
    %8999 = vmatpush1.msra.mxu0 %v3571
    %9000 = vmatprep.subr.mxu0 %v3580
    %9001 = vmatpush1.msra.mxu0 %v3579
    %9002 = vmatprep.subr.mxu0 %v3588
    %9003 = vmatpush1.msra.mxu0 %v3587
    %9004 = vmatprep.subr.mxu0 %v3596
    %9005 = vmatpush1.msra.mxu0 %v3595
    %9006 = vmatprep.subr.mxu0 %v3604
    %9007 = vmatpush1.msra.mxu0 %v3603
    %9008 = vmatprep.subr.mxu0 %v3612
    %9009 = vmatpush1.msra.mxu0 %v3611
    %9010 = vmatprep.subr.mxu0 %v3620
    %9011 = vmatpush1.msra.mxu0 %v3619
    %9012 = vmatprep.subr.mxu0 %v3628
    %9013 = vmatpush1.msra.mxu0 %v3627
    %9014 = vmatprep.subr.mxu0 %v3636
    %9015 = vmatpush1.msra.mxu0 %v3635
    %9016 = vmatprep.subr.mxu0 %v3644
    %9017 = vmatpush1.msra.mxu0 %v3643
    %9018 = vmatprep.subr.mxu0 %v3652
    %9019 = vmatpush1.msra.mxu0 %v3651
    %9020 = vmatprep.subr.mxu0 %v3660
    %9021 = vmatpush1.msra.mxu0 %v3659
    %9022 = vmatprep.subr.mxu0 %v3668
    %9023 = vmatpush1.msra.mxu0 %v3667
    %9024 = vmatprep.subr.mxu0 %v3676
    %9025 = vmatpush1.msra.mxu0 %v3675
    %9026 = vmatprep.subr.mxu0 %v3684
    %9027 = vmatpush1.msra.mxu0 %v3683
    %9028 = vmatprep.subr.mxu0 %v3692
    %9029 = vmatpush1.msra.mxu0 %v3691
    %9030 = vmatprep.mubr.f32.mxu0 %v2130
    %9031 = vmatmul.mubr.f32.gmra.mrb[0].mxu0 %v2129
    %v9032 = vpop.f32.mrb[0].mxu0
    %v9033 = vadd.f32 %v8922, %v9032
    %v9034 = vpop.f32.mrb[0].mxu0
    %v9035 = vadd.f32 %v8924, %v9034
    %9036 = vmatprep.mubr.f32.mxu0 %v2134
    %9037 = vmatmul.mubr.f32.gmra.mrb[0].mxu0 %v2133
    %v9038 = vpop.f32.mrb[0].mxu0
    %v9039 = vadd.f32 %v8928, %v9038
    %v9040 = vpop.f32.mrb[0].mxu0
    %v9041 = vadd.f32 %v8930, %v9040
    %9042 = vmatprep.mubr.f32.mxu0 %v2138
    %9043 = vmatmul.mubr.f32.gmra.mrb[0].mxu0 %v2137
    %v9044 = vpop.f32.mrb[0].mxu0
    %v9045 = vadd.f32 %v8934, %v9044
    %v9046 = vpop.f32.mrb[0].mxu0
    %v9047 = vadd.f32 %v8936, %v9046
    %9048 = vmatprep.mubr.f32.mxu0 %v2142
    %9049 = vmatmul.mubr.f32.gmra.mrb[0].mxu0 %v2141
    %v9050 = vpop.f32.mrb[0].mxu0
    %v9051 = vadd.f32 %v8940, %v9050
    %v9052 = vpop.f32.mrb[0].mxu0
    %v9053 = vadd.f32 %v8942, %v9052
    %9054 = vmatprep.mubr.f32.mxu0 %v2146
    %9055 = vmatmul.mubr.f32.gmra.mrb[0].mxu0 %v2145
    %v9056 = vpop.f32.mrb[0].mxu0
    %v9057 = vadd.f32 %v8946, %v9056
    %v9058 = vpop.f32.mrb[0].mxu0
    %v9059 = vadd.f32 %v8948, %v9058
    %9060 = vmatprep.mubr.f32.mxu0 %v2150
    %9061 = vmatmul.mubr.f32.gmra.mrb[0].mxu0 %v2149
    %v9062 = vpop.f32.mrb[0].mxu0
    %v9063 = vadd.f32 %v8952, %v9062
    %v9064 = vpop.f32.mrb[0].mxu0
    %v9065 = vadd.f32 %v8954, %v9064
    %9066 = vmatprep.mubr.f32.mxu0 %v2154
    %9067 = vmatmul.mubr.f32.gmra.mrb[0].mxu0 %v2153
    %v9068 = vpop.f32.mrb[0].mxu0
    %v9069 = vadd.f32 %v8958, %v9068
    %v9070 = vpop.f32.mrb[0].mxu0
    %v9071 = vadd.f32 %v8960, %v9070
    %9072 = vmatprep.mubr.f32.mxu0 0.0
    %9073 = vmatmul.mubr.f32.gmra.mrb[0].mxu0 0.0
    %v9074 = vpop.f32.mrb[0].mxu0
    %v9075 = vpop.f32.mrb[0].mxu0
    %9076 = vdwg.mxu0
    %v9077 = vadd.f32 %v7479, %v8367
    %v9078 = vadd.f32 %v7481, %v8369
    %v9079 = vadd.f32 %v7701, %v8589
    %v9080 = vadd.f32 %v7703, %v8591
    %v9081 = vadd.f32 %v7923, %v8811
    %v9082 = vadd.f32 %v7925, %v8813
    %v9083 = vadd.f32 %v8145, %v9033
    %v9084 = vadd.f32 %v8147, %v9035
    %v9085 = vadd.f32 %v7485, %v8373
    %v9086 = vadd.f32 %v7487, %v8375
    %v9087 = vadd.f32 %v7707, %v8595
    %v9088 = vadd.f32 %v7709, %v8597
    %v9089 = vadd.f32 %v7929, %v8817
    %v9090 = vadd.f32 %v7931, %v8819
    %v9091 = vadd.f32 %v8151, %v9039
    %v9092 = vadd.f32 %v8153, %v9041
    %v9093 = vadd.f32 %v7491, %v8379
    %v9094 = vadd.f32 %v7493, %v8381
    %v9095 = vadd.f32 %v7713, %v8601
    %v9096 = vadd.f32 %v7715, %v8603
    %v9097 = vadd.f32 %v7935, %v8823
    %v9098 = vadd.f32 %v7937, %v8825
    %v9099 = vadd.f32 %v8157, %v9045
    %v9100 = vadd.f32 %v8159, %v9047
    %v9101 = vadd.f32 %v7497, %v8385
    %v9102 = vadd.f32 %v7499, %v8387
    %v9103 = vadd.f32 %v7719, %v8607
    %v9104 = vadd.f32 %v7721, %v8609
    %v9105 = vadd.f32 %v7941, %v8829
    %v9106 = vadd.f32 %v7943, %v8831
    %v9107 = vadd.f32 %v8163, %v9051
    %v9108 = vadd.f32 %v8165, %v9053
    %v9109 = vadd.f32 %v7503, %v8391
    %v9110 = vadd.f32 %v7505, %v8393
    %v9111 = vadd.f32 %v7725, %v8613
    %v9112 = vadd.f32 %v7727, %v8615
    %v9113 = vadd.f32 %v7947, %v8835
    %v9114 = vadd.f32 %v7949, %v8837
    %v9115 = vadd.f32 %v8169, %v9057
    %v9116 = vadd.f32 %v8171, %v9059
    %v9117 = vadd.f32 %v7509, %v8397
    %v9118 = vadd.f32 %v7511, %v8399
    %v9119 = vadd.f32 %v7731, %v8619
    %v9120 = vadd.f32 %v7733, %v8621
    %v9121 = vadd.f32 %v7953, %v8841
    %v9122 = vadd.f32 %v7955, %v8843
    %v9123 = vadd.f32 %v8175, %v9063
    %v9124 = vadd.f32 %v8177, %v9065
    %v9125 = vadd.f32 %v7515, %v8403
    %v9126 = vadd.f32 %v7517, %v8405
    %v9127 = vadd.f32 %v7737, %v8625
    %v9128 = vadd.f32 %v7739, %v8627
    %v9129 = vadd.f32 %v7959, %v8847
    %v9130 = vadd.f32 %v7961, %v8849
    %v9131 = vadd.f32 %v8181, %v9069
    %v9132 = vadd.f32 %v8183, %v9071
    %v9133 = vmax.f32 %v6357, %v9077
    %v9134 = vmax.f32 %v6358, %v9078
    %v9135 = vmax.f32 %v6359, %v9079
    %v9136 = vmax.f32 %v6360, %v9080
    %v9137 = vmax.f32 %v6361, %v9081
    %v9138 = vmax.f32 %v6362, %v9082
    %v9139 = vmax.f32 %v6363, %v9083
    %v9140 = vmax.f32 %v6364, %v9084
    %v9141 = vmax.f32 %v6365, %v9085
    %v9142 = vmax.f32 %v6366, %v9086
    %v9143 = vmax.f32 %v6367, %v9087
    %v9144 = vmax.f32 %v6368, %v9088
    %v9145 = vmax.f32 %v6369, %v9089
    %v9146 = vmax.f32 %v6370, %v9090
    %v9147 = vmax.f32 %v6371, %v9091
    %v9148 = vmax.f32 %v6372, %v9092
    %v9149 = vmax.f32 %v6373, %v9093
    %v9150 = vmax.f32 %v6374, %v9094
    %v9151 = vmax.f32 %v6375, %v9095
    %v9152 = vmax.f32 %v6376, %v9096
    %v9153 = vmax.f32 %v6377, %v9097
    %v9154 = vmax.f32 %v6378, %v9098
    %v9155 = vmax.f32 %v6379, %v9099
    %v9156 = vmax.f32 %v6380, %v9100
    %v9157 = vmax.f32 %v6381, %v9101
    %v9158 = vmax.f32 %v6382, %v9102
    %v9159 = vmax.f32 %v6383, %v9103
    %v9160 = vmax.f32 %v6384, %v9104
    %v9161 = vmax.f32 %v6385, %v9105
    %v9162 = vmax.f32 %v6386, %v9106
    %v9163 = vmax.f32 %v6387, %v9107
    %v9164 = vmax.f32 %v6388, %v9108
    %v9165 = vmax.f32 %v6389, %v9109
    %v9166 = vmax.f32 %v6390, %v9110
    %v9167 = vmax.f32 %v6391, %v9111
    %v9168 = vmax.f32 %v6392, %v9112
    %v9169 = vmax.f32 %v6393, %v9113
    %v9170 = vmax.f32 %v6394, %v9114
    %v9171 = vmax.f32 %v6395, %v9115
    %v9172 = vmax.f32 %v6396, %v9116
    %v9173 = vmax.f32 %v6397, %v9117
    %v9174 = vmax.f32 %v6398, %v9118
    %v9175 = vmax.f32 %v6399, %v9119
    %v9176 = vmax.f32 %v6400, %v9120
    %v9177 = vmax.f32 %v6401, %v9121
    %v9178 = vmax.f32 %v6402, %v9122
    %v9179 = vmax.f32 %v6403, %v9123
    %v9180 = vmax.f32 %v6404, %v9124
    %v9181 = vmax.f32 %v6405, %v9125
    %v9182 = vmax.f32 %v6406, %v9126
    %v9183 = vmax.f32 %v6407, %v9127
    %v9184 = vmax.f32 %v6408, %v9128
    %v9185 = vmax.f32 %v6409, %v9129
    %v9186 = vmax.f32 %v6410, %v9130
    %v9187 = vmax.f32 %v6411, %v9131
    %v9188 = vmax.f32 %v6412, %v9132
    %v9189 = vmax.f32 %v9133, %v9137
    %v9190 = vmax.f32 %v9134, %v9138
    %v9191 = vmax.f32 %v9135, %v9139
    %v9192 = vmax.f32 %v9136, %v9140
    %v9193 = vmax.f32 %v9141, %v9145
    %v9194 = vmax.f32 %v9142, %v9146
    %v9195 = vmax.f32 %v9143, %v9147
    %v9196 = vmax.f32 %v9144, %v9148
    %v9197 = vmax.f32 %v9149, %v9153
    %v9198 = vmax.f32 %v9150, %v9154
    %v9199 = vmax.f32 %v9151, %v9155
    %v9200 = vmax.f32 %v9152, %v9156
    %v9201 = vmax.f32 %v9157, %v9161
    %v9202 = vmax.f32 %v9158, %v9162
    %v9203 = vmax.f32 %v9159, %v9163
    %v9204 = vmax.f32 %v9160, %v9164
    %v9205 = vmax.f32 %v9165, %v9169
    %v9206 = vmax.f32 %v9166, %v9170
    %v9207 = vmax.f32 %v9167, %v9171
    %v9208 = vmax.f32 %v9168, %v9172
    %v9209 = vmax.f32 %v9173, %v9177
    %v9210 = vmax.f32 %v9174, %v9178
    %v9211 = vmax.f32 %v9175, %v9179
    %v9212 = vmax.f32 %v9176, %v9180
    %v9213 = vmax.f32 %v9181, %v9185
    %v9214 = vmax.f32 %v9182, %v9186
    %v9215 = vmax.f32 %v9183, %v9187
    %v9216 = vmax.f32 %v9184, %v9188
    %v9217 = vld [vmem:[#allocation7] sm:$0xf]
    %v9219 = vlaneseq
    %v9220 = vshrl.u32 %v9219, 7
    %v9221 = vsub.s32 0, %v9220
    %v9222 = vrot.slane %v9217, %v9221
    %v9223 = vlaneseq
    %v9224 = vshrl.u32 %v9223, 7
    %v9225 = vsub.s32 1, %v9224
    %v9226 = vrot.slane %v9217, %v9225
    %v9227 = vlaneseq
    %v9228 = vshrl.u32 %v9227, 7
    %v9229 = vsub.s32 2, %v9228
    %v9230 = vrot.slane %v9217, %v9229
    %v9231 = vlaneseq
    %v9232 = vshrl.u32 %v9231, 7
    %v9233 = vsub.s32 3, %v9232
    %v9234 = vrot.slane %v9217, %v9233
    %v9239 = vadd.f32 %v9189, %v9222
    %v9240 = vadd.f32 %v9190, %v9226
    %v9241 = vadd.f32 %v9191, %v9230
    %v9242 = vadd.f32 %v9192, %v9234
    %v9243 = vadd.f32 %v9193, %v9222
    %v9244 = vadd.f32 %v9194, %v9226
    %v9245 = vadd.f32 %v9195, %v9230
    %v9246 = vadd.f32 %v9196, %v9234
    %v9247 = vadd.f32 %v9197, %v9222
    %v9248 = vadd.f32 %v9198, %v9226
    %v9249 = vadd.f32 %v9199, %v9230
    %v9250 = vadd.f32 %v9200, %v9234
    %v9251 = vadd.f32 %v9201, %v9222
    %v9252 = vadd.f32 %v9202, %v9226
    %v9253 = vadd.f32 %v9203, %v9230
    %v9254 = vadd.f32 %v9204, %v9234
    %v9255 = vadd.f32 %v9205, %v9222
    %v9256 = vadd.f32 %v9206, %v9226
    %v9257 = vadd.f32 %v9207, %v9230
    %v9258 = vadd.f32 %v9208, %v9234
    %v9259 = vadd.f32 %v9209, %v9222
    %v9260 = vadd.f32 %v9210, %v9226
    %v9261 = vadd.f32 %v9211, %v9230
    %v9262 = vadd.f32 %v9212, %v9234
    %v9263 = vadd.f32 %v9213, %v9222
    %v9264 = vadd.f32 %v9214, %v9226
    %v9265 = vadd.f32 %v9215, %v9230
    %v9266 = vadd.f32 %v9216, %v9234
    %v9267 = vmax.f32 %v9239, 0.0
    %v9268 = vmax.f32 %v9240, 0.0
    %v9269 = vmax.f32 %v9241, 0.0
    %v9270 = vmax.f32 %v9242, 0.0
    %v9271 = vmax.f32 %v9243, 0.0
    %v9272 = vmax.f32 %v9244, 0.0
    %v9273 = vmax.f32 %v9245, 0.0
    %v9274 = vmax.f32 %v9246, 0.0
    %v9275 = vmax.f32 %v9247, 0.0
    %v9276 = vmax.f32 %v9248, 0.0
    %v9277 = vmax.f32 %v9249, 0.0
    %v9278 = vmax.f32 %v9250, 0.0
    %v9279 = vmax.f32 %v9251, 0.0
    %v9280 = vmax.f32 %v9252, 0.0
    %v9281 = vmax.f32 %v9253, 0.0
    %v9282 = vmax.f32 %v9254, 0.0
    %v9283 = vmax.f32 %v9255, 0.0
    %v9284 = vmax.f32 %v9256, 0.0
    %v9285 = vmax.f32 %v9257, 0.0
    %v9286 = vmax.f32 %v9258, 0.0
    %v9287 = vmax.f32 %v9259, 0.0
    %v9288 = vmax.f32 %v9260, 0.0
    %v9289 = vmax.f32 %v9261, 0.0
    %v9290 = vmax.f32 %v9262, 0.0
    %v9291 = vmax.f32 %v9263, 0.0
    %v9292 = vmax.f32 %v9264, 0.0
    %v9293 = vmax.f32 %v9265, 0.0
    %v9294 = vmax.f32 %v9266, 0.0
    %v9295 = vld [vmem:[%s5] sm:$0xff]
    %v9296 = vld [vmem:[%s5 + $0x8] sm:$0xff]
    %v9297 = vld [vmem:[%s5 + $0x10] sm:$0xff]
    %v9298 = vld [vmem:[%s5 + $0x18] sm:$0xff]
    %v9299 = vld [vmem:[%s5 + $0x20] sm:$0xff]
    %v9300 = vld [vmem:[%s5 + $0x28] sm:$0xff]
    %v9301 = vld [vmem:[%s5 + $0x30] sm:$0xff]
    %v9302 = vld [vmem:[%s5 + $0x38] sm:$0xff]
    %v9303 = vld [vmem:[%s5 + $0x40] sm:$0xff]
    %v9304 = vld [vmem:[%s5 + $0x48] sm:$0xff]
    %v9305 = vld [vmem:[%s5 + $0x50] sm:$0xff]
    %v9306 = vld [vmem:[%s5 + $0x58] sm:$0xff]
    %v9307 = vld [vmem:[%s5 + $0x60] sm:$0xff]
    %v9308 = vld [vmem:[%s5 + $0x68] sm:$0xff]
    %v9309 = vld [vmem:[%s5 + $0x70] sm:$0xff]
    %v9310 = vld [vmem:[%s5 + $0x78] sm:$0xff]
    %v9311 = vld [vmem:[%s5 + $0x80] sm:$0xff]
    %v9312 = vld [vmem:[%s5 + $0x88] sm:$0xff]
    %v9313 = vld [vmem:[%s5 + $0x90] sm:$0xff]
    %v9314 = vld [vmem:[%s5 + $0x98] sm:$0xff]
    %v9315 = vld [vmem:[%s5 + $0xa0] sm:$0xff]
    %v9316 = vld [vmem:[%s5 + $0xa8] sm:$0xff]
    %v9317 = vld [vmem:[%s5 + $0xb0] sm:$0xff]
    %v9318 = vld [vmem:[%s5 + $0xb8] sm:$0xff]
    %v9319 = vld [vmem:[%s5 + $0xc0] sm:$0xff]
    %v9320 = vld [vmem:[%s5 + $0xc8] sm:$0xff]
    %v9321 = vld [vmem:[%s5 + $0xd0] sm:$0xff]
    %v9322 = vld [vmem:[%s5 + $0xd8] sm:$0xff]
    %v9323 = vld [vmem:[%s5 + $0xe0] sm:$0xff]
    %v9324 = vld [vmem:[%s5 + $0xe8] sm:$0xff]
    %v9325 = vld [vmem:[%s5 + $0xf0] sm:$0xff]
    %v9326 = vld [vmem:[%s5 + $0xf8] sm:$0xff]
    %v9327 = vld [vmem:[%s5 + $0x100] sm:$0xff]
    %v9328 = vld [vmem:[%s5 + $0x108] sm:$0xff]
    %v9329 = vld [vmem:[%s5 + $0x110] sm:$0xff]
    %v9330 = vld [vmem:[%s5 + $0x118] sm:$0xff]
    %v9331 = vld [vmem:[%s5 + $0x120] sm:$0xff]
    %v9332 = vld [vmem:[%s5 + $0x128] sm:$0xff]
    %v9333 = vld [vmem:[%s5 + $0x130] sm:$0xff]
    %v9334 = vld [vmem:[%s5 + $0x138] sm:$0xff]
    %v9335 = vld [vmem:[%s5 + $0x140] sm:$0xff]
    %v9336 = vld [vmem:[%s5 + $0x148] sm:$0xff]
    %v9337 = vld [vmem:[%s5 + $0x150] sm:$0xff]
    %v9338 = vld [vmem:[%s5 + $0x158] sm:$0xff]
    %v9339 = vld [vmem:[%s5 + $0x160] sm:$0xff]
    %v9340 = vld [vmem:[%s5 + $0x168] sm:$0xff]
    %v9341 = vld [vmem:[%s5 + $0x170] sm:$0xff]
    %v9342 = vld [vmem:[%s5 + $0x178] sm:$0xff]
    %v9343 = vld [vmem:[%s5 + $0x180] sm:$0xff]
    %v9344 = vld [vmem:[%s5 + $0x188] sm:$0xff]
    %v9345 = vld [vmem:[%s5 + $0x190] sm:$0xff]
    %v9346 = vld [vmem:[%s5 + $0x198] sm:$0xff]
    %v9347 = vld [vmem:[%s5 + $0x1a0] sm:$0xff]
    %v9348 = vld [vmem:[%s5 + $0x1a8] sm:$0xff]
    %v9349 = vld [vmem:[%s5 + $0x1b0] sm:$0xff]
    %v9350 = vld [vmem:[%s5 + $0x1b8] sm:$0xff]
    %v9351 = vld [vmem:[%s5 + $0x1c0] sm:$0xff]
    %v9352 = vld [vmem:[%s5 + $0x1c8] sm:$0xff]
    %v9353 = vld [vmem:[%s5 + $0x1d0] sm:$0xff]
    %v9354 = vld [vmem:[%s5 + $0x1d8] sm:$0xff]
    %v9355 = vld [vmem:[%s5 + $0x1e0] sm:$0xff]
    %v9356 = vld [vmem:[%s5 + $0x1e8] sm:$0xff]
    %v9357 = vld [vmem:[%s5 + $0x1f0] sm:$0xff]
    %v9358 = vld [vmem:[%s5 + $0x1f8] sm:$0xff]
    %s9359 = scalar_lea.vmem %s5, 512
    %v9360 = vld [vmem:[%s9359] sm:$0xff]
    %v9361 = vld [vmem:[%s9359 + $0x8] sm:$0xff]
    %v9362 = vld [vmem:[%s9359 + $0x10] sm:$0xff]
    %v9363 = vld [vmem:[%s9359 + $0x18] sm:$0xff]
    %v9364 = vld [vmem:[%s9359 + $0x20] sm:$0xff]
    %v9365 = vld [vmem:[%s9359 + $0x28] sm:$0xff]
    %v9366 = vld [vmem:[%s9359 + $0x30] sm:$0xff]
    %v9367 = vld [vmem:[%s9359 + $0x38] sm:$0xff]
    %v9368 = vld [vmem:[%s9359 + $0x40] sm:$0xff]
    %v9369 = vld [vmem:[%s9359 + $0x48] sm:$0xff]
    %v9370 = vld [vmem:[%s9359 + $0x50] sm:$0xff]
    %v9371 = vld [vmem:[%s9359 + $0x58] sm:$0xff]
    %v9372 = vld [vmem:[%s9359 + $0x60] sm:$0xff]
    %v9373 = vld [vmem:[%s9359 + $0x68] sm:$0xff]
    %v9374 = vld [vmem:[%s9359 + $0x70] sm:$0xff]
    %v9375 = vld [vmem:[%s9359 + $0x78] sm:$0xff]
    %v9376 = vld [vmem:[%s9359 + $0x80] sm:$0xff]
    %v9377 = vld [vmem:[%s9359 + $0x88] sm:$0xff]
    %v9378 = vld [vmem:[%s9359 + $0x90] sm:$0xff]
    %v9379 = vld [vmem:[%s9359 + $0x98] sm:$0xff]
    %v9380 = vld [vmem:[%s9359 + $0xa0] sm:$0xff]
    %v9381 = vld [vmem:[%s9359 + $0xa8] sm:$0xff]
    %v9382 = vld [vmem:[%s9359 + $0xb0] sm:$0xff]
    %v9383 = vld [vmem:[%s9359 + $0xb8] sm:$0xff]
    %v9384 = vld [vmem:[%s9359 + $0xc0] sm:$0xff]
    %v9385 = vld [vmem:[%s9359 + $0xc8] sm:$0xff]
    %v9386 = vld [vmem:[%s9359 + $0xd0] sm:$0xff]
    %v9387 = vld [vmem:[%s9359 + $0xd8] sm:$0xff]
    %v9388 = vld [vmem:[%s9359 + $0xe0] sm:$0xff]
    %v9389 = vld [vmem:[%s9359 + $0xe8] sm:$0xff]
    %v9390 = vld [vmem:[%s9359 + $0xf0] sm:$0xff]
    %v9391 = vld [vmem:[%s9359 + $0xf8] sm:$0xff]
    %v9392 = vld [vmem:[%s9359 + $0x100] sm:$0xff]
    %v9393 = vld [vmem:[%s9359 + $0x108] sm:$0xff]
    %v9394 = vld [vmem:[%s9359 + $0x110] sm:$0xff]
    %v9395 = vld [vmem:[%s9359 + $0x118] sm:$0xff]
    %v9396 = vld [vmem:[%s9359 + $0x120] sm:$0xff]
    %v9397 = vld [vmem:[%s9359 + $0x128] sm:$0xff]
    %v9398 = vld [vmem:[%s9359 + $0x130] sm:$0xff]
    %v9399 = vld [vmem:[%s9359 + $0x138] sm:$0xff]
    %v9400 = vld [vmem:[%s9359 + $0x140] sm:$0xff]
    %v9401 = vld [vmem:[%s9359 + $0x148] sm:$0xff]
    %v9402 = vld [vmem:[%s9359 + $0x150] sm:$0xff]
    %v9403 = vld [vmem:[%s9359 + $0x158] sm:$0xff]
    %v9404 = vld [vmem:[%s9359 + $0x160] sm:$0xff]
    %v9405 = vld [vmem:[%s9359 + $0x168] sm:$0xff]
    %v9406 = vld [vmem:[%s9359 + $0x170] sm:$0xff]
    %v9407 = vld [vmem:[%s9359 + $0x178] sm:$0xff]
    %v9408 = vld [vmem:[%s9359 + $0x180] sm:$0xff]
    %v9409 = vld [vmem:[%s9359 + $0x188] sm:$0xff]
    %v9410 = vld [vmem:[%s9359 + $0x190] sm:$0xff]
    %v9411 = vld [vmem:[%s9359 + $0x198] sm:$0xff]
    %v9412 = vld [vmem:[%s9359 + $0x1a0] sm:$0xff]
    %v9413 = vld [vmem:[%s9359 + $0x1a8] sm:$0xff]
    %v9414 = vld [vmem:[%s9359 + $0x1b0] sm:$0xff]
    %v9415 = vld [vmem:[%s9359 + $0x1b8] sm:$0xff]
    %v9416 = vld [vmem:[%s9359 + $0x1c0] sm:$0xff]
    %v9417 = vld [vmem:[%s9359 + $0x1c8] sm:$0xff]
    %v9418 = vld [vmem:[%s9359 + $0x1d0] sm:$0xff]
    %v9419 = vld [vmem:[%s9359 + $0x1d8] sm:$0xff]
    %v9420 = vld [vmem:[%s9359 + $0x1e0] sm:$0xff]
    %v9421 = vld [vmem:[%s9359 + $0x1e8] sm:$0xff]
    %v9422 = vld [vmem:[%s9359 + $0x1f0] sm:$0xff]
    %v9423 = vld [vmem:[%s9359 + $0x1f8] sm:$0xff]
    %9424 = vmatprep.subr.mxu0 0.0
    %9425 = vmatpush1.msra.mxu0 %v9360
    %9426 = vmatprep.subr.mxu0 0.0
    %9427 = vmatpush1.msra.mxu0 %v9361
    %9428 = vmatprep.subr.mxu0 0.0
    %9429 = vmatpush1.msra.mxu0 %v9362
    %9430 = vmatprep.subr.mxu0 0.0
    %9431 = vmatpush1.msra.mxu0 %v9363
    %9432 = vmatprep.subr.mxu0 0.0
    %9433 = vmatpush1.msra.mxu0 %v9364
    %9434 = vmatprep.subr.mxu0 0.0
    %9435 = vmatpush1.msra.mxu0 %v9365
    %9436 = vmatprep.subr.mxu0 0.0
    %9437 = vmatpush1.msra.mxu0 %v9366
    %9438 = vmatprep.subr.mxu0 0.0
    %9439 = vmatpush1.msra.mxu0 %v9367
    %9440 = vmatprep.subr.mxu0 0.0
    %9441 = vmatpush1.msra.mxu0 %v9368
    %9442 = vmatprep.subr.mxu0 0.0
    %9443 = vmatpush1.msra.mxu0 %v9369
    %9444 = vmatprep.subr.mxu0 0.0
    %9445 = vmatpush1.msra.mxu0 %v9370
    %9446 = vmatprep.subr.mxu0 0.0
    %9447 = vmatpush1.msra.mxu0 %v9371
    %9448 = vmatprep.subr.mxu0 0.0
    %9449 = vmatpush1.msra.mxu0 %v9372
    %9450 = vmatprep.subr.mxu0 0.0
    %9451 = vmatpush1.msra.mxu0 %v9373
    %9452 = vmatprep.subr.mxu0 0.0
    %9453 = vmatpush1.msra.mxu0 %v9374
    %9454 = vmatprep.subr.mxu0 0.0
    %9455 = vmatpush1.msra.mxu0 %v9375
    %9456 = vmatprep.subr.mxu0 0.0
    %9457 = vmatpush1.msra.mxu0 %v9376
    %9458 = vmatprep.subr.mxu0 0.0
    %9459 = vmatpush1.msra.mxu0 %v9377
    %9460 = vmatprep.subr.mxu0 0.0
    %9461 = vmatpush1.msra.mxu0 %v9378
    %9462 = vmatprep.subr.mxu0 0.0
    %9463 = vmatpush1.msra.mxu0 %v9379
    %9464 = vmatprep.subr.mxu0 0.0
    %9465 = vmatpush1.msra.mxu0 %v9380
    %9466 = vmatprep.subr.mxu0 0.0
    %9467 = vmatpush1.msra.mxu0 %v9381
    %9468 = vmatprep.subr.mxu0 0.0
    %9469 = vmatpush1.msra.mxu0 %v9382
    %9470 = vmatprep.subr.mxu0 0.0
    %9471 = vmatpush1.msra.mxu0 %v9383
    %9472 = vmatprep.subr.mxu0 0.0
    %9473 = vmatpush1.msra.mxu0 %v9384
    %9474 = vmatprep.subr.mxu0 0.0
    %9475 = vmatpush1.msra.mxu0 %v9385
    %9476 = vmatprep.subr.mxu0 0.0
    %9477 = vmatpush1.msra.mxu0 %v9386
    %9478 = vmatprep.subr.mxu0 0.0
    %9479 = vmatpush1.msra.mxu0 %v9387
    %9480 = vmatprep.subr.mxu0 0.0
    %9481 = vmatpush1.msra.mxu0 %v9388
    %9482 = vmatprep.subr.mxu0 0.0
    %9483 = vmatpush1.msra.mxu0 %v9389
    %9484 = vmatprep.subr.mxu0 0.0
    %9485 = vmatpush1.msra.mxu0 %v9390
    %9486 = vmatprep.subr.mxu0 0.0
    %9487 = vmatpush1.msra.mxu0 %v9391
    %9488 = vmatprep.mubr.f32.mxu0 %v9272
    %9489 = vmatmul.mubr.f32.gmra.mrb[0].mxu0 %v9271
    %v9490 = vpop.f32.mrb[0].mxu0
    %v9491 = vadd.f32 0.0, %v9490
    %v9492 = vpop.f32.mrb[0].mxu0
    %9493 = vdwg.mxu0
    %9494 = vmatprep.subr.mxu0 0.0
    %9495 = vmatpush1.msra.mxu0 %v9392
    %9496 = vmatprep.subr.mxu0 0.0
    %9497 = vmatpush1.msra.mxu0 %v9393
    %9498 = vmatprep.subr.mxu0 0.0
    %9499 = vmatpush1.msra.mxu0 %v9394
    %9500 = vmatprep.subr.mxu0 0.0
    %9501 = vmatpush1.msra.mxu0 %v9395
    %9502 = vmatprep.subr.mxu0 0.0
    %9503 = vmatpush1.msra.mxu0 %v9396
    %9504 = vmatprep.subr.mxu0 0.0
    %9505 = vmatpush1.msra.mxu0 %v9397
    %9506 = vmatprep.subr.mxu0 0.0
    %9507 = vmatpush1.msra.mxu0 %v9398
    %9508 = vmatprep.subr.mxu0 0.0
    %9509 = vmatpush1.msra.mxu0 %v9399
    %9510 = vmatprep.subr.mxu0 0.0
    %9511 = vmatpush1.msra.mxu0 %v9400
    %9512 = vmatprep.subr.mxu0 0.0
    %9513 = vmatpush1.msra.mxu0 %v9401
    %9514 = vmatprep.subr.mxu0 0.0
    %9515 = vmatpush1.msra.mxu0 %v9402
    %9516 = vmatprep.subr.mxu0 0.0
    %9517 = vmatpush1.msra.mxu0 %v9403
    %9518 = vmatprep.subr.mxu0 0.0
    %9519 = vmatpush1.msra.mxu0 %v9404
    %9520 = vmatprep.subr.mxu0 0.0
    %9521 = vmatpush1.msra.mxu0 %v9405
    %9522 = vmatprep.subr.mxu0 0.0
    %9523 = vmatpush1.msra.mxu0 %v9406
    %9524 = vmatprep.subr.mxu0 0.0
    %9525 = vmatpush1.msra.mxu0 %v9407
    %9526 = vmatprep.subr.mxu0 0.0
    %9527 = vmatpush1.msra.mxu0 %v9408
    %9528 = vmatprep.subr.mxu0 0.0
    %9529 = vmatpush1.msra.mxu0 %v9409
    %9530 = vmatprep.subr.mxu0 0.0
    %9531 = vmatpush1.msra.mxu0 %v9410
    %9532 = vmatprep.subr.mxu0 0.0
    %9533 = vmatpush1.msra.mxu0 %v9411
    %9534 = vmatprep.subr.mxu0 0.0
    %9535 = vmatpush1.msra.mxu0 %v9412
    %9536 = vmatprep.subr.mxu0 0.0
    %9537 = vmatpush1.msra.mxu0 %v9413
    %9538 = vmatprep.subr.mxu0 0.0
    %9539 = vmatpush1.msra.mxu0 %v9414
    %9540 = vmatprep.subr.mxu0 0.0
    %9541 = vmatpush1.msra.mxu0 %v9415
    %9542 = vmatprep.subr.mxu0 0.0
    %9543 = vmatpush1.msra.mxu0 %v9416
    %9544 = vmatprep.subr.mxu0 0.0
    %9545 = vmatpush1.msra.mxu0 %v9417
    %9546 = vmatprep.subr.mxu0 0.0
    %9547 = vmatpush1.msra.mxu0 %v9418
    %9548 = vmatprep.subr.mxu0 0.0
    %9549 = vmatpush1.msra.mxu0 %v9419
    %9550 = vmatprep.subr.mxu0 0.0
    %9551 = vmatpush1.msra.mxu0 %v9420
    %9552 = vmatprep.subr.mxu0 0.0
    %9553 = vmatpush1.msra.mxu0 %v9421
    %9554 = vmatprep.subr.mxu0 0.0
    %9555 = vmatpush1.msra.mxu0 %v9422
    %9556 = vmatprep.subr.mxu0 0.0
    %9557 = vmatpush1.msra.mxu0 %v9423
    %9558 = vmatprep.mubr.f32.mxu0 %v9274
    %9559 = vmatmul.mubr.f32.gmra.mrb[0].mxu0 %v9273
    %v9560 = vpop.f32.mrb[0].mxu0
    %v9561 = vadd.f32 %v9491, %v9560
    %v9562 = vpop.f32.mrb[0].mxu0
    %9563 = vdwg.mxu0
    %9564 = vmatprep.subr.mxu0 0.0
    %9565 = vmatpush1.msra.mxu0 %v9295
    %9566 = vmatprep.subr.mxu0 0.0
    %9567 = vmatpush1.msra.mxu0 %v9296
    %9568 = vmatprep.subr.mxu0 0.0
    %9569 = vmatpush1.msra.mxu0 %v9297
    %9570 = vmatprep.subr.mxu0 0.0
    %9571 = vmatpush1.msra.mxu0 %v9298
    %9572 = vmatprep.subr.mxu0 0.0
    %9573 = vmatpush1.msra.mxu0 %v9299
    %9574 = vmatprep.subr.mxu0 0.0
    %9575 = vmatpush1.msra.mxu0 %v9300
    %9576 = vmatprep.subr.mxu0 0.0
    %9577 = vmatpush1.msra.mxu0 %v9301
    %9578 = vmatprep.subr.mxu0 0.0
    %9579 = vmatpush1.msra.mxu0 %v9302
    %9580 = vmatprep.subr.mxu0 0.0
    %9581 = vmatpush1.msra.mxu0 %v9303
    %9582 = vmatprep.subr.mxu0 0.0
    %9583 = vmatpush1.msra.mxu0 %v9304
    %9584 = vmatprep.subr.mxu0 0.0
    %9585 = vmatpush1.msra.mxu0 %v9305
    %9586 = vmatprep.subr.mxu0 0.0
    %9587 = vmatpush1.msra.mxu0 %v9306
    %9588 = vmatprep.subr.mxu0 0.0
    %9589 = vmatpush1.msra.mxu0 %v9307
    %9590 = vmatprep.subr.mxu0 0.0
    %9591 = vmatpush1.msra.mxu0 %v9308
    %9592 = vmatprep.subr.mxu0 0.0
    %9593 = vmatpush1.msra.mxu0 %v9309
    %9594 = vmatprep.subr.mxu0 0.0
    %9595 = vmatpush1.msra.mxu0 %v9310
    %9596 = vmatprep.subr.mxu0 0.0
    %9597 = vmatpush1.msra.mxu0 %v9311
    %9598 = vmatprep.subr.mxu0 0.0
    %9599 = vmatpush1.msra.mxu0 %v9312
    %9600 = vmatprep.subr.mxu0 0.0
    %9601 = vmatpush1.msra.mxu0 %v9313
    %9602 = vmatprep.subr.mxu0 0.0
    %9603 = vmatpush1.msra.mxu0 %v9314
    %9604 = vmatprep.subr.mxu0 0.0
    %9605 = vmatpush1.msra.mxu0 %v9315
    %9606 = vmatprep.subr.mxu0 0.0
    %9607 = vmatpush1.msra.mxu0 %v9316
    %9608 = vmatprep.subr.mxu0 0.0
    %9609 = vmatpush1.msra.mxu0 %v9317
    %9610 = vmatprep.subr.mxu0 0.0
    %9611 = vmatpush1.msra.mxu0 %v9318
    %9612 = vmatprep.subr.mxu0 0.0
    %9613 = vmatpush1.msra.mxu0 %v9319
    %9614 = vmatprep.subr.mxu0 0.0
    %9615 = vmatpush1.msra.mxu0 %v9320
    %9616 = vmatprep.subr.mxu0 0.0
    %9617 = vmatpush1.msra.mxu0 %v9321
    %9618 = vmatprep.subr.mxu0 0.0
    %9619 = vmatpush1.msra.mxu0 %v9322
    %9620 = vmatprep.subr.mxu0 0.0
    %9621 = vmatpush1.msra.mxu0 %v9323
    %9622 = vmatprep.subr.mxu0 0.0
    %9623 = vmatpush1.msra.mxu0 %v9324
    %9624 = vmatprep.subr.mxu0 0.0
    %9625 = vmatpush1.msra.mxu0 %v9325
    %9626 = vmatprep.subr.mxu0 0.0
    %9627 = vmatpush1.msra.mxu0 %v9326
    %9628 = vmatprep.mubr.f32.mxu0 %v9268
    %9629 = vmatmul.mubr.f32.gmra.mrb[0].mxu0 %v9267
    %v9630 = vpop.f32.mrb[0].mxu0
    %v9631 = vadd.f32 %v9561, %v9630
    %v9632 = vpop.f32.mrb[0].mxu0
    %9633 = vdwg.mxu0
    %9634 = vmatprep.subr.mxu0 0.0
    %9635 = vmatpush1.msra.mxu0 %v9327
    %9636 = vmatprep.subr.mxu0 0.0
    %9637 = vmatpush1.msra.mxu0 %v9328
    %9638 = vmatprep.subr.mxu0 0.0
    %9639 = vmatpush1.msra.mxu0 %v9329
    %9640 = vmatprep.subr.mxu0 0.0
    %9641 = vmatpush1.msra.mxu0 %v9330
    %9642 = vmatprep.subr.mxu0 0.0
    %9643 = vmatpush1.msra.mxu0 %v9331
    %9644 = vmatprep.subr.mxu0 0.0
    %9645 = vmatpush1.msra.mxu0 %v9332
    %9646 = vmatprep.subr.mxu0 0.0
    %9647 = vmatpush1.msra.mxu0 %v9333
    %9648 = vmatprep.subr.mxu0 0.0
    %9649 = vmatpush1.msra.mxu0 %v9334
    %9650 = vmatprep.subr.mxu0 0.0
    %9651 = vmatpush1.msra.mxu0 %v9335
    %9652 = vmatprep.subr.mxu0 0.0
    %9653 = vmatpush1.msra.mxu0 %v9336
    %9654 = vmatprep.subr.mxu0 0.0
    %9655 = vmatpush1.msra.mxu0 %v9337
    %9656 = vmatprep.subr.mxu0 0.0
    %9657 = vmatpush1.msra.mxu0 %v9338
    %9658 = vmatprep.subr.mxu0 0.0
    %9659 = vmatpush1.msra.mxu0 %v9339
    %9660 = vmatprep.subr.mxu0 0.0
    %9661 = vmatpush1.msra.mxu0 %v9340
    %9662 = vmatprep.subr.mxu0 0.0
    %9663 = vmatpush1.msra.mxu0 %v9341
    %9664 = vmatprep.subr.mxu0 0.0
    %9665 = vmatpush1.msra.mxu0 %v9342
    %9666 = vmatprep.subr.mxu0 0.0
    %9667 = vmatpush1.msra.mxu0 %v9343
    %9668 = vmatprep.subr.mxu0 0.0
    %9669 = vmatpush1.msra.mxu0 %v9344
    %9670 = vmatprep.subr.mxu0 0.0
    %9671 = vmatpush1.msra.mxu0 %v9345
    %9672 = vmatprep.subr.mxu0 0.0
    %9673 = vmatpush1.msra.mxu0 %v9346
    %9674 = vmatprep.subr.mxu0 0.0
    %9675 = vmatpush1.msra.mxu0 %v9347
    %9676 = vmatprep.subr.mxu0 0.0
    %9677 = vmatpush1.msra.mxu0 %v9348
    %9678 = vmatprep.subr.mxu0 0.0
    %9679 = vmatpush1.msra.mxu0 %v9349
    %9680 = vmatprep.subr.mxu0 0.0
    %9681 = vmatpush1.msra.mxu0 %v9350
    %9682 = vmatprep.subr.mxu0 0.0
    %9683 = vmatpush1.msra.mxu0 %v9351
    %9684 = vmatprep.subr.mxu0 0.0
    %9685 = vmatpush1.msra.mxu0 %v9352
    %9686 = vmatprep.subr.mxu0 0.0
    %9687 = vmatpush1.msra.mxu0 %v9353
    %9688 = vmatprep.subr.mxu0 0.0
    %9689 = vmatpush1.msra.mxu0 %v9354
    %9690 = vmatprep.subr.mxu0 0.0
    %9691 = vmatpush1.msra.mxu0 %v9355
    %9692 = vmatprep.subr.mxu0 0.0
    %9693 = vmatpush1.msra.mxu0 %v9356
    %9694 = vmatprep.subr.mxu0 0.0
    %9695 = vmatpush1.msra.mxu0 %v9357
    %9696 = vmatprep.subr.mxu0 0.0
    %9697 = vmatpush1.msra.mxu0 %v9358
    %9698 = vmatprep.mubr.f32.mxu0 %v9270
    %9699 = vmatmul.mubr.f32.gmra.mrb[0].mxu0 %v9269
    %v9700 = vpop.f32.mrb[0].mxu0
    %v9701 = vadd.f32 %v9631, %v9700
    %v9702 = vpop.f32.mrb[0].mxu0
    %9703 = vdwg.mxu0
    %s9704 = scalar_lea.vmem %s5, 1024
    %v9705 = vld [vmem:[%s9704] sm:$0xff]
    %v9706 = vld [vmem:[%s9704 + $0x8] sm:$0xff]
    %v9707 = vld [vmem:[%s9704 + $0x10] sm:$0xff]
    %v9708 = vld [vmem:[%s9704 + $0x18] sm:$0xff]
    %v9709 = vld [vmem:[%s9704 + $0x20] sm:$0xff]
    %v9710 = vld [vmem:[%s9704 + $0x28] sm:$0xff]
    %v9711 = vld [vmem:[%s9704 + $0x30] sm:$0xff]
    %v9712 = vld [vmem:[%s9704 + $0x38] sm:$0xff]
    %v9713 = vld [vmem:[%s9704 + $0x40] sm:$0xff]
    %v9714 = vld [vmem:[%s9704 + $0x48] sm:$0xff]
    %v9715 = vld [vmem:[%s9704 + $0x50] sm:$0xff]
    %v9716 = vld [vmem:[%s9704 + $0x58] sm:$0xff]
    %v9717 = vld [vmem:[%s9704 + $0x60] sm:$0xff]
    %v9718 = vld [vmem:[%s9704 + $0x68] sm:$0xff]
    %v9719 = vld [vmem:[%s9704 + $0x70] sm:$0xff]
    %v9720 = vld [vmem:[%s9704 + $0x78] sm:$0xff]
    %v9721 = vld [vmem:[%s9704 + $0x80] sm:$0xff]
    %v9722 = vld [vmem:[%s9704 + $0x88] sm:$0xff]
    %v9723 = vld [vmem:[%s9704 + $0x90] sm:$0xff]
    %v9724 = vld [vmem:[%s9704 + $0x98] sm:$0xff]
    %v9725 = vld [vmem:[%s9704 + $0xa0] sm:$0xff]
    %v9726 = vld [vmem:[%s9704 + $0xa8] sm:$0xff]
    %v9727 = vld [vmem:[%s9704 + $0xb0] sm:$0xff]
    %v9728 = vld [vmem:[%s9704 + $0xb8] sm:$0xff]
    %v9729 = vld [vmem:[%s9704 + $0xc0] sm:$0xff]
    %v9730 = vld [vmem:[%s9704 + $0xc8] sm:$0xff]
    %v9731 = vld [vmem:[%s9704 + $0xd0] sm:$0xff]
    %v9732 = vld [vmem:[%s9704 + $0xd8] sm:$0xff]
    %v9733 = vld [vmem:[%s9704 + $0xe0] sm:$0xff]
    %v9734 = vld [vmem:[%s9704 + $0xe8] sm:$0xff]
    %v9735 = vld [vmem:[%s9704 + $0xf0] sm:$0xff]
    %v9736 = vld [vmem:[%s9704 + $0xf8] sm:$0xff]
    %v9737 = vld [vmem:[%s9704 + $0x100] sm:$0xff]
    %v9738 = vld [vmem:[%s9704 + $0x108] sm:$0xff]
    %v9739 = vld [vmem:[%s9704 + $0x110] sm:$0xff]
    %v9740 = vld [vmem:[%s9704 + $0x118] sm:$0xff]
    %v9741 = vld [vmem:[%s9704 + $0x120] sm:$0xff]
    %v9742 = vld [vmem:[%s9704 + $0x128] sm:$0xff]
    %v9743 = vld [vmem:[%s9704 + $0x130] sm:$0xff]
    %v9744 = vld [vmem:[%s9704 + $0x138] sm:$0xff]
    %v9745 = vld [vmem:[%s9704 + $0x140] sm:$0xff]
    %v9746 = vld [vmem:[%s9704 + $0x148] sm:$0xff]
    %v9747 = vld [vmem:[%s9704 + $0x150] sm:$0xff]
    %v9748 = vld [vmem:[%s9704 + $0x158] sm:$0xff]
    %v9749 = vld [vmem:[%s9704 + $0x160] sm:$0xff]
    %v9750 = vld [vmem:[%s9704 + $0x168] sm:$0xff]
    %v9751 = vld [vmem:[%s9704 + $0x170] sm:$0xff]
    %v9752 = vld [vmem:[%s9704 + $0x178] sm:$0xff]
    %v9753 = vld [vmem:[%s9704 + $0x180] sm:$0xff]
    %v9754 = vld [vmem:[%s9704 + $0x188] sm:$0xff]
    %v9755 = vld [vmem:[%s9704 + $0x190] sm:$0xff]
    %v9756 = vld [vmem:[%s9704 + $0x198] sm:$0xff]
    %v9757 = vld [vmem:[%s9704 + $0x1a0] sm:$0xff]
    %v9758 = vld [vmem:[%s9704 + $0x1a8] sm:$0xff]
    %v9759 = vld [vmem:[%s9704 + $0x1b0] sm:$0xff]
    %v9760 = vld [vmem:[%s9704 + $0x1b8] sm:$0xff]
    %v9761 = vld [vmem:[%s9704 + $0x1c0] sm:$0xff]
    %v9762 = vld [vmem:[%s9704 + $0x1c8] sm:$0xff]
    %v9763 = vld [vmem:[%s9704 + $0x1d0] sm:$0xff]
    %v9764 = vld [vmem:[%s9704 + $0x1d8] sm:$0xff]
    %v9765 = vld [vmem:[%s9704 + $0x1e0] sm:$0xff]
    %v9766 = vld [vmem:[%s9704 + $0x1e8] sm:$0xff]
    %v9767 = vld [vmem:[%s9704 + $0x1f0] sm:$0xff]
    %v9768 = vld [vmem:[%s9704 + $0x1f8] sm:$0xff]
    %9769 = vmatprep.subr.mxu0 0.0
    %9770 = vmatpush1.msra.mxu0 %v9705
    %9771 = vmatprep.subr.mxu0 0.0
    %9772 = vmatpush1.msra.mxu0 %v9706
    %9773 = vmatprep.subr.mxu0 0.0
    %9774 = vmatpush1.msra.mxu0 %v9707
    %9775 = vmatprep.subr.mxu0 0.0
    %9776 = vmatpush1.msra.mxu0 %v9708
    %9777 = vmatprep.subr.mxu0 0.0
    %9778 = vmatpush1.msra.mxu0 %v9709
    %9779 = vmatprep.subr.mxu0 0.0
    %9780 = vmatpush1.msra.mxu0 %v9710
    %9781 = vmatprep.subr.mxu0 0.0
    %9782 = vmatpush1.msra.mxu0 %v9711
    %9783 = vmatprep.subr.mxu0 0.0
    %9784 = vmatpush1.msra.mxu0 %v9712
    %9785 = vmatprep.subr.mxu0 0.0
    %9786 = vmatpush1.msra.mxu0 %v9713
    %9787 = vmatprep.subr.mxu0 0.0
    %9788 = vmatpush1.msra.mxu0 %v9714
    %9789 = vmatprep.subr.mxu0 0.0
    %9790 = vmatpush1.msra.mxu0 %v9715
    %9791 = vmatprep.subr.mxu0 0.0
    %9792 = vmatpush1.msra.mxu0 %v9716
    %9793 = vmatprep.subr.mxu0 0.0
    %9794 = vmatpush1.msra.mxu0 %v9717
    %9795 = vmatprep.subr.mxu0 0.0
    %9796 = vmatpush1.msra.mxu0 %v9718
    %9797 = vmatprep.subr.mxu0 0.0
    %9798 = vmatpush1.msra.mxu0 %v9719
    %9799 = vmatprep.subr.mxu0 0.0
    %9800 = vmatpush1.msra.mxu0 %v9720
    %9801 = vmatprep.subr.mxu0 0.0
    %9802 = vmatpush1.msra.mxu0 %v9721
    %9803 = vmatprep.subr.mxu0 0.0
    %9804 = vmatpush1.msra.mxu0 %v9722
    %9805 = vmatprep.subr.mxu0 0.0
    %9806 = vmatpush1.msra.mxu0 %v9723
    %9807 = vmatprep.subr.mxu0 0.0
    %9808 = vmatpush1.msra.mxu0 %v9724
    %9809 = vmatprep.subr.mxu0 0.0
    %9810 = vmatpush1.msra.mxu0 %v9725
    %9811 = vmatprep.subr.mxu0 0.0
    %9812 = vmatpush1.msra.mxu0 %v9726
    %9813 = vmatprep.subr.mxu0 0.0
    %9814 = vmatpush1.msra.mxu0 %v9727
    %9815 = vmatprep.subr.mxu0 0.0
    %9816 = vmatpush1.msra.mxu0 %v9728
    %9817 = vmatprep.subr.mxu0 0.0
    %9818 = vmatpush1.msra.mxu0 %v9729
    %9819 = vmatprep.subr.mxu0 0.0
    %9820 = vmatpush1.msra.mxu0 %v9730
    %9821 = vmatprep.subr.mxu0 0.0
    %9822 = vmatpush1.msra.mxu0 %v9731
    %9823 = vmatprep.subr.mxu0 0.0
    %9824 = vmatpush1.msra.mxu0 %v9732
    %9825 = vmatprep.subr.mxu0 0.0
    %9826 = vmatpush1.msra.mxu0 %v9733
    %9827 = vmatprep.subr.mxu0 0.0
    %9828 = vmatpush1.msra.mxu0 %v9734
    %9829 = vmatprep.subr.mxu0 0.0
    %9830 = vmatpush1.msra.mxu0 %v9735
    %9831 = vmatprep.subr.mxu0 0.0
    %9832 = vmatpush1.msra.mxu0 %v9736
    %9833 = vmatprep.mubr.f32.mxu0 %v9276
    %9834 = vmatmul.mubr.f32.gmra.mrb[0].mxu0 %v9275
    %v9835 = vpop.f32.mrb[0].mxu0
    %v9836 = vadd.f32 0.0, %v9835
    %v9837 = vpop.f32.mrb[0].mxu0
    %9838 = vdwg.mxu0
    %9839 = vmatprep.subr.mxu0 0.0
    %9840 = vmatpush1.msra.mxu0 %v9737
    %9841 = vmatprep.subr.mxu0 0.0
    %9842 = vmatpush1.msra.mxu0 %v9738
    %9843 = vmatprep.subr.mxu0 0.0
    %9844 = vmatpush1.msra.mxu0 %v9739
    %9845 = vmatprep.subr.mxu0 0.0
    %9846 = vmatpush1.msra.mxu0 %v9740
    %9847 = vmatprep.subr.mxu0 0.0
    %9848 = vmatpush1.msra.mxu0 %v9741
    %9849 = vmatprep.subr.mxu0 0.0
    %9850 = vmatpush1.msra.mxu0 %v9742
    %9851 = vmatprep.subr.mxu0 0.0
    %9852 = vmatpush1.msra.mxu0 %v9743
    %9853 = vmatprep.subr.mxu0 0.0
    %9854 = vmatpush1.msra.mxu0 %v9744
    %9855 = vmatprep.subr.mxu0 0.0
    %9856 = vmatpush1.msra.mxu0 %v9745
    %9857 = vmatprep.subr.mxu0 0.0
    %9858 = vmatpush1.msra.mxu0 %v9746
    %9859 = vmatprep.subr.mxu0 0.0
    %9860 = vmatpush1.msra.mxu0 %v9747
    %9861 = vmatprep.subr.mxu0 0.0
    %9862 = vmatpush1.msra.mxu0 %v9748
    %9863 = vmatprep.subr.mxu0 0.0
    %9864 = vmatpush1.msra.mxu0 %v9749
    %9865 = vmatprep.subr.mxu0 0.0
    %9866 = vmatpush1.msra.mxu0 %v9750
    %9867 = vmatprep.subr.mxu0 0.0
    %9868 = vmatpush1.msra.mxu0 %v9751
    %9869 = vmatprep.subr.mxu0 0.0
    %9870 = vmatpush1.msra.mxu0 %v9752
    %9871 = vmatprep.subr.mxu0 0.0
    %9872 = vmatpush1.msra.mxu0 %v9753
    %9873 = vmatprep.subr.mxu0 0.0
    %9874 = vmatpush1.msra.mxu0 %v9754
    %9875 = vmatprep.subr.mxu0 0.0
    %9876 = vmatpush1.msra.mxu0 %v9755
    %9877 = vmatprep.subr.mxu0 0.0
    %9878 = vmatpush1.msra.mxu0 %v9756
    %9879 = vmatprep.subr.mxu0 0.0
    %9880 = vmatpush1.msra.mxu0 %v9757
    %9881 = vmatprep.subr.mxu0 0.0
    %9882 = vmatpush1.msra.mxu0 %v9758
    %9883 = vmatprep.subr.mxu0 0.0
    %9884 = vmatpush1.msra.mxu0 %v9759
    %9885 = vmatprep.subr.mxu0 0.0
    %9886 = vmatpush1.msra.mxu0 %v9760
    %9887 = vmatprep.subr.mxu0 0.0
    %9888 = vmatpush1.msra.mxu0 %v9761
    %9889 = vmatprep.subr.mxu0 0.0
    %9890 = vmatpush1.msra.mxu0 %v9762
    %9891 = vmatprep.subr.mxu0 0.0
    %9892 = vmatpush1.msra.mxu0 %v9763
    %9893 = vmatprep.subr.mxu0 0.0
    %9894 = vmatpush1.msra.mxu0 %v9764
    %9895 = vmatprep.subr.mxu0 0.0
    %9896 = vmatpush1.msra.mxu0 %v9765
    %9897 = vmatprep.subr.mxu0 0.0
    %9898 = vmatpush1.msra.mxu0 %v9766
    %9899 = vmatprep.subr.mxu0 0.0
    %9900 = vmatpush1.msra.mxu0 %v9767
    %9901 = vmatprep.subr.mxu0 0.0
    %9902 = vmatpush1.msra.mxu0 %v9768
    %9903 = vmatprep.mubr.f32.mxu0 %v9278
    %9904 = vmatmul.mubr.f32.gmra.mrb[0].mxu0 %v9277
    %v9905 = vpop.f32.mrb[0].mxu0
    %v9906 = vadd.f32 %v9836, %v9905
    %v9907 = vpop.f32.mrb[0].mxu0
    %9908 = vdwg.mxu0
    %v9909 = vadd.f32 %v9701, %v9906
    %s9910 = scalar_lea.vmem %s5, 1536
    %v9911 = vld [vmem:[%s9910] sm:$0xff]
    %v9912 = vld [vmem:[%s9910 + $0x8] sm:$0xff]
    %v9913 = vld [vmem:[%s9910 + $0x10] sm:$0xff]
    %v9914 = vld [vmem:[%s9910 + $0x18] sm:$0xff]
    %v9915 = vld [vmem:[%s9910 + $0x20] sm:$0xff]
    %v9916 = vld [vmem:[%s9910 + $0x28] sm:$0xff]
    %v9917 = vld [vmem:[%s9910 + $0x30] sm:$0xff]
    %v9918 = vld [vmem:[%s9910 + $0x38] sm:$0xff]
    %v9919 = vld [vmem:[%s9910 + $0x40] sm:$0xff]
    %v9920 = vld [vmem:[%s9910 + $0x48] sm:$0xff]
    %v9921 = vld [vmem:[%s9910 + $0x50] sm:$0xff]
    %v9922 = vld [vmem:[%s9910 + $0x58] sm:$0xff]
    %v9923 = vld [vmem:[%s9910 + $0x60] sm:$0xff]
    %v9924 = vld [vmem:[%s9910 + $0x68] sm:$0xff]
    %v9925 = vld [vmem:[%s9910 + $0x70] sm:$0xff]
    %v9926 = vld [vmem:[%s9910 + $0x78] sm:$0xff]
    %v9927 = vld [vmem:[%s9910 + $0x80] sm:$0xff]
    %v9928 = vld [vmem:[%s9910 + $0x88] sm:$0xff]
    %v9929 = vld [vmem:[%s9910 + $0x90] sm:$0xff]
    %v9930 = vld [vmem:[%s9910 + $0x98] sm:$0xff]
    %v9931 = vld [vmem:[%s9910 + $0xa0] sm:$0xff]
    %v9932 = vld [vmem:[%s9910 + $0xa8] sm:$0xff]
    %v9933 = vld [vmem:[%s9910 + $0xb0] sm:$0xff]
    %v9934 = vld [vmem:[%s9910 + $0xb8] sm:$0xff]
    %v9935 = vld [vmem:[%s9910 + $0xc0] sm:$0xff]
    %v9936 = vld [vmem:[%s9910 + $0xc8] sm:$0xff]
    %v9937 = vld [vmem:[%s9910 + $0xd0] sm:$0xff]
    %v9938 = vld [vmem:[%s9910 + $0xd8] sm:$0xff]
    %v9939 = vld [vmem:[%s9910 + $0xe0] sm:$0xff]
    %v9940 = vld [vmem:[%s9910 + $0xe8] sm:$0xff]
    %v9941 = vld [vmem:[%s9910 + $0xf0] sm:$0xff]
    %v9942 = vld [vmem:[%s9910 + $0xf8] sm:$0xff]
    %v9943 = vld [vmem:[%s9910 + $0x100] sm:$0xff]
    %v9944 = vld [vmem:[%s9910 + $0x108] sm:$0xff]
    %v9945 = vld [vmem:[%s9910 + $0x110] sm:$0xff]
    %v9946 = vld [vmem:[%s9910 + $0x118] sm:$0xff]
    %v9947 = vld [vmem:[%s9910 + $0x120] sm:$0xff]
    %v9948 = vld [vmem:[%s9910 + $0x128] sm:$0xff]
    %v9949 = vld [vmem:[%s9910 + $0x130] sm:$0xff]
    %v9950 = vld [vmem:[%s9910 + $0x138] sm:$0xff]
    %v9951 = vld [vmem:[%s9910 + $0x140] sm:$0xff]
    %v9952 = vld [vmem:[%s9910 + $0x148] sm:$0xff]
    %v9953 = vld [vmem:[%s9910 + $0x150] sm:$0xff]
    %v9954 = vld [vmem:[%s9910 + $0x158] sm:$0xff]
    %v9955 = vld [vmem:[%s9910 + $0x160] sm:$0xff]
    %v9956 = vld [vmem:[%s9910 + $0x168] sm:$0xff]
    %v9957 = vld [vmem:[%s9910 + $0x170] sm:$0xff]
    %v9958 = vld [vmem:[%s9910 + $0x178] sm:$0xff]
    %v9959 = vld [vmem:[%s9910 + $0x180] sm:$0xff]
    %v9960 = vld [vmem:[%s9910 + $0x188] sm:$0xff]
    %v9961 = vld [vmem:[%s9910 + $0x190] sm:$0xff]
    %v9962 = vld [vmem:[%s9910 + $0x198] sm:$0xff]
    %v9963 = vld [vmem:[%s9910 + $0x1a0] sm:$0xff]
    %v9964 = vld [vmem:[%s9910 + $0x1a8] sm:$0xff]
    %v9965 = vld [vmem:[%s9910 + $0x1b0] sm:$0xff]
    %v9966 = vld [vmem:[%s9910 + $0x1b8] sm:$0xff]
    %v9967 = vld [vmem:[%s9910 + $0x1c0] sm:$0xff]
    %v9968 = vld [vmem:[%s9910 + $0x1c8] sm:$0xff]
    %v9969 = vld [vmem:[%s9910 + $0x1d0] sm:$0xff]
    %v9970 = vld [vmem:[%s9910 + $0x1d8] sm:$0xff]
    %v9971 = vld [vmem:[%s9910 + $0x1e0] sm:$0xff]
    %v9972 = vld [vmem:[%s9910 + $0x1e8] sm:$0xff]
    %v9973 = vld [vmem:[%s9910 + $0x1f0] sm:$0xff]
    %v9974 = vld [vmem:[%s9910 + $0x1f8] sm:$0xff]
    %9975 = vmatprep.subr.mxu0 0.0
    %9976 = vmatpush1.msra.mxu0 %v9911
    %9977 = vmatprep.subr.mxu0 0.0
    %9978 = vmatpush1.msra.mxu0 %v9912
    %9979 = vmatprep.subr.mxu0 0.0
    %9980 = vmatpush1.msra.mxu0 %v9913
    %9981 = vmatprep.subr.mxu0 0.0
    %9982 = vmatpush1.msra.mxu0 %v9914
    %9983 = vmatprep.subr.mxu0 0.0
    %9984 = vmatpush1.msra.mxu0 %v9915
    %9985 = vmatprep.subr.mxu0 0.0
    %9986 = vmatpush1.msra.mxu0 %v9916
    %9987 = vmatprep.subr.mxu0 0.0
    %9988 = vmatpush1.msra.mxu0 %v9917
    %9989 = vmatprep.subr.mxu0 0.0
    %9990 = vmatpush1.msra.mxu0 %v9918
    %9991 = vmatprep.subr.mxu0 0.0
    %9992 = vmatpush1.msra.mxu0 %v9919
    %9993 = vmatprep.subr.mxu0 0.0
    %9994 = vmatpush1.msra.mxu0 %v9920
    %9995 = vmatprep.subr.mxu0 0.0
    %9996 = vmatpush1.msra.mxu0 %v9921
    %9997 = vmatprep.subr.mxu0 0.0
    %9998 = vmatpush1.msra.mxu0 %v9922
    %9999 = vmatprep.subr.mxu0 0.0
    %10000 = vmatpush1.msra.mxu0 %v9923
    %10001 = vmatprep.subr.mxu0 0.0
    %10002 = vmatpush1.msra.mxu0 %v9924
    %10003 = vmatprep.subr.mxu0 0.0
    %10004 = vmatpush1.msra.mxu0 %v9925
    %10005 = vmatprep.subr.mxu0 0.0
    %10006 = vmatpush1.msra.mxu0 %v9926
    %10007 = vmatprep.subr.mxu0 0.0
    %10008 = vmatpush1.msra.mxu0 %v9927
    %10009 = vmatprep.subr.mxu0 0.0
    %10010 = vmatpush1.msra.mxu0 %v9928
    %10011 = vmatprep.subr.mxu0 0.0
    %10012 = vmatpush1.msra.mxu0 %v9929
    %10013 = vmatprep.subr.mxu0 0.0
    %10014 = vmatpush1.msra.mxu0 %v9930
    %10015 = vmatprep.subr.mxu0 0.0
    %10016 = vmatpush1.msra.mxu0 %v9931
    %10017 = vmatprep.subr.mxu0 0.0
    %10018 = vmatpush1.msra.mxu0 %v9932
    %10019 = vmatprep.subr.mxu0 0.0
    %10020 = vmatpush1.msra.mxu0 %v9933
    %10021 = vmatprep.subr.mxu0 0.0
    %10022 = vmatpush1.msra.mxu0 %v9934
    %10023 = vmatprep.subr.mxu0 0.0
    %10024 = vmatpush1.msra.mxu0 %v9935
    %10025 = vmatprep.subr.mxu0 0.0
    %10026 = vmatpush1.msra.mxu0 %v9936
    %10027 = vmatprep.subr.mxu0 0.0
    %10028 = vmatpush1.msra.mxu0 %v9937
    %10029 = vmatprep.subr.mxu0 0.0
    %10030 = vmatpush1.msra.mxu0 %v9938
    %10031 = vmatprep.subr.mxu0 0.0
    %10032 = vmatpush1.msra.mxu0 %v9939
    %10033 = vmatprep.subr.mxu0 0.0
    %10034 = vmatpush1.msra.mxu0 %v9940
    %10035 = vmatprep.subr.mxu0 0.0
    %10036 = vmatpush1.msra.mxu0 %v9941
    %10037 = vmatprep.subr.mxu0 0.0
    %10038 = vmatpush1.msra.mxu0 %v9942
    %10039 = vmatprep.mubr.f32.mxu0 %v9280
    %10040 = vmatmul.mubr.f32.gmra.mrb[0].mxu0 %v9279
    %v10041 = vpop.f32.mrb[0].mxu0
    %v10042 = vadd.f32 0.0, %v10041
    %v10043 = vpop.f32.mrb[0].mxu0
    %10044 = vdwg.mxu0
    %10045 = vmatprep.subr.mxu0 0.0
    %10046 = vmatpush1.msra.mxu0 %v9943
    %10047 = vmatprep.subr.mxu0 0.0
    %10048 = vmatpush1.msra.mxu0 %v9944
    %10049 = vmatprep.subr.mxu0 0.0
    %10050 = vmatpush1.msra.mxu0 %v9945
    %10051 = vmatprep.subr.mxu0 0.0
    %10052 = vmatpush1.msra.mxu0 %v9946
    %10053 = vmatprep.subr.mxu0 0.0
    %10054 = vmatpush1.msra.mxu0 %v9947
    %10055 = vmatprep.subr.mxu0 0.0
    %10056 = vmatpush1.msra.mxu0 %v9948
    %10057 = vmatprep.subr.mxu0 0.0
    %10058 = vmatpush1.msra.mxu0 %v9949
    %10059 = vmatprep.subr.mxu0 0.0
    %10060 = vmatpush1.msra.mxu0 %v9950
    %10061 = vmatprep.subr.mxu0 0.0
    %10062 = vmatpush1.msra.mxu0 %v9951
    %10063 = vmatprep.subr.mxu0 0.0
    %10064 = vmatpush1.msra.mxu0 %v9952
    %10065 = vmatprep.subr.mxu0 0.0
    %10066 = vmatpush1.msra.mxu0 %v9953
    %10067 = vmatprep.subr.mxu0 0.0
    %10068 = vmatpush1.msra.mxu0 %v9954
    %10069 = vmatprep.subr.mxu0 0.0
    %10070 = vmatpush1.msra.mxu0 %v9955
    %10071 = vmatprep.subr.mxu0 0.0
    %10072 = vmatpush1.msra.mxu0 %v9956
    %10073 = vmatprep.subr.mxu0 0.0
    %10074 = vmatpush1.msra.mxu0 %v9957
    %10075 = vmatprep.subr.mxu0 0.0
    %10076 = vmatpush1.msra.mxu0 %v9958
    %10077 = vmatprep.subr.mxu0 0.0
    %10078 = vmatpush1.msra.mxu0 %v9959
    %10079 = vmatprep.subr.mxu0 0.0
    %10080 = vmatpush1.msra.mxu0 %v9960
    %10081 = vmatprep.subr.mxu0 0.0
    %10082 = vmatpush1.msra.mxu0 %v9961
    %10083 = vmatprep.subr.mxu0 0.0
    %10084 = vmatpush1.msra.mxu0 %v9962
    %10085 = vmatprep.subr.mxu0 0.0
    %10086 = vmatpush1.msra.mxu0 %v9963
    %10087 = vmatprep.subr.mxu0 0.0
    %10088 = vmatpush1.msra.mxu0 %v9964
    %10089 = vmatprep.subr.mxu0 0.0
    %10090 = vmatpush1.msra.mxu0 %v9965
    %10091 = vmatprep.subr.mxu0 0.0
    %10092 = vmatpush1.msra.mxu0 %v9966
    %10093 = vmatprep.subr.mxu0 0.0
    %10094 = vmatpush1.msra.mxu0 %v9967
    %10095 = vmatprep.subr.mxu0 0.0
    %10096 = vmatpush1.msra.mxu0 %v9968
    %10097 = vmatprep.subr.mxu0 0.0
    %10098 = vmatpush1.msra.mxu0 %v9969
    %10099 = vmatprep.subr.mxu0 0.0
    %10100 = vmatpush1.msra.mxu0 %v9970
    %10101 = vmatprep.subr.mxu0 0.0
    %10102 = vmatpush1.msra.mxu0 %v9971
    %10103 = vmatprep.subr.mxu0 0.0
    %10104 = vmatpush1.msra.mxu0 %v9972
    %10105 = vmatprep.subr.mxu0 0.0
    %10106 = vmatpush1.msra.mxu0 %v9973
    %10107 = vmatprep.subr.mxu0 0.0
    %10108 = vmatpush1.msra.mxu0 %v9974
    %10109 = vmatprep.mubr.f32.mxu0 %v9282
    %10110 = vmatmul.mubr.f32.gmra.mrb[0].mxu0 %v9281
    %v10111 = vpop.f32.mrb[0].mxu0
    %v10112 = vadd.f32 %v10042, %v10111
    %v10113 = vpop.f32.mrb[0].mxu0
    %10114 = vdwg.mxu0
    %v10115 = vadd.f32 %v9909, %v10112
    %s10116 = scalar_lea.vmem %s5, 2048
    %v10117 = vld [vmem:[%s10116] sm:$0xff]
    %v10118 = vld [vmem:[%s10116 + $0x8] sm:$0xff]
    %v10119 = vld [vmem:[%s10116 + $0x10] sm:$0xff]
    %v10120 = vld [vmem:[%s10116 + $0x18] sm:$0xff]
    %v10121 = vld [vmem:[%s10116 + $0x20] sm:$0xff]
    %v10122 = vld [vmem:[%s10116 + $0x28] sm:$0xff]
    %v10123 = vld [vmem:[%s10116 + $0x30] sm:$0xff]
    %v10124 = vld [vmem:[%s10116 + $0x38] sm:$0xff]
    %v10125 = vld [vmem:[%s10116 + $0x40] sm:$0xff]
    %v10126 = vld [vmem:[%s10116 + $0x48] sm:$0xff]
    %v10127 = vld [vmem:[%s10116 + $0x50] sm:$0xff]
    %v10128 = vld [vmem:[%s10116 + $0x58] sm:$0xff]
    %v10129 = vld [vmem:[%s10116 + $0x60] sm:$0xff]
    %v10130 = vld [vmem:[%s10116 + $0x68] sm:$0xff]
    %v10131 = vld [vmem:[%s10116 + $0x70] sm:$0xff]
    %v10132 = vld [vmem:[%s10116 + $0x78] sm:$0xff]
    %v10133 = vld [vmem:[%s10116 + $0x80] sm:$0xff]
    %v10134 = vld [vmem:[%s10116 + $0x88] sm:$0xff]
    %v10135 = vld [vmem:[%s10116 + $0x90] sm:$0xff]
    %v10136 = vld [vmem:[%s10116 + $0x98] sm:$0xff]
    %v10137 = vld [vmem:[%s10116 + $0xa0] sm:$0xff]
    %v10138 = vld [vmem:[%s10116 + $0xa8] sm:$0xff]
    %v10139 = vld [vmem:[%s10116 + $0xb0] sm:$0xff]
    %v10140 = vld [vmem:[%s10116 + $0xb8] sm:$0xff]
    %v10141 = vld [vmem:[%s10116 + $0xc0] sm:$0xff]
    %v10142 = vld [vmem:[%s10116 + $0xc8] sm:$0xff]
    %v10143 = vld [vmem:[%s10116 + $0xd0] sm:$0xff]
    %v10144 = vld [vmem:[%s10116 + $0xd8] sm:$0xff]
    %v10145 = vld [vmem:[%s10116 + $0xe0] sm:$0xff]
    %v10146 = vld [vmem:[%s10116 + $0xe8] sm:$0xff]
    %v10147 = vld [vmem:[%s10116 + $0xf0] sm:$0xff]
    %v10148 = vld [vmem:[%s10116 + $0xf8] sm:$0xff]
    %v10149 = vld [vmem:[%s10116 + $0x100] sm:$0xff]
    %v10150 = vld [vmem:[%s10116 + $0x108] sm:$0xff]
    %v10151 = vld [vmem:[%s10116 + $0x110] sm:$0xff]
    %v10152 = vld [vmem:[%s10116 + $0x118] sm:$0xff]
    %v10153 = vld [vmem:[%s10116 + $0x120] sm:$0xff]
    %v10154 = vld [vmem:[%s10116 + $0x128] sm:$0xff]
    %v10155 = vld [vmem:[%s10116 + $0x130] sm:$0xff]
    %v10156 = vld [vmem:[%s10116 + $0x138] sm:$0xff]
    %v10157 = vld [vmem:[%s10116 + $0x140] sm:$0xff]
    %v10158 = vld [vmem:[%s10116 + $0x148] sm:$0xff]
    %v10159 = vld [vmem:[%s10116 + $0x150] sm:$0xff]
    %v10160 = vld [vmem:[%s10116 + $0x158] sm:$0xff]
    %v10161 = vld [vmem:[%s10116 + $0x160] sm:$0xff]
    %v10162 = vld [vmem:[%s10116 + $0x168] sm:$0xff]
    %v10163 = vld [vmem:[%s10116 + $0x170] sm:$0xff]
    %v10164 = vld [vmem:[%s10116 + $0x178] sm:$0xff]
    %v10165 = vld [vmem:[%s10116 + $0x180] sm:$0xff]
    %v10166 = vld [vmem:[%s10116 + $0x188] sm:$0xff]
    %v10167 = vld [vmem:[%s10116 + $0x190] sm:$0xff]
    %v10168 = vld [vmem:[%s10116 + $0x198] sm:$0xff]
    %v10169 = vld [vmem:[%s10116 + $0x1a0] sm:$0xff]
    %v10170 = vld [vmem:[%s10116 + $0x1a8] sm:$0xff]
    %v10171 = vld [vmem:[%s10116 + $0x1b0] sm:$0xff]
    %v10172 = vld [vmem:[%s10116 + $0x1b8] sm:$0xff]
    %v10173 = vld [vmem:[%s10116 + $0x1c0] sm:$0xff]
    %v10174 = vld [vmem:[%s10116 + $0x1c8] sm:$0xff]
    %v10175 = vld [vmem:[%s10116 + $0x1d0] sm:$0xff]
    %v10176 = vld [vmem:[%s10116 + $0x1d8] sm:$0xff]
    %v10177 = vld [vmem:[%s10116 + $0x1e0] sm:$0xff]
    %v10178 = vld [vmem:[%s10116 + $0x1e8] sm:$0xff]
    %v10179 = vld [vmem:[%s10116 + $0x1f0] sm:$0xff]
    %v10180 = vld [vmem:[%s10116 + $0x1f8] sm:$0xff]
    %10181 = vmatprep.subr.mxu0 0.0
    %10182 = vmatpush1.msra.mxu0 %v10117
    %10183 = vmatprep.subr.mxu0 0.0
    %10184 = vmatpush1.msra.mxu0 %v10118
    %10185 = vmatprep.subr.mxu0 0.0
    %10186 = vmatpush1.msra.mxu0 %v10119
    %10187 = vmatprep.subr.mxu0 0.0
    %10188 = vmatpush1.msra.mxu0 %v10120
    %10189 = vmatprep.subr.mxu0 0.0
    %10190 = vmatpush1.msra.mxu0 %v10121
    %10191 = vmatprep.subr.mxu0 0.0
    %10192 = vmatpush1.msra.mxu0 %v10122
    %10193 = vmatprep.subr.mxu0 0.0
    %10194 = vmatpush1.msra.mxu0 %v10123
    %10195 = vmatprep.subr.mxu0 0.0
    %10196 = vmatpush1.msra.mxu0 %v10124
    %10197 = vmatprep.subr.mxu0 0.0
    %10198 = vmatpush1.msra.mxu0 %v10125
    %10199 = vmatprep.subr.mxu0 0.0
    %10200 = vmatpush1.msra.mxu0 %v10126
    %10201 = vmatprep.subr.mxu0 0.0
    %10202 = vmatpush1.msra.mxu0 %v10127
    %10203 = vmatprep.subr.mxu0 0.0
    %10204 = vmatpush1.msra.mxu0 %v10128
    %10205 = vmatprep.subr.mxu0 0.0
    %10206 = vmatpush1.msra.mxu0 %v10129
    %10207 = vmatprep.subr.mxu0 0.0
    %10208 = vmatpush1.msra.mxu0 %v10130
    %10209 = vmatprep.subr.mxu0 0.0
    %10210 = vmatpush1.msra.mxu0 %v10131
    %10211 = vmatprep.subr.mxu0 0.0
    %10212 = vmatpush1.msra.mxu0 %v10132
    %10213 = vmatprep.subr.mxu0 0.0
    %10214 = vmatpush1.msra.mxu0 %v10133
    %10215 = vmatprep.subr.mxu0 0.0
    %10216 = vmatpush1.msra.mxu0 %v10134
    %10217 = vmatprep.subr.mxu0 0.0
    %10218 = vmatpush1.msra.mxu0 %v10135
    %10219 = vmatprep.subr.mxu0 0.0
    %10220 = vmatpush1.msra.mxu0 %v10136
    %10221 = vmatprep.subr.mxu0 0.0
    %10222 = vmatpush1.msra.mxu0 %v10137
    %10223 = vmatprep.subr.mxu0 0.0
    %10224 = vmatpush1.msra.mxu0 %v10138
    %10225 = vmatprep.subr.mxu0 0.0
    %10226 = vmatpush1.msra.mxu0 %v10139
    %10227 = vmatprep.subr.mxu0 0.0
    %10228 = vmatpush1.msra.mxu0 %v10140
    %10229 = vmatprep.subr.mxu0 0.0
    %10230 = vmatpush1.msra.mxu0 %v10141
    %10231 = vmatprep.subr.mxu0 0.0
    %10232 = vmatpush1.msra.mxu0 %v10142
    %10233 = vmatprep.subr.mxu0 0.0
    %10234 = vmatpush1.msra.mxu0 %v10143
    %10235 = vmatprep.subr.mxu0 0.0
    %10236 = vmatpush1.msra.mxu0 %v10144
    %10237 = vmatprep.subr.mxu0 0.0
    %10238 = vmatpush1.msra.mxu0 %v10145
    %10239 = vmatprep.subr.mxu0 0.0
    %10240 = vmatpush1.msra.mxu0 %v10146
    %10241 = vmatprep.subr.mxu0 0.0
    %10242 = vmatpush1.msra.mxu0 %v10147
    %10243 = vmatprep.subr.mxu0 0.0
    %10244 = vmatpush1.msra.mxu0 %v10148
    %10245 = vmatprep.mubr.f32.mxu0 %v9284
    %10246 = vmatmul.mubr.f32.gmra.mrb[0].mxu0 %v9283
    %v10247 = vpop.f32.mrb[0].mxu0
    %v10248 = vadd.f32 0.0, %v10247
    %v10249 = vpop.f32.mrb[0].mxu0
    %10250 = vdwg.mxu0
    %10251 = vmatprep.subr.mxu0 0.0
    %10252 = vmatpush1.msra.mxu0 %v10149
    %10253 = vmatprep.subr.mxu0 0.0
    %10254 = vmatpush1.msra.mxu0 %v10150
    %10255 = vmatprep.subr.mxu0 0.0
    %10256 = vmatpush1.msra.mxu0 %v10151
    %10257 = vmatprep.subr.mxu0 0.0
    %10258 = vmatpush1.msra.mxu0 %v10152
    %10259 = vmatprep.subr.mxu0 0.0
    %10260 = vmatpush1.msra.mxu0 %v10153
    %10261 = vmatprep.subr.mxu0 0.0
    %10262 = vmatpush1.msra.mxu0 %v10154
    %10263 = vmatprep.subr.mxu0 0.0
    %10264 = vmatpush1.msra.mxu0 %v10155
    %10265 = vmatprep.subr.mxu0 0.0
    %10266 = vmatpush1.msra.mxu0 %v10156
    %10267 = vmatprep.subr.mxu0 0.0
    %10268 = vmatpush1.msra.mxu0 %v10157
    %10269 = vmatprep.subr.mxu0 0.0
    %10270 = vmatpush1.msra.mxu0 %v10158
    %10271 = vmatprep.subr.mxu0 0.0
    %10272 = vmatpush1.msra.mxu0 %v10159
    %10273 = vmatprep.subr.mxu0 0.0
    %10274 = vmatpush1.msra.mxu0 %v10160
    %10275 = vmatprep.subr.mxu0 0.0
    %10276 = vmatpush1.msra.mxu0 %v10161
    %10277 = vmatprep.subr.mxu0 0.0
    %10278 = vmatpush1.msra.mxu0 %v10162
    %10279 = vmatprep.subr.mxu0 0.0
    %10280 = vmatpush1.msra.mxu0 %v10163
    %10281 = vmatprep.subr.mxu0 0.0
    %10282 = vmatpush1.msra.mxu0 %v10164
    %10283 = vmatprep.subr.mxu0 0.0
    %10284 = vmatpush1.msra.mxu0 %v10165
    %10285 = vmatprep.subr.mxu0 0.0
    %10286 = vmatpush1.msra.mxu0 %v10166
    %10287 = vmatprep.subr.mxu0 0.0
    %10288 = vmatpush1.msra.mxu0 %v10167
    %10289 = vmatprep.subr.mxu0 0.0
    %10290 = vmatpush1.msra.mxu0 %v10168
    %10291 = vmatprep.subr.mxu0 0.0
    %10292 = vmatpush1.msra.mxu0 %v10169
    %10293 = vmatprep.subr.mxu0 0.0
    %10294 = vmatpush1.msra.mxu0 %v10170
    %10295 = vmatprep.subr.mxu0 0.0
    %10296 = vmatpush1.msra.mxu0 %v10171
    %10297 = vmatprep.subr.mxu0 0.0
    %10298 = vmatpush1.msra.mxu0 %v10172
    %10299 = vmatprep.subr.mxu0 0.0
    %10300 = vmatpush1.msra.mxu0 %v10173
    %10301 = vmatprep.subr.mxu0 0.0
    %10302 = vmatpush1.msra.mxu0 %v10174
    %10303 = vmatprep.subr.mxu0 0.0
    %10304 = vmatpush1.msra.mxu0 %v10175
    %10305 = vmatprep.subr.mxu0 0.0
    %10306 = vmatpush1.msra.mxu0 %v10176
    %10307 = vmatprep.subr.mxu0 0.0
    %10308 = vmatpush1.msra.mxu0 %v10177
    %10309 = vmatprep.subr.mxu0 0.0
    %10310 = vmatpush1.msra.mxu0 %v10178
    %10311 = vmatprep.subr.mxu0 0.0
    %10312 = vmatpush1.msra.mxu0 %v10179
    %10313 = vmatprep.subr.mxu0 0.0
    %10314 = vmatpush1.msra.mxu0 %v10180
    %10315 = vmatprep.mubr.f32.mxu0 %v9286
    %10316 = vmatmul.mubr.f32.gmra.mrb[0].mxu0 %v9285
    %v10317 = vpop.f32.mrb[0].mxu0
    %v10318 = vadd.f32 %v10248, %v10317
    %v10319 = vpop.f32.mrb[0].mxu0
    %10320 = vdwg.mxu0
    %v10321 = vadd.f32 %v10115, %v10318
    %s10322 = scalar_lea.vmem %s5, 2560
    %v10323 = vld [vmem:[%s10322] sm:$0xff]
    %v10324 = vld [vmem:[%s10322 + $0x8] sm:$0xff]
    %v10325 = vld [vmem:[%s10322 + $0x10] sm:$0xff]
    %v10326 = vld [vmem:[%s10322 + $0x18] sm:$0xff]
    %v10327 = vld [vmem:[%s10322 + $0x20] sm:$0xff]
    %v10328 = vld [vmem:[%s10322 + $0x28] sm:$0xff]
    %v10329 = vld [vmem:[%s10322 + $0x30] sm:$0xff]
    %v10330 = vld [vmem:[%s10322 + $0x38] sm:$0xff]
    %v10331 = vld [vmem:[%s10322 + $0x40] sm:$0xff]
    %v10332 = vld [vmem:[%s10322 + $0x48] sm:$0xff]
    %v10333 = vld [vmem:[%s10322 + $0x50] sm:$0xff]
    %v10334 = vld [vmem:[%s10322 + $0x58] sm:$0xff]
    %v10335 = vld [vmem:[%s10322 + $0x60] sm:$0xff]
    %v10336 = vld [vmem:[%s10322 + $0x68] sm:$0xff]
    %v10337 = vld [vmem:[%s10322 + $0x70] sm:$0xff]
    %v10338 = vld [vmem:[%s10322 + $0x78] sm:$0xff]
    %v10339 = vld [vmem:[%s10322 + $0x80] sm:$0xff]
    %v10340 = vld [vmem:[%s10322 + $0x88] sm:$0xff]
    %v10341 = vld [vmem:[%s10322 + $0x90] sm:$0xff]
    %v10342 = vld [vmem:[%s10322 + $0x98] sm:$0xff]
    %v10343 = vld [vmem:[%s10322 + $0xa0] sm:$0xff]
    %v10344 = vld [vmem:[%s10322 + $0xa8] sm:$0xff]
    %v10345 = vld [vmem:[%s10322 + $0xb0] sm:$0xff]
    %v10346 = vld [vmem:[%s10322 + $0xb8] sm:$0xff]
    %v10347 = vld [vmem:[%s10322 + $0xc0] sm:$0xff]
    %v10348 = vld [vmem:[%s10322 + $0xc8] sm:$0xff]
    %v10349 = vld [vmem:[%s10322 + $0xd0] sm:$0xff]
    %v10350 = vld [vmem:[%s10322 + $0xd8] sm:$0xff]
    %v10351 = vld [vmem:[%s10322 + $0xe0] sm:$0xff]
    %v10352 = vld [vmem:[%s10322 + $0xe8] sm:$0xff]
    %v10353 = vld [vmem:[%s10322 + $0xf0] sm:$0xff]
    %v10354 = vld [vmem:[%s10322 + $0xf8] sm:$0xff]
    %v10355 = vld [vmem:[%s10322 + $0x100] sm:$0xff]
    %v10356 = vld [vmem:[%s10322 + $0x108] sm:$0xff]
    %v10357 = vld [vmem:[%s10322 + $0x110] sm:$0xff]
    %v10358 = vld [vmem:[%s10322 + $0x118] sm:$0xff]
    %v10359 = vld [vmem:[%s10322 + $0x120] sm:$0xff]
    %v10360 = vld [vmem:[%s10322 + $0x128] sm:$0xff]
    %v10361 = vld [vmem:[%s10322 + $0x130] sm:$0xff]
    %v10362 = vld [vmem:[%s10322 + $0x138] sm:$0xff]
    %v10363 = vld [vmem:[%s10322 + $0x140] sm:$0xff]
    %v10364 = vld [vmem:[%s10322 + $0x148] sm:$0xff]
    %v10365 = vld [vmem:[%s10322 + $0x150] sm:$0xff]
    %v10366 = vld [vmem:[%s10322 + $0x158] sm:$0xff]
    %v10367 = vld [vmem:[%s10322 + $0x160] sm:$0xff]
    %v10368 = vld [vmem:[%s10322 + $0x168] sm:$0xff]
    %v10369 = vld [vmem:[%s10322 + $0x170] sm:$0xff]
    %v10370 = vld [vmem:[%s10322 + $0x178] sm:$0xff]
    %v10371 = vld [vmem:[%s10322 + $0x180] sm:$0xff]
    %v10372 = vld [vmem:[%s10322 + $0x188] sm:$0xff]
    %v10373 = vld [vmem:[%s10322 + $0x190] sm:$0xff]
    %v10374 = vld [vmem:[%s10322 + $0x198] sm:$0xff]
    %v10375 = vld [vmem:[%s10322 + $0x1a0] sm:$0xff]
    %v10376 = vld [vmem:[%s10322 + $0x1a8] sm:$0xff]
    %v10377 = vld [vmem:[%s10322 + $0x1b0] sm:$0xff]
    %v10378 = vld [vmem:[%s10322 + $0x1b8] sm:$0xff]
    %v10379 = vld [vmem:[%s10322 + $0x1c0] sm:$0xff]
    %v10380 = vld [vmem:[%s10322 + $0x1c8] sm:$0xff]
    %v10381 = vld [vmem:[%s10322 + $0x1d0] sm:$0xff]
    %v10382 = vld [vmem:[%s10322 + $0x1d8] sm:$0xff]
    %v10383 = vld [vmem:[%s10322 + $0x1e0] sm:$0xff]
    %v10384 = vld [vmem:[%s10322 + $0x1e8] sm:$0xff]
    %v10385 = vld [vmem:[%s10322 + $0x1f0] sm:$0xff]
    %v10386 = vld [vmem:[%s10322 + $0x1f8] sm:$0xff]
    %10387 = vmatprep.subr.mxu0 0.0
    %10388 = vmatpush1.msra.mxu0 %v10323
    %10389 = vmatprep.subr.mxu0 0.0
    %10390 = vmatpush1.msra.mxu0 %v10324
    %10391 = vmatprep.subr.mxu0 0.0
    %10392 = vmatpush1.msra.mxu0 %v10325
    %10393 = vmatprep.subr.mxu0 0.0
    %10394 = vmatpush1.msra.mxu0 %v10326
    %10395 = vmatprep.subr.mxu0 0.0
    %10396 = vmatpush1.msra.mxu0 %v10327
    %10397 = vmatprep.subr.mxu0 0.0
    %10398 = vmatpush1.msra.mxu0 %v10328
    %10399 = vmatprep.subr.mxu0 0.0
    %10400 = vmatpush1.msra.mxu0 %v10329
    %10401 = vmatprep.subr.mxu0 0.0
    %10402 = vmatpush1.msra.mxu0 %v10330
    %10403 = vmatprep.subr.mxu0 0.0
    %10404 = vmatpush1.msra.mxu0 %v10331
    %10405 = vmatprep.subr.mxu0 0.0
    %10406 = vmatpush1.msra.mxu0 %v10332
    %10407 = vmatprep.subr.mxu0 0.0
    %10408 = vmatpush1.msra.mxu0 %v10333
    %10409 = vmatprep.subr.mxu0 0.0
    %10410 = vmatpush1.msra.mxu0 %v10334
    %10411 = vmatprep.subr.mxu0 0.0
    %10412 = vmatpush1.msra.mxu0 %v10335
    %10413 = vmatprep.subr.mxu0 0.0
    %10414 = vmatpush1.msra.mxu0 %v10336
    %10415 = vmatprep.subr.mxu0 0.0
    %10416 = vmatpush1.msra.mxu0 %v10337
    %10417 = vmatprep.subr.mxu0 0.0
    %10418 = vmatpush1.msra.mxu0 %v10338
    %10419 = vmatprep.subr.mxu0 0.0
    %10420 = vmatpush1.msra.mxu0 %v10339
    %10421 = vmatprep.subr.mxu0 0.0
    %10422 = vmatpush1.msra.mxu0 %v10340
    %10423 = vmatprep.subr.mxu0 0.0
    %10424 = vmatpush1.msra.mxu0 %v10341
    %10425 = vmatprep.subr.mxu0 0.0
    %10426 = vmatpush1.msra.mxu0 %v10342
    %10427 = vmatprep.subr.mxu0 0.0
    %10428 = vmatpush1.msra.mxu0 %v10343
    %10429 = vmatprep.subr.mxu0 0.0
    %10430 = vmatpush1.msra.mxu0 %v10344
    %10431 = vmatprep.subr.mxu0 0.0
    %10432 = vmatpush1.msra.mxu0 %v10345
    %10433 = vmatprep.subr.mxu0 0.0
    %10434 = vmatpush1.msra.mxu0 %v10346
    %10435 = vmatprep.subr.mxu0 0.0
    %10436 = vmatpush1.msra.mxu0 %v10347
    %10437 = vmatprep.subr.mxu0 0.0
    %10438 = vmatpush1.msra.mxu0 %v10348
    %10439 = vmatprep.subr.mxu0 0.0
    %10440 = vmatpush1.msra.mxu0 %v10349
    %10441 = vmatprep.subr.mxu0 0.0
    %10442 = vmatpush1.msra.mxu0 %v10350
    %10443 = vmatprep.subr.mxu0 0.0
    %10444 = vmatpush1.msra.mxu0 %v10351
    %10445 = vmatprep.subr.mxu0 0.0
    %10446 = vmatpush1.msra.mxu0 %v10352
    %10447 = vmatprep.subr.mxu0 0.0
    %10448 = vmatpush1.msra.mxu0 %v10353
    %10449 = vmatprep.subr.mxu0 0.0
    %10450 = vmatpush1.msra.mxu0 %v10354
    %10451 = vmatprep.mubr.f32.mxu0 %v9288
    %10452 = vmatmul.mubr.f32.gmra.mrb[0].mxu0 %v9287
    %v10453 = vpop.f32.mrb[0].mxu0
    %v10454 = vadd.f32 0.0, %v10453
    %v10455 = vpop.f32.mrb[0].mxu0
    %10456 = vdwg.mxu0
    %10457 = vmatprep.subr.mxu0 0.0
    %10458 = vmatpush1.msra.mxu0 %v10355
    %10459 = vmatprep.subr.mxu0 0.0
    %10460 = vmatpush1.msra.mxu0 %v10356
    %10461 = vmatprep.subr.mxu0 0.0
    %10462 = vmatpush1.msra.mxu0 %v10357
    %10463 = vmatprep.subr.mxu0 0.0
    %10464 = vmatpush1.msra.mxu0 %v10358
    %10465 = vmatprep.subr.mxu0 0.0
    %10466 = vmatpush1.msra.mxu0 %v10359
    %10467 = vmatprep.subr.mxu0 0.0
    %10468 = vmatpush1.msra.mxu0 %v10360
    %10469 = vmatprep.subr.mxu0 0.0
    %10470 = vmatpush1.msra.mxu0 %v10361
    %10471 = vmatprep.subr.mxu0 0.0
    %10472 = vmatpush1.msra.mxu0 %v10362
    %10473 = vmatprep.subr.mxu0 0.0
    %10474 = vmatpush1.msra.mxu0 %v10363
    %10475 = vmatprep.subr.mxu0 0.0
    %10476 = vmatpush1.msra.mxu0 %v10364
    %10477 = vmatprep.subr.mxu0 0.0
    %10478 = vmatpush1.msra.mxu0 %v10365
    %10479 = vmatprep.subr.mxu0 0.0
    %10480 = vmatpush1.msra.mxu0 %v10366
    %10481 = vmatprep.subr.mxu0 0.0
    %10482 = vmatpush1.msra.mxu0 %v10367
    %10483 = vmatprep.subr.mxu0 0.0
    %10484 = vmatpush1.msra.mxu0 %v10368
    %10485 = vmatprep.subr.mxu0 0.0
    %10486 = vmatpush1.msra.mxu0 %v10369
    %10487 = vmatprep.subr.mxu0 0.0
    %10488 = vmatpush1.msra.mxu0 %v10370
    %10489 = vmatprep.subr.mxu0 0.0
    %10490 = vmatpush1.msra.mxu0 %v10371
    %10491 = vmatprep.subr.mxu0 0.0
    %10492 = vmatpush1.msra.mxu0 %v10372
    %10493 = vmatprep.subr.mxu0 0.0
    %10494 = vmatpush1.msra.mxu0 %v10373
    %10495 = vmatprep.subr.mxu0 0.0
    %10496 = vmatpush1.msra.mxu0 %v10374
    %10497 = vmatprep.subr.mxu0 0.0
    %10498 = vmatpush1.msra.mxu0 %v10375
    %10499 = vmatprep.subr.mxu0 0.0
    %10500 = vmatpush1.msra.mxu0 %v10376
    %10501 = vmatprep.subr.mxu0 0.0
    %10502 = vmatpush1.msra.mxu0 %v10377
    %10503 = vmatprep.subr.mxu0 0.0
    %10504 = vmatpush1.msra.mxu0 %v10378
    %10505 = vmatprep.subr.mxu0 0.0
    %10506 = vmatpush1.msra.mxu0 %v10379
    %10507 = vmatprep.subr.mxu0 0.0
    %10508 = vmatpush1.msra.mxu0 %v10380
    %10509 = vmatprep.subr.mxu0 0.0
    %10510 = vmatpush1.msra.mxu0 %v10381
    %10511 = vmatprep.subr.mxu0 0.0
    %10512 = vmatpush1.msra.mxu0 %v10382
    %10513 = vmatprep.subr.mxu0 0.0
    %10514 = vmatpush1.msra.mxu0 %v10383
    %10515 = vmatprep.subr.mxu0 0.0
    %10516 = vmatpush1.msra.mxu0 %v10384
    %10517 = vmatprep.subr.mxu0 0.0
    %10518 = vmatpush1.msra.mxu0 %v10385
    %10519 = vmatprep.subr.mxu0 0.0
    %10520 = vmatpush1.msra.mxu0 %v10386
    %10521 = vmatprep.mubr.f32.mxu0 %v9290
    %10522 = vmatmul.mubr.f32.gmra.mrb[0].mxu0 %v9289
    %v10523 = vpop.f32.mrb[0].mxu0
    %v10524 = vadd.f32 %v10454, %v10523
    %v10525 = vpop.f32.mrb[0].mxu0
    %10526 = vdwg.mxu0
    %v10527 = vadd.f32 %v10321, %v10524
    %s10528 = scalar_lea.vmem %s5, 3072
    %v10529 = vld [vmem:[%s10528] sm:$0xff]
    %v10530 = vld [vmem:[%s10528 + $0x8] sm:$0xff]
    %v10531 = vld [vmem:[%s10528 + $0x10] sm:$0xff]
    %v10532 = vld [vmem:[%s10528 + $0x18] sm:$0xff]
    %v10533 = vld [vmem:[%s10528 + $0x20] sm:$0xff]
    %v10534 = vld [vmem:[%s10528 + $0x28] sm:$0xff]
    %v10535 = vld [vmem:[%s10528 + $0x30] sm:$0xff]
    %v10536 = vld [vmem:[%s10528 + $0x38] sm:$0xff]
    %v10537 = vld [vmem:[%s10528 + $0x40] sm:$0xff]
    %v10538 = vld [vmem:[%s10528 + $0x48] sm:$0xff]
    %v10539 = vld [vmem:[%s10528 + $0x50] sm:$0xff]
    %v10540 = vld [vmem:[%s10528 + $0x58] sm:$0xff]
    %v10541 = vld [vmem:[%s10528 + $0x60] sm:$0xff]
    %v10542 = vld [vmem:[%s10528 + $0x68] sm:$0xff]
    %v10543 = vld [vmem:[%s10528 + $0x70] sm:$0xff]
    %v10544 = vld [vmem:[%s10528 + $0x78] sm:$0xff]
    %v10545 = vld [vmem:[%s10528 + $0x80] sm:$0xff]
    %v10546 = vld [vmem:[%s10528 + $0x88] sm:$0xff]
    %v10547 = vld [vmem:[%s10528 + $0x90] sm:$0xff]
    %v10548 = vld [vmem:[%s10528 + $0x98] sm:$0xff]
    %v10549 = vld [vmem:[%s10528 + $0xa0] sm:$0xff]
    %v10550 = vld [vmem:[%s10528 + $0xa8] sm:$0xff]
    %v10551 = vld [vmem:[%s10528 + $0xb0] sm:$0xff]
    %v10552 = vld [vmem:[%s10528 + $0xb8] sm:$0xff]
    %v10553 = vld [vmem:[%s10528 + $0xc0] sm:$0xff]
    %v10554 = vld [vmem:[%s10528 + $0xc8] sm:$0xff]
    %v10555 = vld [vmem:[%s10528 + $0xd0] sm:$0xff]
    %v10556 = vld [vmem:[%s10528 + $0xd8] sm:$0xff]
    %v10557 = vld [vmem:[%s10528 + $0xe0] sm:$0xff]
    %v10558 = vld [vmem:[%s10528 + $0xe8] sm:$0xff]
    %v10559 = vld [vmem:[%s10528 + $0xf0] sm:$0xff]
    %v10560 = vld [vmem:[%s10528 + $0xf8] sm:$0xff]
    %v10561 = vld [vmem:[%s10528 + $0x100] sm:$0xff]
    %v10562 = vld [vmem:[%s10528 + $0x108] sm:$0xff]
    %v10563 = vld [vmem:[%s10528 + $0x110] sm:$0xff]
    %v10564 = vld [vmem:[%s10528 + $0x118] sm:$0xff]
    %v10565 = vld [vmem:[%s10528 + $0x120] sm:$0xff]
    %v10566 = vld [vmem:[%s10528 + $0x128] sm:$0xff]
    %v10567 = vld [vmem:[%s10528 + $0x130] sm:$0xff]
    %v10568 = vld [vmem:[%s10528 + $0x138] sm:$0xff]
    %v10569 = vld [vmem:[%s10528 + $0x140] sm:$0xff]
    %v10570 = vld [vmem:[%s10528 + $0x148] sm:$0xff]
    %v10571 = vld [vmem:[%s10528 + $0x150] sm:$0xff]
    %v10572 = vld [vmem:[%s10528 + $0x158] sm:$0xff]
    %v10573 = vld [vmem:[%s10528 + $0x160] sm:$0xff]
    %v10574 = vld [vmem:[%s10528 + $0x168] sm:$0xff]
    %v10575 = vld [vmem:[%s10528 + $0x170] sm:$0xff]
    %v10576 = vld [vmem:[%s10528 + $0x178] sm:$0xff]
    %v10577 = vld [vmem:[%s10528 + $0x180] sm:$0xff]
    %v10578 = vld [vmem:[%s10528 + $0x188] sm:$0xff]
    %v10579 = vld [vmem:[%s10528 + $0x190] sm:$0xff]
    %v10580 = vld [vmem:[%s10528 + $0x198] sm:$0xff]
    %v10581 = vld [vmem:[%s10528 + $0x1a0] sm:$0xff]
    %v10582 = vld [vmem:[%s10528 + $0x1a8] sm:$0xff]
    %v10583 = vld [vmem:[%s10528 + $0x1b0] sm:$0xff]
    %v10584 = vld [vmem:[%s10528 + $0x1b8] sm:$0xff]
    %v10585 = vld [vmem:[%s10528 + $0x1c0] sm:$0xff]
    %v10586 = vld [vmem:[%s10528 + $0x1c8] sm:$0xff]
    %v10587 = vld [vmem:[%s10528 + $0x1d0] sm:$0xff]
    %v10588 = vld [vmem:[%s10528 + $0x1d8] sm:$0xff]
    %v10589 = vld [vmem:[%s10528 + $0x1e0] sm:$0xff]
    %v10590 = vld [vmem:[%s10528 + $0x1e8] sm:$0xff]
    %v10591 = vld [vmem:[%s10528 + $0x1f0] sm:$0xff]
    %v10592 = vld [vmem:[%s10528 + $0x1f8] sm:$0xff]
    %10593 = vmatprep.subr.mxu0 0.0
    %10594 = vmatpush1.msra.mxu0 %v10529
    %10595 = vmatprep.subr.mxu0 0.0
    %10596 = vmatpush1.msra.mxu0 %v10530
    %10597 = vmatprep.subr.mxu0 0.0
    %10598 = vmatpush1.msra.mxu0 %v10531
    %10599 = vmatprep.subr.mxu0 0.0
    %10600 = vmatpush1.msra.mxu0 %v10532
    %10601 = vmatprep.subr.mxu0 0.0
    %10602 = vmatpush1.msra.mxu0 %v10533
    %10603 = vmatprep.subr.mxu0 0.0
    %10604 = vmatpush1.msra.mxu0 %v10534
    %10605 = vmatprep.subr.mxu0 0.0
    %10606 = vmatpush1.msra.mxu0 %v10535
    %10607 = vmatprep.subr.mxu0 0.0
    %10608 = vmatpush1.msra.mxu0 %v10536
    %10609 = vmatprep.subr.mxu0 0.0
    %10610 = vmatpush1.msra.mxu0 %v10537
    %10611 = vmatprep.subr.mxu0 0.0
    %10612 = vmatpush1.msra.mxu0 %v10538
    %10613 = vmatprep.subr.mxu0 0.0
    %10614 = vmatpush1.msra.mxu0 %v10539
    %10615 = vmatprep.subr.mxu0 0.0
    %10616 = vmatpush1.msra.mxu0 %v10540
    %10617 = vmatprep.subr.mxu0 0.0
    %10618 = vmatpush1.msra.mxu0 %v10541
    %10619 = vmatprep.subr.mxu0 0.0
    %10620 = vmatpush1.msra.mxu0 %v10542
    %10621 = vmatprep.subr.mxu0 0.0
    %10622 = vmatpush1.msra.mxu0 %v10543
    %10623 = vmatprep.subr.mxu0 0.0
    %10624 = vmatpush1.msra.mxu0 %v10544
    %10625 = vmatprep.subr.mxu0 0.0
    %10626 = vmatpush1.msra.mxu0 %v10545
    %10627 = vmatprep.subr.mxu0 0.0
    %10628 = vmatpush1.msra.mxu0 %v10546
    %10629 = vmatprep.subr.mxu0 0.0
    %10630 = vmatpush1.msra.mxu0 %v10547
    %10631 = vmatprep.subr.mxu0 0.0
    %10632 = vmatpush1.msra.mxu0 %v10548
    %10633 = vmatprep.subr.mxu0 0.0
    %10634 = vmatpush1.msra.mxu0 %v10549
    %10635 = vmatprep.subr.mxu0 0.0
    %10636 = vmatpush1.msra.mxu0 %v10550
    %10637 = vmatprep.subr.mxu0 0.0
    %10638 = vmatpush1.msra.mxu0 %v10551
    %10639 = vmatprep.subr.mxu0 0.0
    %10640 = vmatpush1.msra.mxu0 %v10552
    %10641 = vmatprep.subr.mxu0 0.0
    %10642 = vmatpush1.msra.mxu0 %v10553
    %10643 = vmatprep.subr.mxu0 0.0
    %10644 = vmatpush1.msra.mxu0 %v10554
    %10645 = vmatprep.subr.mxu0 0.0
    %10646 = vmatpush1.msra.mxu0 %v10555
    %10647 = vmatprep.subr.mxu0 0.0
    %10648 = vmatpush1.msra.mxu0 %v10556
    %10649 = vmatprep.subr.mxu0 0.0
    %10650 = vmatpush1.msra.mxu0 %v10557
    %10651 = vmatprep.subr.mxu0 0.0
    %10652 = vmatpush1.msra.mxu0 %v10558
    %10653 = vmatprep.subr.mxu0 0.0
    %10654 = vmatpush1.msra.mxu0 %v10559
    %10655 = vmatprep.subr.mxu0 0.0
    %10656 = vmatpush1.msra.mxu0 %v10560
    %10657 = vmatprep.mubr.f32.mxu0 %v9292
    %10658 = vmatmul.mubr.f32.gmra.mrb[0].mxu0 %v9291
    %v10659 = vpop.f32.mrb[0].mxu0
    %v10660 = vadd.f32 0.0, %v10659
    %v10661 = vpop.f32.mrb[0].mxu0
    %10662 = vdwg.mxu0
    %10663 = vmatprep.subr.mxu0 0.0
    %10664 = vmatpush1.msra.mxu0 %v10561
    %10665 = vmatprep.subr.mxu0 0.0
    %10666 = vmatpush1.msra.mxu0 %v10562
    %10667 = vmatprep.subr.mxu0 0.0
    %10668 = vmatpush1.msra.mxu0 %v10563
    %10669 = vmatprep.subr.mxu0 0.0
    %10670 = vmatpush1.msra.mxu0 %v10564
    %10671 = vmatprep.subr.mxu0 0.0
    %10672 = vmatpush1.msra.mxu0 %v10565
    %10673 = vmatprep.subr.mxu0 0.0
    %10674 = vmatpush1.msra.mxu0 %v10566
    %10675 = vmatprep.subr.mxu0 0.0
    %10676 = vmatpush1.msra.mxu0 %v10567
    %10677 = vmatprep.subr.mxu0 0.0
    %10678 = vmatpush1.msra.mxu0 %v10568
    %10679 = vmatprep.subr.mxu0 0.0
    %10680 = vmatpush1.msra.mxu0 %v10569
    %10681 = vmatprep.subr.mxu0 0.0
    %10682 = vmatpush1.msra.mxu0 %v10570
    %10683 = vmatprep.subr.mxu0 0.0
    %10684 = vmatpush1.msra.mxu0 %v10571
    %10685 = vmatprep.subr.mxu0 0.0
    %10686 = vmatpush1.msra.mxu0 %v10572
    %10687 = vmatprep.subr.mxu0 0.0
    %10688 = vmatpush1.msra.mxu0 %v10573
    %10689 = vmatprep.subr.mxu0 0.0
    %10690 = vmatpush1.msra.mxu0 %v10574
    %10691 = vmatprep.subr.mxu0 0.0
    %10692 = vmatpush1.msra.mxu0 %v10575
    %10693 = vmatprep.subr.mxu0 0.0
    %10694 = vmatpush1.msra.mxu0 %v10576
    %10695 = vmatprep.subr.mxu0 0.0
    %10696 = vmatpush1.msra.mxu0 %v10577
    %10697 = vmatprep.subr.mxu0 0.0
    %10698 = vmatpush1.msra.mxu0 %v10578
    %10699 = vmatprep.subr.mxu0 0.0
    %10700 = vmatpush1.msra.mxu0 %v10579
    %10701 = vmatprep.subr.mxu0 0.0
    %10702 = vmatpush1.msra.mxu0 %v10580
    %10703 = vmatprep.subr.mxu0 0.0
    %10704 = vmatpush1.msra.mxu0 %v10581
    %10705 = vmatprep.subr.mxu0 0.0
    %10706 = vmatpush1.msra.mxu0 %v10582
    %10707 = vmatprep.subr.mxu0 0.0
    %10708 = vmatpush1.msra.mxu0 %v10583
    %10709 = vmatprep.subr.mxu0 0.0
    %10710 = vmatpush1.msra.mxu0 %v10584
    %10711 = vmatprep.subr.mxu0 0.0
    %10712 = vmatpush1.msra.mxu0 %v10585
    %10713 = vmatprep.subr.mxu0 0.0
    %10714 = vmatpush1.msra.mxu0 %v10586
    %10715 = vmatprep.subr.mxu0 0.0
    %10716 = vmatpush1.msra.mxu0 %v10587
    %10717 = vmatprep.subr.mxu0 0.0
    %10718 = vmatpush1.msra.mxu0 %v10588
    %10719 = vmatprep.subr.mxu0 0.0
    %10720 = vmatpush1.msra.mxu0 %v10589
    %10721 = vmatprep.subr.mxu0 0.0
    %10722 = vmatpush1.msra.mxu0 %v10590
    %10723 = vmatprep.subr.mxu0 0.0
    %10724 = vmatpush1.msra.mxu0 %v10591
    %10725 = vmatprep.subr.mxu0 0.0
    %10726 = vmatpush1.msra.mxu0 %v10592
    %10727 = vmatprep.mubr.f32.mxu0 %v9294
    %10728 = vmatmul.mubr.f32.gmra.mrb[0].mxu0 %v9293
    %v10729 = vpop.f32.mrb[0].mxu0
    %v10730 = vadd.f32 %v10660, %v10729
    %v10731 = vpop.f32.mrb[0].mxu0
    %10732 = vdwg.mxu0
    %v10733 = vadd.f32 %v10527, %v10730
    %v10734 = vld [vmem:[#allocation9] sm:$0x1]
    %v10736 = vlaneseq
    %v10737 = vshrl.u32 %v10736, 7
    %v10738 = vsub.s32 0, %v10737
    %v10739 = vrot.slane %v10734, %v10738
    %v10741 = vadd.f32 %v10733, %v10739
    %v10742 = vld [vmem:[#allocation10] sm:$0xff]
    %v10743 = vld [vmem:[#allocation10 + $0x8] sm:$0xff]
    %v10744 = vld [vmem:[#allocation10 + $0x10] sm:$0xff]
    %v10745 = vld [vmem:[#allocation10 + $0x18] sm:$0xff]
    %v10746 = vld [vmem:[#allocation12] sm:$0x1]
    %v10748 = vlaneseq
    %v10749 = vshrl.u32 %v10748, 7
    %v10750 = vsub.s32 0, %v10749
    %v10751 = vrot.slane %v10746, %v10750
    %vm10753 = vcmask 261120
    %v10755 = vsel %vm10753, %v10741, 0
    %10757 = vmatprep.subr.mxu0 0.0
    %10758 = vmatpush1.msra.mxu0 %v10742
    %10759 = vmatprep.subr.mxu0 0.0
    %10760 = vmatpush1.msra.mxu0 %v10743
    %10761 = vmatprep.subr.mxu0 0.0
    %10762 = vmatpush1.msra.mxu0 %v10744
    %10763 = vmatprep.subr.mxu0 0.0
    %10764 = vmatpush1.msra.mxu0 %v10745
    %10765 = vmatprep.subr.mxu0 0.0
    %10766 = vmatpush1.msra.mxu0 0.0
    %10767 = vmatprep.subr.mxu0 0.0
    %10768 = vmatpush1.msra.mxu0 0.0
    %10769 = vmatprep.subr.mxu0 0.0
    %10770 = vmatpush1.msra.mxu0 0.0
    %10771 = vmatprep.subr.mxu0 0.0
    %10772 = vmatpush1.msra.mxu0 0.0
    %10773 = vmatprep.subr.mxu0 0.0
    %10774 = vmatpush1.msra.mxu0 0.0
    %10775 = vmatprep.subr.mxu0 0.0
    %10776 = vmatpush1.msra.mxu0 0.0
    %10777 = vmatprep.subr.mxu0 0.0
    %10778 = vmatpush1.msra.mxu0 0.0
    %10779 = vmatprep.subr.mxu0 0.0
    %10780 = vmatpush1.msra.mxu0 0.0
    %10781 = vmatprep.subr.mxu0 0.0
    %10782 = vmatpush1.msra.mxu0 0.0
    %10783 = vmatprep.subr.mxu0 0.0
    %10784 = vmatpush1.msra.mxu0 0.0
    %10785 = vmatprep.subr.mxu0 0.0
    %10786 = vmatpush1.msra.mxu0 0.0
    %10787 = vmatprep.subr.mxu0 0.0
    %10788 = vmatpush1.msra.mxu0 0.0
    %10789 = vmatprep.subr.mxu0 0.0
    %10790 = vmatpush1.msra.mxu0 0.0
    %10791 = vmatprep.subr.mxu0 0.0
    %10792 = vmatpush1.msra.mxu0 0.0
    %10793 = vmatprep.subr.mxu0 0.0
    %10794 = vmatpush1.msra.mxu0 0.0
    %10795 = vmatprep.subr.mxu0 0.0
    %10796 = vmatpush1.msra.mxu0 0.0
    %10797 = vmatprep.subr.mxu0 0.0
    %10798 = vmatpush1.msra.mxu0 0.0
    %10799 = vmatprep.subr.mxu0 0.0
    %10800 = vmatpush1.msra.mxu0 0.0
    %10801 = vmatprep.subr.mxu0 0.0
    %10802 = vmatpush1.msra.mxu0 0.0
    %10803 = vmatprep.subr.mxu0 0.0
    %10804 = vmatpush1.msra.mxu0 0.0
    %10805 = vmatprep.subr.mxu0 0.0
    %10806 = vmatpush1.msra.mxu0 0.0
    %10807 = vmatprep.subr.mxu0 0.0
    %10808 = vmatpush1.msra.mxu0 0.0
    %10809 = vmatprep.subr.mxu0 0.0
    %10810 = vmatpush1.msra.mxu0 0.0
    %10811 = vmatprep.subr.mxu0 0.0
    %10812 = vmatpush1.msra.mxu0 0.0
    %10813 = vmatprep.subr.mxu0 0.0
    %10814 = vmatpush1.msra.mxu0 0.0
    %10815 = vmatprep.subr.mxu0 0.0
    %10816 = vmatpush1.msra.mxu0 0.0
    %10817 = vmatprep.subr.mxu0 0.0
    %10818 = vmatpush1.msra.mxu0 0.0
    %10819 = vmatprep.subr.mxu0 0.0
    %10820 = vmatpush1.msra.mxu0 0.0
    %10821 = vmatprep.mubr.f32.mxu0 0.0
    %10822 = vmatmul.mubr.f32.gmra.mrb[0].mxu0 %v10755
    %v10823 = vpop.f32.mrb[0].mxu0
    %v10824 = vadd.f32 %v10751, %v10823
    %v10825 = vpop.f32.mrb[0].mxu0
    %10826 = vdwg.mxu0
    %v10827 = vmax.f32 %v10824, 0.0
    %v10828 = vld [vmem:[#allocation13] sm:$0xff]
    %v10829 = vld [vmem:[#allocation13 + $0x8] sm:$0xff]
    %v10830 = vld [vmem:[#allocation13 + $0x10] sm:$0xff]
    %v10831 = vld [vmem:[#allocation13 + $0x18] sm:$0xff]
    %v10832 = vld [vmem:[#allocation13 + $0x20] sm:$0xff]
    %v10833 = vld [vmem:[#allocation13 + $0x28] sm:$0xff]
    %v10834 = vld [vmem:[#allocation13 + $0x30] sm:$0xff]
    %v10835 = vld [vmem:[#allocation13 + $0x38] sm:$0xff]
    %v10836 = vld [vmem:[#allocation13 + $0x40] sm:$0xff]
    %v10837 = vld [vmem:[#allocation13 + $0x48] sm:$0xff]
    %v10838 = vld [vmem:[#allocation13 + $0x50] sm:$0xff]
    %v10839 = vld [vmem:[#allocation13 + $0x58] sm:$0xff]
    %v10840 = vld [vmem:[#allocation13 + $0x60] sm:$0xff]
    %v10841 = vld [vmem:[#allocation13 + $0x68] sm:$0xff]
    %v10842 = vld [vmem:[#allocation13 + $0x70] sm:$0xff]
    %v10843 = vld [vmem:[#allocation13 + $0x78] sm:$0xff]
    %v10844 = vld [vmem:[#allocation15] sm:$0x1]
    %v10846 = vlaneseq
    %v10847 = vshrl.u32 %v10846, 7
    %v10848 = vsub.s32 0, %v10847
    %v10849 = vrot.slane %v10844, %v10848
    %10851 = vmatprep.subr.mxu0 0.0
    %10852 = vmatpush1.msra.mxu0 %v10828
    %10853 = vmatprep.subr.mxu0 0.0
    %10854 = vmatpush1.msra.mxu0 %v10829
    %10855 = vmatprep.subr.mxu0 0.0
    %10856 = vmatpush1.msra.mxu0 %v10830
    %10857 = vmatprep.subr.mxu0 0.0
    %10858 = vmatpush1.msra.mxu0 %v10831
    %10859 = vmatprep.subr.mxu0 0.0
    %10860 = vmatpush1.msra.mxu0 %v10832
    %10861 = vmatprep.subr.mxu0 0.0
    %10862 = vmatpush1.msra.mxu0 %v10833
    %10863 = vmatprep.subr.mxu0 0.0
    %10864 = vmatpush1.msra.mxu0 %v10834
    %10865 = vmatprep.subr.mxu0 0.0
    %10866 = vmatpush1.msra.mxu0 %v10835
    %10867 = vmatprep.subr.mxu0 0.0
    %10868 = vmatpush1.msra.mxu0 %v10836
    %10869 = vmatprep.subr.mxu0 0.0
    %10870 = vmatpush1.msra.mxu0 %v10837
    %10871 = vmatprep.subr.mxu0 0.0
    %10872 = vmatpush1.msra.mxu0 %v10838
    %10873 = vmatprep.subr.mxu0 0.0
    %10874 = vmatpush1.msra.mxu0 %v10839
    %10875 = vmatprep.subr.mxu0 0.0
    %10876 = vmatpush1.msra.mxu0 %v10840
    %10877 = vmatprep.subr.mxu0 0.0
    %10878 = vmatpush1.msra.mxu0 %v10841
    %10879 = vmatprep.subr.mxu0 0.0
    %10880 = vmatpush1.msra.mxu0 %v10842
    %10881 = vmatprep.subr.mxu0 0.0
    %10882 = vmatpush1.msra.mxu0 %v10843
    %10883 = vmatprep.subr.mxu0 0.0
    %10884 = vmatpush1.msra.mxu0 0.0
    %10885 = vmatprep.subr.mxu0 0.0
    %10886 = vmatpush1.msra.mxu0 0.0
    %10887 = vmatprep.subr.mxu0 0.0
    %10888 = vmatpush1.msra.mxu0 0.0
    %10889 = vmatprep.subr.mxu0 0.0
    %10890 = vmatpush1.msra.mxu0 0.0
    %10891 = vmatprep.subr.mxu0 0.0
    %10892 = vmatpush1.msra.mxu0 0.0
    %10893 = vmatprep.subr.mxu0 0.0
    %10894 = vmatpush1.msra.mxu0 0.0
    %10895 = vmatprep.subr.mxu0 0.0
    %10896 = vmatpush1.msra.mxu0 0.0
    %10897 = vmatprep.subr.mxu0 0.0
    %10898 = vmatpush1.msra.mxu0 0.0
    %10899 = vmatprep.subr.mxu0 0.0
    %10900 = vmatpush1.msra.mxu0 0.0
    %10901 = vmatprep.subr.mxu0 0.0
    %10902 = vmatpush1.msra.mxu0 0.0
    %10903 = vmatprep.subr.mxu0 0.0
    %10904 = vmatpush1.msra.mxu0 0.0
    %10905 = vmatprep.subr.mxu0 0.0
    %10906 = vmatpush1.msra.mxu0 0.0
    %10907 = vmatprep.subr.mxu0 0.0
    %10908 = vmatpush1.msra.mxu0 0.0
    %10909 = vmatprep.subr.mxu0 0.0
    %10910 = vmatpush1.msra.mxu0 0.0
    %10911 = vmatprep.subr.mxu0 0.0
    %10912 = vmatpush1.msra.mxu0 0.0
    %10913 = vmatprep.subr.mxu0 0.0
    %10914 = vmatpush1.msra.mxu0 0.0
    %10915 = vmatprep.mubr.f32.mxu0 0.0
    %10916 = vmatmul.mubr.f32.gmra.mrb[0].mxu0 %v10827
    %v10917 = vpop.f32.mrb[0].mxu0
    %v10918 = vadd.f32 %v10849, %v10917
    %v10919 = vpop.f32.mrb[0].mxu0
    %10920 = vdwg.mxu0
    %v10921 = vmax.f32 %v10918, 0.0
    %v10922 = vld [vmem:[%s11] sm:$0xff]
    %v10923 = vld [vmem:[%s11 + $0x8] sm:$0xff]
    %v10924 = vld [vmem:[%s11 + $0x10] sm:$0xff]
    %v10925 = vld [vmem:[%s11 + $0x18] sm:$0xff]
    %v10926 = vld [vmem:[%s11 + $0x20] sm:$0xff]
    %v10927 = vld [vmem:[%s11 + $0x28] sm:$0xff]
    %v10928 = vld [vmem:[%s11 + $0x30] sm:$0xff]
    %v10929 = vld [vmem:[%s11 + $0x38] sm:$0xff]
    %v10930 = vld [vmem:[%s11 + $0x40] sm:$0xff]
    %v10931 = vld [vmem:[%s11 + $0x48] sm:$0xff]
    %v10932 = vld [vmem:[%s11 + $0x50] sm:$0xff]
    %v10933 = vld [vmem:[%s11 + $0x58] sm:$0xff]
    %v10934 = vld [vmem:[%s11 + $0x60] sm:$0xff]
    %v10935 = vld [vmem:[%s11 + $0x68] sm:$0xff]
    %v10936 = vld [vmem:[%s11 + $0x70] sm:$0xff]
    %v10937 = vld [vmem:[%s11 + $0x78] sm:$0xff]
    %v10938 = vld [vmem:[#allocation16] sm:$0x1]
    %v10940 = vlaneseq
    %v10941 = vshrl.u32 %v10940, 7
    %v10942 = vsub.s32 0, %v10941
    %v10943 = vrot.slane %v10938, %v10942
    %10945 = vmatprep.subr.mxu0 0.0
    %10946 = vmatpush1.msra.mxu0 %v10922
    %10947 = vmatprep.subr.mxu0 0.0
    %10948 = vmatpush1.msra.mxu0 %v10923
    %10949 = vmatprep.subr.mxu0 0.0
    %10950 = vmatpush1.msra.mxu0 %v10924
    %10951 = vmatprep.subr.mxu0 0.0
    %10952 = vmatpush1.msra.mxu0 %v10925
    %10953 = vmatprep.subr.mxu0 0.0
    %10954 = vmatpush1.msra.mxu0 %v10926
    %10955 = vmatprep.subr.mxu0 0.0
    %10956 = vmatpush1.msra.mxu0 %v10927
    %10957 = vmatprep.subr.mxu0 0.0
    %10958 = vmatpush1.msra.mxu0 %v10928
    %10959 = vmatprep.subr.mxu0 0.0
    %10960 = vmatpush1.msra.mxu0 %v10929
    %10961 = vmatprep.subr.mxu0 0.0
    %10962 = vmatpush1.msra.mxu0 %v10930
    %10963 = vmatprep.subr.mxu0 0.0
    %10964 = vmatpush1.msra.mxu0 %v10931
    %10965 = vmatprep.subr.mxu0 0.0
    %10966 = vmatpush1.msra.mxu0 %v10932
    %10967 = vmatprep.subr.mxu0 0.0
    %10968 = vmatpush1.msra.mxu0 %v10933
    %10969 = vmatprep.subr.mxu0 0.0
    %10970 = vmatpush1.msra.mxu0 %v10934
    %10971 = vmatprep.subr.mxu0 0.0
    %10972 = vmatpush1.msra.mxu0 %v10935
    %10973 = vmatprep.subr.mxu0 0.0
    %10974 = vmatpush1.msra.mxu0 %v10936
    %10975 = vmatprep.subr.mxu0 0.0
    %10976 = vmatpush1.msra.mxu0 %v10937
    %10977 = vmatprep.subr.mxu0 0.0
    %10978 = vmatpush1.msra.mxu0 0.0
    %10979 = vmatprep.subr.mxu0 0.0
    %10980 = vmatpush1.msra.mxu0 0.0
    %10981 = vmatprep.subr.mxu0 0.0
    %10982 = vmatpush1.msra.mxu0 0.0
    %10983 = vmatprep.subr.mxu0 0.0
    %10984 = vmatpush1.msra.mxu0 0.0
    %10985 = vmatprep.subr.mxu0 0.0
    %10986 = vmatpush1.msra.mxu0 0.0
    %10987 = vmatprep.subr.mxu0 0.0
    %10988 = vmatpush1.msra.mxu0 0.0
    %10989 = vmatprep.subr.mxu0 0.0
    %10990 = vmatpush1.msra.mxu0 0.0
    %10991 = vmatprep.subr.mxu0 0.0
    %10992 = vmatpush1.msra.mxu0 0.0
    %10993 = vmatprep.subr.mxu0 0.0
    %10994 = vmatpush1.msra.mxu0 0.0
    %10995 = vmatprep.subr.mxu0 0.0
    %10996 = vmatpush1.msra.mxu0 0.0
    %10997 = vmatprep.subr.mxu0 0.0
    %10998 = vmatpush1.msra.mxu0 0.0
    %10999 = vmatprep.subr.mxu0 0.0
    %11000 = vmatpush1.msra.mxu0 0.0
    %11001 = vmatprep.subr.mxu0 0.0
    %11002 = vmatpush1.msra.mxu0 0.0
    %11003 = vmatprep.subr.mxu0 0.0
    %11004 = vmatpush1.msra.mxu0 0.0
    %11005 = vmatprep.subr.mxu0 0.0
    %11006 = vmatpush1.msra.mxu0 0.0
    %11007 = vmatprep.subr.mxu0 0.0
    %11008 = vmatpush1.msra.mxu0 0.0
    %11009 = vmatprep.mubr.f32.mxu0 0.0
    %11010 = vmatmul.mubr.f32.gmra.mrb[0].mxu0 %v10921
    %v11011 = vpop.f32.mrb[0].mxu0
    %v11012 = vadd.f32 %v10943, %v11011
    %v11013 = vpop.f32.mrb[0].mxu0
    %11014 = vdwg.mxu0
    %11015 = vst.msk [vmem:[%s13] sm:$0xff] %vm10753, %v10741
    %11016 = vst [vmem:[%s14] sm:$0xff] %v10921
    %vm11017 = vcmask 80896
    %11018 = vst.msk [vmem:[%s15] sm:$0xff] %vm11017, %v11012
    // Predicated region
    $region94: #{causal_rep_forward.1} parent=1 // pred_check
      _
    $region95: #{causal_rep_forward.1} parent=1 // pred_check_branch
      %11020 = sbr.rel (0) target = $region97
    $region96: #{causal_rep_forward.1} parent=1 // pred_region
      _
    $region97: #{causal_rep_forward.1} parent=1 // pred_fallthru
      _
    // Predicated region
    $region98: #{causal_rep_forward.1} parent=1 // pred_check
      _
    $region99: #{causal_rep_forward.1} parent=1 // pred_check_branch
      %11022 = sbr.rel (0) target = $region101
    $region100: #{causal_rep_forward.1} parent=1 // pred_region
      _
    $region101: #{causal_rep_forward.1} parent=1 // pred_fallthru
      _
    // Predicated region
    $region102: #{causal_rep_forward.1} parent=1 // pred_check
      _
    $region103: #{causal_rep_forward.1} parent=1 // pred_check_branch
      %11024 = sbr.rel (0) target = $region105
    $region104: #{causal_rep_forward.1} parent=1 // pred_region
      _
    $region105: #{causal_rep_forward.1} parent=1 // pred_fallthru
      _
    // Predicated region
    $region106: #{causal_rep_forward.1} parent=1 // pred_check
      _
    $region107: #{causal_rep_forward.1} parent=1 // pred_check_branch
      %11026 = sbr.rel (0) target = $region109
    $region108: #{causal_rep_forward.1} parent=1 // pred_region
      _
    $region109: #{causal_rep_forward.1} parent=1 // pred_fallthru
      _
    // Predicated region
    $region110: #{causal_rep_forward.1} parent=1 // pred_check
      _
    $region111: #{causal_rep_forward.1} parent=1 // pred_check_branch
      %11028 = sbr.rel (0) target = $region113
    $region112: #{causal_rep_forward.1} parent=1 // pred_region
      _
    $region113: #{causal_rep_forward.1} parent=1 // pred_fallthru
      _
    // Predicated region
    $region114: #{causal_rep_forward.1} parent=1 // pred_check
      _
    $region115: #{causal_rep_forward.1} parent=1 // pred_check_branch
      %11030 = sbr.rel (0) target = $region117
    $region116: #{causal_rep_forward.1} parent=1 // pred_region
      _
    $region117: #{causal_rep_forward.1} parent=1 // pred_fallthru
      _
    %11031 = vsyncpa [#allocation3], 1
    %11032 = vsyncpa [#allocation5], 1
    %11033 = vsyncpa [#allocation8], 1
    %11034 = vsyncpa [#allocation11], 1
    %11035 = vsyncpa [#allocation14], 1
    %11036 = vsyncpa [#allocation17], 1

</llo_original>
